<compile_context>
chip_gen: v5e
topology: v5e:2x2
jax: 0.10.0
libtpu: 0.0.40
codegen_flags: <defaults>
</compile_context>

<pallas_src>
import functools

import jax
import jax.numpy as jnp
from jax.experimental import pallas as pl
from jax.experimental.pallas import tpu as pltpu


# packed per-layer vector rows: [n1g, n1b, bproj, n2g, n2b, b2]
_ROW_N1G, _ROW_N1B, _ROW_BPROJ, _ROW_N2G, _ROW_N2B, _ROW_B2 = range(6)


# ----------------------------- in-kernel helpers -----------------------------

def _layernorm(x, g, b, eps=1e-5):
    # x: (R, D) f32; g/b: (1, D).  nn.LayerNorm: biased variance, eps=1e-5.
    mu = jnp.mean(x, axis=-1, keepdims=True)
    xc = x - mu
    var = jnp.mean(xc * xc, axis=-1, keepdims=True)
    return xc * jax.lax.rsqrt(var + eps) * g + b


def _gelu(x):
    # exact (erf) GELU, matching torch.nn.GELU() default
    return 0.5 * x * (1.0 + jax.lax.erf(x * jnp.float32(0.7071067811865476)))


# ------------------------------- fused kernel --------------------------------

def _encoder_kernel(x_ref, wqkv_ref, wproj_ref, w1_ref, w2_ref,
                    vec_ref, b1_ref, fng_ref, fnb_ref,
                    o_ref, *, num_heads):
    layer = pl.program_id(1)
    n_layers = pl.num_programs(1)
    _, N, D = x_ref.shape            # block is (1, N, D); one batch element
    H = num_heads
    hd = D // H
    scale = jnp.float32(hd ** -0.5)

    # The output block has a constant block index along the depth axis, so it
    # is the VMEM-resident carrier of the residual stream (no extra scratch,
    # single HBM writeback at the end of the depth sweep).
    @pl.when(layer == 0)
    def _():
        o_ref[...] = x_ref[...].astype(o_ref.dtype)

    x = o_ref[...].reshape(N, D).astype(jnp.float32)          # (N, D) f32

    # packed per-layer vectors (6, D): cheap sublane row slices
    n1g = vec_ref[_ROW_N1G:_ROW_N1G + 1, :]
    n1b = vec_ref[_ROW_N1B:_ROW_N1B + 1, :]
    bproj = vec_ref[_ROW_BPROJ:_ROW_BPROJ + 1, :]
    n2g = vec_ref[_ROW_N2G:_ROW_N2G + 1, :]
    n2b = vec_ref[_ROW_N2B:_ROW_N2B + 1, :]
    b2 = vec_ref[_ROW_B2:_ROW_B2 + 1, :]

    # -------------------- attention branch --------------------
    h1 = _layernorm(x, n1g, n1b)
    qkv = jnp.dot(h1.astype(jnp.bfloat16), wqkv_ref[...],     # bf16 MXU, f32 acc
                  preferred_element_type=jnp.float32)          # (N, 3D)

    # Q: (H, N, hd).  Small per-head slice+stack (head-major qkv columns).
    qh = jnp.stack([qkv[:, h * hd:(h + 1) * hd] for h in range(H)],
                   axis=0).astype(jnp.bfloat16)                # (H, N, hd)

    # K, V: one aligned 2-D transpose of the K|V half, then tile-aligned
    # reshapes put the head axis on a leading (batch) dim with no masked lanes.
    kvT = jnp.transpose(qkv[:, D:3 * D])                       # (2D, N)
    kT = kvT[0:D, :].reshape(H, hd, N).astype(jnp.bfloat16)    # (H, hd, N)
    vT = kvT[D:2 * D, :].reshape(H, hd, N).astype(jnp.bfloat16)

    # batched matmuls with a single leading (head) batch dim
    logits = jnp.einsum('hqd,hdk->hqk', qh, kT,
                        preferred_element_type=jnp.float32) * scale   # (H, N, N)
    logits = logits - jnp.max(logits, axis=-1, keepdims=True)
    p = jnp.exp(logits)
    p = p / jnp.sum(p, axis=-1, keepdims=True)                 # exact softmax
    ctxT = jnp.einsum('hdk,hqk->hdq', vT, p.astype(jnp.bfloat16),
                      preferred_element_type=jnp.float32)      # (H, hd, N)

    # head merge: free reshape + one 2-D transpose back to token-major layout
    ctx = jnp.transpose(ctxT.reshape(D, N))                    # (N, D) f32

    attn = jnp.dot(ctx.astype(jnp.bfloat16), wproj_ref[...],
                   preferred_element_type=jnp.float32) + bproj
    x = x + attn                                               # residual 1

    # ----------------------- MLP branch ------------------------
    h2 = _layernorm(x, n2g, n2b)
    h2 = jnp.dot(h2.astype(jnp.bfloat16), w1_ref[...],
                 preferred_element_type=jnp.float32) + b1_ref[...]
    h2 = _gelu(h2)
    h2 = jnp.dot(h2.astype(jnp.bfloat16), w2_ref[...],
                 preferred_element_type=jnp.float32) + b2
    x = x + h2                                                 # residual 2

    @pl.when(layer < n_layers - 1)
    def _():
        o_ref[...] = x.reshape(1, N, D).astype(o_ref.dtype)

    # Final LayerNorm fused into the last depth step; single HBM writeback.
    @pl.when(layer == n_layers - 1)
    def _():
        y = _layernorm(x, fng_ref[...], fnb_ref[...])
        o_ref[...] = y.reshape(1, N, D).astype(o_ref.dtype)


# ------------------------------- host wrapper ---------------------------------

def transformer_encoder_co(x, params, final_norm, num_heads):
    """Fused forward pass of TransformerEncoder_co.  x: (B, N, D) float32."""
    B, N, D = x.shape
    depth = params["wqkv"].shape[0]
    hidden = params["w1"].shape[-1]
    assert D % num_heads == 0 and (D // num_heads) % 8 == 0
    assert D % 128 == 0 and N % 8 == 0

    def wspec(*dims):           # per-layer slice; leading depth axis squeezed
        nd = len(dims)
        return pl.BlockSpec((None,) + dims, lambda b, l, _nd=nd: (l,) + (0,) * _nd)

    grid_spec = pltpu.PrefetchScalarGridSpec(
        num_scalar_prefetch=0,
        grid=(B, depth),                                   # batch outer, depth inner
        in_specs=[
            pl.BlockSpec((1, N, D), lambda b, l: (b, 0, 0)),   # x (per batch elem)
            wspec(D, 3 * D),                                   # wqkv  (bf16)
            wspec(D, D),                                       # wproj (bf16)
            wspec(D, hidden),                                  # w1    (bf16)
            wspec(hidden, D),                                  # w2    (bf16)
            wspec(6, D),                                       # packed LN/bias rows
            wspec(1, hidden),                                  # b1
            pl.BlockSpec((1, D), lambda b, l: (0, 0)),         # final norm g
            pl.BlockSpec((1, D), lambda b, l: (0, 0)),         # final norm b
        ],
        out_specs=pl.BlockSpec((1, N, D), lambda b, l: (b, 0, 0)),
    )

    return pl.pallas_call(
        functools.partial(_encoder_kernel, num_heads=num_heads),
        out_shape=jax.ShapeDtypeStruct((B, N, D), x.dtype),
        grid_spec=grid_spec,
        compiler_params=pltpu.CompilerParams(
            # batch is independent -> megacore-parallel on v7x;
            # depth carries the resident residual stream -> sequential.
            dimension_semantics=("parallel", "arbitrary"),
            # plenty for the toy; fits every generation's physical VMEM.
            # (raise toward ~100 MiB on v5e/v6e for production shapes)
            vmem_limit_bytes=48 * 1024 * 1024,
        ),
    )(x, params["wqkv"], params["wproj"], params["w1"], params["w2"],
      params["vecs"], params["b1"], final_norm["g"], final_norm["b"])


def init_params(key, depth, embed_dim, mlp_ratio=4.0):
    """Matches _init_weights: trunc_normal(std=0.02) linear weights, zero
    biases, LayerNorm weight=1 / bias=0.  Matmul weights are stacked along a
    leading depth axis and stored bf16 (MXU-native, half the DMA bytes); the
    7 small per-layer vectors are packed into `vecs` (depth, 6, D) + b1.
    NOTE: weights are (in, out) for x @ W with qkv columns in timm head-major
    order [q_h0..q_hH | k_h0.. | v_h0..]; PyTorch nn.Linear stores (out, in),
    so imported checkpoints must be transposed (and qkv column order kept)."""
    hidden = int(embed_dim * mlp_ratio)

    def tn(k, shape):
        return jax.random.truncated_normal(k, -2.0, 2.0, shape, jnp.float32) * 0.02

    ks = jax.random.split(key, 4 * depth)
    wqkv = jnp.stack([tn(ks[4 * i + 0], (embed_dim, 3 * embed_dim))
                      for i in range(depth)]).astype(jnp.bfloat16)
    wproj = jnp.stack([tn(ks[4 * i + 1], (embed_dim, embed_dim))
                       for i in range(depth)]).astype(jnp.bfloat16)
    w1 = jnp.stack([tn(ks[4 * i + 2], (embed_dim, hidden))
                    for i in range(depth)]).astype(jnp.bfloat16)
    w2 = jnp.stack([tn(ks[4 * i + 3], (hidden, embed_dim))
                    for i in range(depth)]).astype(jnp.bfloat16)

    ones = jnp.ones((depth, 1, embed_dim), jnp.float32)
    zeros = jnp.zeros((depth, 1, embed_dim), jnp.float32)
    # rows: n1g, n1b, bproj, n2g, n2b, b2
    vecs = jnp.concatenate([ones, zeros, zeros, ones, zeros, zeros], axis=1)

    params = dict(wqkv=wqkv, wproj=wproj, w1=w1, w2=w2, vecs=vecs,
                  b1=jnp.zeros((depth, 1, hidden), jnp.float32))
    final_norm = dict(g=jnp.ones((1, embed_dim), jnp.float32),
                      b=jnp.zeros((1, embed_dim), jnp.float32))
    return params, final_norm


# --------------------------- pure-JAX reference -------------------------------

def _reference(x, params, final_norm, num_heads):
    B, N, D = x.shape
    H = num_heads
    hd = D // H
    depth = params["wqkv"].shape[0]

    def ln(v, g, b, eps=1e-5):
        mu = v.mean(-1, keepdims=True)
        var = ((v - mu) ** 2).mean(-1, keepdims=True)
        return (v - mu) * jax.lax.rsqrt(var + eps) * g + b

    def gelu(v):
        return 0.5 * v * (1.0 + jax.lax.erf(v * jnp.float32(0.7071067811865476)))

    for l in range(depth):
        vec = params["vecs"][l]
        n1g, n1b, bproj, n2g, n2b, b2 = (vec[i] for i in range(6))
        wqkv = params["wqkv"][l].astype(jnp.float32)
        wproj = params["wproj"][l].astype(jnp.float32)
        w1 = params["w1"][l].astype(jnp.float32)
        w2 = params["w2"][l].astype(jnp.float32)
        b1 = params["b1"][l]

        h = ln(x, n1g, n1b)
        qkv = (h @ wqkv).reshape(B, N, 3, H, hd).transpose(2, 0, 3, 1, 4)
        q, k, v = qkv[0], qkv[1], qkv[2]                       # (B, H, N, hd)
        att = jnp.einsum('bhqd,bhkd->bhqk', q, k) * (hd ** -0.5)
        att = jax.nn.softmax(att, axis=-1)
        ctx = jnp.einsum('bhqk,bhkd->bhqd', att, v)
        ctx = ctx.transpose(0, 2, 1, 3).reshape(B, N, D)
        x = x + ctx @ wproj + bproj

        h2 = ln(x, n2g, n2b)
        x = x + (gelu(h2 @ w1 + b1) @ w2 + b2)

    return ln(x, final_norm["g"][0], final_norm["b"][0])


# ------------------------------------ main ------------------------------------

if __name__ == "__main__":
    # Lane-dense toy shape: 128 tokens, D = 128 (one full lane width), hd = 32.
    B, N, D = 2, 128, 128        # batch, tokens, embed_dim
    depth, num_heads = 2, 4      # head_dim = 32, mlp hidden = 512

    key = jax.random.PRNGKey(0)
    k_x, k_p = jax.random.split(key)
    x = jax.random.normal(k_x, (B, N, D), jnp.float32)

    params, final_norm = init_params(k_p, depth, D, mlp_ratio=4.0)

    out = transformer_encoder_co(x, params, final_norm, num_heads)
    out = jax.block_until_ready(out)

    assert out.shape == (B, N, D), out.shape
    assert bool(jnp.all(jnp.isfinite(out)))

    # loose check vs f32 reference (kernel uses bf16 matmul inputs, f32 acc)
    ref = _reference(x, params, final_norm, num_heads)
    max_err = float(jnp.max(jnp.abs(out - ref)))
    assert max_err < 0.1, f"max |out - ref| = {max_err}"

    print("KERNEL_OK")
</pallas_src>

<mosaic_0001>
module attributes {stable_mosaic.version = 11 : i64} {
  func.func @_encoder_kernel(%arg0: i32, %arg1: i32, %arg2: memref<1x128x128xf32, #tpu.memory_space<vmem>>, %arg3: memref<1x128x384xbf16, #tpu.memory_space<vmem>>, %arg4: memref<1x128x128xbf16, #tpu.memory_space<vmem>>, %arg5: memref<1x128x512xbf16, #tpu.memory_space<vmem>>, %arg6: memref<1x512x128xbf16, #tpu.memory_space<vmem>>, %arg7: memref<1x6x128xf32, #tpu.memory_space<vmem>>, %arg8: memref<1x1x512xf32, #tpu.memory_space<vmem>>, %arg9: memref<1x128xf32, #tpu.memory_space<vmem>>, %arg10: memref<1x128xf32, #tpu.memory_space<vmem>>, %arg11: memref<1x128x128xf32, #tpu.memory_space<vmem>>) attributes {dimension_semantics = [#tpu.dimension_semantics<parallel>, #tpu.dimension_semantics<arbitrary>], iteration_bounds = array<i64: 2, 2>, scalar_prefetch = 0 : i64, scratch_operands = 0 : i64, tpu.core_type = #tpu.core_type<tc>, window_params = [{transform_indices = @transform_0, window_bounds = array<i64: 1, 128, 128>}, {transform_indices = @transform_1, window_bounds = array<i64: 1, 128, 384>}, {transform_indices = @transform_2, window_bounds = array<i64: 1, 128, 128>}, {transform_indices = @transform_3, window_bounds = array<i64: 1, 128, 512>}, {transform_indices = @transform_4, window_bounds = array<i64: 1, 512, 128>}, {transform_indices = @transform_5, window_bounds = array<i64: 1, 6, 128>}, {transform_indices = @transform_6, window_bounds = array<i64: 1, 1, 512>}, {pipeline_mode = #tpu.pipeline_mode<synchronous>, transform_indices = @transform_7, window_bounds = array<i64: 1, 128>}, {pipeline_mode = #tpu.pipeline_mode<synchronous>, transform_indices = @transform_8, window_bounds = array<i64: 1, 128>}, {transform_indices = @transform_9, window_bounds = array<i64: 1, 128, 128>}]} {
    %c0_i32 = arith.constant 0 : i32
    %0 = arith.cmpi eq, %arg1, %c0_i32 : i32
    %1 = arith.extui %0 : i1 to i32
    %c0_i32_0 = arith.constant 0 : i32
    %2 = arith.cmpi ne, %1, %c0_i32_0 : i32
    scf.if %2 {
      %c0_55 = arith.constant 0 : index
      %c0_56 = arith.constant 0 : index
      %c0_57 = arith.constant 0 : index
      %131 = vector.load %arg2[%c0_55, %c0_56, %c0_57] : memref<1x128x128xf32, #tpu.memory_space<vmem>>, vector<1x128x128xf32>
      %c0_58 = arith.constant 0 : index
      %c0_59 = arith.constant 0 : index
      %c0_60 = arith.constant 0 : index
      %132 = vector.load %arg11[%c0_58, %c0_59, %c0_60] : memref<1x128x128xf32, #tpu.memory_space<vmem>>, vector<1x128x128xf32>
      tpu.vector_store %arg11[%c0_58, %c0_59, %c0_60], %131 {strides = array<i32>} : memref<1x128x128xf32, #tpu.memory_space<vmem>>, vector<1x128x128xf32>,
    } else {
    }
    %c0 = arith.constant 0 : index
    %c0_1 = arith.constant 0 : index
    %c0_2 = arith.constant 0 : index
    %3 = vector.load %arg11[%c0, %c0_1, %c0_2] : memref<1x128x128xf32, #tpu.memory_space<vmem>>, vector<1x128x128xf32>
    %4 = vector.shape_cast %3 : vector<1x128x128xf32> to vector<128x128xf32>
    %c0_3 = arith.constant 0 : index
    %c0_4 = arith.constant 0 : index
    %c0_5 = arith.constant 0 : index
    %5 = vector.load %arg7[%c0_3, %c0_4, %c0_5] : memref<1x6x128xf32, #tpu.memory_space<vmem>>, vector<1x1x128xf32>
    %6 = vector.shape_cast %5 : vector<1x1x128xf32> to vector<1x128xf32>
    %c0_6 = arith.constant 0 : index
    %c1 = arith.constant 1 : index
    %c0_7 = arith.constant 0 : index
    %7 = vector.load %arg7[%c0_6, %c1, %c0_7] : memref<1x6x128xf32, #tpu.memory_space<vmem>>, vector<1x1x128xf32>
    %8 = vector.shape_cast %7 : vector<1x1x128xf32> to vector<1x128xf32>
    %c0_8 = arith.constant 0 : index
    %c2 = arith.constant 2 : index
    %c0_9 = arith.constant 0 : index
    %9 = vector.load %arg7[%c0_8, %c2, %c0_9] : memref<1x6x128xf32, #tpu.memory_space<vmem>>, vector<1x1x128xf32>
    %10 = vector.shape_cast %9 : vector<1x1x128xf32> to vector<1x128xf32>
    %c0_10 = arith.constant 0 : index
    %c3 = arith.constant 3 : index
    %c0_11 = arith.constant 0 : index
    %11 = vector.load %arg7[%c0_10, %c3, %c0_11] : memref<1x6x128xf32, #tpu.memory_space<vmem>>, vector<1x1x128xf32>
    %12 = vector.shape_cast %11 : vector<1x1x128xf32> to vector<1x128xf32>
    %c0_12 = arith.constant 0 : index
    %c4 = arith.constant 4 : index
    %c0_13 = arith.constant 0 : index
    %13 = vector.load %arg7[%c0_12, %c4, %c0_13] : memref<1x6x128xf32, #tpu.memory_space<vmem>>, vector<1x1x128xf32>
    %14 = vector.shape_cast %13 : vector<1x1x128xf32> to vector<1x128xf32>
    %c0_14 = arith.constant 0 : index
    %c5 = arith.constant 5 : index
    %c0_15 = arith.constant 0 : index
    %15 = vector.load %arg7[%c0_14, %c5, %c0_15] : memref<1x6x128xf32, #tpu.memory_space<vmem>>, vector<1x1x128xf32>
    %16 = vector.shape_cast %15 : vector<1x1x128xf32> to vector<1x128xf32>
    %cst = arith.constant dense<0.000000e+00> : vector<128xf32>
    %17 = vector.multi_reduction <add>, %4, %cst [1] : vector<128x128xf32> to vector<128xf32>
    %18 = vector.shape_cast %17 : vector<128xf32> to vector<128x1xf32>
    %cst_16 = arith.constant 1.280000e+02 : f32
    %19 = vector.broadcast %cst_16 : f32 to vector<128x1xf32>
    %20 = arith.divf %18, %19 : vector<128x1xf32>
    %21 = vector.broadcast %20 : vector<128x1xf32> to vector<128x128xf32>
    %22 = arith.subf %4, %21 : vector<128x128xf32>
    %23 = arith.mulf %22, %22 : vector<128x128xf32>
    %cst_17 = arith.constant dense<0.000000e+00> : vector<128xf32>
    %24 = vector.multi_reduction <add>, %23, %cst_17 [1] : vector<128x128xf32> to vector<128xf32>
    %25 = vector.shape_cast %24 : vector<128xf32> to vector<128x1xf32>
    %cst_18 = arith.constant 1.280000e+02 : f32
    %26 = vector.broadcast %cst_18 : f32 to vector<128x1xf32>
    %27 = arith.divf %25, %26 : vector<128x1xf32>
    %cst_19 = arith.constant 9.99999974E-6 : f32
    %28 = vector.broadcast %cst_19 : f32 to vector<128x1xf32>
    %29 = arith.addf %27, %28 : vector<128x1xf32>
    %30 = math.rsqrt %29 : vector<128x1xf32>
    %31 = vector.broadcast %30 : vector<128x1xf32> to vector<128x128xf32>
    %32 = arith.mulf %22, %31 : vector<128x128xf32>
    %33 = vector.broadcast %6 : vector<1x128xf32> to vector<128x128xf32>
    %34 = arith.mulf %32, %33 : vector<128x128xf32>
    %35 = vector.broadcast %8 : vector<1x128xf32> to vector<128x128xf32>
    %36 = arith.addf %34, %35 : vector<128x128xf32>
    %37 = arith.truncf %36 : vector<128x128xf32> to vector<128x128xbf16>
    %c0_20 = arith.constant 0 : index
    %c0_21 = arith.constant 0 : index
    %c0_22 = arith.constant 0 : index
    %38 = vector.load %arg3[%c0_20, %c0_21, %c0_22] : memref<1x128x384xbf16, #tpu.memory_space<vmem>>, vector<1x128x384xbf16>
    %39 = vector.shape_cast %38 : vector<1x128x384xbf16> to vector<128x384xbf16>
    %cst_23 = arith.constant dense<0.000000e+00> : vector<128x384xf32>
    %40 = tpu.matmul %37, %39, %cst_23 {dimension_numbers = #tpu.dot_dimension_numbers<[1], [0], [0], [1], [0, 0, 1, 1], [], []>} : vector<128x128xbf16>, vector<128x384xbf16>, vector<128x384xf32> -> vector<128x384xf32>
    %41 = vector.extract_strided_slice %40 {offsets = [0, 0], sizes = [128, 32], strides = [1, 1]} : vector<128x384xf32> to vector<128x32xf32>
    %42 = vector.extract_strided_slice %40 {offsets = [0, 32], sizes = [128, 32], strides = [1, 1]} : vector<128x384xf32> to vector<128x32xf32>
    %43 = vector.extract_strided_slice %40 {offsets = [0, 64], sizes = [128, 32], strides = [1, 1]} : vector<128x384xf32> to vector<128x32xf32>
    %44 = vector.extract_strided_slice %40 {offsets = [0, 96], sizes = [128, 32], strides = [1, 1]} : vector<128x384xf32> to vector<128x32xf32>
    %45 = vector.shape_cast %41 : vector<128x32xf32> to vector<1x128x32xf32>
    %46 = vector.shape_cast %42 : vector<128x32xf32> to vector<1x128x32xf32>
    %47 = vector.shape_cast %43 : vector<128x32xf32> to vector<1x128x32xf32>
    %48 = vector.shape_cast %44 : vector<128x32xf32> to vector<1x128x32xf32>
    %49 = tpu.concatenate %45, %46, %47, %48 in 0 : vector<1x128x32xf32>, vector<1x128x32xf32>, vector<1x128x32xf32>, vector<1x128x32xf32> -> vector<4x128x32xf32>
    %50 = arith.truncf %49 : vector<4x128x32xf32> to vector<4x128x32xbf16>
    %51 = vector.extract_strided_slice %40 {offsets = [0, 128], sizes = [128, 256], strides = [1, 1]} : vector<128x384xf32> to vector<128x256xf32>
    %52 = tpu.transpose %51, [1, 0] : vector<128x256xf32> -> vector<256x128xf32>
    %53 = vector.extract_strided_slice %52 {offsets = [0, 0], sizes = [128, 128], strides = [1, 1]} : vector<256x128xf32> to vector<128x128xf32>
    %54 = vector.shape_cast %53 : vector<128x128xf32> to vector<4x32x128xf32>
    %55 = arith.truncf %54 : vector<4x32x128xf32> to vector<4x32x128xbf16>
    %56 = vector.extract_strided_slice %52 {offsets = [128, 0], sizes = [128, 128], strides = [1, 1]} : vector<256x128xf32> to vector<128x128xf32>
    %57 = vector.shape_cast %56 : vector<128x128xf32> to vector<4x32x128xf32>
    %58 = arith.truncf %57 : vector<4x32x128xf32> to vector<4x32x128xbf16>
    "tpu.trace_start"() <{level = 10 : i32, message = "hqd,hdk->hqk"}> : () -> ()
    %cst_24 = arith.constant dense<0.000000e+00> : vector<4x128x128xf32>
    %59 = tpu.matmul %50, %55, %cst_24 {dimension_numbers = #tpu.dot_dimension_numbers<[2], [1], [1], [2], [0, 0, 0, 1, 1, 2], [0], [0]>} : vector<4x128x32xbf16>, vector<4x32x128xbf16>, vector<4x128x128xf32> -> vector<4x128x128xf32>
    "tpu.trace_stop"() : () -> ()
    %cst_25 = arith.constant 0.176776692 : f32
    %60 = vector.broadcast %cst_25 : f32 to vector<4x128x128xf32>
    %61 = arith.mulf %59, %60 : vector<4x128x128xf32>
    %cst_26 = arith.constant dense<0xFF800000> : vector<4x128xf32>
    %62 = vector.multi_reduction <maximumf>, %61, %cst_26 [2] : vector<4x128x128xf32> to vector<4x128xf32>
    %63 = vector.shape_cast %62 : vector<4x128xf32> to vector<4x128x1xf32>
    %64 = vector.broadcast %63 : vector<4x128x1xf32> to vector<4x128x128xf32>
    %65 = arith.subf %61, %64 : vector<4x128x128xf32>
    %66 = math.exp %65 : vector<4x128x128xf32>
    %cst_27 = arith.constant dense<0.000000e+00> : vector<4x128xf32>
    %67 = vector.multi_reduction <add>, %66, %cst_27 [2] : vector<4x128x128xf32> to vector<4x128xf32>
    %68 = vector.shape_cast %67 : vector<4x128xf32> to vector<4x128x1xf32>
    %69 = vector.broadcast %68 : vector<4x128x1xf32> to vector<4x128x128xf32>
    %70 = arith.divf %66, %69 : vector<4x128x128xf32>
    %71 = arith.truncf %70 : vector<4x128x128xf32> to vector<4x128x128xbf16>
    "tpu.trace_start"() <{level = 10 : i32, message = "hdk,hqk->hdq"}> : () -> ()
    %cst_28 = arith.constant dense<0.000000e+00> : vector<4x32x128xf32>
    %72 = tpu.matmul %58, %71, %cst_28 {dimension_numbers = #tpu.dot_dimension_numbers<[2], [2], [1], [1], [0, 0, 0, 1, 1, 1], [0], [0]>} : vector<4x32x128xbf16>, vector<4x128x128xbf16>, vector<4x32x128xf32> -> vector<4x32x128xf32>
    "tpu.trace_stop"() : () -> ()
    %73 = vector.shape_cast %72 : vector<4x32x128xf32> to vector<128x128xf32>
    %74 = tpu.transpose %73, [1, 0] : vector<128x128xf32> -> vector<128x128xf32>
    %75 = arith.truncf %74 : vector<128x128xf32> to vector<128x128xbf16>
    %c0_29 = arith.constant 0 : index
    %c0_30 = arith.constant 0 : index
    %c0_31 = arith.constant 0 : index
    %76 = vector.load %arg4[%c0_29, %c0_30, %c0_31] : memref<1x128x128xbf16, #tpu.memory_space<vmem>>, vector<1x128x128xbf16>
    %77 = vector.shape_cast %76 : vector<1x128x128xbf16> to vector<128x128xbf16>
    %cst_32 = arith.constant dense<0.000000e+00> : vector<128x128xf32>
    %78 = tpu.matmul %75, %77, %cst_32 {dimension_numbers = #tpu.dot_dimension_numbers<[1], [0], [0], [1], [0, 0, 1, 1], [], []>} : vector<128x128xbf16>, vector<128x128xbf16>, vector<128x128xf32> -> vector<128x128xf32>
    %79 = vector.broadcast %10 : vector<1x128xf32> to vector<128x128xf32>
    %80 = arith.addf %78, %79 : vector<128x128xf32>
    %81 = arith.addf %4, %80 : vector<128x128xf32>
    %cst_33 = arith.constant dense<0.000000e+00> : vector<128xf32>
    %82 = vector.multi_reduction <add>, %81, %cst_33 [1] : vector<128x128xf32> to vector<128xf32>
    %83 = vector.shape_cast %82 : vector<128xf32> to vector<128x1xf32>
    %cst_34 = arith.constant 1.280000e+02 : f32
    %84 = vector.broadcast %cst_34 : f32 to vector<128x1xf32>
    %85 = arith.divf %83, %84 : vector<128x1xf32>
    %86 = vector.broadcast %85 : vector<128x1xf32> to vector<128x128xf32>
    %87 = arith.subf %81, %86 : vector<128x128xf32>
    %88 = arith.mulf %87, %87 : vector<128x128xf32>
    %cst_35 = arith.constant dense<0.000000e+00> : vector<128xf32>
    %89 = vector.multi_reduction <add>, %88, %cst_35 [1] : vector<128x128xf32> to vector<128xf32>
    %90 = vector.shape_cast %89 : vector<128xf32> to vector<128x1xf32>
    %cst_36 = arith.constant 1.280000e+02 : f32
    %91 = vector.broadcast %cst_36 : f32 to vector<128x1xf32>
    %92 = arith.divf %90, %91 : vector<128x1xf32>
    %cst_37 = arith.constant 9.99999974E-6 : f32
    %93 = vector.broadcast %cst_37 : f32 to vector<128x1xf32>
    %94 = arith.addf %92, %93 : vector<128x1xf32>
    %95 = math.rsqrt %94 : vector<128x1xf32>
    %96 = vector.broadcast %95 : vector<128x1xf32> to vector<128x128xf32>
    %97 = arith.mulf %87, %96 : vector<128x128xf32>
    %98 = vector.broadcast %12 : vector<1x128xf32> to vector<128x128xf32>
    %99 = arith.mulf %97, %98 : vector<128x128xf32>
    %100 = vector.broadcast %14 : vector<1x128xf32> to vector<128x128xf32>
    %101 = arith.addf %99, %100 : vector<128x128xf32>
    %102 = arith.truncf %101 : vector<128x128xf32> to vector<128x128xbf16>
    %c0_38 = arith.constant 0 : index
    %c0_39 = arith.constant 0 : index
    %c0_40 = arith.constant 0 : index
    %103 = vector.load %arg5[%c0_38, %c0_39, %c0_40] : memref<1x128x512xbf16, #tpu.memory_space<vmem>>, vector<1x128x512xbf16>
    %104 = vector.shape_cast %103 : vector<1x128x512xbf16> to vector<128x512xbf16>
    %cst_41 = arith.constant dense<0.000000e+00> : vector<128x512xf32>
    %105 = tpu.matmul %102, %104, %cst_41 {dimension_numbers = #tpu.dot_dimension_numbers<[1], [0], [0], [1], [0, 0, 1, 1], [], []>} : vector<128x128xbf16>, vector<128x512xbf16>, vector<128x512xf32> -> vector<128x512xf32>
    %c0_42 = arith.constant 0 : index
    %c0_43 = arith.constant 0 : index
    %c0_44 = arith.constant 0 : index
    %106 = vector.load %arg8[%c0_42, %c0_43, %c0_44] : memref<1x1x512xf32, #tpu.memory_space<vmem>>, vector<1x1x512xf32>
    %107 = vector.shape_cast %106 : vector<1x1x512xf32> to vector<1x512xf32>
    %108 = vector.broadcast %107 : vector<1x512xf32> to vector<128x512xf32>
    %109 = arith.addf %105, %108 : vector<128x512xf32>
    %cst_45 = arith.constant 5.000000e-01 : f32
    %110 = vector.broadcast %cst_45 : f32 to vector<128x512xf32>
    %111 = arith.mulf %110, %109 : vector<128x512xf32>
    %cst_46 = arith.constant 0.707106769 : f32
    %112 = vector.broadcast %cst_46 : f32 to vector<128x512xf32>
    %113 = arith.mulf %109, %112 : vector<128x512xf32>
    %114 = math.erf %113 : vector<128x512xf32>
    %cst_47 = arith.constant 1.000000e+00 : f32
    %115 = vector.broadcast %cst_47 : f32 to vector<128x512xf32>
    %116 = arith.addf %115, %114 : vector<128x512xf32>
    %117 = arith.mulf %111, %116 : vector<128x512xf32>
    %118 = arith.truncf %117 : vector<128x512xf32> to vector<128x512xbf16>
    %c0_48 = arith.constant 0 : index
    %c0_49 = arith.constant 0 : index
    %c0_50 = arith.constant 0 : index
    %119 = vector.load %arg6[%c0_48, %c0_49, %c0_50] : memref<1x512x128xbf16, #tpu.memory_space<vmem>>, vector<1x512x128xbf16>
    %120 = vector.shape_cast %119 : vector<1x512x128xbf16> to vector<512x128xbf16>
    %cst_51 = arith.constant dense<0.000000e+00> : vector<128x128xf32>
    %121 = tpu.matmul %118, %120, %cst_51 {dimension_numbers = #tpu.dot_dimension_numbers<[1], [0], [0], [1], [0, 0, 1, 1], [], []>} : vector<128x512xbf16>, vector<512x128xbf16>, vector<128x128xf32> -> vector<128x128xf32>
    %122 = vector.broadcast %16 : vector<1x128xf32> to vector<128x128xf32>
    %123 = arith.addf %121, %122 : vector<128x128xf32>
    %124 = arith.addf %81, %123 : vector<128x128xf32>
    %c1_i32 = arith.constant 1 : i32
    %125 = arith.cmpi slt, %arg1, %c1_i32 : i32
    %126 = arith.extui %125 : i1 to i32
    %c0_i32_52 = arith.constant 0 : i32
    %127 = arith.cmpi ne, %126, %c0_i32_52 : i32
    scf.if %127 {
      %131 = vector.shape_cast %124 : vector<128x128xf32> to vector<1x128x128xf32>
      %c0_55 = arith.constant 0 : index
      %c0_56 = arith.constant 0 : index
      %c0_57 = arith.constant 0 : index
      %132 = vector.load %arg11[%c0_55, %c0_56, %c0_57] : memref<1x128x128xf32, #tpu.memory_space<vmem>>, vector<1x128x128xf32>
      tpu.vector_store %arg11[%c0_55, %c0_56, %c0_57], %131 {strides = array<i32>} : memref<1x128x128xf32, #tpu.memory_space<vmem>>, vector<1x128x128xf32>,
    } else {
    }
    %c1_i32_53 = arith.constant 1 : i32
    %128 = arith.cmpi eq, %arg1, %c1_i32_53 : i32
    %129 = arith.extui %128 : i1 to i32
    %c0_i32_54 = arith.constant 0 : i32
    %130 = arith.cmpi ne, %129, %c0_i32_54 : i32
    scf.if %130 {
      %c0_55 = arith.constant 0 : index
      %c0_56 = arith.constant 0 : index
      %131 = vector.load %arg9[%c0_55, %c0_56] : memref<1x128xf32, #tpu.memory_space<vmem>>, vector<1x128xf32>
      %c0_57 = arith.constant 0 : index
      %c0_58 = arith.constant 0 : index
      %132 = vector.load %arg10[%c0_57, %c0_58] : memref<1x128xf32, #tpu.memory_space<vmem>>, vector<1x128xf32>
      %cst_59 = arith.constant dense<0.000000e+00> : vector<128xf32>
      %133 = vector.multi_reduction <add>, %124, %cst_59 [1] : vector<128x128xf32> to vector<128xf32>
      %134 = vector.shape_cast %133 : vector<128xf32> to vector<128x1xf32>
      %cst_60 = arith.constant 1.280000e+02 : f32
      %135 = vector.broadcast %cst_60 : f32 to vector<128x1xf32>
      %136 = arith.divf %134, %135 : vector<128x1xf32>
      %137 = vector.broadcast %136 : vector<128x1xf32> to vector<128x128xf32>
      %138 = arith.subf %124, %137 : vector<128x128xf32>
      %139 = arith.mulf %138, %138 : vector<128x128xf32>
      %cst_61 = arith.constant dense<0.000000e+00> : vector<128xf32>
      %140 = vector.multi_reduction <add>, %139, %cst_61 [1] : vector<128x128xf32> to vector<128xf32>
      %141 = vector.shape_cast %140 : vector<128xf32> to vector<128x1xf32>
      %cst_62 = arith.constant 1.280000e+02 : f32
      %142 = vector.broadcast %cst_62 : f32 to vector<128x1xf32>
      %143 = arith.divf %141, %142 : vector<128x1xf32>
      %cst_63 = arith.constant 9.99999974E-6 : f32
      %144 = vector.broadcast %cst_63 : f32 to vector<128x1xf32>
      %145 = arith.addf %143, %144 : vector<128x1xf32>
      %146 = math.rsqrt %145 : vector<128x1xf32>
      %147 = vector.broadcast %146 : vector<128x1xf32> to vector<128x128xf32>
      %148 = arith.mulf %138, %147 : vector<128x128xf32>
      %149 = vector.broadcast %131 : vector<1x128xf32> to vector<128x128xf32>
      %150 = arith.mulf %148, %149 : vector<128x128xf32>
      %151 = vector.broadcast %132 : vector<1x128xf32> to vector<128x128xf32>
      %152 = arith.addf %150, %151 : vector<128x128xf32>
      %153 = vector.shape_cast %152 : vector<128x128xf32> to vector<1x128x128xf32>
      %c0_64 = arith.constant 0 : index
      %c0_65 = arith.constant 0 : index
      %c0_66 = arith.constant 0 : index
      %154 = vector.load %arg11[%c0_64, %c0_65, %c0_66] : memref<1x128x128xf32, #tpu.memory_space<vmem>>, vector<1x128x128xf32>
      tpu.vector_store %arg11[%c0_64, %c0_65, %c0_66], %153 {strides = array<i32>} : memref<1x128x128xf32, #tpu.memory_space<vmem>>, vector<1x128x128xf32>,
    } else {
    }
    return
  }
  func.func @transform_0(%arg0: i32, %arg1: i32) -> (i32, i32, i32) {
    %c0_i32 = arith.constant 0 : i32
    %c0_i32_0 = arith.constant 0 : i32
    %c0_i32_1 = arith.constant 0 : i32
    return %arg0, %c0_i32, %c0_i32_0 : i32, i32, i32
  }
  func.func @transform_1(%arg0: i32, %arg1: i32) -> (i32, i32, i32) {
    %c0_i32 = arith.constant 0 : i32
    %c0_i32_0 = arith.constant 0 : i32
    %c0_i32_1 = arith.constant 0 : i32
    return %arg1, %c0_i32, %c0_i32_0 : i32, i32, i32
  }
  func.func @transform_2(%arg0: i32, %arg1: i32) -> (i32, i32, i32) {
    %c0_i32 = arith.constant 0 : i32
    %c0_i32_0 = arith.constant 0 : i32
    %c0_i32_1 = arith.constant 0 : i32
    return %arg1, %c0_i32, %c0_i32_0 : i32, i32, i32
  }
  func.func @transform_3(%arg0: i32, %arg1: i32) -> (i32, i32, i32) {
    %c0_i32 = arith.constant 0 : i32
    %c0_i32_0 = arith.constant 0 : i32
    %c0_i32_1 = arith.constant 0 : i32
    return %arg1, %c0_i32, %c0_i32_0 : i32, i32, i32
  }
  func.func @transform_4(%arg0: i32, %arg1: i32) -> (i32, i32, i32) {
    %c0_i32 = arith.constant 0 : i32
    %c0_i32_0 = arith.constant 0 : i32
    %c0_i32_1 = arith.constant 0 : i32
    return %arg1, %c0_i32, %c0_i32_0 : i32, i32, i32
  }
  func.func @transform_5(%arg0: i32, %arg1: i32) -> (i32, i32, i32) {
    %c0_i32 = arith.constant 0 : i32
    %c0_i32_0 = arith.constant 0 : i32
    %c0_i32_1 = arith.constant 0 : i32
    return %arg1, %c0_i32, %c0_i32_0 : i32, i32, i32
  }
  func.func @transform_6(%arg0: i32, %arg1: i32) -> (i32, i32, i32) {
    %c0_i32 = arith.constant 0 : i32
    %c0_i32_0 = arith.constant 0 : i32
    %c0_i32_1 = arith.constant 0 : i32
    return %arg1, %c0_i32, %c0_i32_0 : i32, i32, i32
  }
  func.func @transform_7(%arg0: i32, %arg1: i32) -> (i32, i32) {
    %c0_i32 = arith.constant 0 : i32
    %c0_i32_0 = arith.constant 0 : i32
    %c0_i32_1 = arith.constant 0 : i32
    return %c0_i32, %c0_i32_0 : i32, i32
  }
  func.func @transform_8(%arg0: i32, %arg1: i32) -> (i32, i32) {
    %c0_i32 = arith.constant 0 : i32
    %c0_i32_0 = arith.constant 0 : i32
    %c0_i32_1 = arith.constant 0 : i32
    return %c0_i32, %c0_i32_0 : i32, i32
  }
  func.func @transform_9(%arg0: i32, %arg1: i32) -> (i32, i32, i32) {
    %c0_i32 = arith.constant 0 : i32
    %c0_i32_0 = arith.constant 0 : i32
    %c0_i32_1 = arith.constant 0 : i32
    return %arg0, %c0_i32, %c0_i32_0 : i32, i32, i32
  }
}

</mosaic_0001>

<llo_original>
// kernel: tpu_custom_call.1
$region0: #{tpu_custom_call.1}
  #allocation0 [shape = 'u32[]', space=smem, size = 0x4, offset = 0x4, fixed_abs, tag = 'smem constant byte address 0x4 - core index']
  #allocation1 [shape = 'u32[72,128]{1,0:T(1,128)}', space=vmem, size = 0x9000, scoped, tag = 'internal scratch']
  %s0 = inlined_call_operand.hbm [shape: f32[2,128,128], index: 0, kind: input, shape index: {}]
  %s1 = inlined_call_operand.hbm [shape: bf16[2,128,384], index: 1, kind: input, shape index: {}]
  %s2 = inlined_call_operand.hbm [shape: bf16[2,128,128], index: 2, kind: input, shape index: {}]
  %s3 = inlined_call_operand.hbm [shape: bf16[2,128,512], index: 3, kind: input, shape index: {}]
  %s4 = inlined_call_operand.hbm [shape: bf16[2,512,128], index: 4, kind: input, shape index: {}]
  %s5 = inlined_call_operand.vmem [shape: f32[2,6,128], index: 5, kind: input, shape index: {}]
  %s6 = inlined_call_operand.vmem [shape: f32[2,1,512], index: 6, kind: input, shape index: {}]
  %s7 = inlined_call_operand.vmem [shape: f32[1,128], index: 7, kind: input, shape index: {}]
  %s8 = inlined_call_operand.vmem [shape: f32[1,128], index: 8, kind: input, shape index: {}]
  %s9 = inlined_call_operand.hbm [shape: f32[2,128,128], index: 9, kind: output, shape index: {}]
  %s10 = sld [smem:[#allocation0]]
  $region101: #{tpu_custom_call.1} parent=0
    _
  %s12 = ssub.s32 1, %s10
  %s13 = scalar_select 0, %s12, %s10
  $region1: #{tpu_custom_call.1} parent=0
    #allocation2 [shape = 'u8[131072]{0}', space=vmem, size = 0x20000, scoped, tag = 'input window, operand 0']
    #allocation3 [shape = 's32[2]{0}', space=sflag, size = 0x8, scoped, tag = 'scoped memory for tpu_custom_call.1']
    #allocation4 [shape = 's32[2]{0}', space=sflag, size = 0x8, scoped, tag = 'scoped memory for tpu_custom_call.1']
    #allocation5 [shape = 'u8[196608]{0}', space=vmem, size = 0x30000, scoped, tag = 'input window, operand 1']
    #allocation6 [shape = 's32[2]{0}', space=sflag, size = 0x8, scoped, tag = 'scoped memory for tpu_custom_call.1']
    #allocation7 [shape = 'u8[65536]{0}', space=vmem, size = 0x10000, scoped, tag = 'input window, operand 2']
    #allocation8 [shape = 'u8[262144]{0}', space=vmem, size = 0x40000, scoped, tag = 'input window, operand 3']
    #allocation9 [shape = 's32[2]{0}', space=sflag, size = 0x8, scoped, tag = 'scoped memory for tpu_custom_call.1']
    #allocation10 [shape = 'u8[262144]{0}', space=vmem, size = 0x40000, scoped, tag = 'input window, operand 4']
    #allocation11 [shape = 'u8[131072]{0}', space=vmem, size = 0x20000, scoped, tag = 'output window, operand 0']
    %14 = vsyncpa [#allocation3], 0
    %s15 = scalar_lea.sflag [#allocation3], 1
    %16 = vsyncpa %s15, 0
    %17 = vsyncpa [#allocation6], 0
    %s18 = scalar_lea.sflag [#allocation6], 1
    %19 = vsyncpa %s18, 0
    %20 = vsyncpa [#allocation9], 0
    %s21 = scalar_lea.sflag [#allocation9], 1
    %22 = vsyncpa %s21, 0
    %23 = vsyncpa [#allocation4], 0
    %s24 = scalar_lea.sflag [#allocation4], 1
    %25 = vsyncpa %s24, 0
    loop: start=0, step=1, limit=6
    $region2: #{tpu_custom_call.1} parent=1 // loop_pre_header
      _
    $region3: #{tpu_custom_call.1} parent=1 // loop_header
      %s27 = sphi 0, %s31
      %p28 = scmp.ge.s32.totalorder %s27, 6
      %s34 = sphi 0, %s46
      %s35 = sphi 0, %s42
      %s36 = sphi 0, %s34
      %s37 = sphi 0, %s35
      %s38 = sphi 0, %s36
      %s39 = sphi 0, %s37
      %s49 = sphi 0, %s51
      %s52 = sphi 0, %s49
      %s53 = sphi 0, %s52
      %s69 = sphi 0, %s53
      %s75 = sphi 0, %s77
      %s78 = sphi 0, %s75
      %s79 = sphi 0, %s78
      %s95 = sphi 0, %s79
      %s101 = sphi 0, %s103
      %s104 = sphi 0, %s101
      %s105 = sphi 0, %s104
      %s121 = sphi 0, %s105
      %s127 = sphi 0, %s129
      %s130 = sphi 0, %s127
      %s131 = sphi 0, %s130
      %s147 = sphi 0, %s131
      %s153 = sphi 0, %s155
      %s156 = sphi 0, %s153
      %s157 = sphi 0, %s156
      %s173 = sphi 0, %s157
      %s179 = sphi 0, %s181
      %s182 = sphi 0, %s179
      %s183 = sphi 0, %s182
      %s199 = sphi 0, %s183
      %s205 = sphi 0, %s207
      %s208 = sphi 0, %s205
      %s209 = sphi 0, %s208
      %s225 = sphi 0, %s209
      %s229 = sphi 0, %s229
      %s231 = sphi 0, %s229
      %s232 = sphi 0, %s231
      %s246 = sphi 0, %s232
      %s250 = sphi 0, %s250
      %s252 = sphi 0, %s250
      %s253 = sphi 0, %s252
      %s267 = sphi 0, %s253
      %s273 = sphi 0, %s275
      %s276 = sphi 0, %s273
      %s277 = sphi 0, %s276
      %s293 = sphi 0, %s277
    $region4: #{tpu_custom_call.1} parent=1 // loop_header_branch
      %30 = sbr.rel (%p28) target = $region8
    $region5: #{tpu_custom_call.1} parent=1 // loop_body
      %s32 = ssub.s32 %s27, 1
      %s33 = ssub.s32 %s27, 2
      %s40 = sadd.s32 1, %s35
      %p41 = scmp.ge.s32.totalorder %s40, 2
      %s42 = scalar_select %p41, 0, %s40
      %s43 = sadd.s32 1, %s34
      %s44 = scalar_select %p41, %s43, %s34
      %p45 = scmp.ge.s32.totalorder %s44, 2
      %s46 = scalar_select %p45, 0, %s44
      %s47 = ssub.s32 %s34, %s46
      %p48 = scmp.eq.s32.totalorder %s47, 0
      %s50 = sadd.s32 %s49, 1
      %s51 = scalar_select %p48, %s49, %s50
      %p54 = pneg %p48
      %p55 = scmp.eq.s32.totalorder %s27, 3
      %p56 = por %p54, %p55
      %p57 = scmp.ne.s32.totalorder %s49, %s52
      %p58 = scmp.eq.s32.totalorder %s27, 0
      %p59 = por %p57, %p58
      %p60 = scmp.ne.s32.totalorder %s49, %s52
      %p61 = scmp.eq.s32.totalorder %s32, 3
      %p62 = por %p60, %p61
      %p63 = scmp.ne.s32.totalorder %s52, %s53
      %p64 = scmp.eq.s32.totalorder %s32, 0
      %p65 = por %p63, %p64
      %p66 = scmp.ne.s32.totalorder %s52, %s53
      %p67 = scmp.eq.s32.totalorder %s33, 3
      %p68 = por %p66, %p67
      %p70 = scmp.ne.s32.totalorder %s53, %s69
      %p71 = scmp.eq.s32.totalorder %s33, 0
      %p72 = por %p70, %p71
      %s73 = ssub.s32 %s35, %s42
      %p74 = scmp.eq.s32.totalorder %s73, 0
      %s76 = sadd.s32 %s75, 1
      %s77 = scalar_select %p74, %s75, %s76
      %p80 = pneg %p74
      %p81 = scmp.eq.s32.totalorder %s27, 3
      %p82 = por %p80, %p81
      %p83 = scmp.ne.s32.totalorder %s75, %s78
      %p84 = scmp.eq.s32.totalorder %s27, 0
      %p85 = por %p83, %p84
      %p86 = scmp.ne.s32.totalorder %s75, %s78
      %p87 = scmp.eq.s32.totalorder %s32, 3
      %p88 = por %p86, %p87
      %p89 = scmp.ne.s32.totalorder %s78, %s79
      %p90 = scmp.eq.s32.totalorder %s32, 0
      %p91 = por %p89, %p90
      %p92 = scmp.ne.s32.totalorder %s78, %s79
      %p93 = scmp.eq.s32.totalorder %s33, 3
      %p94 = por %p92, %p93
      %p96 = scmp.ne.s32.totalorder %s79, %s95
      %p97 = scmp.eq.s32.totalorder %s33, 0
      %p98 = por %p96, %p97
      %s99 = ssub.s32 %s35, %s42
      %p100 = scmp.eq.s32.totalorder %s99, 0
      %s102 = sadd.s32 %s101, 1
      %s103 = scalar_select %p100, %s101, %s102
      %p106 = pneg %p100
      %p107 = scmp.eq.s32.totalorder %s27, 3
      %p108 = por %p106, %p107
      %p109 = scmp.ne.s32.totalorder %s101, %s104
      %p110 = scmp.eq.s32.totalorder %s27, 0
      %p111 = por %p109, %p110
      %p112 = scmp.ne.s32.totalorder %s101, %s104
      %p113 = scmp.eq.s32.totalorder %s32, 3
      %p114 = por %p112, %p113
      %p115 = scmp.ne.s32.totalorder %s104, %s105
      %p116 = scmp.eq.s32.totalorder %s32, 0
      %p117 = por %p115, %p116
      %p118 = scmp.ne.s32.totalorder %s104, %s105
      %p119 = scmp.eq.s32.totalorder %s33, 3
      %p120 = por %p118, %p119
      %p122 = scmp.ne.s32.totalorder %s105, %s121
      %p123 = scmp.eq.s32.totalorder %s33, 0
      %p124 = por %p122, %p123
      %s125 = ssub.s32 %s35, %s42
      %p126 = scmp.eq.s32.totalorder %s125, 0
      %s128 = sadd.s32 %s127, 1
      %s129 = scalar_select %p126, %s127, %s128
      %p132 = pneg %p126
      %p133 = scmp.eq.s32.totalorder %s27, 3
      %p134 = por %p132, %p133
      %p135 = scmp.ne.s32.totalorder %s127, %s130
      %p136 = scmp.eq.s32.totalorder %s27, 0
      %p137 = por %p135, %p136
      %p138 = scmp.ne.s32.totalorder %s127, %s130
      %p139 = scmp.eq.s32.totalorder %s32, 3
      %p140 = por %p138, %p139
      %p141 = scmp.ne.s32.totalorder %s130, %s131
      %p142 = scmp.eq.s32.totalorder %s32, 0
      %p143 = por %p141, %p142
      %p144 = scmp.ne.s32.totalorder %s130, %s131
      %p145 = scmp.eq.s32.totalorder %s33, 3
      %p146 = por %p144, %p145
      %p148 = scmp.ne.s32.totalorder %s131, %s147
      %p149 = scmp.eq.s32.totalorder %s33, 0
      %p150 = por %p148, %p149
      %s151 = ssub.s32 %s35, %s42
      %p152 = scmp.eq.s32.totalorder %s151, 0
      %s154 = sadd.s32 %s153, 1
      %s155 = scalar_select %p152, %s153, %s154
      %p158 = pneg %p152
      %p159 = scmp.eq.s32.totalorder %s27, 3
      %p160 = por %p158, %p159
      %p161 = scmp.ne.s32.totalorder %s153, %s156
      %p162 = scmp.eq.s32.totalorder %s27, 0
      %p163 = por %p161, %p162
      %p164 = scmp.ne.s32.totalorder %s153, %s156
      %p165 = scmp.eq.s32.totalorder %s32, 3
      %p166 = por %p164, %p165
      %p167 = scmp.ne.s32.totalorder %s156, %s157
      %p168 = scmp.eq.s32.totalorder %s32, 0
      %p169 = por %p167, %p168
      %p170 = scmp.ne.s32.totalorder %s156, %s157
      %p171 = scmp.eq.s32.totalorder %s33, 3
      %p172 = por %p170, %p171
      %p174 = scmp.ne.s32.totalorder %s157, %s173
      %p175 = scmp.eq.s32.totalorder %s33, 0
      %p176 = por %p174, %p175
      %s177 = ssub.s32 %s35, %s42
      %p178 = scmp.eq.s32.totalorder %s177, 0
      %s180 = sadd.s32 %s179, 1
      %s181 = scalar_select %p178, %s179, %s180
      %p184 = pneg %p178
      %p185 = scmp.eq.s32.totalorder %s27, 3
      %p186 = por %p184, %p185
      %p187 = scmp.ne.s32.totalorder %s179, %s182
      %p188 = scmp.eq.s32.totalorder %s27, 0
      %p189 = por %p187, %p188
      %p190 = scmp.ne.s32.totalorder %s179, %s182
      %p191 = scmp.eq.s32.totalorder %s32, 3
      %p192 = por %p190, %p191
      %p193 = scmp.ne.s32.totalorder %s182, %s183
      %p194 = scmp.eq.s32.totalorder %s32, 0
      %p195 = por %p193, %p194
      %p196 = scmp.ne.s32.totalorder %s182, %s183
      %p197 = scmp.eq.s32.totalorder %s33, 3
      %p198 = por %p196, %p197
      %p200 = scmp.ne.s32.totalorder %s183, %s199
      %p201 = scmp.eq.s32.totalorder %s33, 0
      %p202 = por %p200, %p201
      %s203 = ssub.s32 %s35, %s42
      %p204 = scmp.eq.s32.totalorder %s203, 0
      %s206 = sadd.s32 %s205, 1
      %s207 = scalar_select %p204, %s205, %s206
      %p210 = pneg %p204
      %p211 = scmp.eq.s32.totalorder %s27, 3
      %p212 = por %p210, %p211
      %p213 = scmp.ne.s32.totalorder %s205, %s208
      %p214 = scmp.eq.s32.totalorder %s27, 0
      %p215 = por %p213, %p214
      %p216 = scmp.ne.s32.totalorder %s205, %s208
      %p217 = scmp.eq.s32.totalorder %s32, 3
      %p218 = por %p216, %p217
      %p219 = scmp.ne.s32.totalorder %s208, %s209
      %p220 = scmp.eq.s32.totalorder %s32, 0
      %p221 = por %p219, %p220
      %p222 = scmp.ne.s32.totalorder %s208, %s209
      %p223 = scmp.eq.s32.totalorder %s33, 3
      %p224 = por %p222, %p223
      %p226 = scmp.ne.s32.totalorder %s209, %s225
      %p227 = scmp.eq.s32.totalorder %s33, 0
      %p228 = por %p226, %p227
      %s230 = sadd.s32 %s229, 1
      %p233 = scmp.eq.s32.totalorder %s27, 3
      %p234 = scmp.ne.s32.totalorder %s229, %s231
      %p235 = scmp.eq.s32.totalorder %s27, 0
      %p236 = por %p234, %p235
      %p237 = scmp.ne.s32.totalorder %s229, %s231
      %p238 = scmp.eq.s32.totalorder %s32, 3
      %p239 = por %p237, %p238
      %p240 = scmp.ne.s32.totalorder %s231, %s232
      %p241 = scmp.eq.s32.totalorder %s32, 0
      %p242 = por %p240, %p241
      %p243 = scmp.ne.s32.totalorder %s231, %s232
      %p244 = scmp.eq.s32.totalorder %s33, 3
      %p245 = por %p243, %p244
      %p247 = scmp.ne.s32.totalorder %s232, %s246
      %p248 = scmp.eq.s32.totalorder %s33, 0
      %p249 = por %p247, %p248
      %s251 = sadd.s32 %s250, 1
      %p254 = scmp.eq.s32.totalorder %s27, 3
      %p255 = scmp.ne.s32.totalorder %s250, %s252
      %p256 = scmp.eq.s32.totalorder %s27, 0
      %p257 = por %p255, %p256
      %p258 = scmp.ne.s32.totalorder %s250, %s252
      %p259 = scmp.eq.s32.totalorder %s32, 3
      %p260 = por %p258, %p259
      %p261 = scmp.ne.s32.totalorder %s252, %s253
      %p262 = scmp.eq.s32.totalorder %s32, 0
      %p263 = por %p261, %p262
      %p264 = scmp.ne.s32.totalorder %s252, %s253
      %p265 = scmp.eq.s32.totalorder %s33, 3
      %p266 = por %p264, %p265
      %p268 = scmp.ne.s32.totalorder %s253, %s267
      %p269 = scmp.eq.s32.totalorder %s33, 0
      %p270 = por %p268, %p269
      %s271 = ssub.s32 %s34, %s46
      %p272 = scmp.eq.s32.totalorder %s271, 0
      %s274 = sadd.s32 %s273, 1
      %s275 = scalar_select %p272, %s273, %s274
      %p278 = pneg %p272
      %p279 = scmp.eq.s32.totalorder %s27, 3
      %p280 = por %p278, %p279
      %p281 = scmp.ne.s32.totalorder %s273, %s276
      %p282 = scmp.eq.s32.totalorder %s27, 0
      %p283 = por %p281, %p282
      %p284 = scmp.ne.s32.totalorder %s273, %s276
      %p285 = scmp.eq.s32.totalorder %s32, 3
      %p286 = por %p284, %p285
      %p287 = scmp.ne.s32.totalorder %s276, %s277
      %p288 = scmp.eq.s32.totalorder %s32, 0
      %p289 = por %p287, %p288
      %p290 = scmp.ne.s32.totalorder %s276, %s277
      %p291 = scmp.eq.s32.totalorder %s33, 3
      %p292 = por %p290, %p291
      %p294 = scmp.ne.s32.totalorder %s277, %s293
      %p295 = scmp.eq.s32.totalorder %s33, 0
      %p296 = por %p294, %p295
      %p297 = scmp.le.s32.totalorder 1, %s27
      %p298 = scmp.lt.s32.totalorder %s27, 5
      %p299 = pnand %p297, %p298
      %p300 = pneg %p299
      // Predicated region
      $region9: #{tpu_custom_call.1} parent=5 // pred_check
        _
      $region10: #{tpu_custom_call.1} parent=5 // pred_check_branch
        %302 = sbr.rel (%p299) target = $region12
      $region11: #{tpu_custom_call.1} parent=5 // pred_region
        %s303 = ssub.s32 %s27, 1
        // Predicated region
        $region13: #{tpu_custom_call.1} parent=11 // pred_check
          %p304 = pneg %p242
        $region14: #{tpu_custom_call.1} parent=11 // pred_check_branch
          %306 = sbr.rel (%p304) target = $region16
        $region15: #{tpu_custom_call.1} parent=11 // pred_region
          _
        $region16: #{tpu_custom_call.1} parent=11 // pred_fallthru
          _
        // Predicated region
        $region17: #{tpu_custom_call.1} parent=11 // pred_check
          %p307 = pneg %p263
        $region18: #{tpu_custom_call.1} parent=11 // pred_check_branch
          %309 = sbr.rel (%p307) target = $region20
        $region19: #{tpu_custom_call.1} parent=11 // pred_region
          _
        $region20: #{tpu_custom_call.1} parent=11 // pred_fallthru
          _
      $region12: #{tpu_custom_call.1} parent=5 // pred_fallthru
        _
      %p310 = scmp.lt.s32.totalorder %s27, 4
      // Predicated region
      $region21: #{tpu_custom_call.1} parent=5 // pred_check
        %p311 = pneg %p310
      $region22: #{tpu_custom_call.1} parent=5 // pred_check_branch
        %313 = sbr.rel (%p311) target = $region24
      $region23: #{tpu_custom_call.1} parent=5 // pred_region
        // Predicated region
        $region25: #{tpu_custom_call.1} parent=23 // pred_check
          %p314 = pneg %p59
        $region26: #{tpu_custom_call.1} parent=23 // pred_check_branch
          %316 = sbr.rel (%p314) target = $region28
        $region27: #{tpu_custom_call.1} parent=23 // pred_region
          %s317 = sand.u32 %s49, 1
          %s318 = scalar_lea.sflag [#allocation3], %s317
          %s319 = sand.u32 %s49, 1
          %s320 = smul.addr %s319, 128
          %s321 = scalar_lea.vmem [#allocation2], %s320
          %323 = vsyncadd %s318, 0
          %s324 = smul.addr %s34, 16
          %s325 = smul.addr %s324, 8
          %s326 = scalar_lea.hbm %s0, %s325
          %s327 = sshll.u32 %s326, 4
          %s328 = int_to_ptr.hbm [resolvable:$true] %s327
          %s329 = sshll.u32 %s321, 4
          %s330 = int_to_ptr.vmem [resolvable:$true] %s329
          %335 = dma.hbm_to_vmem [thread:$0]  %s328, 2048, %s330, %s318, 128, 128, 8
        $region28: #{tpu_custom_call.1} parent=23 // pred_fallthru
          _
        // Predicated region
        $region29: #{tpu_custom_call.1} parent=23 // pred_check
          %p336 = pneg %p85
        $region30: #{tpu_custom_call.1} parent=23 // pred_check_branch
          %338 = sbr.rel (%p336) target = $region32
        $region31: #{tpu_custom_call.1} parent=23 // pred_region
          %s339 = sand.u32 %s27, 1
          %s340 = scalar_lea.sflag [#allocation6], %s339
          %s341 = sand.u32 %s75, 1
          %s342 = smul.addr %s341, 192
          %s343 = scalar_lea.vmem [#allocation5], %s342
          %345 = vsyncadd %s340, 0
          %s346 = smul.addr %s35, 48
          %s347 = smul.addr %s346, 4
          %s348 = scalar_lea.hbm %s1, %s347
          %s349 = sshll.u32 %s348, 4
          %s350 = int_to_ptr.hbm [resolvable:$true] %s349
          %s351 = sshll.u32 %s343, 4
          %s352 = int_to_ptr.vmem [resolvable:$true] %s351
          %357 = dma.hbm_to_vmem [thread:$0]  %s350, 3072, %s352, %s340, 192, 192, 12
        $region32: #{tpu_custom_call.1} parent=23 // pred_fallthru
          _
        // Predicated region
        $region33: #{tpu_custom_call.1} parent=23 // pred_check
          %p358 = pneg %p111
        $region34: #{tpu_custom_call.1} parent=23 // pred_check_branch
          %360 = sbr.rel (%p358) target = $region36
        $region35: #{tpu_custom_call.1} parent=23 // pred_region
          %s361 = sand.u32 %s27, 1
          %s362 = scalar_lea.sflag [#allocation6], %s361
          %s363 = sand.u32 %s101, 1
          %s364 = smul.addr %s363, 64
          %s365 = scalar_lea.vmem [#allocation7], %s364
          %367 = vsyncadd %s362, 0
          %s368 = smul.addr %s35, 16
          %s369 = smul.addr %s368, 4
          %s370 = scalar_lea.hbm %s2, %s369
          %s371 = sshll.u32 %s370, 4
          %s372 = int_to_ptr.hbm [resolvable:$true] %s371
          %s373 = sshll.u32 %s365, 4
          %s374 = int_to_ptr.vmem [resolvable:$true] %s373
          %379 = dma.hbm_to_vmem [thread:$0]  %s372, 1024, %s374, %s362, 64, 64, 4
        $region36: #{tpu_custom_call.1} parent=23 // pred_fallthru
          _
        // Predicated region
        $region37: #{tpu_custom_call.1} parent=23 // pred_check
          %p380 = pneg %p137
        $region38: #{tpu_custom_call.1} parent=23 // pred_check_branch
          %382 = sbr.rel (%p380) target = $region40
        $region39: #{tpu_custom_call.1} parent=23 // pred_region
          %s383 = sand.u32 %s27, 1
          %s384 = scalar_lea.sflag [#allocation9], %s383
          %s385 = sand.u32 %s127, 1
          %s386 = smul.addr %s385, 256
          %s387 = scalar_lea.vmem [#allocation8], %s386
          %389 = vsyncadd %s384, 0
          %s390 = smul.addr %s35, 64
          %s391 = smul.addr %s390, 4
          %s392 = scalar_lea.hbm %s3, %s391
          %s393 = sshll.u32 %s392, 4
          %s394 = int_to_ptr.hbm [resolvable:$true] %s393
          %s395 = sshll.u32 %s387, 4
          %s396 = int_to_ptr.vmem [resolvable:$true] %s395
          %401 = dma.hbm_to_vmem [thread:$0]  %s394, 4096, %s396, %s384, 256, 256, 16
        $region40: #{tpu_custom_call.1} parent=23 // pred_fallthru
          _
        // Predicated region
        $region41: #{tpu_custom_call.1} parent=23 // pred_check
          %p402 = pneg %p163
        $region42: #{tpu_custom_call.1} parent=23 // pred_check_branch
          %404 = sbr.rel (%p402) target = $region44
        $region43: #{tpu_custom_call.1} parent=23 // pred_region
          %s405 = sand.u32 %s27, 1
          %s406 = scalar_lea.sflag [#allocation9], %s405
          %s407 = sand.u32 %s153, 1
          %s408 = smul.addr %s407, 256
          %s409 = scalar_lea.vmem [#allocation10], %s408
          %411 = vsyncadd %s406, 0
          %s412 = smul.addr %s35, 64
          %s413 = smul.addr %s412, 4
          %s414 = scalar_lea.hbm %s4, %s413
          %s415 = sshll.u32 %s414, 4
          %s416 = int_to_ptr.hbm [resolvable:$true] %s415
          %s417 = sshll.u32 %s409, 4
          %s418 = int_to_ptr.vmem [resolvable:$true] %s417
          %423 = dma.hbm_to_vmem [thread:$0]  %s416, 4096, %s418, %s406, 64, 64, 4
        $region44: #{tpu_custom_call.1} parent=23 // pred_fallthru
          _
        // Predicated region
        $region45: #{tpu_custom_call.1} parent=23 // pred_check
          %p424 = pneg %p189
        $region46: #{tpu_custom_call.1} parent=23 // pred_check_branch
          %426 = sbr.rel (%p424) target = $region48
        $region47: #{tpu_custom_call.1} parent=23 // pred_region
          %p427 = scmp.lt.s32.totalorder %s35, 1
          %s428 = scalar_select %p427, %s35, 1
          %s429 = smul.addr %s428, 8
          %s430 = scalar_lea.vmem %s5, %s429
        $region48: #{tpu_custom_call.1} parent=23 // pred_fallthru
          _
        // Predicated region
        $region49: #{tpu_custom_call.1} parent=23 // pred_check
          %p431 = pneg %p215
        $region50: #{tpu_custom_call.1} parent=23 // pred_check_branch
          %433 = sbr.rel (%p431) target = $region52
        $region51: #{tpu_custom_call.1} parent=23 // pred_region
          %p434 = scmp.lt.s32.totalorder %s35, 1
          %s435 = scalar_select %p434, %s35, 1
          %s436 = smul.addr %s435, 4
          %s437 = scalar_lea.vmem %s6, %s436
        $region52: #{tpu_custom_call.1} parent=23 // pred_fallthru
          _
      $region24: #{tpu_custom_call.1} parent=5 // pred_fallthru
        _
      %p438 = scmp.le.s32.totalorder 1, %s27
      %p439 = scmp.lt.s32.totalorder %s27, 5
      %p440 = pnand %p438, %p439
      %p441 = pneg %p440
      // Predicated region
      $region53: #{tpu_custom_call.1} parent=5 // pred_check
        _
      $region54: #{tpu_custom_call.1} parent=5 // pred_check_branch
        %443 = sbr.rel (%p440) target = $region56
      $region55: #{tpu_custom_call.1} parent=5 // pred_region
        %s444 = ssub.s32 %s27, 1
        %s445 = sand.u32 %s52, 1
        %s446 = scalar_lea.sflag [#allocation3], %s445
        %s447 = sand.u32 %s52, 1
        %s448 = smul.addr %s447, 128
        %s449 = scalar_lea.vmem [#allocation2], %s448
        // Predicated region
        $region57: #{tpu_custom_call.1} parent=55 // pred_check
          %p450 = pneg %p65
        $region58: #{tpu_custom_call.1} parent=55 // pred_check_branch
          %452 = sbr.rel (%p450) target = $region60
        $region59: #{tpu_custom_call.1} parent=55 // pred_region
          %454 = dma.done %s446, 2048
        $region60: #{tpu_custom_call.1} parent=55 // pred_fallthru
          _
        %s455 = sand.u32 %s32, 1
        %s456 = scalar_lea.sflag [#allocation6], %s455
        %s457 = sand.u32 %s78, 1
        %s458 = smul.addr %s457, 192
        %s459 = scalar_lea.vmem [#allocation5], %s458
        // Predicated region
        $region61: #{tpu_custom_call.1} parent=55 // pred_check
          %p460 = pneg %p91
        $region62: #{tpu_custom_call.1} parent=55 // pred_check_branch
          %462 = sbr.rel (%p460) target = $region64
        $region63: #{tpu_custom_call.1} parent=55 // pred_region
          %464 = dma.done %s456, 3072
        $region64: #{tpu_custom_call.1} parent=55 // pred_fallthru
          _
        %s465 = sand.u32 %s32, 1
        %s466 = scalar_lea.sflag [#allocation6], %s465
        %s467 = sand.u32 %s104, 1
        %s468 = smul.addr %s467, 64
        %s469 = scalar_lea.vmem [#allocation7], %s468
        // Predicated region
        $region65: #{tpu_custom_call.1} parent=55 // pred_check
          %p470 = pneg %p117
        $region66: #{tpu_custom_call.1} parent=55 // pred_check_branch
          %472 = sbr.rel (%p470) target = $region68
        $region67: #{tpu_custom_call.1} parent=55 // pred_region
          %474 = dma.done %s466, 1024
        $region68: #{tpu_custom_call.1} parent=55 // pred_fallthru
          _
        %s475 = sand.u32 %s32, 1
        %s476 = scalar_lea.sflag [#allocation9], %s475
        %s477 = sand.u32 %s130, 1
        %s478 = smul.addr %s477, 256
        %s479 = scalar_lea.vmem [#allocation8], %s478
        // Predicated region
        $region69: #{tpu_custom_call.1} parent=55 // pred_check
          %p480 = pneg %p143
        $region70: #{tpu_custom_call.1} parent=55 // pred_check_branch
          %482 = sbr.rel (%p480) target = $region72
        $region71: #{tpu_custom_call.1} parent=55 // pred_region
          %484 = dma.done %s476, 4096
        $region72: #{tpu_custom_call.1} parent=55 // pred_fallthru
          _
        %s485 = sand.u32 %s32, 1
        %s486 = scalar_lea.sflag [#allocation9], %s485
        %s487 = sand.u32 %s156, 1
        %s488 = smul.addr %s487, 256
        %s489 = scalar_lea.vmem [#allocation10], %s488
        // Predicated region
        $region73: #{tpu_custom_call.1} parent=55 // pred_check
          %p490 = pneg %p169
        $region74: #{tpu_custom_call.1} parent=55 // pred_check_branch
          %492 = sbr.rel (%p490) target = $region76
        $region75: #{tpu_custom_call.1} parent=55 // pred_region
          %494 = dma.done %s486, 4096
        $region76: #{tpu_custom_call.1} parent=55 // pred_fallthru
          _
        %s495 = sand.u32 %s52, 1
        %s496 = scalar_lea.sflag [#allocation3], %s495
        %s497 = sand.u32 %s52, 1
        %s498 = smul.addr %s497, 128
        %s499 = scalar_lea.vmem [#allocation2], %s498
        %p500 = pneg %p65
        %p501 = pneg %p62
        %s502 = sand.u32 %s32, 1
        %s503 = scalar_lea.sflag [#allocation6], %s502
        %s504 = sand.u32 %s78, 1
        %s505 = smul.addr %s504, 192
        %s506 = scalar_lea.vmem [#allocation5], %s505
        %p507 = pneg %p91
        %p508 = pneg %p88
        %s509 = sand.u32 %s32, 1
        %s510 = scalar_lea.sflag [#allocation6], %s509
        %s511 = sand.u32 %s104, 1
        %s512 = smul.addr %s511, 64
        %s513 = scalar_lea.vmem [#allocation7], %s512
        %p514 = pneg %p117
        %p515 = pneg %p114
        %s516 = sand.u32 %s32, 1
        %s517 = scalar_lea.sflag [#allocation9], %s516
        %s518 = sand.u32 %s130, 1
        %s519 = smul.addr %s518, 256
        %s520 = scalar_lea.vmem [#allocation8], %s519
        %p521 = pneg %p143
        %p522 = pneg %p140
        %s523 = sand.u32 %s32, 1
        %s524 = scalar_lea.sflag [#allocation9], %s523
        %s525 = sand.u32 %s156, 1
        %s526 = smul.addr %s525, 256
        %s527 = scalar_lea.vmem [#allocation10], %s526
        %p528 = pneg %p169
        %p529 = pneg %p166
        %p530 = scmp.lt.s32.totalorder %s37, 1
        %s531 = scalar_select %p530, %s37, 1
        %s532 = smul.addr %s531, 8
        %s533 = scalar_lea.vmem %s5, %s532
        %p534 = pneg %p195
        %p535 = pneg %p192
        %p536 = scmp.lt.s32.totalorder %s37, 1
        %s537 = scalar_select %p536, %s37, 1
        %s538 = smul.addr %s537, 4
        %s539 = scalar_lea.vmem %s6, %s538
        %p540 = pneg %p221
        %p541 = pneg %p218
        %p542 = pneg %p242
        %p543 = pneg %p239
        %p544 = pneg %p263
        %p545 = pneg %p260
        %p546 = pneg %p289
        %p547 = pneg %p286
        %s548 = sand.u32 %s276, 1
        %s549 = scalar_lea.sflag [#allocation4], %s548
        %s550 = sand.u32 %s276, 1
        %s551 = smul.addr %s550, 128
        %s552 = scalar_lea.vmem [#allocation11], %s551
        %p553 = scmp.lt.s32.totalorder %s37, 1
        %s554 = scalar_select %p553, %s37, 1
        %s555 = smul.addr %s554, 8
        %s556 = scalar_lea.vmem %s5, %s555
        %p557 = scmp.lt.s32.totalorder %s37, 1
        %s558 = scalar_select %p557, %s37, 1
        %s559 = smul.addr %s558, 4
        %s560 = scalar_lea.vmem %s6, %s559
        %p562 = scmp.eq.s32.totalorder %s37, 0
        // Predicated region
        $region77: #{tpu_custom_call.1} parent=55 // pred_check
          %p563 = pneg %p562
        $region78: #{tpu_custom_call.1} parent=55 // pred_check_branch
          %565 = sbr.rel (%p563) target = $region80
        $region79: #{tpu_custom_call.1} parent=55 // pred_region
          %v566 = vld [vmem:[%s449] sm:$0xff]
          %v567 = vld [vmem:[%s449 + $0x8] sm:$0xff]
          %v568 = vld [vmem:[%s449 + $0x10] sm:$0xff]
          %v569 = vld [vmem:[%s449 + $0x18] sm:$0xff]
          %v570 = vld [vmem:[%s449 + $0x20] sm:$0xff]
          %v571 = vld [vmem:[%s449 + $0x28] sm:$0xff]
          %v572 = vld [vmem:[%s449 + $0x30] sm:$0xff]
          %v573 = vld [vmem:[%s449 + $0x38] sm:$0xff]
          %v574 = vld [vmem:[%s449 + $0x40] sm:$0xff]
          %v575 = vld [vmem:[%s449 + $0x48] sm:$0xff]
          %v576 = vld [vmem:[%s449 + $0x50] sm:$0xff]
          %v577 = vld [vmem:[%s449 + $0x58] sm:$0xff]
          %v578 = vld [vmem:[%s449 + $0x60] sm:$0xff]
          %v579 = vld [vmem:[%s449 + $0x68] sm:$0xff]
          %v580 = vld [vmem:[%s449 + $0x70] sm:$0xff]
          %v581 = vld [vmem:[%s449 + $0x78] sm:$0xff]
          %582 = vst [vmem:[%s552] sm:$0xff] %v566
          %583 = vst [vmem:[%s552 + $0x8] sm:$0xff] %v567
          %584 = vst [vmem:[%s552 + $0x10] sm:$0xff] %v568
          %585 = vst [vmem:[%s552 + $0x18] sm:$0xff] %v569
          %586 = vst [vmem:[%s552 + $0x20] sm:$0xff] %v570
          %587 = vst [vmem:[%s552 + $0x28] sm:$0xff] %v571
          %588 = vst [vmem:[%s552 + $0x30] sm:$0xff] %v572
          %589 = vst [vmem:[%s552 + $0x38] sm:$0xff] %v573
          %590 = vst [vmem:[%s552 + $0x40] sm:$0xff] %v574
          %591 = vst [vmem:[%s552 + $0x48] sm:$0xff] %v575
          %592 = vst [vmem:[%s552 + $0x50] sm:$0xff] %v576
          %593 = vst [vmem:[%s552 + $0x58] sm:$0xff] %v577
          %594 = vst [vmem:[%s552 + $0x60] sm:$0xff] %v578
          %595 = vst [vmem:[%s552 + $0x68] sm:$0xff] %v579
          %596 = vst [vmem:[%s552 + $0x70] sm:$0xff] %v580
          %597 = vst [vmem:[%s552 + $0x78] sm:$0xff] %v581
        $region80: #{tpu_custom_call.1} parent=55 // pred_fallthru
          _
        %v598 = vld [vmem:[%s552] sm:$0xff]
        %v599 = vld [vmem:[%s552 + $0x8] sm:$0xff]
        %v600 = vld [vmem:[%s552 + $0x10] sm:$0xff]
        %v601 = vld [vmem:[%s552 + $0x18] sm:$0xff]
        %v602 = vld [vmem:[%s552 + $0x20] sm:$0xff]
        %v603 = vld [vmem:[%s552 + $0x28] sm:$0xff]
        %v604 = vld [vmem:[%s552 + $0x30] sm:$0xff]
        %v605 = vld [vmem:[%s552 + $0x38] sm:$0xff]
        %v606 = vld [vmem:[%s552 + $0x40] sm:$0xff]
        %v607 = vld [vmem:[%s552 + $0x48] sm:$0xff]
        %v608 = vld [vmem:[%s552 + $0x50] sm:$0xff]
        %v609 = vld [vmem:[%s552 + $0x58] sm:$0xff]
        %v610 = vld [vmem:[%s552 + $0x60] sm:$0xff]
        %v611 = vld [vmem:[%s552 + $0x68] sm:$0xff]
        %v612 = vld [vmem:[%s552 + $0x70] sm:$0xff]
        %v613 = vld [vmem:[%s552 + $0x78] sm:$0xff]
        %v614 = vld [vmem:[%s556] sm:$0x1]
        %v615 = vld [vmem:[%s556 + $0x1] sm:$0x1]
        %v616 = vld [vmem:[%s556 + $0x2] sm:$0x1]
        %v617 = vld [vmem:[%s556 + $0x3] sm:$0x1]
        %v618 = vld [vmem:[%s556 + $0x4] sm:$0x1]
        %v619 = vld [vmem:[%s556 + $0x5] sm:$0x1]
        %620 = vadd.xlane.f32.xlu0 %v598
        %v621 = vpop.xlane.xlu0 %620
        %622 = vadd.xlane.f32.xlu0 %v599
        %v623 = vpop.xlane.xlu0 %622
        %624 = vadd.xlane.f32.xlu0 %v600
        %v625 = vpop.xlane.xlu0 %624
        %626 = vadd.xlane.f32.xlu0 %v601
        %v627 = vpop.xlane.xlu0 %626
        %628 = vadd.xlane.f32.xlu0 %v602
        %v629 = vpop.xlane.xlu0 %628
        %630 = vadd.xlane.f32.xlu0 %v603
        %v631 = vpop.xlane.xlu0 %630
        %632 = vadd.xlane.f32.xlu0 %v604
        %v633 = vpop.xlane.xlu0 %632
        %634 = vadd.xlane.f32.xlu0 %v605
        %v635 = vpop.xlane.xlu0 %634
        %636 = vadd.xlane.f32.xlu0 %v606
        %v637 = vpop.xlane.xlu0 %636
        %638 = vadd.xlane.f32.xlu0 %v607
        %v639 = vpop.xlane.xlu0 %638
        %640 = vadd.xlane.f32.xlu0 %v608
        %v641 = vpop.xlane.xlu0 %640
        %642 = vadd.xlane.f32.xlu0 %v609
        %v643 = vpop.xlane.xlu0 %642
        %644 = vadd.xlane.f32.xlu0 %v610
        %v645 = vpop.xlane.xlu0 %644
        %646 = vadd.xlane.f32.xlu0 %v611
        %v647 = vpop.xlane.xlu0 %646
        %648 = vadd.xlane.f32.xlu0 %v612
        %v649 = vpop.xlane.xlu0 %648
        %650 = vadd.xlane.f32.xlu0 %v613
        %v651 = vpop.xlane.xlu0 %650
        %v652 = vrcp.pop 128.0
        %v653 = vmul.f32 128.0, %v652
        %v654 = vsub.f32 1.0, %v653
        %v655 = vmul.f32 %v652, %v654
        %v656 = vadd.f32 %v652, %v655
        %vm657 = vweird.f32 %v652
        %v658 = vsel %vm657, %v652, %v656
        %v659 = vmul.f32 %v621, %v658
        %v660 = vmul.f32 %v623, %v658
        %v661 = vmul.f32 %v625, %v658
        %v662 = vmul.f32 %v627, %v658
        %v663 = vmul.f32 %v629, %v658
        %v664 = vmul.f32 %v631, %v658
        %v665 = vmul.f32 %v633, %v658
        %v666 = vmul.f32 %v635, %v658
        %v667 = vmul.f32 %v637, %v658
        %v668 = vmul.f32 %v639, %v658
        %v669 = vmul.f32 %v641, %v658
        %v670 = vmul.f32 %v643, %v658
        %v671 = vmul.f32 %v645, %v658
        %v672 = vmul.f32 %v647, %v658
        %v673 = vmul.f32 %v649, %v658
        %v674 = vmul.f32 %v651, %v658
        %v675 = vsub.f32 %v598, %v659
        %v676 = vsub.f32 %v599, %v660
        %v677 = vsub.f32 %v600, %v661
        %v678 = vsub.f32 %v601, %v662
        %v679 = vsub.f32 %v602, %v663
        %v680 = vsub.f32 %v603, %v664
        %v681 = vsub.f32 %v604, %v665
        %v682 = vsub.f32 %v605, %v666
        %v683 = vsub.f32 %v606, %v667
        %v684 = vsub.f32 %v607, %v668
        %v685 = vsub.f32 %v608, %v669
        %v686 = vsub.f32 %v609, %v670
        %v687 = vsub.f32 %v610, %v671
        %v688 = vsub.f32 %v611, %v672
        %v689 = vsub.f32 %v612, %v673
        %v690 = vsub.f32 %v613, %v674
        %v691 = vmul.f32 %v675, %v675
        %v692 = vmul.f32 %v676, %v676
        %v693 = vmul.f32 %v677, %v677
        %v694 = vmul.f32 %v678, %v678
        %v695 = vmul.f32 %v679, %v679
        %v696 = vmul.f32 %v680, %v680
        %v697 = vmul.f32 %v681, %v681
        %v698 = vmul.f32 %v682, %v682
        %v699 = vmul.f32 %v683, %v683
        %v700 = vmul.f32 %v684, %v684
        %v701 = vmul.f32 %v685, %v685
        %v702 = vmul.f32 %v686, %v686
        %v703 = vmul.f32 %v687, %v687
        %v704 = vmul.f32 %v688, %v688
        %v705 = vmul.f32 %v689, %v689
        %v706 = vmul.f32 %v690, %v690
        %707 = vadd.xlane.f32.xlu0 %v691
        %v708 = vpop.xlane.xlu0 %707
        %709 = vadd.xlane.f32.xlu0 %v692
        %v710 = vpop.xlane.xlu0 %709
        %711 = vadd.xlane.f32.xlu0 %v693
        %v712 = vpop.xlane.xlu0 %711
        %713 = vadd.xlane.f32.xlu0 %v694
        %v714 = vpop.xlane.xlu0 %713
        %715 = vadd.xlane.f32.xlu0 %v695
        %v716 = vpop.xlane.xlu0 %715
        %717 = vadd.xlane.f32.xlu0 %v696
        %v718 = vpop.xlane.xlu0 %717
        %719 = vadd.xlane.f32.xlu0 %v697
        %v720 = vpop.xlane.xlu0 %719
        %721 = vadd.xlane.f32.xlu0 %v698
        %v722 = vpop.xlane.xlu0 %721
        %723 = vadd.xlane.f32.xlu0 %v699
        %v724 = vpop.xlane.xlu0 %723
        %725 = vadd.xlane.f32.xlu0 %v700
        %v726 = vpop.xlane.xlu0 %725
        %727 = vadd.xlane.f32.xlu0 %v701
        %v728 = vpop.xlane.xlu0 %727
        %729 = vadd.xlane.f32.xlu0 %v702
        %v730 = vpop.xlane.xlu0 %729
        %731 = vadd.xlane.f32.xlu0 %v703
        %v732 = vpop.xlane.xlu0 %731
        %733 = vadd.xlane.f32.xlu0 %v704
        %v734 = vpop.xlane.xlu0 %733
        %735 = vadd.xlane.f32.xlu0 %v705
        %v736 = vpop.xlane.xlu0 %735
        %737 = vadd.xlane.f32.xlu0 %v706
        %v738 = vpop.xlane.xlu0 %737
        %v739 = vmul.f32 %v708, %v658
        %v740 = vmul.f32 %v710, %v658
        %v741 = vmul.f32 %v712, %v658
        %v742 = vmul.f32 %v714, %v658
        %v743 = vmul.f32 %v716, %v658
        %v744 = vmul.f32 %v718, %v658
        %v745 = vmul.f32 %v720, %v658
        %v746 = vmul.f32 %v722, %v658
        %v747 = vmul.f32 %v724, %v658
        %v748 = vmul.f32 %v726, %v658
        %v749 = vmul.f32 %v728, %v658
        %v750 = vmul.f32 %v730, %v658
        %v751 = vmul.f32 %v732, %v658
        %v752 = vmul.f32 %v734, %v658
        %v753 = vmul.f32 %v736, %v658
        %v754 = vmul.f32 %v738, %v658
        %v755 = vadd.f32 %v739, 1e-05
        %v756 = vadd.f32 %v740, 1e-05
        %v757 = vadd.f32 %v741, 1e-05
        %v758 = vadd.f32 %v742, 1e-05
        %v759 = vadd.f32 %v743, 1e-05
        %v760 = vadd.f32 %v744, 1e-05
        %v761 = vadd.f32 %v745, 1e-05
        %v762 = vadd.f32 %v746, 1e-05
        %v763 = vadd.f32 %v747, 1e-05
        %v764 = vadd.f32 %v748, 1e-05
        %v765 = vadd.f32 %v749, 1e-05
        %v766 = vadd.f32 %v750, 1e-05
        %v767 = vadd.f32 %v751, 1e-05
        %v768 = vadd.f32 %v752, 1e-05
        %v769 = vadd.f32 %v753, 1e-05
        %v770 = vadd.f32 %v754, 1e-05
        %v771 = vrsqrt.pop %v755
        %v772 = vmul.f32 %v771, %v755
        %v773 = vmul.f32 %v772, %v771
        %v774 = vmul.f32 0.5, %v773
        %v775 = vsub.f32 1.5, %v774
        %v776 = vmul.f32 %v771, %v775
        %vm777 = vweird.f32 %v755
        %vm778 = vweird.f32 %v771
        %vm779 = vmor %vm777, %vm778
        %v780 = vsel %vm779, %v771, %v776
        %v781 = vrsqrt.pop %v756
        %v782 = vmul.f32 %v781, %v756
        %v783 = vmul.f32 %v782, %v781
        %v784 = vmul.f32 0.5, %v783
        %v785 = vsub.f32 1.5, %v784
        %v786 = vmul.f32 %v781, %v785
        %vm787 = vweird.f32 %v756
        %vm788 = vweird.f32 %v781
        %vm789 = vmor %vm787, %vm788
        %v790 = vsel %vm789, %v781, %v786
        %v791 = vrsqrt.pop %v757
        %v792 = vmul.f32 %v791, %v757
        %v793 = vmul.f32 %v792, %v791
        %v794 = vmul.f32 0.5, %v793
        %v795 = vsub.f32 1.5, %v794
        %v796 = vmul.f32 %v791, %v795
        %vm797 = vweird.f32 %v757
        %vm798 = vweird.f32 %v791
        %vm799 = vmor %vm797, %vm798
        %v800 = vsel %vm799, %v791, %v796
        %v801 = vrsqrt.pop %v758
        %v802 = vmul.f32 %v801, %v758
        %v803 = vmul.f32 %v802, %v801
        %v804 = vmul.f32 0.5, %v803
        %v805 = vsub.f32 1.5, %v804
        %v806 = vmul.f32 %v801, %v805
        %vm807 = vweird.f32 %v758
        %vm808 = vweird.f32 %v801
        %vm809 = vmor %vm807, %vm808
        %v810 = vsel %vm809, %v801, %v806
        %v811 = vrsqrt.pop %v759
        %v812 = vmul.f32 %v811, %v759
        %v813 = vmul.f32 %v812, %v811
        %v814 = vmul.f32 0.5, %v813
        %v815 = vsub.f32 1.5, %v814
        %v816 = vmul.f32 %v811, %v815
        %vm817 = vweird.f32 %v759
        %vm818 = vweird.f32 %v811
        %vm819 = vmor %vm817, %vm818
        %v820 = vsel %vm819, %v811, %v816
        %v821 = vrsqrt.pop %v760
        %v822 = vmul.f32 %v821, %v760
        %v823 = vmul.f32 %v822, %v821
        %v824 = vmul.f32 0.5, %v823
        %v825 = vsub.f32 1.5, %v824
        %v826 = vmul.f32 %v821, %v825
        %vm827 = vweird.f32 %v760
        %vm828 = vweird.f32 %v821
        %vm829 = vmor %vm827, %vm828
        %v830 = vsel %vm829, %v821, %v826
        %v831 = vrsqrt.pop %v761
        %v832 = vmul.f32 %v831, %v761
        %v833 = vmul.f32 %v832, %v831
        %v834 = vmul.f32 0.5, %v833
        %v835 = vsub.f32 1.5, %v834
        %v836 = vmul.f32 %v831, %v835
        %vm837 = vweird.f32 %v761
        %vm838 = vweird.f32 %v831
        %vm839 = vmor %vm837, %vm838
        %v840 = vsel %vm839, %v831, %v836
        %v841 = vrsqrt.pop %v762
        %v842 = vmul.f32 %v841, %v762
        %v843 = vmul.f32 %v842, %v841
        %v844 = vmul.f32 0.5, %v843
        %v845 = vsub.f32 1.5, %v844
        %v846 = vmul.f32 %v841, %v845
        %vm847 = vweird.f32 %v762
        %vm848 = vweird.f32 %v841
        %vm849 = vmor %vm847, %vm848
        %v850 = vsel %vm849, %v841, %v846
        %v851 = vrsqrt.pop %v763
        %v852 = vmul.f32 %v851, %v763
        %v853 = vmul.f32 %v852, %v851
        %v854 = vmul.f32 0.5, %v853
        %v855 = vsub.f32 1.5, %v854
        %v856 = vmul.f32 %v851, %v855
        %vm857 = vweird.f32 %v763
        %vm858 = vweird.f32 %v851
        %vm859 = vmor %vm857, %vm858
        %v860 = vsel %vm859, %v851, %v856
        %v861 = vrsqrt.pop %v764
        %v862 = vmul.f32 %v861, %v764
        %v863 = vmul.f32 %v862, %v861
        %v864 = vmul.f32 0.5, %v863
        %v865 = vsub.f32 1.5, %v864
        %v866 = vmul.f32 %v861, %v865
        %vm867 = vweird.f32 %v764
        %vm868 = vweird.f32 %v861
        %vm869 = vmor %vm867, %vm868
        %v870 = vsel %vm869, %v861, %v866
        %v871 = vrsqrt.pop %v765
        %v872 = vmul.f32 %v871, %v765
        %v873 = vmul.f32 %v872, %v871
        %v874 = vmul.f32 0.5, %v873
        %v875 = vsub.f32 1.5, %v874
        %v876 = vmul.f32 %v871, %v875
        %vm877 = vweird.f32 %v765
        %vm878 = vweird.f32 %v871
        %vm879 = vmor %vm877, %vm878
        %v880 = vsel %vm879, %v871, %v876
        %v881 = vrsqrt.pop %v766
        %v882 = vmul.f32 %v881, %v766
        %v883 = vmul.f32 %v882, %v881
        %v884 = vmul.f32 0.5, %v883
        %v885 = vsub.f32 1.5, %v884
        %v886 = vmul.f32 %v881, %v885
        %vm887 = vweird.f32 %v766
        %vm888 = vweird.f32 %v881
        %vm889 = vmor %vm887, %vm888
        %v890 = vsel %vm889, %v881, %v886
        %v891 = vrsqrt.pop %v767
        %v892 = vmul.f32 %v891, %v767
        %v893 = vmul.f32 %v892, %v891
        %v894 = vmul.f32 0.5, %v893
        %v895 = vsub.f32 1.5, %v894
        %v896 = vmul.f32 %v891, %v895
        %vm897 = vweird.f32 %v767
        %vm898 = vweird.f32 %v891
        %vm899 = vmor %vm897, %vm898
        %v900 = vsel %vm899, %v891, %v896
        %v901 = vrsqrt.pop %v768
        %v902 = vmul.f32 %v901, %v768
        %v903 = vmul.f32 %v902, %v901
        %v904 = vmul.f32 0.5, %v903
        %v905 = vsub.f32 1.5, %v904
        %v906 = vmul.f32 %v901, %v905
        %vm907 = vweird.f32 %v768
        %vm908 = vweird.f32 %v901
        %vm909 = vmor %vm907, %vm908
        %v910 = vsel %vm909, %v901, %v906
        %v911 = vrsqrt.pop %v769
        %v912 = vmul.f32 %v911, %v769
        %v913 = vmul.f32 %v912, %v911
        %v914 = vmul.f32 0.5, %v913
        %v915 = vsub.f32 1.5, %v914
        %v916 = vmul.f32 %v911, %v915
        %vm917 = vweird.f32 %v769
        %vm918 = vweird.f32 %v911
        %vm919 = vmor %vm917, %vm918
        %v920 = vsel %vm919, %v911, %v916
        %v921 = vrsqrt.pop %v770
        %v922 = vmul.f32 %v921, %v770
        %v923 = vmul.f32 %v922, %v921
        %v924 = vmul.f32 0.5, %v923
        %v925 = vsub.f32 1.5, %v924
        %v926 = vmul.f32 %v921, %v925
        %vm927 = vweird.f32 %v770
        %vm928 = vweird.f32 %v921
        %vm929 = vmor %vm927, %vm928
        %v930 = vsel %vm929, %v921, %v926
        %v931 = vmul.f32 %v675, %v780
        %v932 = vmul.f32 %v676, %v790
        %v933 = vmul.f32 %v677, %v800
        %v934 = vmul.f32 %v678, %v810
        %v935 = vmul.f32 %v679, %v820
        %v936 = vmul.f32 %v680, %v830
        %v937 = vmul.f32 %v681, %v840
        %v938 = vmul.f32 %v682, %v850
        %v939 = vmul.f32 %v683, %v860
        %v940 = vmul.f32 %v684, %v870
        %v941 = vmul.f32 %v685, %v880
        %v942 = vmul.f32 %v686, %v890
        %v943 = vmul.f32 %v687, %v900
        %v944 = vmul.f32 %v688, %v910
        %v945 = vmul.f32 %v689, %v920
        %v946 = vmul.f32 %v690, %v930
        %v947 = vperm.slane %v614, 0
        %v948 = vmul.f32 %v931, %v947
        %v949 = vmul.f32 %v932, %v947
        %v950 = vmul.f32 %v933, %v947
        %v951 = vmul.f32 %v934, %v947
        %v952 = vmul.f32 %v935, %v947
        %v953 = vmul.f32 %v936, %v947
        %v954 = vmul.f32 %v937, %v947
        %v955 = vmul.f32 %v938, %v947
        %v956 = vmul.f32 %v939, %v947
        %v957 = vmul.f32 %v940, %v947
        %v958 = vmul.f32 %v941, %v947
        %v959 = vmul.f32 %v942, %v947
        %v960 = vmul.f32 %v943, %v947
        %v961 = vmul.f32 %v944, %v947
        %v962 = vmul.f32 %v945, %v947
        %v963 = vmul.f32 %v946, %v947
        %v964 = vperm.slane %v615, 0
        %v965 = vadd.f32 %v948, %v964
        %v966 = vadd.f32 %v949, %v964
        %v967 = vadd.f32 %v950, %v964
        %v968 = vadd.f32 %v951, %v964
        %v969 = vadd.f32 %v952, %v964
        %v970 = vadd.f32 %v953, %v964
        %v971 = vadd.f32 %v954, %v964
        %v972 = vadd.f32 %v955, %v964
        %v973 = vadd.f32 %v956, %v964
        %v974 = vadd.f32 %v957, %v964
        %v975 = vadd.f32 %v958, %v964
        %v976 = vadd.f32 %v959, %v964
        %v977 = vadd.f32 %v960, %v964
        %v978 = vadd.f32 %v961, %v964
        %v979 = vadd.f32 %v962, %v964
        %v980 = vadd.f32 %v963, %v964
        %v981 = vpack.c.bf16 %v966, %v965
        %v982 = vpack.c.bf16 %v968, %v967
        %v983 = vpack.c.bf16 %v970, %v969
        %v984 = vpack.c.bf16 %v972, %v971
        %v985 = vpack.c.bf16 %v974, %v973
        %v986 = vpack.c.bf16 %v976, %v975
        %v987 = vpack.c.bf16 %v978, %v977
        %v988 = vpack.c.bf16 %v980, %v979
        %v989 = vld [vmem:[%s459] sm:$0xff]
        %v990 = vld [vmem:[%s459 + $0x8] sm:$0xf]
        %v991 = vld [vmem:[%s459 + $0xc] sm:$0xff]
        %v992 = vld [vmem:[%s459 + $0x14] sm:$0xf]
        %v993 = vld [vmem:[%s459 + $0x18] sm:$0xff]
        %v994 = vld [vmem:[%s459 + $0x20] sm:$0xf]
        %v995 = vld [vmem:[%s459 + $0x24] sm:$0xff]
        %v996 = vld [vmem:[%s459 + $0x2c] sm:$0xf]
        %v997 = vld [vmem:[%s459 + $0x30] sm:$0xff]
        %v998 = vld [vmem:[%s459 + $0x38] sm:$0xf]
        %v999 = vld [vmem:[%s459 + $0x3c] sm:$0xff]
        %v1000 = vld [vmem:[%s459 + $0x44] sm:$0xf]
        %v1001 = vld [vmem:[%s459 + $0x48] sm:$0xff]
        %v1002 = vld [vmem:[%s459 + $0x50] sm:$0xf]
        %v1003 = vld [vmem:[%s459 + $0x54] sm:$0xff]
        %v1004 = vld [vmem:[%s459 + $0x5c] sm:$0xf]
        %v1005 = vld [vmem:[%s459 + $0x60] sm:$0xff]
        %v1006 = vld [vmem:[%s459 + $0x68] sm:$0xf]
        %v1007 = vld [vmem:[%s459 + $0x6c] sm:$0xff]
        %v1008 = vld [vmem:[%s459 + $0x74] sm:$0xf]
        %v1009 = vld [vmem:[%s459 + $0x78] sm:$0xff]
        %v1010 = vld [vmem:[%s459 + $0x80] sm:$0xf]
        %v1011 = vld [vmem:[%s459 + $0x84] sm:$0xff]
        %v1012 = vld [vmem:[%s459 + $0x8c] sm:$0xf]
        %v1013 = vld [vmem:[%s459 + $0x90] sm:$0xff]
        %v1014 = vld [vmem:[%s459 + $0x98] sm:$0xf]
        %v1015 = vld [vmem:[%s459 + $0x9c] sm:$0xff]
        %v1016 = vld [vmem:[%s459 + $0xa4] sm:$0xf]
        %v1017 = vld [vmem:[%s459 + $0xa8] sm:$0xff]
        %v1018 = vld [vmem:[%s459 + $0xb0] sm:$0xf]
        %v1019 = vld [vmem:[%s459 + $0xb4] sm:$0xff]
        %v1020 = vld [vmem:[%s459 + $0xbc] sm:$0xf]
        %v1053 = vunpack.c.l.b16 %v989
        %v1054 = vunpack.c.h.b16 %v989
        %v1055 = vunpack.c.l.b16 %v990
        %v1056 = vunpack.c.l.b16 %v991
        %v1057 = vunpack.c.h.b16 %v991
        %v1058 = vunpack.c.l.b16 %v992
        %v1059 = vunpack.c.l.b16 %v993
        %v1060 = vunpack.c.h.b16 %v993
        %v1061 = vunpack.c.l.b16 %v994
        %v1062 = vunpack.c.l.b16 %v995
        %v1063 = vunpack.c.h.b16 %v995
        %v1064 = vunpack.c.l.b16 %v996
        %v1065 = vunpack.c.l.b16 %v997
        %v1066 = vunpack.c.h.b16 %v997
        %v1067 = vunpack.c.l.b16 %v998
        %v1068 = vunpack.c.l.b16 %v999
        %v1069 = vunpack.c.h.b16 %v999
        %v1070 = vunpack.c.l.b16 %v1000
        %v1071 = vunpack.c.l.b16 %v1001
        %v1072 = vunpack.c.h.b16 %v1001
        %v1073 = vunpack.c.l.b16 %v1002
        %v1074 = vunpack.c.l.b16 %v1003
        %v1075 = vunpack.c.h.b16 %v1003
        %v1076 = vunpack.c.l.b16 %v1004
        %v1077 = vunpack.c.l.b16 %v1005
        %v1078 = vunpack.c.h.b16 %v1005
        %v1079 = vunpack.c.l.b16 %v1006
        %v1080 = vunpack.c.l.b16 %v1007
        %v1081 = vunpack.c.h.b16 %v1007
        %v1082 = vunpack.c.l.b16 %v1008
        %v1083 = vunpack.c.l.b16 %v1009
        %v1084 = vunpack.c.h.b16 %v1009
        %v1085 = vunpack.c.l.b16 %v1010
        %v1086 = vunpack.c.l.b16 %v1011
        %v1087 = vunpack.c.h.b16 %v1011
        %v1088 = vunpack.c.l.b16 %v1012
        %v1089 = vunpack.c.l.b16 %v1013
        %v1090 = vunpack.c.h.b16 %v1013
        %v1091 = vunpack.c.l.b16 %v1014
        %v1092 = vunpack.c.l.b16 %v1015
        %v1093 = vunpack.c.h.b16 %v1015
        %v1094 = vunpack.c.l.b16 %v1016
        %v1095 = vunpack.c.l.b16 %v1017
        %v1096 = vunpack.c.h.b16 %v1017
        %v1097 = vunpack.c.l.b16 %v1018
        %v1098 = vunpack.c.l.b16 %v1019
        %v1099 = vunpack.c.h.b16 %v1019
        %v1100 = vunpack.c.l.b16 %v1020
        %v1101 = vpack.c.b16 %v1056, %v1053
        %v1102 = vpack.c.b16 %v1057, %v1054
        %v1103 = vpack.c.b16 %v1058, %v1055
        %v1104 = vpack.c.b16 %v1062, %v1059
        %v1105 = vpack.c.b16 %v1063, %v1060
        %v1106 = vpack.c.b16 %v1064, %v1061
        %v1107 = vpack.c.b16 %v1068, %v1065
        %v1108 = vpack.c.b16 %v1069, %v1066
        %v1109 = vpack.c.b16 %v1070, %v1067
        %v1110 = vpack.c.b16 %v1074, %v1071
        %v1111 = vpack.c.b16 %v1075, %v1072
        %v1112 = vpack.c.b16 %v1076, %v1073
        %v1113 = vpack.c.b16 %v1080, %v1077
        %v1114 = vpack.c.b16 %v1081, %v1078
        %v1115 = vpack.c.b16 %v1082, %v1079
        %v1116 = vpack.c.b16 %v1086, %v1083
        %v1117 = vpack.c.b16 %v1087, %v1084
        %v1118 = vpack.c.b16 %v1088, %v1085
        %v1119 = vpack.c.b16 %v1092, %v1089
        %v1120 = vpack.c.b16 %v1093, %v1090
        %v1121 = vpack.c.b16 %v1094, %v1091
        %v1122 = vpack.c.b16 %v1098, %v1095
        %v1123 = vpack.c.b16 %v1099, %v1096
        %v1124 = vpack.c.b16 %v1100, %v1097
        %1149 = vmatpush.bf16.msra.mxu0 %v1122
        %1150 = vmatpush.bf16.msra.mxu0 %v1119
        %1151 = vmatpush.bf16.msra.mxu0 %v1116
        %1152 = vmatpush.bf16.msra.mxu0 %v1113
        %1153 = vmatpush.bf16.msra.mxu0 %v1110
        %1154 = vmatpush.bf16.msra.mxu0 %v1107
        %1155 = vmatpush.bf16.msra.mxu0 %v1104
        %1156 = vmatpush.bf16.msra.mxu0 %v1101
        %1157 = vmatmul.bf16.gmra.mxu0 %v981
        %v1158 = vpop.f32.mrf.mxu0
        %v1159 = vadd.f32 0.0, %v1158
        %v1160 = vpop.f32.mrf.mxu0
        %v1161 = vadd.f32 0.0, %v1160
        %1162 = vmatmul.bf16.gmra.mxu0 %v982
        %v1163 = vpop.f32.mrf.mxu0
        %v1164 = vadd.f32 0.0, %v1163
        %v1165 = vpop.f32.mrf.mxu0
        %v1166 = vadd.f32 0.0, %v1165
        %1167 = vmatmul.bf16.gmra.mxu0 %v983
        %v1168 = vpop.f32.mrf.mxu0
        %v1169 = vadd.f32 0.0, %v1168
        %v1170 = vpop.f32.mrf.mxu0
        %v1171 = vadd.f32 0.0, %v1170
        %1172 = vmatmul.bf16.gmra.mxu0 %v984
        %v1173 = vpop.f32.mrf.mxu0
        %v1174 = vadd.f32 0.0, %v1173
        %v1175 = vpop.f32.mrf.mxu0
        %v1176 = vadd.f32 0.0, %v1175
        %1177 = vmatmul.bf16.gmra.mxu0 %v985
        %v1178 = vpop.f32.mrf.mxu0
        %v1179 = vadd.f32 0.0, %v1178
        %v1180 = vpop.f32.mrf.mxu0
        %v1181 = vadd.f32 0.0, %v1180
        %1182 = vmatmul.bf16.gmra.mxu0 %v986
        %v1183 = vpop.f32.mrf.mxu0
        %v1184 = vadd.f32 0.0, %v1183
        %v1185 = vpop.f32.mrf.mxu0
        %v1186 = vadd.f32 0.0, %v1185
        %1187 = vmatmul.bf16.gmra.mxu0 %v987
        %v1188 = vpop.f32.mrf.mxu0
        %v1189 = vadd.f32 0.0, %v1188
        %v1190 = vpop.f32.mrf.mxu0
        %v1191 = vadd.f32 0.0, %v1190
        %1192 = vmatmul.bf16.gmra.mxu0 %v988
        %v1193 = vpop.f32.mrf.mxu0
        %v1194 = vadd.f32 0.0, %v1193
        %v1195 = vpop.f32.mrf.mxu0
        %v1196 = vadd.f32 0.0, %v1195
        %1197 = vdwg.mxu0
        %1198 = vmatpush.bf16.msra.mxu0 %v1123
        %1199 = vmatpush.bf16.msra.mxu0 %v1120
        %1200 = vmatpush.bf16.msra.mxu0 %v1117
        %1201 = vmatpush.bf16.msra.mxu0 %v1114
        %1202 = vmatpush.bf16.msra.mxu0 %v1111
        %1203 = vmatpush.bf16.msra.mxu0 %v1108
        %1204 = vmatpush.bf16.msra.mxu0 %v1105
        %1205 = vmatpush.bf16.msra.mxu0 %v1102
        %1206 = vmatmul.bf16.gmra.mxu0 %v981
        %v1207 = vpop.f32.mrf.mxu0
        %v1208 = vadd.f32 0.0, %v1207
        %v1209 = vpop.f32.mrf.mxu0
        %v1210 = vadd.f32 0.0, %v1209
        %1211 = vmatmul.bf16.gmra.mxu0 %v982
        %v1212 = vpop.f32.mrf.mxu0
        %v1213 = vadd.f32 0.0, %v1212
        %v1214 = vpop.f32.mrf.mxu0
        %v1215 = vadd.f32 0.0, %v1214
        %1216 = vmatmul.bf16.gmra.mxu0 %v983
        %v1217 = vpop.f32.mrf.mxu0
        %v1218 = vadd.f32 0.0, %v1217
        %v1219 = vpop.f32.mrf.mxu0
        %v1220 = vadd.f32 0.0, %v1219
        %1221 = vmatmul.bf16.gmra.mxu0 %v984
        %v1222 = vpop.f32.mrf.mxu0
        %v1223 = vadd.f32 0.0, %v1222
        %v1224 = vpop.f32.mrf.mxu0
        %v1225 = vadd.f32 0.0, %v1224
        %1226 = vmatmul.bf16.gmra.mxu0 %v985
        %v1227 = vpop.f32.mrf.mxu0
        %v1228 = vadd.f32 0.0, %v1227
        %v1229 = vpop.f32.mrf.mxu0
        %v1230 = vadd.f32 0.0, %v1229
        %1231 = vmatmul.bf16.gmra.mxu0 %v986
        %v1232 = vpop.f32.mrf.mxu0
        %v1233 = vadd.f32 0.0, %v1232
        %v1234 = vpop.f32.mrf.mxu0
        %v1235 = vadd.f32 0.0, %v1234
        %1236 = vmatmul.bf16.gmra.mxu0 %v987
        %v1237 = vpop.f32.mrf.mxu0
        %v1238 = vadd.f32 0.0, %v1237
        %v1239 = vpop.f32.mrf.mxu0
        %v1240 = vadd.f32 0.0, %v1239
        %1241 = vmatmul.bf16.gmra.mxu0 %v988
        %v1242 = vpop.f32.mrf.mxu0
        %v1243 = vadd.f32 0.0, %v1242
        %v1244 = vpop.f32.mrf.mxu0
        %v1245 = vadd.f32 0.0, %v1244
        %1246 = vdwg.mxu0
        %1247 = vmatpush.bf16.msra.mxu0 %v1124
        %1248 = vmatpush.bf16.msra.mxu0 %v1121
        %1249 = vmatpush.bf16.msra.mxu0 %v1118
        %1250 = vmatpush.bf16.msra.mxu0 %v1115
        %1251 = vmatpush.bf16.msra.mxu0 %v1112
        %1252 = vmatpush.bf16.msra.mxu0 %v1109
        %1253 = vmatpush.bf16.msra.mxu0 %v1106
        %1254 = vmatpush.bf16.msra.mxu0 %v1103
        %1255 = vmatmul.bf16.gmra.mxu0 %v981
        %v1256 = vpop.f32.mrf.mxu0
        %v1257 = vadd.f32 0.0, %v1256
        %v1258 = vpop.f32.mrf.mxu0
        %v1259 = vadd.f32 0.0, %v1258
        %1260 = vmatmul.bf16.gmra.mxu0 %v982
        %v1261 = vpop.f32.mrf.mxu0
        %v1262 = vadd.f32 0.0, %v1261
        %v1263 = vpop.f32.mrf.mxu0
        %v1264 = vadd.f32 0.0, %v1263
        %1265 = vmatmul.bf16.gmra.mxu0 %v983
        %v1266 = vpop.f32.mrf.mxu0
        %v1267 = vadd.f32 0.0, %v1266
        %v1268 = vpop.f32.mrf.mxu0
        %v1269 = vadd.f32 0.0, %v1268
        %1270 = vmatmul.bf16.gmra.mxu0 %v984
        %v1271 = vpop.f32.mrf.mxu0
        %v1272 = vadd.f32 0.0, %v1271
        %v1273 = vpop.f32.mrf.mxu0
        %v1274 = vadd.f32 0.0, %v1273
        %1275 = vmatmul.bf16.gmra.mxu0 %v985
        %v1276 = vpop.f32.mrf.mxu0
        %v1277 = vadd.f32 0.0, %v1276
        %v1278 = vpop.f32.mrf.mxu0
        %v1279 = vadd.f32 0.0, %v1278
        %1280 = vmatmul.bf16.gmra.mxu0 %v986
        %v1281 = vpop.f32.mrf.mxu0
        %v1282 = vadd.f32 0.0, %v1281
        %v1283 = vpop.f32.mrf.mxu0
        %v1284 = vadd.f32 0.0, %v1283
        %1285 = vmatmul.bf16.gmra.mxu0 %v987
        %v1286 = vpop.f32.mrf.mxu0
        %v1287 = vadd.f32 0.0, %v1286
        %v1288 = vpop.f32.mrf.mxu0
        %v1289 = vadd.f32 0.0, %v1288
        %1290 = vmatmul.bf16.gmra.mxu0 %v988
        %v1291 = vpop.f32.mrf.mxu0
        %v1292 = vadd.f32 0.0, %v1291
        %v1293 = vpop.f32.mrf.mxu0
        %v1294 = vadd.f32 0.0, %v1293
        %1295 = vdwg.mxu0
        %1312 = vrot.lane.b32.xlu0 %v1159, 96
        %v1313 = vpop.permute.xlu0 %1312
        %1314 = vrot.lane.b32.xlu0 %v1161, 96
        %v1315 = vpop.permute.xlu0 %1314
        %1316 = vrot.lane.b32.xlu0 %v1164, 96
        %v1317 = vpop.permute.xlu0 %1316
        %1318 = vrot.lane.b32.xlu0 %v1166, 96
        %v1319 = vpop.permute.xlu0 %1318
        %1320 = vrot.lane.b32.xlu0 %v1169, 96
        %v1321 = vpop.permute.xlu0 %1320
        %1322 = vrot.lane.b32.xlu0 %v1171, 96
        %v1323 = vpop.permute.xlu0 %1322
        %1324 = vrot.lane.b32.xlu0 %v1174, 96
        %v1325 = vpop.permute.xlu0 %1324
        %1326 = vrot.lane.b32.xlu0 %v1176, 96
        %v1327 = vpop.permute.xlu0 %1326
        %1328 = vrot.lane.b32.xlu0 %v1179, 96
        %v1329 = vpop.permute.xlu0 %1328
        %1330 = vrot.lane.b32.xlu0 %v1181, 96
        %v1331 = vpop.permute.xlu0 %1330
        %1332 = vrot.lane.b32.xlu0 %v1184, 96
        %v1333 = vpop.permute.xlu0 %1332
        %1334 = vrot.lane.b32.xlu0 %v1186, 96
        %v1335 = vpop.permute.xlu0 %1334
        %1336 = vrot.lane.b32.xlu0 %v1189, 96
        %v1337 = vpop.permute.xlu0 %1336
        %1338 = vrot.lane.b32.xlu0 %v1191, 96
        %v1339 = vpop.permute.xlu0 %1338
        %1340 = vrot.lane.b32.xlu0 %v1194, 96
        %v1341 = vpop.permute.xlu0 %1340
        %1342 = vrot.lane.b32.xlu0 %v1196, 96
        %v1343 = vpop.permute.xlu0 %1342
        %1360 = vrot.lane.b32.xlu0 %v1159, 64
        %v1361 = vpop.permute.xlu0 %1360
        %1362 = vrot.lane.b32.xlu0 %v1161, 64
        %v1363 = vpop.permute.xlu0 %1362
        %1364 = vrot.lane.b32.xlu0 %v1164, 64
        %v1365 = vpop.permute.xlu0 %1364
        %1366 = vrot.lane.b32.xlu0 %v1166, 64
        %v1367 = vpop.permute.xlu0 %1366
        %1368 = vrot.lane.b32.xlu0 %v1169, 64
        %v1369 = vpop.permute.xlu0 %1368
        %1370 = vrot.lane.b32.xlu0 %v1171, 64
        %v1371 = vpop.permute.xlu0 %1370
        %1372 = vrot.lane.b32.xlu0 %v1174, 64
        %v1373 = vpop.permute.xlu0 %1372
        %1374 = vrot.lane.b32.xlu0 %v1176, 64
        %v1375 = vpop.permute.xlu0 %1374
        %1376 = vrot.lane.b32.xlu0 %v1179, 64
        %v1377 = vpop.permute.xlu0 %1376
        %1378 = vrot.lane.b32.xlu0 %v1181, 64
        %v1379 = vpop.permute.xlu0 %1378
        %1380 = vrot.lane.b32.xlu0 %v1184, 64
        %v1381 = vpop.permute.xlu0 %1380
        %1382 = vrot.lane.b32.xlu0 %v1186, 64
        %v1383 = vpop.permute.xlu0 %1382
        %1384 = vrot.lane.b32.xlu0 %v1189, 64
        %v1385 = vpop.permute.xlu0 %1384
        %1386 = vrot.lane.b32.xlu0 %v1191, 64
        %v1387 = vpop.permute.xlu0 %1386
        %1388 = vrot.lane.b32.xlu0 %v1194, 64
        %v1389 = vpop.permute.xlu0 %1388
        %1390 = vrot.lane.b32.xlu0 %v1196, 64
        %v1391 = vpop.permute.xlu0 %1390
        %1408 = vrot.lane.b32.xlu0 %v1159, 32
        %v1409 = vpop.permute.xlu0 %1408
        %1410 = vrot.lane.b32.xlu0 %v1161, 32
        %v1411 = vpop.permute.xlu0 %1410
        %1412 = vrot.lane.b32.xlu0 %v1164, 32
        %v1413 = vpop.permute.xlu0 %1412
        %1414 = vrot.lane.b32.xlu0 %v1166, 32
        %v1415 = vpop.permute.xlu0 %1414
        %1416 = vrot.lane.b32.xlu0 %v1169, 32
        %v1417 = vpop.permute.xlu0 %1416
        %1418 = vrot.lane.b32.xlu0 %v1171, 32
        %v1419 = vpop.permute.xlu0 %1418
        %1420 = vrot.lane.b32.xlu0 %v1174, 32
        %v1421 = vpop.permute.xlu0 %1420
        %1422 = vrot.lane.b32.xlu0 %v1176, 32
        %v1423 = vpop.permute.xlu0 %1422
        %1424 = vrot.lane.b32.xlu0 %v1179, 32
        %v1425 = vpop.permute.xlu0 %1424
        %1426 = vrot.lane.b32.xlu0 %v1181, 32
        %v1427 = vpop.permute.xlu0 %1426
        %1428 = vrot.lane.b32.xlu0 %v1184, 32
        %v1429 = vpop.permute.xlu0 %1428
        %1430 = vrot.lane.b32.xlu0 %v1186, 32
        %v1431 = vpop.permute.xlu0 %1430
        %1432 = vrot.lane.b32.xlu0 %v1189, 32
        %v1433 = vpop.permute.xlu0 %1432
        %1434 = vrot.lane.b32.xlu0 %v1191, 32
        %v1435 = vpop.permute.xlu0 %1434
        %1436 = vrot.lane.b32.xlu0 %v1194, 32
        %v1437 = vpop.permute.xlu0 %1436
        %1438 = vrot.lane.b32.xlu0 %v1196, 32
        %v1439 = vpop.permute.xlu0 %1438
        %v1456 = vpack.c.bf16 %v1159, %v1159
        %v1457 = vpack.c.bf16 %v1161, %v1161
        %v1458 = vpack.c.bf16 %v1164, %v1164
        %v1459 = vpack.c.bf16 %v1166, %v1166
        %v1460 = vpack.c.bf16 %v1169, %v1169
        %v1461 = vpack.c.bf16 %v1171, %v1171
        %v1462 = vpack.c.bf16 %v1174, %v1174
        %v1463 = vpack.c.bf16 %v1176, %v1176
        %v1464 = vpack.c.bf16 %v1179, %v1179
        %v1465 = vpack.c.bf16 %v1181, %v1181
        %v1466 = vpack.c.bf16 %v1184, %v1184
        %v1467 = vpack.c.bf16 %v1186, %v1186
        %v1468 = vpack.c.bf16 %v1189, %v1189
        %v1469 = vpack.c.bf16 %v1191, %v1191
        %v1470 = vpack.c.bf16 %v1194, %v1194
        %v1471 = vpack.c.bf16 %v1196, %v1196
        %v1472 = vpack.c.bf16 %v1313, %v1313
        %v1473 = vpack.c.bf16 %v1315, %v1315
        %v1474 = vpack.c.bf16 %v1317, %v1317
        %v1475 = vpack.c.bf16 %v1319, %v1319
        %v1476 = vpack.c.bf16 %v1321, %v1321
        %v1477 = vpack.c.bf16 %v1323, %v1323
        %v1478 = vpack.c.bf16 %v1325, %v1325
        %v1479 = vpack.c.bf16 %v1327, %v1327
        %v1480 = vpack.c.bf16 %v1329, %v1329
        %v1481 = vpack.c.bf16 %v1331, %v1331
        %v1482 = vpack.c.bf16 %v1333, %v1333
        %v1483 = vpack.c.bf16 %v1335, %v1335
        %v1484 = vpack.c.bf16 %v1337, %v1337
        %v1485 = vpack.c.bf16 %v1339, %v1339
        %v1486 = vpack.c.bf16 %v1341, %v1341
        %v1487 = vpack.c.bf16 %v1343, %v1343
        %v1488 = vpack.c.bf16 %v1361, %v1361
        %v1489 = vpack.c.bf16 %v1363, %v1363
        %v1490 = vpack.c.bf16 %v1365, %v1365
        %v1491 = vpack.c.bf16 %v1367, %v1367
        %v1492 = vpack.c.bf16 %v1369, %v1369
        %v1493 = vpack.c.bf16 %v1371, %v1371
        %v1494 = vpack.c.bf16 %v1373, %v1373
        %v1495 = vpack.c.bf16 %v1375, %v1375
        %v1496 = vpack.c.bf16 %v1377, %v1377
        %v1497 = vpack.c.bf16 %v1379, %v1379
        %v1498 = vpack.c.bf16 %v1381, %v1381
        %v1499 = vpack.c.bf16 %v1383, %v1383
        %v1500 = vpack.c.bf16 %v1385, %v1385
        %v1501 = vpack.c.bf16 %v1387, %v1387
        %v1502 = vpack.c.bf16 %v1389, %v1389
        %v1503 = vpack.c.bf16 %v1391, %v1391
        %v1504 = vpack.c.bf16 %v1409, %v1409
        %v1505 = vpack.c.bf16 %v1411, %v1411
        %v1506 = vpack.c.bf16 %v1413, %v1413
        %v1507 = vpack.c.bf16 %v1415, %v1415
        %v1508 = vpack.c.bf16 %v1417, %v1417
        %v1509 = vpack.c.bf16 %v1419, %v1419
        %v1510 = vpack.c.bf16 %v1421, %v1421
        %v1511 = vpack.c.bf16 %v1423, %v1423
        %v1512 = vpack.c.bf16 %v1425, %v1425
        %v1513 = vpack.c.bf16 %v1427, %v1427
        %v1514 = vpack.c.bf16 %v1429, %v1429
        %v1515 = vpack.c.bf16 %v1431, %v1431
        %v1516 = vpack.c.bf16 %v1433, %v1433
        %v1517 = vpack.c.bf16 %v1435, %v1435
        %v1518 = vpack.c.bf16 %v1437, %v1437
        %v1519 = vpack.c.bf16 %v1439, %v1439
        %1520 = vxpose.xlu0.b32.start [1/16] %v1208, 128
        %1521 = vxpose.xlu0.b32.cont [2/16] %v1210, 128
        %1522 = vxpose.xlu0.b32.cont [3/16] %v1213, 128
        %1523 = vxpose.xlu0.b32.cont [4/16] %v1215, 128
        %1524 = vxpose.xlu0.b32.cont [5/16] %v1218, 128
        %1525 = vxpose.xlu0.b32.cont [6/16] %v1220, 128
        %1526 = vxpose.xlu0.b32.cont [7/16] %v1223, 128
        %1527 = vxpose.xlu0.b32.cont [8/16] %v1225, 128
        %1528 = vxpose.xlu0.b32.cont [9/16] %v1228, 128
        %1529 = vxpose.xlu0.b32.cont [10/16] %v1230, 128
        %1530 = vxpose.xlu0.b32.cont [11/16] %v1233, 128
        %1531 = vxpose.xlu0.b32.cont [12/16] %v1235, 128
        %1532 = vxpose.xlu0.b32.cont [13/16] %v1238, 128
        %1533 = vxpose.xlu0.b32.cont [14/16] %v1240, 128
        %1534 = vxpose.xlu0.b32.cont [15/16] %v1243, 128
        %1535 = vxpose.xlu0.b32.end [16/16] %v1245, 128
        %v1536 = vpop.trf.xlu0
        %v1537 = vpop.trf.xlu0
        %v1538 = vpop.trf.xlu0
        %v1539 = vpop.trf.xlu0
        %v1540 = vpop.trf.xlu0
        %v1541 = vpop.trf.xlu0
        %v1542 = vpop.trf.xlu0
        %v1543 = vpop.trf.xlu0
        %v1544 = vpop.trf.xlu0
        %v1545 = vpop.trf.xlu0
        %v1546 = vpop.trf.xlu0
        %v1547 = vpop.trf.xlu0
        %v1548 = vpop.trf.xlu0
        %v1549 = vpop.trf.xlu0
        %v1550 = vpop.trf.xlu0
        %v1551 = vpop.trf.xlu0
        %1552 = vxpose.xlu0.b32.start [1/16] %v1257, 128
        %1553 = vxpose.xlu0.b32.cont [2/16] %v1259, 128
        %1554 = vxpose.xlu0.b32.cont [3/16] %v1262, 128
        %1555 = vxpose.xlu0.b32.cont [4/16] %v1264, 128
        %1556 = vxpose.xlu0.b32.cont [5/16] %v1267, 128
        %1557 = vxpose.xlu0.b32.cont [6/16] %v1269, 128
        %1558 = vxpose.xlu0.b32.cont [7/16] %v1272, 128
        %1559 = vxpose.xlu0.b32.cont [8/16] %v1274, 128
        %1560 = vxpose.xlu0.b32.cont [9/16] %v1277, 128
        %1561 = vxpose.xlu0.b32.cont [10/16] %v1279, 128
        %1562 = vxpose.xlu0.b32.cont [11/16] %v1282, 128
        %1563 = vxpose.xlu0.b32.cont [12/16] %v1284, 128
        %1564 = vxpose.xlu0.b32.cont [13/16] %v1287, 128
        %1565 = vxpose.xlu0.b32.cont [14/16] %v1289, 128
        %1566 = vxpose.xlu0.b32.cont [15/16] %v1292, 128
        %1567 = vxpose.xlu0.b32.end [16/16] %v1294, 128
        %v1568 = vpop.trf.xlu0
        %v1569 = vpop.trf.xlu0
        %v1570 = vpop.trf.xlu0
        %v1571 = vpop.trf.xlu0
        %v1572 = vpop.trf.xlu0
        %v1573 = vpop.trf.xlu0
        %v1574 = vpop.trf.xlu0
        %v1575 = vpop.trf.xlu0
        %v1576 = vpop.trf.xlu0
        %v1577 = vpop.trf.xlu0
        %v1578 = vpop.trf.xlu0
        %v1579 = vpop.trf.xlu0
        %v1580 = vpop.trf.xlu0
        %v1581 = vpop.trf.xlu0
        %v1582 = vpop.trf.xlu0
        %v1583 = vpop.trf.xlu0
        %v1584 = vpack.c.bf16 %v1536, %v1536
        %v1585 = vpack.c.bf16 %v1537, %v1537
        %v1586 = vpack.c.bf16 %v1538, %v1538
        %v1587 = vpack.c.bf16 %v1539, %v1539
        %v1588 = vpack.c.bf16 %v1540, %v1540
        %v1589 = vpack.c.bf16 %v1541, %v1541
        %v1590 = vpack.c.bf16 %v1542, %v1542
        %v1591 = vpack.c.bf16 %v1543, %v1543
        %v1592 = vpack.c.bf16 %v1544, %v1544
        %v1593 = vpack.c.bf16 %v1545, %v1545
        %v1594 = vpack.c.bf16 %v1546, %v1546
        %v1595 = vpack.c.bf16 %v1547, %v1547
        %v1596 = vpack.c.bf16 %v1548, %v1548
        %v1597 = vpack.c.bf16 %v1549, %v1549
        %v1598 = vpack.c.bf16 %v1550, %v1550
        %v1599 = vpack.c.bf16 %v1551, %v1551
        %v1600 = vpack.c.bf16 %v1568, %v1568
        %v1601 = vpack.c.bf16 %v1569, %v1569
        %v1602 = vpack.c.bf16 %v1570, %v1570
        %v1603 = vpack.c.bf16 %v1571, %v1571
        %v1604 = vpack.c.bf16 %v1572, %v1572
        %v1605 = vpack.c.bf16 %v1573, %v1573
        %v1606 = vpack.c.bf16 %v1574, %v1574
        %v1607 = vpack.c.bf16 %v1575, %v1575
        %v1608 = vpack.c.bf16 %v1576, %v1576
        %v1609 = vpack.c.bf16 %v1577, %v1577
        %v1610 = vpack.c.bf16 %v1578, %v1578
        %v1611 = vpack.c.bf16 %v1579, %v1579
        %v1612 = vpack.c.bf16 %v1580, %v1580
        %v1613 = vpack.c.bf16 %v1581, %v1581
        %v1614 = vpack.c.bf16 %v1582, %v1582
        %v1615 = vpack.c.bf16 %v1583, %v1583
        %v1632 = vunpack.c.l.b16 %v1456
        %v1633 = vunpack.c.l.b16 %v1457
        %v1634 = vunpack.c.l.b16 %v1458
        %v1635 = vunpack.c.l.b16 %v1459
        %v1636 = vunpack.c.l.b16 %v1460
        %v1637 = vunpack.c.l.b16 %v1461
        %v1638 = vunpack.c.l.b16 %v1462
        %v1639 = vunpack.c.l.b16 %v1463
        %v1640 = vunpack.c.l.b16 %v1464
        %v1641 = vunpack.c.l.b16 %v1465
        %v1642 = vunpack.c.l.b16 %v1466
        %v1643 = vunpack.c.l.b16 %v1467
        %v1644 = vunpack.c.l.b16 %v1468
        %v1645 = vunpack.c.l.b16 %v1469
        %v1646 = vunpack.c.l.b16 %v1470
        %v1647 = vunpack.c.l.b16 %v1471
        %v1648 = vpack.c.b16 %v1633, %v1632
        %v1649 = vpack.c.b16 %v1635, %v1634
        %v1650 = vpack.c.b16 %v1637, %v1636
        %v1651 = vpack.c.b16 %v1639, %v1638
        %v1652 = vpack.c.b16 %v1641, %v1640
        %v1653 = vpack.c.b16 %v1643, %v1642
        %v1654 = vpack.c.b16 %v1645, %v1644
        %v1655 = vpack.c.b16 %v1647, %v1646
        %v1660 = vunpack.c.l.b16 %v1584
        %v1661 = vunpack.c.l.b16 %v1585
        %v1662 = vunpack.c.l.b16 %v1586
        %v1663 = vunpack.c.l.b16 %v1587
        %v1664 = vpack.c.b16 %v1661, %v1660
        %v1665 = vpack.c.b16 %v1663, %v1662
        %vm1668 = vcmask 261120
        %v1670 = vsel %vm1668, %v1648, 0
        %v1673 = vsel %vm1668, %v1649, 0
        %v1676 = vsel %vm1668, %v1650, 0
        %v1679 = vsel %vm1668, %v1651, 0
        %v1682 = vsel %vm1668, %v1652, 0
        %v1685 = vsel %vm1668, %v1653, 0
        %v1688 = vsel %vm1668, %v1654, 0
        %v1691 = vsel %vm1668, %v1655, 0
        %1693 = vmatpush.bf16.msra.mxu0 0
        %1694 = vmatpush.bf16.msra.mxu0 0
        %1695 = vmatpush.bf16.msra.mxu0 0
        %1696 = vmatpush.bf16.msra.mxu0 0
        %1697 = vmatpush.bf16.msra.mxu0 0
        %1698 = vmatpush.bf16.msra.mxu0 0
        %1699 = vmatpush.bf16.msra.mxu0 %v1665
        %1700 = vmatpush.bf16.msra.mxu0 %v1664
        %1701 = vmatmul.bf16.gmra.mxu0 %v1670
        %v1702 = vpop.f32.mrf.mxu0
        %v1703 = vadd.f32 0.0, %v1702
        %v1704 = vpop.f32.mrf.mxu0
        %v1705 = vadd.f32 0.0, %v1704
        %1706 = vmatmul.bf16.gmra.mxu0 %v1673
        %v1707 = vpop.f32.mrf.mxu0
        %v1708 = vadd.f32 0.0, %v1707
        %v1709 = vpop.f32.mrf.mxu0
        %v1710 = vadd.f32 0.0, %v1709
        %1711 = vmatmul.bf16.gmra.mxu0 %v1676
        %v1712 = vpop.f32.mrf.mxu0
        %v1713 = vadd.f32 0.0, %v1712
        %v1714 = vpop.f32.mrf.mxu0
        %v1715 = vadd.f32 0.0, %v1714
        %1716 = vmatmul.bf16.gmra.mxu0 %v1679
        %v1717 = vpop.f32.mrf.mxu0
        %v1718 = vadd.f32 0.0, %v1717
        %v1719 = vpop.f32.mrf.mxu0
        %v1720 = vadd.f32 0.0, %v1719
        %1721 = vmatmul.bf16.gmra.mxu0 %v1682
        %v1722 = vpop.f32.mrf.mxu0
        %v1723 = vadd.f32 0.0, %v1722
        %v1724 = vpop.f32.mrf.mxu0
        %v1725 = vadd.f32 0.0, %v1724
        %1726 = vmatmul.bf16.gmra.mxu0 %v1685
        %v1727 = vpop.f32.mrf.mxu0
        %v1728 = vadd.f32 0.0, %v1727
        %v1729 = vpop.f32.mrf.mxu0
        %v1730 = vadd.f32 0.0, %v1729
        %1731 = vmatmul.bf16.gmra.mxu0 %v1688
        %v1732 = vpop.f32.mrf.mxu0
        %v1733 = vadd.f32 0.0, %v1732
        %v1734 = vpop.f32.mrf.mxu0
        %v1735 = vadd.f32 0.0, %v1734
        %1736 = vmatmul.bf16.gmra.mxu0 %v1691
        %v1737 = vpop.f32.mrf.mxu0
        %v1738 = vadd.f32 0.0, %v1737
        %v1739 = vpop.f32.mrf.mxu0
        %v1740 = vadd.f32 0.0, %v1739
        %1741 = vdwg.mxu0
        %v1758 = vunpack.c.l.b16 %v1472
        %v1759 = vunpack.c.l.b16 %v1473
        %v1760 = vunpack.c.l.b16 %v1474
        %v1761 = vunpack.c.l.b16 %v1475
        %v1762 = vunpack.c.l.b16 %v1476
        %v1763 = vunpack.c.l.b16 %v1477
        %v1764 = vunpack.c.l.b16 %v1478
        %v1765 = vunpack.c.l.b16 %v1479
        %v1766 = vunpack.c.l.b16 %v1480
        %v1767 = vunpack.c.l.b16 %v1481
        %v1768 = vunpack.c.l.b16 %v1482
        %v1769 = vunpack.c.l.b16 %v1483
        %v1770 = vunpack.c.l.b16 %v1484
        %v1771 = vunpack.c.l.b16 %v1485
        %v1772 = vunpack.c.l.b16 %v1486
        %v1773 = vunpack.c.l.b16 %v1487
        %v1774 = vpack.c.b16 %v1759, %v1758
        %v1775 = vpack.c.b16 %v1761, %v1760
        %v1776 = vpack.c.b16 %v1763, %v1762
        %v1777 = vpack.c.b16 %v1765, %v1764
        %v1778 = vpack.c.b16 %v1767, %v1766
        %v1779 = vpack.c.b16 %v1769, %v1768
        %v1780 = vpack.c.b16 %v1771, %v1770
        %v1781 = vpack.c.b16 %v1773, %v1772
        %v1786 = vunpack.c.l.b16 %v1588
        %v1787 = vunpack.c.l.b16 %v1589
        %v1788 = vunpack.c.l.b16 %v1590
        %v1789 = vunpack.c.l.b16 %v1591
        %v1790 = vpack.c.b16 %v1787, %v1786
        %v1791 = vpack.c.b16 %v1789, %v1788
        %v1795 = vsel %vm1668, %v1774, 0
        %v1798 = vsel %vm1668, %v1775, 0
        %v1801 = vsel %vm1668, %v1776, 0
        %v1804 = vsel %vm1668, %v1777, 0
        %v1807 = vsel %vm1668, %v1778, 0
        %v1810 = vsel %vm1668, %v1779, 0
        %v1813 = vsel %vm1668, %v1780, 0
        %v1816 = vsel %vm1668, %v1781, 0
        %1818 = vmatpush.bf16.msra.mxu0 0
        %1819 = vmatpush.bf16.msra.mxu0 0
        %1820 = vmatpush.bf16.msra.mxu0 0
        %1821 = vmatpush.bf16.msra.mxu0 0
        %1822 = vmatpush.bf16.msra.mxu0 0
        %1823 = vmatpush.bf16.msra.mxu0 0
        %1824 = vmatpush.bf16.msra.mxu0 %v1791
        %1825 = vmatpush.bf16.msra.mxu0 %v1790
        %1826 = vmatmul.bf16.gmra.mxu0 %v1795
        %v1827 = vpop.f32.mrf.mxu0
        %v1828 = vadd.f32 0.0, %v1827
        %v1829 = vpop.f32.mrf.mxu0
        %v1830 = vadd.f32 0.0, %v1829
        %1831 = vmatmul.bf16.gmra.mxu0 %v1798
        %v1832 = vpop.f32.mrf.mxu0
        %v1833 = vadd.f32 0.0, %v1832
        %v1834 = vpop.f32.mrf.mxu0
        %v1835 = vadd.f32 0.0, %v1834
        %1836 = vmatmul.bf16.gmra.mxu0 %v1801
        %v1837 = vpop.f32.mrf.mxu0
        %v1838 = vadd.f32 0.0, %v1837
        %v1839 = vpop.f32.mrf.mxu0
        %v1840 = vadd.f32 0.0, %v1839
        %1841 = vmatmul.bf16.gmra.mxu0 %v1804
        %v1842 = vpop.f32.mrf.mxu0
        %v1843 = vadd.f32 0.0, %v1842
        %v1844 = vpop.f32.mrf.mxu0
        %v1845 = vadd.f32 0.0, %v1844
        %1846 = vmatmul.bf16.gmra.mxu0 %v1807
        %v1847 = vpop.f32.mrf.mxu0
        %v1848 = vadd.f32 0.0, %v1847
        %v1849 = vpop.f32.mrf.mxu0
        %v1850 = vadd.f32 0.0, %v1849
        %1851 = vmatmul.bf16.gmra.mxu0 %v1810
        %v1852 = vpop.f32.mrf.mxu0
        %v1853 = vadd.f32 0.0, %v1852
        %v1854 = vpop.f32.mrf.mxu0
        %v1855 = vadd.f32 0.0, %v1854
        %1856 = vmatmul.bf16.gmra.mxu0 %v1813
        %v1857 = vpop.f32.mrf.mxu0
        %v1858 = vadd.f32 0.0, %v1857
        %v1859 = vpop.f32.mrf.mxu0
        %v1860 = vadd.f32 0.0, %v1859
        %1861 = vmatmul.bf16.gmra.mxu0 %v1816
        %v1862 = vpop.f32.mrf.mxu0
        %v1863 = vadd.f32 0.0, %v1862
        %v1864 = vpop.f32.mrf.mxu0
        %v1865 = vadd.f32 0.0, %v1864
        %1866 = vdwg.mxu0
        %v1883 = vunpack.c.l.b16 %v1488
        %v1884 = vunpack.c.l.b16 %v1489
        %v1885 = vunpack.c.l.b16 %v1490
        %v1886 = vunpack.c.l.b16 %v1491
        %v1887 = vunpack.c.l.b16 %v1492
        %v1888 = vunpack.c.l.b16 %v1493
        %v1889 = vunpack.c.l.b16 %v1494
        %v1890 = vunpack.c.l.b16 %v1495
        %v1891 = vunpack.c.l.b16 %v1496
        %v1892 = vunpack.c.l.b16 %v1497
        %v1893 = vunpack.c.l.b16 %v1498
        %v1894 = vunpack.c.l.b16 %v1499
        %v1895 = vunpack.c.l.b16 %v1500
        %v1896 = vunpack.c.l.b16 %v1501
        %v1897 = vunpack.c.l.b16 %v1502
        %v1898 = vunpack.c.l.b16 %v1503
        %v1899 = vpack.c.b16 %v1884, %v1883
        %v1900 = vpack.c.b16 %v1886, %v1885
        %v1901 = vpack.c.b16 %v1888, %v1887
        %v1902 = vpack.c.b16 %v1890, %v1889
        %v1903 = vpack.c.b16 %v1892, %v1891
        %v1904 = vpack.c.b16 %v1894, %v1893
        %v1905 = vpack.c.b16 %v1896, %v1895
        %v1906 = vpack.c.b16 %v1898, %v1897
        %v1911 = vunpack.c.l.b16 %v1592
        %v1912 = vunpack.c.l.b16 %v1593
        %v1913 = vunpack.c.l.b16 %v1594
        %v1914 = vunpack.c.l.b16 %v1595
        %v1915 = vpack.c.b16 %v1912, %v1911
        %v1916 = vpack.c.b16 %v1914, %v1913
        %v1920 = vsel %vm1668, %v1899, 0
        %v1923 = vsel %vm1668, %v1900, 0
        %v1926 = vsel %vm1668, %v1901, 0
        %v1929 = vsel %vm1668, %v1902, 0
        %v1932 = vsel %vm1668, %v1903, 0
        %v1935 = vsel %vm1668, %v1904, 0
        %v1938 = vsel %vm1668, %v1905, 0
        %v1941 = vsel %vm1668, %v1906, 0
        %1943 = vmatpush.bf16.msra.mxu0 0
        %1944 = vmatpush.bf16.msra.mxu0 0
        %1945 = vmatpush.bf16.msra.mxu0 0
        %1946 = vmatpush.bf16.msra.mxu0 0
        %1947 = vmatpush.bf16.msra.mxu0 0
        %1948 = vmatpush.bf16.msra.mxu0 0
        %1949 = vmatpush.bf16.msra.mxu0 %v1916
        %1950 = vmatpush.bf16.msra.mxu0 %v1915
        %1951 = vmatmul.bf16.gmra.mxu0 %v1920
        %v1952 = vpop.f32.mrf.mxu0
        %v1953 = vadd.f32 0.0, %v1952
        %v1954 = vpop.f32.mrf.mxu0
        %v1955 = vadd.f32 0.0, %v1954
        %1956 = vmatmul.bf16.gmra.mxu0 %v1923
        %v1957 = vpop.f32.mrf.mxu0
        %v1958 = vadd.f32 0.0, %v1957
        %v1959 = vpop.f32.mrf.mxu0
        %v1960 = vadd.f32 0.0, %v1959
        %1961 = vmatmul.bf16.gmra.mxu0 %v1926
        %v1962 = vpop.f32.mrf.mxu0
        %v1963 = vadd.f32 0.0, %v1962
        %v1964 = vpop.f32.mrf.mxu0
        %v1965 = vadd.f32 0.0, %v1964
        %1966 = vmatmul.bf16.gmra.mxu0 %v1929
        %v1967 = vpop.f32.mrf.mxu0
        %v1968 = vadd.f32 0.0, %v1967
        %v1969 = vpop.f32.mrf.mxu0
        %v1970 = vadd.f32 0.0, %v1969
        %1971 = vmatmul.bf16.gmra.mxu0 %v1932
        %v1972 = vpop.f32.mrf.mxu0
        %v1973 = vadd.f32 0.0, %v1972
        %v1974 = vpop.f32.mrf.mxu0
        %v1975 = vadd.f32 0.0, %v1974
        %1976 = vmatmul.bf16.gmra.mxu0 %v1935
        %v1977 = vpop.f32.mrf.mxu0
        %v1978 = vadd.f32 0.0, %v1977
        %v1979 = vpop.f32.mrf.mxu0
        %v1980 = vadd.f32 0.0, %v1979
        %1981 = vmatmul.bf16.gmra.mxu0 %v1938
        %v1982 = vpop.f32.mrf.mxu0
        %v1983 = vadd.f32 0.0, %v1982
        %v1984 = vpop.f32.mrf.mxu0
        %v1985 = vadd.f32 0.0, %v1984
        %1986 = vmatmul.bf16.gmra.mxu0 %v1941
        %v1987 = vpop.f32.mrf.mxu0
        %v1988 = vadd.f32 0.0, %v1987
        %v1989 = vpop.f32.mrf.mxu0
        %v1990 = vadd.f32 0.0, %v1989
        %1991 = vdwg.mxu0
        %v2008 = vunpack.c.l.b16 %v1504
        %v2009 = vunpack.c.l.b16 %v1505
        %v2010 = vunpack.c.l.b16 %v1506
        %v2011 = vunpack.c.l.b16 %v1507
        %v2012 = vunpack.c.l.b16 %v1508
        %v2013 = vunpack.c.l.b16 %v1509
        %v2014 = vunpack.c.l.b16 %v1510
        %v2015 = vunpack.c.l.b16 %v1511
        %v2016 = vunpack.c.l.b16 %v1512
        %v2017 = vunpack.c.l.b16 %v1513
        %v2018 = vunpack.c.l.b16 %v1514
        %v2019 = vunpack.c.l.b16 %v1515
        %v2020 = vunpack.c.l.b16 %v1516
        %v2021 = vunpack.c.l.b16 %v1517
        %v2022 = vunpack.c.l.b16 %v1518
        %v2023 = vunpack.c.l.b16 %v1519
        %v2024 = vpack.c.b16 %v2009, %v2008
        %v2025 = vpack.c.b16 %v2011, %v2010
        %v2026 = vpack.c.b16 %v2013, %v2012
        %v2027 = vpack.c.b16 %v2015, %v2014
        %v2028 = vpack.c.b16 %v2017, %v2016
        %v2029 = vpack.c.b16 %v2019, %v2018
        %v2030 = vpack.c.b16 %v2021, %v2020
        %v2031 = vpack.c.b16 %v2023, %v2022
        %v2036 = vunpack.c.l.b16 %v1596
        %v2037 = vunpack.c.l.b16 %v1597
        %v2038 = vunpack.c.l.b16 %v1598
        %v2039 = vunpack.c.l.b16 %v1599
        %v2040 = vpack.c.b16 %v2037, %v2036
        %v2041 = vpack.c.b16 %v2039, %v2038
        %v2045 = vsel %vm1668, %v2024, 0
        %v2048 = vsel %vm1668, %v2025, 0
        %v2051 = vsel %vm1668, %v2026, 0
        %v2054 = vsel %vm1668, %v2027, 0
        %v2057 = vsel %vm1668, %v2028, 0
        %v2060 = vsel %vm1668, %v2029, 0
        %v2063 = vsel %vm1668, %v2030, 0
        %v2066 = vsel %vm1668, %v2031, 0
        %2068 = vmatpush.bf16.msra.mxu0 0
        %2069 = vmatpush.bf16.msra.mxu0 0
        %2070 = vmatpush.bf16.msra.mxu0 0
        %2071 = vmatpush.bf16.msra.mxu0 0
        %2072 = vmatpush.bf16.msra.mxu0 0
        %2073 = vmatpush.bf16.msra.mxu0 0
        %2074 = vmatpush.bf16.msra.mxu0 %v2041
        %2075 = vmatpush.bf16.msra.mxu0 %v2040
        %2076 = vmatmul.bf16.gmra.mxu0 %v2045
        %v2077 = vpop.f32.mrf.mxu0
        %v2078 = vadd.f32 0.0, %v2077
        %v2079 = vpop.f32.mrf.mxu0
        %v2080 = vadd.f32 0.0, %v2079
        %2081 = vmatmul.bf16.gmra.mxu0 %v2048
        %v2082 = vpop.f32.mrf.mxu0
        %v2083 = vadd.f32 0.0, %v2082
        %v2084 = vpop.f32.mrf.mxu0
        %v2085 = vadd.f32 0.0, %v2084
        %2086 = vmatmul.bf16.gmra.mxu0 %v2051
        %v2087 = vpop.f32.mrf.mxu0
        %v2088 = vadd.f32 0.0, %v2087
        %v2089 = vpop.f32.mrf.mxu0
        %v2090 = vadd.f32 0.0, %v2089
        %2091 = vmatmul.bf16.gmra.mxu0 %v2054
        %v2092 = vpop.f32.mrf.mxu0
        %v2093 = vadd.f32 0.0, %v2092
        %v2094 = vpop.f32.mrf.mxu0
        %v2095 = vadd.f32 0.0, %v2094
        %2096 = vmatmul.bf16.gmra.mxu0 %v2057
        %v2097 = vpop.f32.mrf.mxu0
        %v2098 = vadd.f32 0.0, %v2097
        %v2099 = vpop.f32.mrf.mxu0
        %v2100 = vadd.f32 0.0, %v2099
        %2101 = vmatmul.bf16.gmra.mxu0 %v2060
        %v2102 = vpop.f32.mrf.mxu0
        %v2103 = vadd.f32 0.0, %v2102
        %v2104 = vpop.f32.mrf.mxu0
        %v2105 = vadd.f32 0.0, %v2104
        %2106 = vmatmul.bf16.gmra.mxu0 %v2063
        %v2107 = vpop.f32.mrf.mxu0
        %v2108 = vadd.f32 0.0, %v2107
        %v2109 = vpop.f32.mrf.mxu0
        %v2110 = vadd.f32 0.0, %v2109
        %2111 = vmatmul.bf16.gmra.mxu0 %v2066
        %v2112 = vpop.f32.mrf.mxu0
        %v2113 = vadd.f32 0.0, %v2112
        %v2114 = vpop.f32.mrf.mxu0
        %v2115 = vadd.f32 0.0, %v2114
        %2116 = vdwg.mxu0
        %v2117 = vmul.f32 %v1703, 0.17677669
        %v2118 = vmul.f32 %v1705, 0.17677669
        %v2119 = vmul.f32 %v1708, 0.17677669
        %v2120 = vmul.f32 %v1710, 0.17677669
        %v2121 = vmul.f32 %v1713, 0.17677669
        %v2122 = vmul.f32 %v1715, 0.17677669
        %v2123 = vmul.f32 %v1718, 0.17677669
        %v2124 = vmul.f32 %v1720, 0.17677669
        %v2125 = vmul.f32 %v1723, 0.17677669
        %v2126 = vmul.f32 %v1725, 0.17677669
        %v2127 = vmul.f32 %v1728, 0.17677669
        %v2128 = vmul.f32 %v1730, 0.17677669
        %v2129 = vmul.f32 %v1733, 0.17677669
        %v2130 = vmul.f32 %v1735, 0.17677669
        %v2131 = vmul.f32 %v1738, 0.17677669
        %v2132 = vmul.f32 %v1740, 0.17677669
        %v2133 = vmul.f32 %v1828, 0.17677669
        %v2134 = vmul.f32 %v1830, 0.17677669
        %v2135 = vmul.f32 %v1833, 0.17677669
        %v2136 = vmul.f32 %v1835, 0.17677669
        %v2137 = vmul.f32 %v1838, 0.17677669
        %v2138 = vmul.f32 %v1840, 0.17677669
        %v2139 = vmul.f32 %v1843, 0.17677669
        %v2140 = vmul.f32 %v1845, 0.17677669
        %v2141 = vmul.f32 %v1848, 0.17677669
        %v2142 = vmul.f32 %v1850, 0.17677669
        %v2143 = vmul.f32 %v1853, 0.17677669
        %v2144 = vmul.f32 %v1855, 0.17677669
        %v2145 = vmul.f32 %v1858, 0.17677669
        %v2146 = vmul.f32 %v1860, 0.17677669
        %v2147 = vmul.f32 %v1863, 0.17677669
        %v2148 = vmul.f32 %v1865, 0.17677669
        %v2149 = vmul.f32 %v1953, 0.17677669
        %v2150 = vmul.f32 %v1955, 0.17677669
        %v2151 = vmul.f32 %v1958, 0.17677669
        %v2152 = vmul.f32 %v1960, 0.17677669
        %v2153 = vmul.f32 %v1963, 0.17677669
        %v2154 = vmul.f32 %v1965, 0.17677669
        %v2155 = vmul.f32 %v1968, 0.17677669
        %v2156 = vmul.f32 %v1970, 0.17677669
        %v2157 = vmul.f32 %v1973, 0.17677669
        %v2158 = vmul.f32 %v1975, 0.17677669
        %v2159 = vmul.f32 %v1978, 0.17677669
        %v2160 = vmul.f32 %v1980, 0.17677669
        %v2161 = vmul.f32 %v1983, 0.17677669
        %v2162 = vmul.f32 %v1985, 0.17677669
        %v2163 = vmul.f32 %v1988, 0.17677669
        %v2164 = vmul.f32 %v1990, 0.17677669
        %v2165 = vmul.f32 %v2078, 0.17677669
        %v2166 = vmul.f32 %v2080, 0.17677669
        %v2167 = vmul.f32 %v2083, 0.17677669
        %v2168 = vmul.f32 %v2085, 0.17677669
        %v2169 = vmul.f32 %v2088, 0.17677669
        %v2170 = vmul.f32 %v2090, 0.17677669
        %v2171 = vmul.f32 %v2093, 0.17677669
        %v2172 = vmul.f32 %v2095, 0.17677669
        %v2173 = vmul.f32 %v2098, 0.17677669
        %v2174 = vmul.f32 %v2100, 0.17677669
        %v2175 = vmul.f32 %v2103, 0.17677669
        %v2176 = vmul.f32 %v2105, 0.17677669
        %v2177 = vmul.f32 %v2108, 0.17677669
        %v2178 = vmul.f32 %v2110, 0.17677669
        %v2179 = vmul.f32 %v2113, 0.17677669
        %v2180 = vmul.f32 %v2115, 0.17677669
        %2181 = vmax.xlane.f32.xlu0 %v2117
        %v2182 = vpop.xlane.xlu0 %2181
        %2183 = vmax.xlane.f32.xlu0 %v2118
        %v2184 = vpop.xlane.xlu0 %2183
        %2185 = vmax.xlane.f32.xlu0 %v2119
        %v2186 = vpop.xlane.xlu0 %2185
        %2187 = vmax.xlane.f32.xlu0 %v2120
        %v2188 = vpop.xlane.xlu0 %2187
        %2189 = vmax.xlane.f32.xlu0 %v2121
        %v2190 = vpop.xlane.xlu0 %2189
        %2191 = vmax.xlane.f32.xlu0 %v2122
        %v2192 = vpop.xlane.xlu0 %2191
        %2193 = vmax.xlane.f32.xlu0 %v2123
        %v2194 = vpop.xlane.xlu0 %2193
        %2195 = vmax.xlane.f32.xlu0 %v2124
        %v2196 = vpop.xlane.xlu0 %2195
        %2197 = vmax.xlane.f32.xlu0 %v2125
        %v2198 = vpop.xlane.xlu0 %2197
        %2199 = vmax.xlane.f32.xlu0 %v2126
        %v2200 = vpop.xlane.xlu0 %2199
        %2201 = vmax.xlane.f32.xlu0 %v2127
        %v2202 = vpop.xlane.xlu0 %2201
        %2203 = vmax.xlane.f32.xlu0 %v2128
        %v2204 = vpop.xlane.xlu0 %2203
        %2205 = vmax.xlane.f32.xlu0 %v2129
        %v2206 = vpop.xlane.xlu0 %2205
        %2207 = vmax.xlane.f32.xlu0 %v2130
        %v2208 = vpop.xlane.xlu0 %2207
        %2209 = vmax.xlane.f32.xlu0 %v2131
        %v2210 = vpop.xlane.xlu0 %2209
        %2211 = vmax.xlane.f32.xlu0 %v2132
        %v2212 = vpop.xlane.xlu0 %2211
        %2213 = vmax.xlane.f32.xlu0 %v2133
        %v2214 = vpop.xlane.xlu0 %2213
        %2215 = vmax.xlane.f32.xlu0 %v2134
        %v2216 = vpop.xlane.xlu0 %2215
        %2217 = vmax.xlane.f32.xlu0 %v2135
        %v2218 = vpop.xlane.xlu0 %2217
        %2219 = vmax.xlane.f32.xlu0 %v2136
        %v2220 = vpop.xlane.xlu0 %2219
        %2221 = vmax.xlane.f32.xlu0 %v2137
        %v2222 = vpop.xlane.xlu0 %2221
        %2223 = vmax.xlane.f32.xlu0 %v2138
        %v2224 = vpop.xlane.xlu0 %2223
        %2225 = vmax.xlane.f32.xlu0 %v2139
        %v2226 = vpop.xlane.xlu0 %2225
        %2227 = vmax.xlane.f32.xlu0 %v2140
        %v2228 = vpop.xlane.xlu0 %2227
        %2229 = vmax.xlane.f32.xlu0 %v2141
        %v2230 = vpop.xlane.xlu0 %2229
        %2231 = vmax.xlane.f32.xlu0 %v2142
        %v2232 = vpop.xlane.xlu0 %2231
        %2233 = vmax.xlane.f32.xlu0 %v2143
        %v2234 = vpop.xlane.xlu0 %2233
        %2235 = vmax.xlane.f32.xlu0 %v2144
        %v2236 = vpop.xlane.xlu0 %2235
        %2237 = vmax.xlane.f32.xlu0 %v2145
        %v2238 = vpop.xlane.xlu0 %2237
        %2239 = vmax.xlane.f32.xlu0 %v2146
        %v2240 = vpop.xlane.xlu0 %2239
        %2241 = vmax.xlane.f32.xlu0 %v2147
        %v2242 = vpop.xlane.xlu0 %2241
        %2243 = vmax.xlane.f32.xlu0 %v2148
        %v2244 = vpop.xlane.xlu0 %2243
        %2245 = vmax.xlane.f32.xlu0 %v2149
        %v2246 = vpop.xlane.xlu0 %2245
        %2247 = vmax.xlane.f32.xlu0 %v2150
        %v2248 = vpop.xlane.xlu0 %2247
        %2249 = vmax.xlane.f32.xlu0 %v2151
        %v2250 = vpop.xlane.xlu0 %2249
        %2251 = vmax.xlane.f32.xlu0 %v2152
        %v2252 = vpop.xlane.xlu0 %2251
        %2253 = vmax.xlane.f32.xlu0 %v2153
        %v2254 = vpop.xlane.xlu0 %2253
        %2255 = vmax.xlane.f32.xlu0 %v2154
        %v2256 = vpop.xlane.xlu0 %2255
        %2257 = vmax.xlane.f32.xlu0 %v2155
        %v2258 = vpop.xlane.xlu0 %2257
        %2259 = vmax.xlane.f32.xlu0 %v2156
        %v2260 = vpop.xlane.xlu0 %2259
        %2261 = vmax.xlane.f32.xlu0 %v2157
        %v2262 = vpop.xlane.xlu0 %2261
        %2263 = vmax.xlane.f32.xlu0 %v2158
        %v2264 = vpop.xlane.xlu0 %2263
        %2265 = vmax.xlane.f32.xlu0 %v2159
        %v2266 = vpop.xlane.xlu0 %2265
        %2267 = vmax.xlane.f32.xlu0 %v2160
        %v2268 = vpop.xlane.xlu0 %2267
        %2269 = vmax.xlane.f32.xlu0 %v2161
        %v2270 = vpop.xlane.xlu0 %2269
        %2271 = vmax.xlane.f32.xlu0 %v2162
        %v2272 = vpop.xlane.xlu0 %2271
        %2273 = vmax.xlane.f32.xlu0 %v2163
        %v2274 = vpop.xlane.xlu0 %2273
        %2275 = vmax.xlane.f32.xlu0 %v2164
        %v2276 = vpop.xlane.xlu0 %2275
        %2277 = vmax.xlane.f32.xlu0 %v2165
        %v2278 = vpop.xlane.xlu0 %2277
        %2279 = vmax.xlane.f32.xlu0 %v2166
        %v2280 = vpop.xlane.xlu0 %2279
        %2281 = vmax.xlane.f32.xlu0 %v2167
        %v2282 = vpop.xlane.xlu0 %2281
        %2283 = vmax.xlane.f32.xlu0 %v2168
        %v2284 = vpop.xlane.xlu0 %2283
        %2285 = vmax.xlane.f32.xlu0 %v2169
        %v2286 = vpop.xlane.xlu0 %2285
        %2287 = vmax.xlane.f32.xlu0 %v2170
        %v2288 = vpop.xlane.xlu0 %2287
        %2289 = vmax.xlane.f32.xlu0 %v2171
        %v2290 = vpop.xlane.xlu0 %2289
        %2291 = vmax.xlane.f32.xlu0 %v2172
        %v2292 = vpop.xlane.xlu0 %2291
        %2293 = vmax.xlane.f32.xlu0 %v2173
        %v2294 = vpop.xlane.xlu0 %2293
        %2295 = vmax.xlane.f32.xlu0 %v2174
        %v2296 = vpop.xlane.xlu0 %2295
        %2297 = vmax.xlane.f32.xlu0 %v2175
        %v2298 = vpop.xlane.xlu0 %2297
        %2299 = vmax.xlane.f32.xlu0 %v2176
        %v2300 = vpop.xlane.xlu0 %2299
        %2301 = vmax.xlane.f32.xlu0 %v2177
        %v2302 = vpop.xlane.xlu0 %2301
        %2303 = vmax.xlane.f32.xlu0 %v2178
        %v2304 = vpop.xlane.xlu0 %2303
        %2305 = vmax.xlane.f32.xlu0 %v2179
        %v2306 = vpop.xlane.xlu0 %2305
        %2307 = vmax.xlane.f32.xlu0 %v2180
        %v2308 = vpop.xlane.xlu0 %2307
        %v2309 = vsub.f32 %v2117, %v2182
        %v2310 = vsub.f32 %v2118, %v2184
        %v2311 = vsub.f32 %v2119, %v2186
        %v2312 = vsub.f32 %v2120, %v2188
        %v2313 = vsub.f32 %v2121, %v2190
        %v2314 = vsub.f32 %v2122, %v2192
        %v2315 = vsub.f32 %v2123, %v2194
        %v2316 = vsub.f32 %v2124, %v2196
        %v2317 = vsub.f32 %v2125, %v2198
        %v2318 = vsub.f32 %v2126, %v2200
        %v2319 = vsub.f32 %v2127, %v2202
        %v2320 = vsub.f32 %v2128, %v2204
        %v2321 = vsub.f32 %v2129, %v2206
        %v2322 = vsub.f32 %v2130, %v2208
        %v2323 = vsub.f32 %v2131, %v2210
        %v2324 = vsub.f32 %v2132, %v2212
        %v2325 = vsub.f32 %v2133, %v2214
        %v2326 = vsub.f32 %v2134, %v2216
        %v2327 = vsub.f32 %v2135, %v2218
        %v2328 = vsub.f32 %v2136, %v2220
        %v2329 = vsub.f32 %v2137, %v2222
        %v2330 = vsub.f32 %v2138, %v2224
        %v2331 = vsub.f32 %v2139, %v2226
        %v2332 = vsub.f32 %v2140, %v2228
        %v2333 = vsub.f32 %v2141, %v2230
        %v2334 = vsub.f32 %v2142, %v2232
        %v2335 = vsub.f32 %v2143, %v2234
        %v2336 = vsub.f32 %v2144, %v2236
        %v2337 = vsub.f32 %v2145, %v2238
        %v2338 = vsub.f32 %v2146, %v2240
        %v2339 = vsub.f32 %v2147, %v2242
        %v2340 = vsub.f32 %v2148, %v2244
        %v2341 = vsub.f32 %v2149, %v2246
        %v2342 = vsub.f32 %v2150, %v2248
        %v2343 = vsub.f32 %v2151, %v2250
        %v2344 = vsub.f32 %v2152, %v2252
        %v2345 = vsub.f32 %v2153, %v2254
        %v2346 = vsub.f32 %v2154, %v2256
        %v2347 = vsub.f32 %v2155, %v2258
        %v2348 = vsub.f32 %v2156, %v2260
        %v2349 = vsub.f32 %v2157, %v2262
        %v2350 = vsub.f32 %v2158, %v2264
        %v2351 = vsub.f32 %v2159, %v2266
        %v2352 = vsub.f32 %v2160, %v2268
        %v2353 = vsub.f32 %v2161, %v2270
        %v2354 = vsub.f32 %v2162, %v2272
        %v2355 = vsub.f32 %v2163, %v2274
        %v2356 = vsub.f32 %v2164, %v2276
        %v2357 = vsub.f32 %v2165, %v2278
        %v2358 = vsub.f32 %v2166, %v2280
        %v2359 = vsub.f32 %v2167, %v2282
        %v2360 = vsub.f32 %v2168, %v2284
        %v2361 = vsub.f32 %v2169, %v2286
        %v2362 = vsub.f32 %v2170, %v2288
        %v2363 = vsub.f32 %v2171, %v2290
        %v2364 = vsub.f32 %v2172, %v2292
        %v2365 = vsub.f32 %v2173, %v2294
        %v2366 = vsub.f32 %v2174, %v2296
        %v2367 = vsub.f32 %v2175, %v2298
        %v2368 = vsub.f32 %v2176, %v2300
        %v2369 = vsub.f32 %v2177, %v2302
        %v2370 = vsub.f32 %v2178, %v2304
        %v2371 = vsub.f32 %v2179, %v2306
        %v2372 = vsub.f32 %v2180, %v2308
        %v2373 = vmul.f32 %v2309, 1.442695
        %v2374 = vpow.pop %v2373
        %v2375 = vmul.f32 %v2310, 1.442695
        %v2376 = vpow.pop %v2375
        %v2377 = vmul.f32 %v2311, 1.442695
        %v2378 = vpow.pop %v2377
        %v2379 = vmul.f32 %v2312, 1.442695
        %v2380 = vpow.pop %v2379
        %v2381 = vmul.f32 %v2313, 1.442695
        %v2382 = vpow.pop %v2381
        %v2383 = vmul.f32 %v2314, 1.442695
        %v2384 = vpow.pop %v2383
        %v2385 = vmul.f32 %v2315, 1.442695
        %v2386 = vpow.pop %v2385
        %v2387 = vmul.f32 %v2316, 1.442695
        %v2388 = vpow.pop %v2387
        %v2389 = vmul.f32 %v2317, 1.442695
        %v2390 = vpow.pop %v2389
        %v2391 = vmul.f32 %v2318, 1.442695
        %v2392 = vpow.pop %v2391
        %v2393 = vmul.f32 %v2319, 1.442695
        %v2394 = vpow.pop %v2393
        %v2395 = vmul.f32 %v2320, 1.442695
        %v2396 = vpow.pop %v2395
        %v2397 = vmul.f32 %v2321, 1.442695
        %v2398 = vpow.pop %v2397
        %v2399 = vmul.f32 %v2322, 1.442695
        %v2400 = vpow.pop %v2399
        %v2401 = vmul.f32 %v2323, 1.442695
        %v2402 = vpow.pop %v2401
        %v2403 = vmul.f32 %v2324, 1.442695
        %v2404 = vpow.pop %v2403
        %v2405 = vmul.f32 %v2325, 1.442695
        %v2406 = vpow.pop %v2405
        %v2407 = vmul.f32 %v2326, 1.442695
        %v2408 = vpow.pop %v2407
        %v2409 = vmul.f32 %v2327, 1.442695
        %v2410 = vpow.pop %v2409
        %v2411 = vmul.f32 %v2328, 1.442695
        %v2412 = vpow.pop %v2411
        %v2413 = vmul.f32 %v2329, 1.442695
        %v2414 = vpow.pop %v2413
        %v2415 = vmul.f32 %v2330, 1.442695
        %v2416 = vpow.pop %v2415
        %v2417 = vmul.f32 %v2331, 1.442695
        %v2418 = vpow.pop %v2417
        %v2419 = vmul.f32 %v2332, 1.442695
        %v2420 = vpow.pop %v2419
        %v2421 = vmul.f32 %v2333, 1.442695
        %v2422 = vpow.pop %v2421
        %v2423 = vmul.f32 %v2334, 1.442695
        %v2424 = vpow.pop %v2423
        %v2425 = vmul.f32 %v2335, 1.442695
        %v2426 = vpow.pop %v2425
        %v2427 = vmul.f32 %v2336, 1.442695
        %v2428 = vpow.pop %v2427
        %v2429 = vmul.f32 %v2337, 1.442695
        %v2430 = vpow.pop %v2429
        %v2431 = vmul.f32 %v2338, 1.442695
        %v2432 = vpow.pop %v2431
        %v2433 = vmul.f32 %v2339, 1.442695
        %v2434 = vpow.pop %v2433
        %v2435 = vmul.f32 %v2340, 1.442695
        %v2436 = vpow.pop %v2435
        %v2437 = vmul.f32 %v2341, 1.442695
        %v2438 = vpow.pop %v2437
        %v2439 = vmul.f32 %v2342, 1.442695
        %v2440 = vpow.pop %v2439
        %v2441 = vmul.f32 %v2343, 1.442695
        %v2442 = vpow.pop %v2441
        %v2443 = vmul.f32 %v2344, 1.442695
        %v2444 = vpow.pop %v2443
        %v2445 = vmul.f32 %v2345, 1.442695
        %v2446 = vpow.pop %v2445
        %v2447 = vmul.f32 %v2346, 1.442695
        %v2448 = vpow.pop %v2447
        %v2449 = vmul.f32 %v2347, 1.442695
        %v2450 = vpow.pop %v2449
        %v2451 = vmul.f32 %v2348, 1.442695
        %v2452 = vpow.pop %v2451
        %v2453 = vmul.f32 %v2349, 1.442695
        %v2454 = vpow.pop %v2453
        %v2455 = vmul.f32 %v2350, 1.442695
        %v2456 = vpow.pop %v2455
        %v2457 = vmul.f32 %v2351, 1.442695
        %v2458 = vpow.pop %v2457
        %v2459 = vmul.f32 %v2352, 1.442695
        %v2460 = vpow.pop %v2459
        %v2461 = vmul.f32 %v2353, 1.442695
        %v2462 = vpow.pop %v2461
        %v2463 = vmul.f32 %v2354, 1.442695
        %v2464 = vpow.pop %v2463
        %v2465 = vmul.f32 %v2355, 1.442695
        %v2466 = vpow.pop %v2465
        %v2467 = vmul.f32 %v2356, 1.442695
        %v2468 = vpow.pop %v2467
        %v2469 = vmul.f32 %v2357, 1.442695
        %v2470 = vpow.pop %v2469
        %v2471 = vmul.f32 %v2358, 1.442695
        %v2472 = vpow.pop %v2471
        %v2473 = vmul.f32 %v2359, 1.442695
        %v2474 = vpow.pop %v2473
        %v2475 = vmul.f32 %v2360, 1.442695
        %v2476 = vpow.pop %v2475
        %v2477 = vmul.f32 %v2361, 1.442695
        %v2478 = vpow.pop %v2477
        %v2479 = vmul.f32 %v2362, 1.442695
        %v2480 = vpow.pop %v2479
        %v2481 = vmul.f32 %v2363, 1.442695
        %v2482 = vpow.pop %v2481
        %v2483 = vmul.f32 %v2364, 1.442695
        %v2484 = vpow.pop %v2483
        %v2485 = vmul.f32 %v2365, 1.442695
        %v2486 = vpow.pop %v2485
        %v2487 = vmul.f32 %v2366, 1.442695
        %v2488 = vpow.pop %v2487
        %v2489 = vmul.f32 %v2367, 1.442695
        %v2490 = vpow.pop %v2489
        %v2491 = vmul.f32 %v2368, 1.442695
        %v2492 = vpow.pop %v2491
        %v2493 = vmul.f32 %v2369, 1.442695
        %v2494 = vpow.pop %v2493
        %v2495 = vmul.f32 %v2370, 1.442695
        %v2496 = vpow.pop %v2495
        %v2497 = vmul.f32 %v2371, 1.442695
        %v2498 = vpow.pop %v2497
        %v2499 = vmul.f32 %v2372, 1.442695
        %v2500 = vpow.pop %v2499
        %2501 = vadd.xlane.f32.xlu0 %v2374
        %v2502 = vpop.xlane.xlu0 %2501
        %2503 = vadd.xlane.f32.xlu0 %v2376
        %v2504 = vpop.xlane.xlu0 %2503
        %2505 = vadd.xlane.f32.xlu0 %v2378
        %v2506 = vpop.xlane.xlu0 %2505
        %2507 = vadd.xlane.f32.xlu0 %v2380
        %v2508 = vpop.xlane.xlu0 %2507
        %2509 = vadd.xlane.f32.xlu0 %v2382
        %v2510 = vpop.xlane.xlu0 %2509
        %2511 = vadd.xlane.f32.xlu0 %v2384
        %v2512 = vpop.xlane.xlu0 %2511
        %2513 = vadd.xlane.f32.xlu0 %v2386
        %v2514 = vpop.xlane.xlu0 %2513
        %2515 = vadd.xlane.f32.xlu0 %v2388
        %v2516 = vpop.xlane.xlu0 %2515
        %2517 = vadd.xlane.f32.xlu0 %v2390
        %v2518 = vpop.xlane.xlu0 %2517
        %2519 = vadd.xlane.f32.xlu0 %v2392
        %v2520 = vpop.xlane.xlu0 %2519
        %2521 = vadd.xlane.f32.xlu0 %v2394
        %v2522 = vpop.xlane.xlu0 %2521
        %2523 = vadd.xlane.f32.xlu0 %v2396
        %v2524 = vpop.xlane.xlu0 %2523
        %2525 = vadd.xlane.f32.xlu0 %v2398
        %v2526 = vpop.xlane.xlu0 %2525
        %2527 = vadd.xlane.f32.xlu0 %v2400
        %v2528 = vpop.xlane.xlu0 %2527
        %2529 = vadd.xlane.f32.xlu0 %v2402
        %v2530 = vpop.xlane.xlu0 %2529
        %2531 = vadd.xlane.f32.xlu0 %v2404
        %v2532 = vpop.xlane.xlu0 %2531
        %2533 = vadd.xlane.f32.xlu0 %v2406
        %v2534 = vpop.xlane.xlu0 %2533
        %2535 = vadd.xlane.f32.xlu0 %v2408
        %v2536 = vpop.xlane.xlu0 %2535
        %2537 = vadd.xlane.f32.xlu0 %v2410
        %v2538 = vpop.xlane.xlu0 %2537
        %2539 = vadd.xlane.f32.xlu0 %v2412
        %v2540 = vpop.xlane.xlu0 %2539
        %2541 = vadd.xlane.f32.xlu0 %v2414
        %v2542 = vpop.xlane.xlu0 %2541
        %2543 = vadd.xlane.f32.xlu0 %v2416
        %v2544 = vpop.xlane.xlu0 %2543
        %2545 = vadd.xlane.f32.xlu0 %v2418
        %v2546 = vpop.xlane.xlu0 %2545
        %2547 = vadd.xlane.f32.xlu0 %v2420
        %v2548 = vpop.xlane.xlu0 %2547
        %2549 = vadd.xlane.f32.xlu0 %v2422
        %v2550 = vpop.xlane.xlu0 %2549
        %2551 = vadd.xlane.f32.xlu0 %v2424
        %v2552 = vpop.xlane.xlu0 %2551
        %2553 = vadd.xlane.f32.xlu0 %v2426
        %v2554 = vpop.xlane.xlu0 %2553
        %2555 = vadd.xlane.f32.xlu0 %v2428
        %v2556 = vpop.xlane.xlu0 %2555
        %2557 = vadd.xlane.f32.xlu0 %v2430
        %v2558 = vpop.xlane.xlu0 %2557
        %2559 = vadd.xlane.f32.xlu0 %v2432
        %v2560 = vpop.xlane.xlu0 %2559
        %2561 = vadd.xlane.f32.xlu0 %v2434
        %v2562 = vpop.xlane.xlu0 %2561
        %2563 = vadd.xlane.f32.xlu0 %v2436
        %v2564 = vpop.xlane.xlu0 %2563
        %2565 = vadd.xlane.f32.xlu0 %v2438
        %v2566 = vpop.xlane.xlu0 %2565
        %2567 = vadd.xlane.f32.xlu0 %v2440
        %v2568 = vpop.xlane.xlu0 %2567
        %2569 = vadd.xlane.f32.xlu0 %v2442
        %v2570 = vpop.xlane.xlu0 %2569
        %2571 = vadd.xlane.f32.xlu0 %v2444
        %v2572 = vpop.xlane.xlu0 %2571
        %2573 = vadd.xlane.f32.xlu0 %v2446
        %v2574 = vpop.xlane.xlu0 %2573
        %2575 = vadd.xlane.f32.xlu0 %v2448
        %v2576 = vpop.xlane.xlu0 %2575
        %2577 = vadd.xlane.f32.xlu0 %v2450
        %v2578 = vpop.xlane.xlu0 %2577
        %2579 = vadd.xlane.f32.xlu0 %v2452
        %v2580 = vpop.xlane.xlu0 %2579
        %2581 = vadd.xlane.f32.xlu0 %v2454
        %v2582 = vpop.xlane.xlu0 %2581
        %2583 = vadd.xlane.f32.xlu0 %v2456
        %v2584 = vpop.xlane.xlu0 %2583
        %2585 = vadd.xlane.f32.xlu0 %v2458
        %v2586 = vpop.xlane.xlu0 %2585
        %2587 = vadd.xlane.f32.xlu0 %v2460
        %v2588 = vpop.xlane.xlu0 %2587
        %2589 = vadd.xlane.f32.xlu0 %v2462
        %v2590 = vpop.xlane.xlu0 %2589
        %2591 = vadd.xlane.f32.xlu0 %v2464
        %v2592 = vpop.xlane.xlu0 %2591
        %2593 = vadd.xlane.f32.xlu0 %v2466
        %v2594 = vpop.xlane.xlu0 %2593
        %2595 = vadd.xlane.f32.xlu0 %v2468
        %v2596 = vpop.xlane.xlu0 %2595
        %2597 = vadd.xlane.f32.xlu0 %v2470
        %v2598 = vpop.xlane.xlu0 %2597
        %2599 = vadd.xlane.f32.xlu0 %v2472
        %v2600 = vpop.xlane.xlu0 %2599
        %2601 = vadd.xlane.f32.xlu0 %v2474
        %v2602 = vpop.xlane.xlu0 %2601
        %2603 = vadd.xlane.f32.xlu0 %v2476
        %v2604 = vpop.xlane.xlu0 %2603
        %2605 = vadd.xlane.f32.xlu0 %v2478
        %v2606 = vpop.xlane.xlu0 %2605
        %2607 = vadd.xlane.f32.xlu0 %v2480
        %v2608 = vpop.xlane.xlu0 %2607
        %2609 = vadd.xlane.f32.xlu0 %v2482
        %v2610 = vpop.xlane.xlu0 %2609
        %2611 = vadd.xlane.f32.xlu0 %v2484
        %v2612 = vpop.xlane.xlu0 %2611
        %2613 = vadd.xlane.f32.xlu0 %v2486
        %v2614 = vpop.xlane.xlu0 %2613
        %2615 = vadd.xlane.f32.xlu0 %v2488
        %v2616 = vpop.xlane.xlu0 %2615
        %2617 = vadd.xlane.f32.xlu0 %v2490
        %v2618 = vpop.xlane.xlu0 %2617
        %2619 = vadd.xlane.f32.xlu0 %v2492
        %v2620 = vpop.xlane.xlu0 %2619
        %2621 = vadd.xlane.f32.xlu0 %v2494
        %v2622 = vpop.xlane.xlu0 %2621
        %2623 = vadd.xlane.f32.xlu0 %v2496
        %v2624 = vpop.xlane.xlu0 %2623
        %2625 = vadd.xlane.f32.xlu0 %v2498
        %v2626 = vpop.xlane.xlu0 %2625
        %2627 = vadd.xlane.f32.xlu0 %v2500
        %v2628 = vpop.xlane.xlu0 %2627
        %v2629 = vrcp.pop %v2502
        %v2630 = vmul.f32 %v2502, %v2629
        %v2631 = vsub.f32 1.0, %v2630
        %v2632 = vmul.f32 %v2629, %v2631
        %v2633 = vadd.f32 %v2629, %v2632
        %vm2634 = vweird.f32 %v2502
        %vm2635 = vweird.f32 %v2629
        %vm2636 = vmor %vm2634, %vm2635
        %v2637 = vsel %vm2636, %v2629, %v2633
        %v2638 = vand.u32 2147483647, %v2502
        %vm2639 = vcmp.eq.f32.partialorder %v2638, 8.507059e+37
        %v2640 = vand.u32 %v2502, 2147483648
        %v2641 = vor.u32 1.1754944e-38, %v2640
        %v2642 = vsel %vm2639, %v2641, %v2637
        %v2643 = vmul.f32 %v2374, %v2642
        %v2644 = vrcp.pop %v2504
        %v2645 = vmul.f32 %v2504, %v2644
        %v2646 = vsub.f32 1.0, %v2645
        %v2647 = vmul.f32 %v2644, %v2646
        %v2648 = vadd.f32 %v2644, %v2647
        %vm2649 = vweird.f32 %v2504
        %vm2650 = vweird.f32 %v2644
        %vm2651 = vmor %vm2649, %vm2650
        %v2652 = vsel %vm2651, %v2644, %v2648
        %v2653 = vand.u32 2147483647, %v2504
        %vm2654 = vcmp.eq.f32.partialorder %v2653, 8.507059e+37
        %v2655 = vand.u32 %v2504, 2147483648
        %v2656 = vor.u32 1.1754944e-38, %v2655
        %v2657 = vsel %vm2654, %v2656, %v2652
        %v2658 = vmul.f32 %v2376, %v2657
        %v2659 = vrcp.pop %v2506
        %v2660 = vmul.f32 %v2506, %v2659
        %v2661 = vsub.f32 1.0, %v2660
        %v2662 = vmul.f32 %v2659, %v2661
        %v2663 = vadd.f32 %v2659, %v2662
        %vm2664 = vweird.f32 %v2506
        %vm2665 = vweird.f32 %v2659
        %vm2666 = vmor %vm2664, %vm2665
        %v2667 = vsel %vm2666, %v2659, %v2663
        %v2668 = vand.u32 2147483647, %v2506
        %vm2669 = vcmp.eq.f32.partialorder %v2668, 8.507059e+37
        %v2670 = vand.u32 %v2506, 2147483648
        %v2671 = vor.u32 1.1754944e-38, %v2670
        %v2672 = vsel %vm2669, %v2671, %v2667
        %v2673 = vmul.f32 %v2378, %v2672
        %v2674 = vrcp.pop %v2508
        %v2675 = vmul.f32 %v2508, %v2674
        %v2676 = vsub.f32 1.0, %v2675
        %v2677 = vmul.f32 %v2674, %v2676
        %v2678 = vadd.f32 %v2674, %v2677
        %vm2679 = vweird.f32 %v2508
        %vm2680 = vweird.f32 %v2674
        %vm2681 = vmor %vm2679, %vm2680
        %v2682 = vsel %vm2681, %v2674, %v2678
        %v2683 = vand.u32 2147483647, %v2508
        %vm2684 = vcmp.eq.f32.partialorder %v2683, 8.507059e+37
        %v2685 = vand.u32 %v2508, 2147483648
        %v2686 = vor.u32 1.1754944e-38, %v2685
        %v2687 = vsel %vm2684, %v2686, %v2682
        %v2688 = vmul.f32 %v2380, %v2687
        %v2689 = vrcp.pop %v2510
        %v2690 = vmul.f32 %v2510, %v2689
        %v2691 = vsub.f32 1.0, %v2690
        %v2692 = vmul.f32 %v2689, %v2691
        %v2693 = vadd.f32 %v2689, %v2692
        %vm2694 = vweird.f32 %v2510
        %vm2695 = vweird.f32 %v2689
        %vm2696 = vmor %vm2694, %vm2695
        %v2697 = vsel %vm2696, %v2689, %v2693
        %v2698 = vand.u32 2147483647, %v2510
        %vm2699 = vcmp.eq.f32.partialorder %v2698, 8.507059e+37
        %v2700 = vand.u32 %v2510, 2147483648
        %v2701 = vor.u32 1.1754944e-38, %v2700
        %v2702 = vsel %vm2699, %v2701, %v2697
        %v2703 = vmul.f32 %v2382, %v2702
        %v2704 = vrcp.pop %v2512
        %v2705 = vmul.f32 %v2512, %v2704
        %v2706 = vsub.f32 1.0, %v2705
        %v2707 = vmul.f32 %v2704, %v2706
        %v2708 = vadd.f32 %v2704, %v2707
        %vm2709 = vweird.f32 %v2512
        %vm2710 = vweird.f32 %v2704
        %vm2711 = vmor %vm2709, %vm2710
        %v2712 = vsel %vm2711, %v2704, %v2708
        %v2713 = vand.u32 2147483647, %v2512
        %vm2714 = vcmp.eq.f32.partialorder %v2713, 8.507059e+37
        %v2715 = vand.u32 %v2512, 2147483648
        %v2716 = vor.u32 1.1754944e-38, %v2715
        %v2717 = vsel %vm2714, %v2716, %v2712
        %v2718 = vmul.f32 %v2384, %v2717
        %v2719 = vrcp.pop %v2514
        %v2720 = vmul.f32 %v2514, %v2719
        %v2721 = vsub.f32 1.0, %v2720
        %v2722 = vmul.f32 %v2719, %v2721
        %v2723 = vadd.f32 %v2719, %v2722
        %vm2724 = vweird.f32 %v2514
        %vm2725 = vweird.f32 %v2719
        %vm2726 = vmor %vm2724, %vm2725
        %v2727 = vsel %vm2726, %v2719, %v2723
        %v2728 = vand.u32 2147483647, %v2514
        %vm2729 = vcmp.eq.f32.partialorder %v2728, 8.507059e+37
        %v2730 = vand.u32 %v2514, 2147483648
        %v2731 = vor.u32 1.1754944e-38, %v2730
        %v2732 = vsel %vm2729, %v2731, %v2727
        %v2733 = vmul.f32 %v2386, %v2732
        %v2734 = vrcp.pop %v2516
        %v2735 = vmul.f32 %v2516, %v2734
        %v2736 = vsub.f32 1.0, %v2735
        %v2737 = vmul.f32 %v2734, %v2736
        %v2738 = vadd.f32 %v2734, %v2737
        %vm2739 = vweird.f32 %v2516
        %vm2740 = vweird.f32 %v2734
        %vm2741 = vmor %vm2739, %vm2740
        %v2742 = vsel %vm2741, %v2734, %v2738
        %v2743 = vand.u32 2147483647, %v2516
        %vm2744 = vcmp.eq.f32.partialorder %v2743, 8.507059e+37
        %v2745 = vand.u32 %v2516, 2147483648
        %v2746 = vor.u32 1.1754944e-38, %v2745
        %v2747 = vsel %vm2744, %v2746, %v2742
        %v2748 = vmul.f32 %v2388, %v2747
        %v2749 = vrcp.pop %v2518
        %v2750 = vmul.f32 %v2518, %v2749
        %v2751 = vsub.f32 1.0, %v2750
        %v2752 = vmul.f32 %v2749, %v2751
        %v2753 = vadd.f32 %v2749, %v2752
        %vm2754 = vweird.f32 %v2518
        %vm2755 = vweird.f32 %v2749
        %vm2756 = vmor %vm2754, %vm2755
        %v2757 = vsel %vm2756, %v2749, %v2753
        %v2758 = vand.u32 2147483647, %v2518
        %vm2759 = vcmp.eq.f32.partialorder %v2758, 8.507059e+37
        %v2760 = vand.u32 %v2518, 2147483648
        %v2761 = vor.u32 1.1754944e-38, %v2760
        %v2762 = vsel %vm2759, %v2761, %v2757
        %v2763 = vmul.f32 %v2390, %v2762
        %v2764 = vrcp.pop %v2520
        %v2765 = vmul.f32 %v2520, %v2764
        %v2766 = vsub.f32 1.0, %v2765
        %v2767 = vmul.f32 %v2764, %v2766
        %v2768 = vadd.f32 %v2764, %v2767
        %vm2769 = vweird.f32 %v2520
        %vm2770 = vweird.f32 %v2764
        %vm2771 = vmor %vm2769, %vm2770
        %v2772 = vsel %vm2771, %v2764, %v2768
        %v2773 = vand.u32 2147483647, %v2520
        %vm2774 = vcmp.eq.f32.partialorder %v2773, 8.507059e+37
        %v2775 = vand.u32 %v2520, 2147483648
        %v2776 = vor.u32 1.1754944e-38, %v2775
        %v2777 = vsel %vm2774, %v2776, %v2772
        %v2778 = vmul.f32 %v2392, %v2777
        %v2779 = vrcp.pop %v2522
        %v2780 = vmul.f32 %v2522, %v2779
        %v2781 = vsub.f32 1.0, %v2780
        %v2782 = vmul.f32 %v2779, %v2781
        %v2783 = vadd.f32 %v2779, %v2782
        %vm2784 = vweird.f32 %v2522
        %vm2785 = vweird.f32 %v2779
        %vm2786 = vmor %vm2784, %vm2785
        %v2787 = vsel %vm2786, %v2779, %v2783
        %v2788 = vand.u32 2147483647, %v2522
        %vm2789 = vcmp.eq.f32.partialorder %v2788, 8.507059e+37
        %v2790 = vand.u32 %v2522, 2147483648
        %v2791 = vor.u32 1.1754944e-38, %v2790
        %v2792 = vsel %vm2789, %v2791, %v2787
        %v2793 = vmul.f32 %v2394, %v2792
        %v2794 = vrcp.pop %v2524
        %v2795 = vmul.f32 %v2524, %v2794
        %v2796 = vsub.f32 1.0, %v2795
        %v2797 = vmul.f32 %v2794, %v2796
        %v2798 = vadd.f32 %v2794, %v2797
        %vm2799 = vweird.f32 %v2524
        %vm2800 = vweird.f32 %v2794
        %vm2801 = vmor %vm2799, %vm2800
        %v2802 = vsel %vm2801, %v2794, %v2798
        %v2803 = vand.u32 2147483647, %v2524
        %vm2804 = vcmp.eq.f32.partialorder %v2803, 8.507059e+37
        %v2805 = vand.u32 %v2524, 2147483648
        %v2806 = vor.u32 1.1754944e-38, %v2805
        %v2807 = vsel %vm2804, %v2806, %v2802
        %v2808 = vmul.f32 %v2396, %v2807
        %v2809 = vrcp.pop %v2526
        %v2810 = vmul.f32 %v2526, %v2809
        %v2811 = vsub.f32 1.0, %v2810
        %v2812 = vmul.f32 %v2809, %v2811
        %v2813 = vadd.f32 %v2809, %v2812
        %vm2814 = vweird.f32 %v2526
        %vm2815 = vweird.f32 %v2809
        %vm2816 = vmor %vm2814, %vm2815
        %v2817 = vsel %vm2816, %v2809, %v2813
        %v2818 = vand.u32 2147483647, %v2526
        %vm2819 = vcmp.eq.f32.partialorder %v2818, 8.507059e+37
        %v2820 = vand.u32 %v2526, 2147483648
        %v2821 = vor.u32 1.1754944e-38, %v2820
        %v2822 = vsel %vm2819, %v2821, %v2817
        %v2823 = vmul.f32 %v2398, %v2822
        %v2824 = vrcp.pop %v2528
        %v2825 = vmul.f32 %v2528, %v2824
        %v2826 = vsub.f32 1.0, %v2825
        %v2827 = vmul.f32 %v2824, %v2826
        %v2828 = vadd.f32 %v2824, %v2827
        %vm2829 = vweird.f32 %v2528
        %vm2830 = vweird.f32 %v2824
        %vm2831 = vmor %vm2829, %vm2830
        %v2832 = vsel %vm2831, %v2824, %v2828
        %v2833 = vand.u32 2147483647, %v2528
        %vm2834 = vcmp.eq.f32.partialorder %v2833, 8.507059e+37
        %v2835 = vand.u32 %v2528, 2147483648
        %v2836 = vor.u32 1.1754944e-38, %v2835
        %v2837 = vsel %vm2834, %v2836, %v2832
        %v2838 = vmul.f32 %v2400, %v2837
        %v2839 = vrcp.pop %v2530
        %v2840 = vmul.f32 %v2530, %v2839
        %v2841 = vsub.f32 1.0, %v2840
        %v2842 = vmul.f32 %v2839, %v2841
        %v2843 = vadd.f32 %v2839, %v2842
        %vm2844 = vweird.f32 %v2530
        %vm2845 = vweird.f32 %v2839
        %vm2846 = vmor %vm2844, %vm2845
        %v2847 = vsel %vm2846, %v2839, %v2843
        %v2848 = vand.u32 2147483647, %v2530
        %vm2849 = vcmp.eq.f32.partialorder %v2848, 8.507059e+37
        %v2850 = vand.u32 %v2530, 2147483648
        %v2851 = vor.u32 1.1754944e-38, %v2850
        %v2852 = vsel %vm2849, %v2851, %v2847
        %v2853 = vmul.f32 %v2402, %v2852
        %v2854 = vrcp.pop %v2532
        %v2855 = vmul.f32 %v2532, %v2854
        %v2856 = vsub.f32 1.0, %v2855
        %v2857 = vmul.f32 %v2854, %v2856
        %v2858 = vadd.f32 %v2854, %v2857
        %vm2859 = vweird.f32 %v2532
        %vm2860 = vweird.f32 %v2854
        %vm2861 = vmor %vm2859, %vm2860
        %v2862 = vsel %vm2861, %v2854, %v2858
        %v2863 = vand.u32 2147483647, %v2532
        %vm2864 = vcmp.eq.f32.partialorder %v2863, 8.507059e+37
        %v2865 = vand.u32 %v2532, 2147483648
        %v2866 = vor.u32 1.1754944e-38, %v2865
        %v2867 = vsel %vm2864, %v2866, %v2862
        %v2868 = vmul.f32 %v2404, %v2867
        %v2869 = vrcp.pop %v2534
        %v2870 = vmul.f32 %v2534, %v2869
        %v2871 = vsub.f32 1.0, %v2870
        %v2872 = vmul.f32 %v2869, %v2871
        %v2873 = vadd.f32 %v2869, %v2872
        %vm2874 = vweird.f32 %v2534
        %vm2875 = vweird.f32 %v2869
        %vm2876 = vmor %vm2874, %vm2875
        %v2877 = vsel %vm2876, %v2869, %v2873
        %v2878 = vand.u32 2147483647, %v2534
        %vm2879 = vcmp.eq.f32.partialorder %v2878, 8.507059e+37
        %v2880 = vand.u32 %v2534, 2147483648
        %v2881 = vor.u32 1.1754944e-38, %v2880
        %v2882 = vsel %vm2879, %v2881, %v2877
        %v2883 = vmul.f32 %v2406, %v2882
        %v2884 = vrcp.pop %v2536
        %v2885 = vmul.f32 %v2536, %v2884
        %v2886 = vsub.f32 1.0, %v2885
        %v2887 = vmul.f32 %v2884, %v2886
        %v2888 = vadd.f32 %v2884, %v2887
        %vm2889 = vweird.f32 %v2536
        %vm2890 = vweird.f32 %v2884
        %vm2891 = vmor %vm2889, %vm2890
        %v2892 = vsel %vm2891, %v2884, %v2888
        %v2893 = vand.u32 2147483647, %v2536
        %vm2894 = vcmp.eq.f32.partialorder %v2893, 8.507059e+37
        %v2895 = vand.u32 %v2536, 2147483648
        %v2896 = vor.u32 1.1754944e-38, %v2895
        %v2897 = vsel %vm2894, %v2896, %v2892
        %v2898 = vmul.f32 %v2408, %v2897
        %v2899 = vrcp.pop %v2538
        %v2900 = vmul.f32 %v2538, %v2899
        %v2901 = vsub.f32 1.0, %v2900
        %v2902 = vmul.f32 %v2899, %v2901
        %v2903 = vadd.f32 %v2899, %v2902
        %vm2904 = vweird.f32 %v2538
        %vm2905 = vweird.f32 %v2899
        %vm2906 = vmor %vm2904, %vm2905
        %v2907 = vsel %vm2906, %v2899, %v2903
        %v2908 = vand.u32 2147483647, %v2538
        %vm2909 = vcmp.eq.f32.partialorder %v2908, 8.507059e+37
        %v2910 = vand.u32 %v2538, 2147483648
        %v2911 = vor.u32 1.1754944e-38, %v2910
        %v2912 = vsel %vm2909, %v2911, %v2907
        %v2913 = vmul.f32 %v2410, %v2912
        %v2914 = vrcp.pop %v2540
        %v2915 = vmul.f32 %v2540, %v2914
        %v2916 = vsub.f32 1.0, %v2915
        %v2917 = vmul.f32 %v2914, %v2916
        %v2918 = vadd.f32 %v2914, %v2917
        %vm2919 = vweird.f32 %v2540
        %vm2920 = vweird.f32 %v2914
        %vm2921 = vmor %vm2919, %vm2920
        %v2922 = vsel %vm2921, %v2914, %v2918
        %v2923 = vand.u32 2147483647, %v2540
        %vm2924 = vcmp.eq.f32.partialorder %v2923, 8.507059e+37
        %v2925 = vand.u32 %v2540, 2147483648
        %v2926 = vor.u32 1.1754944e-38, %v2925
        %v2927 = vsel %vm2924, %v2926, %v2922
        %v2928 = vmul.f32 %v2412, %v2927
        %v2929 = vrcp.pop %v2542
        %v2930 = vmul.f32 %v2542, %v2929
        %v2931 = vsub.f32 1.0, %v2930
        %v2932 = vmul.f32 %v2929, %v2931
        %v2933 = vadd.f32 %v2929, %v2932
        %vm2934 = vweird.f32 %v2542
        %vm2935 = vweird.f32 %v2929
        %vm2936 = vmor %vm2934, %vm2935
        %v2937 = vsel %vm2936, %v2929, %v2933
        %v2938 = vand.u32 2147483647, %v2542
        %vm2939 = vcmp.eq.f32.partialorder %v2938, 8.507059e+37
        %v2940 = vand.u32 %v2542, 2147483648
        %v2941 = vor.u32 1.1754944e-38, %v2940
        %v2942 = vsel %vm2939, %v2941, %v2937
        %v2943 = vmul.f32 %v2414, %v2942
        %v2944 = vrcp.pop %v2544
        %v2945 = vmul.f32 %v2544, %v2944
        %v2946 = vsub.f32 1.0, %v2945
        %v2947 = vmul.f32 %v2944, %v2946
        %v2948 = vadd.f32 %v2944, %v2947
        %vm2949 = vweird.f32 %v2544
        %vm2950 = vweird.f32 %v2944
        %vm2951 = vmor %vm2949, %vm2950
        %v2952 = vsel %vm2951, %v2944, %v2948
        %v2953 = vand.u32 2147483647, %v2544
        %vm2954 = vcmp.eq.f32.partialorder %v2953, 8.507059e+37
        %v2955 = vand.u32 %v2544, 2147483648
        %v2956 = vor.u32 1.1754944e-38, %v2955
        %v2957 = vsel %vm2954, %v2956, %v2952
        %v2958 = vmul.f32 %v2416, %v2957
        %v2959 = vrcp.pop %v2546
        %v2960 = vmul.f32 %v2546, %v2959
        %v2961 = vsub.f32 1.0, %v2960
        %v2962 = vmul.f32 %v2959, %v2961
        %v2963 = vadd.f32 %v2959, %v2962
        %vm2964 = vweird.f32 %v2546
        %vm2965 = vweird.f32 %v2959
        %vm2966 = vmor %vm2964, %vm2965
        %v2967 = vsel %vm2966, %v2959, %v2963
        %v2968 = vand.u32 2147483647, %v2546
        %vm2969 = vcmp.eq.f32.partialorder %v2968, 8.507059e+37
        %v2970 = vand.u32 %v2546, 2147483648
        %v2971 = vor.u32 1.1754944e-38, %v2970
        %v2972 = vsel %vm2969, %v2971, %v2967
        %v2973 = vmul.f32 %v2418, %v2972
        %v2974 = vrcp.pop %v2548
        %v2975 = vmul.f32 %v2548, %v2974
        %v2976 = vsub.f32 1.0, %v2975
        %v2977 = vmul.f32 %v2974, %v2976
        %v2978 = vadd.f32 %v2974, %v2977
        %vm2979 = vweird.f32 %v2548
        %vm2980 = vweird.f32 %v2974
        %vm2981 = vmor %vm2979, %vm2980
        %v2982 = vsel %vm2981, %v2974, %v2978
        %v2983 = vand.u32 2147483647, %v2548
        %vm2984 = vcmp.eq.f32.partialorder %v2983, 8.507059e+37
        %v2985 = vand.u32 %v2548, 2147483648
        %v2986 = vor.u32 1.1754944e-38, %v2985
        %v2987 = vsel %vm2984, %v2986, %v2982
        %v2988 = vmul.f32 %v2420, %v2987
        %v2989 = vrcp.pop %v2550
        %v2990 = vmul.f32 %v2550, %v2989
        %v2991 = vsub.f32 1.0, %v2990
        %v2992 = vmul.f32 %v2989, %v2991
        %v2993 = vadd.f32 %v2989, %v2992
        %vm2994 = vweird.f32 %v2550
        %vm2995 = vweird.f32 %v2989
        %vm2996 = vmor %vm2994, %vm2995
        %v2997 = vsel %vm2996, %v2989, %v2993
        %v2998 = vand.u32 2147483647, %v2550
        %vm2999 = vcmp.eq.f32.partialorder %v2998, 8.507059e+37
        %v3000 = vand.u32 %v2550, 2147483648
        %v3001 = vor.u32 1.1754944e-38, %v3000
        %v3002 = vsel %vm2999, %v3001, %v2997
        %v3003 = vmul.f32 %v2422, %v3002
        %v3004 = vrcp.pop %v2552
        %v3005 = vmul.f32 %v2552, %v3004
        %v3006 = vsub.f32 1.0, %v3005
        %v3007 = vmul.f32 %v3004, %v3006
        %v3008 = vadd.f32 %v3004, %v3007
        %vm3009 = vweird.f32 %v2552
        %vm3010 = vweird.f32 %v3004
        %vm3011 = vmor %vm3009, %vm3010
        %v3012 = vsel %vm3011, %v3004, %v3008
        %v3013 = vand.u32 2147483647, %v2552
        %vm3014 = vcmp.eq.f32.partialorder %v3013, 8.507059e+37
        %v3015 = vand.u32 %v2552, 2147483648
        %v3016 = vor.u32 1.1754944e-38, %v3015
        %v3017 = vsel %vm3014, %v3016, %v3012
        %v3018 = vmul.f32 %v2424, %v3017
        %v3019 = vrcp.pop %v2554
        %v3020 = vmul.f32 %v2554, %v3019
        %v3021 = vsub.f32 1.0, %v3020
        %v3022 = vmul.f32 %v3019, %v3021
        %v3023 = vadd.f32 %v3019, %v3022
        %vm3024 = vweird.f32 %v2554
        %vm3025 = vweird.f32 %v3019
        %vm3026 = vmor %vm3024, %vm3025
        %v3027 = vsel %vm3026, %v3019, %v3023
        %v3028 = vand.u32 2147483647, %v2554
        %vm3029 = vcmp.eq.f32.partialorder %v3028, 8.507059e+37
        %v3030 = vand.u32 %v2554, 2147483648
        %v3031 = vor.u32 1.1754944e-38, %v3030
        %v3032 = vsel %vm3029, %v3031, %v3027
        %v3033 = vmul.f32 %v2426, %v3032
        %v3034 = vrcp.pop %v2556
        %v3035 = vmul.f32 %v2556, %v3034
        %v3036 = vsub.f32 1.0, %v3035
        %v3037 = vmul.f32 %v3034, %v3036
        %v3038 = vadd.f32 %v3034, %v3037
        %vm3039 = vweird.f32 %v2556
        %vm3040 = vweird.f32 %v3034
        %vm3041 = vmor %vm3039, %vm3040
        %v3042 = vsel %vm3041, %v3034, %v3038
        %v3043 = vand.u32 2147483647, %v2556
        %vm3044 = vcmp.eq.f32.partialorder %v3043, 8.507059e+37
        %v3045 = vand.u32 %v2556, 2147483648
        %v3046 = vor.u32 1.1754944e-38, %v3045
        %v3047 = vsel %vm3044, %v3046, %v3042
        %v3048 = vmul.f32 %v2428, %v3047
        %v3049 = vrcp.pop %v2558
        %v3050 = vmul.f32 %v2558, %v3049
        %v3051 = vsub.f32 1.0, %v3050
        %v3052 = vmul.f32 %v3049, %v3051
        %v3053 = vadd.f32 %v3049, %v3052
        %vm3054 = vweird.f32 %v2558
        %vm3055 = vweird.f32 %v3049
        %vm3056 = vmor %vm3054, %vm3055
        %v3057 = vsel %vm3056, %v3049, %v3053
        %v3058 = vand.u32 2147483647, %v2558
        %vm3059 = vcmp.eq.f32.partialorder %v3058, 8.507059e+37
        %v3060 = vand.u32 %v2558, 2147483648
        %v3061 = vor.u32 1.1754944e-38, %v3060
        %v3062 = vsel %vm3059, %v3061, %v3057
        %v3063 = vmul.f32 %v2430, %v3062
        %v3064 = vrcp.pop %v2560
        %v3065 = vmul.f32 %v2560, %v3064
        %v3066 = vsub.f32 1.0, %v3065
        %v3067 = vmul.f32 %v3064, %v3066
        %v3068 = vadd.f32 %v3064, %v3067
        %vm3069 = vweird.f32 %v2560
        %vm3070 = vweird.f32 %v3064
        %vm3071 = vmor %vm3069, %vm3070
        %v3072 = vsel %vm3071, %v3064, %v3068
        %v3073 = vand.u32 2147483647, %v2560
        %vm3074 = vcmp.eq.f32.partialorder %v3073, 8.507059e+37
        %v3075 = vand.u32 %v2560, 2147483648
        %v3076 = vor.u32 1.1754944e-38, %v3075
        %v3077 = vsel %vm3074, %v3076, %v3072
        %v3078 = vmul.f32 %v2432, %v3077
        %v3079 = vrcp.pop %v2562
        %v3080 = vmul.f32 %v2562, %v3079
        %v3081 = vsub.f32 1.0, %v3080
        %v3082 = vmul.f32 %v3079, %v3081
        %v3083 = vadd.f32 %v3079, %v3082
        %vm3084 = vweird.f32 %v2562
        %vm3085 = vweird.f32 %v3079
        %vm3086 = vmor %vm3084, %vm3085
        %v3087 = vsel %vm3086, %v3079, %v3083
        %v3088 = vand.u32 2147483647, %v2562
        %vm3089 = vcmp.eq.f32.partialorder %v3088, 8.507059e+37
        %v3090 = vand.u32 %v2562, 2147483648
        %v3091 = vor.u32 1.1754944e-38, %v3090
        %v3092 = vsel %vm3089, %v3091, %v3087
        %v3093 = vmul.f32 %v2434, %v3092
        %v3094 = vrcp.pop %v2564
        %v3095 = vmul.f32 %v2564, %v3094
        %v3096 = vsub.f32 1.0, %v3095
        %v3097 = vmul.f32 %v3094, %v3096
        %v3098 = vadd.f32 %v3094, %v3097
        %vm3099 = vweird.f32 %v2564
        %vm3100 = vweird.f32 %v3094
        %vm3101 = vmor %vm3099, %vm3100
        %v3102 = vsel %vm3101, %v3094, %v3098
        %v3103 = vand.u32 2147483647, %v2564
        %vm3104 = vcmp.eq.f32.partialorder %v3103, 8.507059e+37
        %v3105 = vand.u32 %v2564, 2147483648
        %v3106 = vor.u32 1.1754944e-38, %v3105
        %v3107 = vsel %vm3104, %v3106, %v3102
        %v3108 = vmul.f32 %v2436, %v3107
        %v3109 = vrcp.pop %v2566
        %v3110 = vmul.f32 %v2566, %v3109
        %v3111 = vsub.f32 1.0, %v3110
        %v3112 = vmul.f32 %v3109, %v3111
        %v3113 = vadd.f32 %v3109, %v3112
        %vm3114 = vweird.f32 %v2566
        %vm3115 = vweird.f32 %v3109
        %vm3116 = vmor %vm3114, %vm3115
        %v3117 = vsel %vm3116, %v3109, %v3113
        %v3118 = vand.u32 2147483647, %v2566
        %vm3119 = vcmp.eq.f32.partialorder %v3118, 8.507059e+37
        %v3120 = vand.u32 %v2566, 2147483648
        %v3121 = vor.u32 1.1754944e-38, %v3120
        %v3122 = vsel %vm3119, %v3121, %v3117
        %v3123 = vmul.f32 %v2438, %v3122
        %v3124 = vrcp.pop %v2568
        %v3125 = vmul.f32 %v2568, %v3124
        %v3126 = vsub.f32 1.0, %v3125
        %v3127 = vmul.f32 %v3124, %v3126
        %v3128 = vadd.f32 %v3124, %v3127
        %vm3129 = vweird.f32 %v2568
        %vm3130 = vweird.f32 %v3124
        %vm3131 = vmor %vm3129, %vm3130
        %v3132 = vsel %vm3131, %v3124, %v3128
        %v3133 = vand.u32 2147483647, %v2568
        %vm3134 = vcmp.eq.f32.partialorder %v3133, 8.507059e+37
        %v3135 = vand.u32 %v2568, 2147483648
        %v3136 = vor.u32 1.1754944e-38, %v3135
        %v3137 = vsel %vm3134, %v3136, %v3132
        %v3138 = vmul.f32 %v2440, %v3137
        %v3139 = vrcp.pop %v2570
        %v3140 = vmul.f32 %v2570, %v3139
        %v3141 = vsub.f32 1.0, %v3140
        %v3142 = vmul.f32 %v3139, %v3141
        %v3143 = vadd.f32 %v3139, %v3142
        %vm3144 = vweird.f32 %v2570
        %vm3145 = vweird.f32 %v3139
        %vm3146 = vmor %vm3144, %vm3145
        %v3147 = vsel %vm3146, %v3139, %v3143
        %v3148 = vand.u32 2147483647, %v2570
        %vm3149 = vcmp.eq.f32.partialorder %v3148, 8.507059e+37
        %v3150 = vand.u32 %v2570, 2147483648
        %v3151 = vor.u32 1.1754944e-38, %v3150
        %v3152 = vsel %vm3149, %v3151, %v3147
        %v3153 = vmul.f32 %v2442, %v3152
        %v3154 = vrcp.pop %v2572
        %v3155 = vmul.f32 %v2572, %v3154
        %v3156 = vsub.f32 1.0, %v3155
        %v3157 = vmul.f32 %v3154, %v3156
        %v3158 = vadd.f32 %v3154, %v3157
        %vm3159 = vweird.f32 %v2572
        %vm3160 = vweird.f32 %v3154
        %vm3161 = vmor %vm3159, %vm3160
        %v3162 = vsel %vm3161, %v3154, %v3158
        %v3163 = vand.u32 2147483647, %v2572
        %vm3164 = vcmp.eq.f32.partialorder %v3163, 8.507059e+37
        %v3165 = vand.u32 %v2572, 2147483648
        %v3166 = vor.u32 1.1754944e-38, %v3165
        %v3167 = vsel %vm3164, %v3166, %v3162
        %v3168 = vmul.f32 %v2444, %v3167
        %v3169 = vrcp.pop %v2574
        %v3170 = vmul.f32 %v2574, %v3169
        %v3171 = vsub.f32 1.0, %v3170
        %v3172 = vmul.f32 %v3169, %v3171
        %v3173 = vadd.f32 %v3169, %v3172
        %vm3174 = vweird.f32 %v2574
        %vm3175 = vweird.f32 %v3169
        %vm3176 = vmor %vm3174, %vm3175
        %v3177 = vsel %vm3176, %v3169, %v3173
        %v3178 = vand.u32 2147483647, %v2574
        %vm3179 = vcmp.eq.f32.partialorder %v3178, 8.507059e+37
        %v3180 = vand.u32 %v2574, 2147483648
        %v3181 = vor.u32 1.1754944e-38, %v3180
        %v3182 = vsel %vm3179, %v3181, %v3177
        %v3183 = vmul.f32 %v2446, %v3182
        %v3184 = vrcp.pop %v2576
        %v3185 = vmul.f32 %v2576, %v3184
        %v3186 = vsub.f32 1.0, %v3185
        %v3187 = vmul.f32 %v3184, %v3186
        %v3188 = vadd.f32 %v3184, %v3187
        %vm3189 = vweird.f32 %v2576
        %vm3190 = vweird.f32 %v3184
        %vm3191 = vmor %vm3189, %vm3190
        %v3192 = vsel %vm3191, %v3184, %v3188
        %v3193 = vand.u32 2147483647, %v2576
        %vm3194 = vcmp.eq.f32.partialorder %v3193, 8.507059e+37
        %v3195 = vand.u32 %v2576, 2147483648
        %v3196 = vor.u32 1.1754944e-38, %v3195
        %v3197 = vsel %vm3194, %v3196, %v3192
        %v3198 = vmul.f32 %v2448, %v3197
        %v3199 = vrcp.pop %v2578
        %v3200 = vmul.f32 %v2578, %v3199
        %v3201 = vsub.f32 1.0, %v3200
        %v3202 = vmul.f32 %v3199, %v3201
        %v3203 = vadd.f32 %v3199, %v3202
        %vm3204 = vweird.f32 %v2578
        %vm3205 = vweird.f32 %v3199
        %vm3206 = vmor %vm3204, %vm3205
        %v3207 = vsel %vm3206, %v3199, %v3203
        %v3208 = vand.u32 2147483647, %v2578
        %vm3209 = vcmp.eq.f32.partialorder %v3208, 8.507059e+37
        %v3210 = vand.u32 %v2578, 2147483648
        %v3211 = vor.u32 1.1754944e-38, %v3210
        %v3212 = vsel %vm3209, %v3211, %v3207
        %v3213 = vmul.f32 %v2450, %v3212
        %v3214 = vrcp.pop %v2580
        %v3215 = vmul.f32 %v2580, %v3214
        %v3216 = vsub.f32 1.0, %v3215
        %v3217 = vmul.f32 %v3214, %v3216
        %v3218 = vadd.f32 %v3214, %v3217
        %vm3219 = vweird.f32 %v2580
        %vm3220 = vweird.f32 %v3214
        %vm3221 = vmor %vm3219, %vm3220
        %v3222 = vsel %vm3221, %v3214, %v3218
        %v3223 = vand.u32 2147483647, %v2580
        %vm3224 = vcmp.eq.f32.partialorder %v3223, 8.507059e+37
        %v3225 = vand.u32 %v2580, 2147483648
        %v3226 = vor.u32 1.1754944e-38, %v3225
        %v3227 = vsel %vm3224, %v3226, %v3222
        %v3228 = vmul.f32 %v2452, %v3227
        %v3229 = vrcp.pop %v2582
        %v3230 = vmul.f32 %v2582, %v3229
        %v3231 = vsub.f32 1.0, %v3230
        %v3232 = vmul.f32 %v3229, %v3231
        %v3233 = vadd.f32 %v3229, %v3232
        %vm3234 = vweird.f32 %v2582
        %vm3235 = vweird.f32 %v3229
        %vm3236 = vmor %vm3234, %vm3235
        %v3237 = vsel %vm3236, %v3229, %v3233
        %v3238 = vand.u32 2147483647, %v2582
        %vm3239 = vcmp.eq.f32.partialorder %v3238, 8.507059e+37
        %v3240 = vand.u32 %v2582, 2147483648
        %v3241 = vor.u32 1.1754944e-38, %v3240
        %v3242 = vsel %vm3239, %v3241, %v3237
        %v3243 = vmul.f32 %v2454, %v3242
        %v3244 = vrcp.pop %v2584
        %v3245 = vmul.f32 %v2584, %v3244
        %v3246 = vsub.f32 1.0, %v3245
        %v3247 = vmul.f32 %v3244, %v3246
        %v3248 = vadd.f32 %v3244, %v3247
        %vm3249 = vweird.f32 %v2584
        %vm3250 = vweird.f32 %v3244
        %vm3251 = vmor %vm3249, %vm3250
        %v3252 = vsel %vm3251, %v3244, %v3248
        %v3253 = vand.u32 2147483647, %v2584
        %vm3254 = vcmp.eq.f32.partialorder %v3253, 8.507059e+37
        %v3255 = vand.u32 %v2584, 2147483648
        %v3256 = vor.u32 1.1754944e-38, %v3255
        %v3257 = vsel %vm3254, %v3256, %v3252
        %v3258 = vmul.f32 %v2456, %v3257
        %v3259 = vrcp.pop %v2586
        %v3260 = vmul.f32 %v2586, %v3259
        %v3261 = vsub.f32 1.0, %v3260
        %v3262 = vmul.f32 %v3259, %v3261
        %v3263 = vadd.f32 %v3259, %v3262
        %vm3264 = vweird.f32 %v2586
        %vm3265 = vweird.f32 %v3259
        %vm3266 = vmor %vm3264, %vm3265
        %v3267 = vsel %vm3266, %v3259, %v3263
        %v3268 = vand.u32 2147483647, %v2586
        %vm3269 = vcmp.eq.f32.partialorder %v3268, 8.507059e+37
        %v3270 = vand.u32 %v2586, 2147483648
        %v3271 = vor.u32 1.1754944e-38, %v3270
        %v3272 = vsel %vm3269, %v3271, %v3267
        %v3273 = vmul.f32 %v2458, %v3272
        %v3274 = vrcp.pop %v2588
        %v3275 = vmul.f32 %v2588, %v3274
        %v3276 = vsub.f32 1.0, %v3275
        %v3277 = vmul.f32 %v3274, %v3276
        %v3278 = vadd.f32 %v3274, %v3277
        %vm3279 = vweird.f32 %v2588
        %vm3280 = vweird.f32 %v3274
        %vm3281 = vmor %vm3279, %vm3280
        %v3282 = vsel %vm3281, %v3274, %v3278
        %v3283 = vand.u32 2147483647, %v2588
        %vm3284 = vcmp.eq.f32.partialorder %v3283, 8.507059e+37
        %v3285 = vand.u32 %v2588, 2147483648
        %v3286 = vor.u32 1.1754944e-38, %v3285
        %v3287 = vsel %vm3284, %v3286, %v3282
        %v3288 = vmul.f32 %v2460, %v3287
        %v3289 = vrcp.pop %v2590
        %v3290 = vmul.f32 %v2590, %v3289
        %v3291 = vsub.f32 1.0, %v3290
        %v3292 = vmul.f32 %v3289, %v3291
        %v3293 = vadd.f32 %v3289, %v3292
        %vm3294 = vweird.f32 %v2590
        %vm3295 = vweird.f32 %v3289
        %vm3296 = vmor %vm3294, %vm3295
        %v3297 = vsel %vm3296, %v3289, %v3293
        %v3298 = vand.u32 2147483647, %v2590
        %vm3299 = vcmp.eq.f32.partialorder %v3298, 8.507059e+37
        %v3300 = vand.u32 %v2590, 2147483648
        %v3301 = vor.u32 1.1754944e-38, %v3300
        %v3302 = vsel %vm3299, %v3301, %v3297
        %v3303 = vmul.f32 %v2462, %v3302
        %v3304 = vrcp.pop %v2592
        %v3305 = vmul.f32 %v2592, %v3304
        %v3306 = vsub.f32 1.0, %v3305
        %v3307 = vmul.f32 %v3304, %v3306
        %v3308 = vadd.f32 %v3304, %v3307
        %vm3309 = vweird.f32 %v2592
        %vm3310 = vweird.f32 %v3304
        %vm3311 = vmor %vm3309, %vm3310
        %v3312 = vsel %vm3311, %v3304, %v3308
        %v3313 = vand.u32 2147483647, %v2592
        %vm3314 = vcmp.eq.f32.partialorder %v3313, 8.507059e+37
        %v3315 = vand.u32 %v2592, 2147483648
        %v3316 = vor.u32 1.1754944e-38, %v3315
        %v3317 = vsel %vm3314, %v3316, %v3312
        %v3318 = vmul.f32 %v2464, %v3317
        %v3319 = vrcp.pop %v2594
        %v3320 = vmul.f32 %v2594, %v3319
        %v3321 = vsub.f32 1.0, %v3320
        %v3322 = vmul.f32 %v3319, %v3321
        %v3323 = vadd.f32 %v3319, %v3322
        %vm3324 = vweird.f32 %v2594
        %vm3325 = vweird.f32 %v3319
        %vm3326 = vmor %vm3324, %vm3325
        %v3327 = vsel %vm3326, %v3319, %v3323
        %v3328 = vand.u32 2147483647, %v2594
        %vm3329 = vcmp.eq.f32.partialorder %v3328, 8.507059e+37
        %v3330 = vand.u32 %v2594, 2147483648
        %v3331 = vor.u32 1.1754944e-38, %v3330
        %v3332 = vsel %vm3329, %v3331, %v3327
        %v3333 = vmul.f32 %v2466, %v3332
        %v3334 = vrcp.pop %v2596
        %v3335 = vmul.f32 %v2596, %v3334
        %v3336 = vsub.f32 1.0, %v3335
        %v3337 = vmul.f32 %v3334, %v3336
        %v3338 = vadd.f32 %v3334, %v3337
        %vm3339 = vweird.f32 %v2596
        %vm3340 = vweird.f32 %v3334
        %vm3341 = vmor %vm3339, %vm3340
        %v3342 = vsel %vm3341, %v3334, %v3338
        %v3343 = vand.u32 2147483647, %v2596
        %vm3344 = vcmp.eq.f32.partialorder %v3343, 8.507059e+37
        %v3345 = vand.u32 %v2596, 2147483648
        %v3346 = vor.u32 1.1754944e-38, %v3345
        %v3347 = vsel %vm3344, %v3346, %v3342
        %v3348 = vmul.f32 %v2468, %v3347
        %v3349 = vrcp.pop %v2598
        %v3350 = vmul.f32 %v2598, %v3349
        %v3351 = vsub.f32 1.0, %v3350
        %v3352 = vmul.f32 %v3349, %v3351
        %v3353 = vadd.f32 %v3349, %v3352
        %vm3354 = vweird.f32 %v2598
        %vm3355 = vweird.f32 %v3349
        %vm3356 = vmor %vm3354, %vm3355
        %v3357 = vsel %vm3356, %v3349, %v3353
        %v3358 = vand.u32 2147483647, %v2598
        %vm3359 = vcmp.eq.f32.partialorder %v3358, 8.507059e+37
        %v3360 = vand.u32 %v2598, 2147483648
        %v3361 = vor.u32 1.1754944e-38, %v3360
        %v3362 = vsel %vm3359, %v3361, %v3357
        %v3363 = vmul.f32 %v2470, %v3362
        %v3364 = vrcp.pop %v2600
        %v3365 = vmul.f32 %v2600, %v3364
        %v3366 = vsub.f32 1.0, %v3365
        %v3367 = vmul.f32 %v3364, %v3366
        %v3368 = vadd.f32 %v3364, %v3367
        %vm3369 = vweird.f32 %v2600
        %vm3370 = vweird.f32 %v3364
        %vm3371 = vmor %vm3369, %vm3370
        %v3372 = vsel %vm3371, %v3364, %v3368
        %v3373 = vand.u32 2147483647, %v2600
        %vm3374 = vcmp.eq.f32.partialorder %v3373, 8.507059e+37
        %v3375 = vand.u32 %v2600, 2147483648
        %v3376 = vor.u32 1.1754944e-38, %v3375
        %v3377 = vsel %vm3374, %v3376, %v3372
        %v3378 = vmul.f32 %v2472, %v3377
        %v3379 = vrcp.pop %v2602
        %v3380 = vmul.f32 %v2602, %v3379
        %v3381 = vsub.f32 1.0, %v3380
        %v3382 = vmul.f32 %v3379, %v3381
        %v3383 = vadd.f32 %v3379, %v3382
        %vm3384 = vweird.f32 %v2602
        %vm3385 = vweird.f32 %v3379
        %vm3386 = vmor %vm3384, %vm3385
        %v3387 = vsel %vm3386, %v3379, %v3383
        %v3388 = vand.u32 2147483647, %v2602
        %vm3389 = vcmp.eq.f32.partialorder %v3388, 8.507059e+37
        %v3390 = vand.u32 %v2602, 2147483648
        %v3391 = vor.u32 1.1754944e-38, %v3390
        %v3392 = vsel %vm3389, %v3391, %v3387
        %v3393 = vmul.f32 %v2474, %v3392
        %v3394 = vrcp.pop %v2604
        %v3395 = vmul.f32 %v2604, %v3394
        %v3396 = vsub.f32 1.0, %v3395
        %v3397 = vmul.f32 %v3394, %v3396
        %v3398 = vadd.f32 %v3394, %v3397
        %vm3399 = vweird.f32 %v2604
        %vm3400 = vweird.f32 %v3394
        %vm3401 = vmor %vm3399, %vm3400
        %v3402 = vsel %vm3401, %v3394, %v3398
        %v3403 = vand.u32 2147483647, %v2604
        %vm3404 = vcmp.eq.f32.partialorder %v3403, 8.507059e+37
        %v3405 = vand.u32 %v2604, 2147483648
        %v3406 = vor.u32 1.1754944e-38, %v3405
        %v3407 = vsel %vm3404, %v3406, %v3402
        %v3408 = vmul.f32 %v2476, %v3407
        %v3409 = vrcp.pop %v2606
        %v3410 = vmul.f32 %v2606, %v3409
        %v3411 = vsub.f32 1.0, %v3410
        %v3412 = vmul.f32 %v3409, %v3411
        %v3413 = vadd.f32 %v3409, %v3412
        %vm3414 = vweird.f32 %v2606
        %vm3415 = vweird.f32 %v3409
        %vm3416 = vmor %vm3414, %vm3415
        %v3417 = vsel %vm3416, %v3409, %v3413
        %v3418 = vand.u32 2147483647, %v2606
        %vm3419 = vcmp.eq.f32.partialorder %v3418, 8.507059e+37
        %v3420 = vand.u32 %v2606, 2147483648
        %v3421 = vor.u32 1.1754944e-38, %v3420
        %v3422 = vsel %vm3419, %v3421, %v3417
        %v3423 = vmul.f32 %v2478, %v3422
        %v3424 = vrcp.pop %v2608
        %v3425 = vmul.f32 %v2608, %v3424
        %v3426 = vsub.f32 1.0, %v3425
        %v3427 = vmul.f32 %v3424, %v3426
        %v3428 = vadd.f32 %v3424, %v3427
        %vm3429 = vweird.f32 %v2608
        %vm3430 = vweird.f32 %v3424
        %vm3431 = vmor %vm3429, %vm3430
        %v3432 = vsel %vm3431, %v3424, %v3428
        %v3433 = vand.u32 2147483647, %v2608
        %vm3434 = vcmp.eq.f32.partialorder %v3433, 8.507059e+37
        %v3435 = vand.u32 %v2608, 2147483648
        %v3436 = vor.u32 1.1754944e-38, %v3435
        %v3437 = vsel %vm3434, %v3436, %v3432
        %v3438 = vmul.f32 %v2480, %v3437
        %v3439 = vrcp.pop %v2610
        %v3440 = vmul.f32 %v2610, %v3439
        %v3441 = vsub.f32 1.0, %v3440
        %v3442 = vmul.f32 %v3439, %v3441
        %v3443 = vadd.f32 %v3439, %v3442
        %vm3444 = vweird.f32 %v2610
        %vm3445 = vweird.f32 %v3439
        %vm3446 = vmor %vm3444, %vm3445
        %v3447 = vsel %vm3446, %v3439, %v3443
        %v3448 = vand.u32 2147483647, %v2610
        %vm3449 = vcmp.eq.f32.partialorder %v3448, 8.507059e+37
        %v3450 = vand.u32 %v2610, 2147483648
        %v3451 = vor.u32 1.1754944e-38, %v3450
        %v3452 = vsel %vm3449, %v3451, %v3447
        %v3453 = vmul.f32 %v2482, %v3452
        %v3454 = vrcp.pop %v2612
        %v3455 = vmul.f32 %v2612, %v3454
        %v3456 = vsub.f32 1.0, %v3455
        %v3457 = vmul.f32 %v3454, %v3456
        %v3458 = vadd.f32 %v3454, %v3457
        %vm3459 = vweird.f32 %v2612
        %vm3460 = vweird.f32 %v3454
        %vm3461 = vmor %vm3459, %vm3460
        %v3462 = vsel %vm3461, %v3454, %v3458
        %v3463 = vand.u32 2147483647, %v2612
        %vm3464 = vcmp.eq.f32.partialorder %v3463, 8.507059e+37
        %v3465 = vand.u32 %v2612, 2147483648
        %v3466 = vor.u32 1.1754944e-38, %v3465
        %v3467 = vsel %vm3464, %v3466, %v3462
        %v3468 = vmul.f32 %v2484, %v3467
        %v3469 = vrcp.pop %v2614
        %v3470 = vmul.f32 %v2614, %v3469
        %v3471 = vsub.f32 1.0, %v3470
        %v3472 = vmul.f32 %v3469, %v3471
        %v3473 = vadd.f32 %v3469, %v3472
        %vm3474 = vweird.f32 %v2614
        %vm3475 = vweird.f32 %v3469
        %vm3476 = vmor %vm3474, %vm3475
        %v3477 = vsel %vm3476, %v3469, %v3473
        %v3478 = vand.u32 2147483647, %v2614
        %vm3479 = vcmp.eq.f32.partialorder %v3478, 8.507059e+37
        %v3480 = vand.u32 %v2614, 2147483648
        %v3481 = vor.u32 1.1754944e-38, %v3480
        %v3482 = vsel %vm3479, %v3481, %v3477
        %v3483 = vmul.f32 %v2486, %v3482
        %v3484 = vrcp.pop %v2616
        %v3485 = vmul.f32 %v2616, %v3484
        %v3486 = vsub.f32 1.0, %v3485
        %v3487 = vmul.f32 %v3484, %v3486
        %v3488 = vadd.f32 %v3484, %v3487
        %vm3489 = vweird.f32 %v2616
        %vm3490 = vweird.f32 %v3484
        %vm3491 = vmor %vm3489, %vm3490
        %v3492 = vsel %vm3491, %v3484, %v3488
        %v3493 = vand.u32 2147483647, %v2616
        %vm3494 = vcmp.eq.f32.partialorder %v3493, 8.507059e+37
        %v3495 = vand.u32 %v2616, 2147483648
        %v3496 = vor.u32 1.1754944e-38, %v3495
        %v3497 = vsel %vm3494, %v3496, %v3492
        %v3498 = vmul.f32 %v2488, %v3497
        %v3499 = vrcp.pop %v2618
        %v3500 = vmul.f32 %v2618, %v3499
        %v3501 = vsub.f32 1.0, %v3500
        %v3502 = vmul.f32 %v3499, %v3501
        %v3503 = vadd.f32 %v3499, %v3502
        %vm3504 = vweird.f32 %v2618
        %vm3505 = vweird.f32 %v3499
        %vm3506 = vmor %vm3504, %vm3505
        %v3507 = vsel %vm3506, %v3499, %v3503
        %v3508 = vand.u32 2147483647, %v2618
        %vm3509 = vcmp.eq.f32.partialorder %v3508, 8.507059e+37
        %v3510 = vand.u32 %v2618, 2147483648
        %v3511 = vor.u32 1.1754944e-38, %v3510
        %v3512 = vsel %vm3509, %v3511, %v3507
        %v3513 = vmul.f32 %v2490, %v3512
        %v3514 = vrcp.pop %v2620
        %v3515 = vmul.f32 %v2620, %v3514
        %v3516 = vsub.f32 1.0, %v3515
        %v3517 = vmul.f32 %v3514, %v3516
        %v3518 = vadd.f32 %v3514, %v3517
        %vm3519 = vweird.f32 %v2620
        %vm3520 = vweird.f32 %v3514
        %vm3521 = vmor %vm3519, %vm3520
        %v3522 = vsel %vm3521, %v3514, %v3518
        %v3523 = vand.u32 2147483647, %v2620
        %vm3524 = vcmp.eq.f32.partialorder %v3523, 8.507059e+37
        %v3525 = vand.u32 %v2620, 2147483648
        %v3526 = vor.u32 1.1754944e-38, %v3525
        %v3527 = vsel %vm3524, %v3526, %v3522
        %v3528 = vmul.f32 %v2492, %v3527
        %v3529 = vrcp.pop %v2622
        %v3530 = vmul.f32 %v2622, %v3529
        %v3531 = vsub.f32 1.0, %v3530
        %v3532 = vmul.f32 %v3529, %v3531
        %v3533 = vadd.f32 %v3529, %v3532
        %vm3534 = vweird.f32 %v2622
        %vm3535 = vweird.f32 %v3529
        %vm3536 = vmor %vm3534, %vm3535
        %v3537 = vsel %vm3536, %v3529, %v3533
        %v3538 = vand.u32 2147483647, %v2622
        %vm3539 = vcmp.eq.f32.partialorder %v3538, 8.507059e+37
        %v3540 = vand.u32 %v2622, 2147483648
        %v3541 = vor.u32 1.1754944e-38, %v3540
        %v3542 = vsel %vm3539, %v3541, %v3537
        %v3543 = vmul.f32 %v2494, %v3542
        %v3544 = vrcp.pop %v2624
        %v3545 = vmul.f32 %v2624, %v3544
        %v3546 = vsub.f32 1.0, %v3545
        %v3547 = vmul.f32 %v3544, %v3546
        %v3548 = vadd.f32 %v3544, %v3547
        %vm3549 = vweird.f32 %v2624
        %vm3550 = vweird.f32 %v3544
        %vm3551 = vmor %vm3549, %vm3550
        %v3552 = vsel %vm3551, %v3544, %v3548
        %v3553 = vand.u32 2147483647, %v2624
        %vm3554 = vcmp.eq.f32.partialorder %v3553, 8.507059e+37
        %v3555 = vand.u32 %v2624, 2147483648
        %v3556 = vor.u32 1.1754944e-38, %v3555
        %v3557 = vsel %vm3554, %v3556, %v3552
        %v3558 = vmul.f32 %v2496, %v3557
        %v3559 = vrcp.pop %v2626
        %v3560 = vmul.f32 %v2626, %v3559
        %v3561 = vsub.f32 1.0, %v3560
        %v3562 = vmul.f32 %v3559, %v3561
        %v3563 = vadd.f32 %v3559, %v3562
        %vm3564 = vweird.f32 %v2626
        %vm3565 = vweird.f32 %v3559
        %vm3566 = vmor %vm3564, %vm3565
        %v3567 = vsel %vm3566, %v3559, %v3563
        %v3568 = vand.u32 2147483647, %v2626
        %vm3569 = vcmp.eq.f32.partialorder %v3568, 8.507059e+37
        %v3570 = vand.u32 %v2626, 2147483648
        %v3571 = vor.u32 1.1754944e-38, %v3570
        %v3572 = vsel %vm3569, %v3571, %v3567
        %v3573 = vmul.f32 %v2498, %v3572
        %v3574 = vrcp.pop %v2628
        %v3575 = vmul.f32 %v2628, %v3574
        %v3576 = vsub.f32 1.0, %v3575
        %v3577 = vmul.f32 %v3574, %v3576
        %v3578 = vadd.f32 %v3574, %v3577
        %vm3579 = vweird.f32 %v2628
        %vm3580 = vweird.f32 %v3574
        %vm3581 = vmor %vm3579, %vm3580
        %v3582 = vsel %vm3581, %v3574, %v3578
        %v3583 = vand.u32 2147483647, %v2628
        %vm3584 = vcmp.eq.f32.partialorder %v3583, 8.507059e+37
        %v3585 = vand.u32 %v2628, 2147483648
        %v3586 = vor.u32 1.1754944e-38, %v3585
        %v3587 = vsel %vm3584, %v3586, %v3582
        %v3588 = vmul.f32 %v2500, %v3587
        %v3589 = vpack.c.bf16 %v2643, %v2643
        %v3590 = vpack.c.bf16 %v2658, %v2658
        %v3591 = vpack.c.bf16 %v2673, %v2673
        %v3592 = vpack.c.bf16 %v2688, %v2688
        %v3593 = vpack.c.bf16 %v2703, %v2703
        %v3594 = vpack.c.bf16 %v2718, %v2718
        %v3595 = vpack.c.bf16 %v2733, %v2733
        %v3596 = vpack.c.bf16 %v2748, %v2748
        %v3597 = vpack.c.bf16 %v2763, %v2763
        %v3598 = vpack.c.bf16 %v2778, %v2778
        %v3599 = vpack.c.bf16 %v2793, %v2793
        %v3600 = vpack.c.bf16 %v2808, %v2808
        %v3601 = vpack.c.bf16 %v2823, %v2823
        %v3602 = vpack.c.bf16 %v2838, %v2838
        %v3603 = vpack.c.bf16 %v2853, %v2853
        %v3604 = vpack.c.bf16 %v2868, %v2868
        %v3605 = vpack.c.bf16 %v2883, %v2883
        %v3606 = vpack.c.bf16 %v2898, %v2898
        %v3607 = vpack.c.bf16 %v2913, %v2913
        %v3608 = vpack.c.bf16 %v2928, %v2928
        %v3609 = vpack.c.bf16 %v2943, %v2943
        %v3610 = vpack.c.bf16 %v2958, %v2958
        %v3611 = vpack.c.bf16 %v2973, %v2973
        %v3612 = vpack.c.bf16 %v2988, %v2988
        %v3613 = vpack.c.bf16 %v3003, %v3003
        %v3614 = vpack.c.bf16 %v3018, %v3018
        %v3615 = vpack.c.bf16 %v3033, %v3033
        %v3616 = vpack.c.bf16 %v3048, %v3048
        %v3617 = vpack.c.bf16 %v3063, %v3063
        %v3618 = vpack.c.bf16 %v3078, %v3078
        %v3619 = vpack.c.bf16 %v3093, %v3093
        %v3620 = vpack.c.bf16 %v3108, %v3108
        %v3621 = vpack.c.bf16 %v3123, %v3123
        %v3622 = vpack.c.bf16 %v3138, %v3138
        %v3623 = vpack.c.bf16 %v3153, %v3153
        %v3624 = vpack.c.bf16 %v3168, %v3168
        %v3625 = vpack.c.bf16 %v3183, %v3183
        %v3626 = vpack.c.bf16 %v3198, %v3198
        %v3627 = vpack.c.bf16 %v3213, %v3213
        %v3628 = vpack.c.bf16 %v3228, %v3228
        %v3629 = vpack.c.bf16 %v3243, %v3243
        %v3630 = vpack.c.bf16 %v3258, %v3258
        %v3631 = vpack.c.bf16 %v3273, %v3273
        %v3632 = vpack.c.bf16 %v3288, %v3288
        %v3633 = vpack.c.bf16 %v3303, %v3303
        %v3634 = vpack.c.bf16 %v3318, %v3318
        %v3635 = vpack.c.bf16 %v3333, %v3333
        %v3636 = vpack.c.bf16 %v3348, %v3348
        %v3637 = vpack.c.bf16 %v3363, %v3363
        %v3638 = vpack.c.bf16 %v3378, %v3378
        %v3639 = vpack.c.bf16 %v3393, %v3393
        %v3640 = vpack.c.bf16 %v3408, %v3408
        %v3641 = vpack.c.bf16 %v3423, %v3423
        %v3642 = vpack.c.bf16 %v3438, %v3438
        %v3643 = vpack.c.bf16 %v3453, %v3453
        %v3644 = vpack.c.bf16 %v3468, %v3468
        %v3645 = vpack.c.bf16 %v3483, %v3483
        %v3646 = vpack.c.bf16 %v3498, %v3498
        %v3647 = vpack.c.bf16 %v3513, %v3513
        %v3648 = vpack.c.bf16 %v3528, %v3528
        %v3649 = vpack.c.bf16 %v3543, %v3543
        %v3650 = vpack.c.bf16 %v3558, %v3558
        %v3651 = vpack.c.bf16 %v3573, %v3573
        %v3652 = vpack.c.bf16 %v3588, %v3588
        %v3657 = vunpack.c.l.b16 %v1600
        %v3658 = vunpack.c.l.b16 %v1601
        %v3659 = vunpack.c.l.b16 %v1602
        %v3660 = vunpack.c.l.b16 %v1603
        %v3661 = vpack.c.b16 %v3658, %v3657
        %v3662 = vpack.c.b16 %v3660, %v3659
        %v3681 = vunpack.c.l.b16 %v3589
        %v3682 = vunpack.c.l.b16 %v3590
        %v3683 = vunpack.c.l.b16 %v3591
        %v3684 = vunpack.c.l.b16 %v3592
        %v3685 = vunpack.c.l.b16 %v3593
        %v3686 = vunpack.c.l.b16 %v3594
        %v3687 = vunpack.c.l.b16 %v3595
        %v3688 = vunpack.c.l.b16 %v3596
        %v3689 = vunpack.c.l.b16 %v3597
        %v3690 = vunpack.c.l.b16 %v3598
        %v3691 = vunpack.c.l.b16 %v3599
        %v3692 = vunpack.c.l.b16 %v3600
        %v3693 = vunpack.c.l.b16 %v3601
        %v3694 = vunpack.c.l.b16 %v3602
        %v3695 = vunpack.c.l.b16 %v3603
        %v3696 = vunpack.c.l.b16 %v3604
        %v3697 = vpack.c.b16 %v3682, %v3681
        %v3698 = vpack.c.b16 %v3684, %v3683
        %v3699 = vpack.c.b16 %v3686, %v3685
        %v3700 = vpack.c.b16 %v3688, %v3687
        %v3701 = vpack.c.b16 %v3690, %v3689
        %v3702 = vpack.c.b16 %v3692, %v3691
        %v3703 = vpack.c.b16 %v3694, %v3693
        %v3704 = vpack.c.b16 %v3696, %v3695
        %3713 = vmatpush.bf16.xpose.msra.mxu0 %v3704
        %3714 = vmatpush.bf16.xpose.msra.mxu0 %v3703
        %3715 = vmatpush.bf16.xpose.msra.mxu0 %v3702
        %3716 = vmatpush.bf16.xpose.msra.mxu0 %v3701
        %3717 = vmatpush.bf16.xpose.msra.mxu0 %v3700
        %3718 = vmatpush.bf16.xpose.msra.mxu0 %v3699
        %3719 = vmatpush.bf16.xpose.msra.mxu0 %v3698
        %3720 = vmatpush.bf16.xpose.msra.mxu0 %v3697
        %3721 = vmatmul.bf16.gmra.mxu0 %v3661
        %v3722 = vpop.f32.mrf.mxu0
        %v3723 = vadd.f32 0.0, %v3722
        %v3724 = vpop.f32.mrf.mxu0
        %v3725 = vadd.f32 0.0, %v3724
        %3726 = vmatmul.bf16.gmra.mxu0 %v3662
        %v3727 = vpop.f32.mrf.mxu0
        %v3728 = vadd.f32 0.0, %v3727
        %v3729 = vpop.f32.mrf.mxu0
        %v3730 = vadd.f32 0.0, %v3729
        %3731 = vdwg.mxu0
        %v3736 = vunpack.c.l.b16 %v1604
        %v3737 = vunpack.c.l.b16 %v1605
        %v3738 = vunpack.c.l.b16 %v1606
        %v3739 = vunpack.c.l.b16 %v1607
        %v3740 = vpack.c.b16 %v3737, %v3736
        %v3741 = vpack.c.b16 %v3739, %v3738
        %v3760 = vunpack.c.l.b16 %v3605
        %v3761 = vunpack.c.l.b16 %v3606
        %v3762 = vunpack.c.l.b16 %v3607
        %v3763 = vunpack.c.l.b16 %v3608
        %v3764 = vunpack.c.l.b16 %v3609
        %v3765 = vunpack.c.l.b16 %v3610
        %v3766 = vunpack.c.l.b16 %v3611
        %v3767 = vunpack.c.l.b16 %v3612
        %v3768 = vunpack.c.l.b16 %v3613
        %v3769 = vunpack.c.l.b16 %v3614
        %v3770 = vunpack.c.l.b16 %v3615
        %v3771 = vunpack.c.l.b16 %v3616
        %v3772 = vunpack.c.l.b16 %v3617
        %v3773 = vunpack.c.l.b16 %v3618
        %v3774 = vunpack.c.l.b16 %v3619
        %v3775 = vunpack.c.l.b16 %v3620
        %v3776 = vpack.c.b16 %v3761, %v3760
        %v3777 = vpack.c.b16 %v3763, %v3762
        %v3778 = vpack.c.b16 %v3765, %v3764
        %v3779 = vpack.c.b16 %v3767, %v3766
        %v3780 = vpack.c.b16 %v3769, %v3768
        %v3781 = vpack.c.b16 %v3771, %v3770
        %v3782 = vpack.c.b16 %v3773, %v3772
        %v3783 = vpack.c.b16 %v3775, %v3774
        %3792 = vmatpush.bf16.xpose.msra.mxu0 %v3783
        %3793 = vmatpush.bf16.xpose.msra.mxu0 %v3782
        %3794 = vmatpush.bf16.xpose.msra.mxu0 %v3781
        %3795 = vmatpush.bf16.xpose.msra.mxu0 %v3780
        %3796 = vmatpush.bf16.xpose.msra.mxu0 %v3779
        %3797 = vmatpush.bf16.xpose.msra.mxu0 %v3778
        %3798 = vmatpush.bf16.xpose.msra.mxu0 %v3777
        %3799 = vmatpush.bf16.xpose.msra.mxu0 %v3776
        %3800 = vmatmul.bf16.gmra.mxu0 %v3740
        %v3801 = vpop.f32.mrf.mxu0
        %v3802 = vadd.f32 0.0, %v3801
        %v3803 = vpop.f32.mrf.mxu0
        %v3804 = vadd.f32 0.0, %v3803
        %3805 = vmatmul.bf16.gmra.mxu0 %v3741
        %v3806 = vpop.f32.mrf.mxu0
        %v3807 = vadd.f32 0.0, %v3806
        %v3808 = vpop.f32.mrf.mxu0
        %v3809 = vadd.f32 0.0, %v3808
        %3810 = vdwg.mxu0
        %v3815 = vunpack.c.l.b16 %v1608
        %v3816 = vunpack.c.l.b16 %v1609
        %v3817 = vunpack.c.l.b16 %v1610
        %v3818 = vunpack.c.l.b16 %v1611
        %v3819 = vpack.c.b16 %v3816, %v3815
        %v3820 = vpack.c.b16 %v3818, %v3817
        %v3839 = vunpack.c.l.b16 %v3621
        %v3840 = vunpack.c.l.b16 %v3622
        %v3841 = vunpack.c.l.b16 %v3623
        %v3842 = vunpack.c.l.b16 %v3624
        %v3843 = vunpack.c.l.b16 %v3625
        %v3844 = vunpack.c.l.b16 %v3626
        %v3845 = vunpack.c.l.b16 %v3627
        %v3846 = vunpack.c.l.b16 %v3628
        %v3847 = vunpack.c.l.b16 %v3629
        %v3848 = vunpack.c.l.b16 %v3630
        %v3849 = vunpack.c.l.b16 %v3631
        %v3850 = vunpack.c.l.b16 %v3632
        %v3851 = vunpack.c.l.b16 %v3633
        %v3852 = vunpack.c.l.b16 %v3634
        %v3853 = vunpack.c.l.b16 %v3635
        %v3854 = vunpack.c.l.b16 %v3636
        %v3855 = vpack.c.b16 %v3840, %v3839
        %v3856 = vpack.c.b16 %v3842, %v3841
        %v3857 = vpack.c.b16 %v3844, %v3843
        %v3858 = vpack.c.b16 %v3846, %v3845
        %v3859 = vpack.c.b16 %v3848, %v3847
        %v3860 = vpack.c.b16 %v3850, %v3849
        %v3861 = vpack.c.b16 %v3852, %v3851
        %v3862 = vpack.c.b16 %v3854, %v3853
        %3871 = vmatpush.bf16.xpose.msra.mxu0 %v3862
        %3872 = vmatpush.bf16.xpose.msra.mxu0 %v3861
        %3873 = vmatpush.bf16.xpose.msra.mxu0 %v3860
        %3874 = vmatpush.bf16.xpose.msra.mxu0 %v3859
        %3875 = vmatpush.bf16.xpose.msra.mxu0 %v3858
        %3876 = vmatpush.bf16.xpose.msra.mxu0 %v3857
        %3877 = vmatpush.bf16.xpose.msra.mxu0 %v3856
        %3878 = vmatpush.bf16.xpose.msra.mxu0 %v3855
        %3879 = vmatmul.bf16.gmra.mxu0 %v3819
        %v3880 = vpop.f32.mrf.mxu0
        %v3881 = vadd.f32 0.0, %v3880
        %v3882 = vpop.f32.mrf.mxu0
        %v3883 = vadd.f32 0.0, %v3882
        %3884 = vmatmul.bf16.gmra.mxu0 %v3820
        %v3885 = vpop.f32.mrf.mxu0
        %v3886 = vadd.f32 0.0, %v3885
        %v3887 = vpop.f32.mrf.mxu0
        %v3888 = vadd.f32 0.0, %v3887
        %3889 = vdwg.mxu0
        %v3894 = vunpack.c.l.b16 %v1612
        %v3895 = vunpack.c.l.b16 %v1613
        %v3896 = vunpack.c.l.b16 %v1614
        %v3897 = vunpack.c.l.b16 %v1615
        %v3898 = vpack.c.b16 %v3895, %v3894
        %v3899 = vpack.c.b16 %v3897, %v3896
        %v3918 = vunpack.c.l.b16 %v3637
        %v3919 = vunpack.c.l.b16 %v3638
        %v3920 = vunpack.c.l.b16 %v3639
        %v3921 = vunpack.c.l.b16 %v3640
        %v3922 = vunpack.c.l.b16 %v3641
        %v3923 = vunpack.c.l.b16 %v3642
        %v3924 = vunpack.c.l.b16 %v3643
        %v3925 = vunpack.c.l.b16 %v3644
        %v3926 = vunpack.c.l.b16 %v3645
        %v3927 = vunpack.c.l.b16 %v3646
        %v3928 = vunpack.c.l.b16 %v3647
        %v3929 = vunpack.c.l.b16 %v3648
        %v3930 = vunpack.c.l.b16 %v3649
        %v3931 = vunpack.c.l.b16 %v3650
        %v3932 = vunpack.c.l.b16 %v3651
        %v3933 = vunpack.c.l.b16 %v3652
        %v3934 = vpack.c.b16 %v3919, %v3918
        %v3935 = vpack.c.b16 %v3921, %v3920
        %v3936 = vpack.c.b16 %v3923, %v3922
        %v3937 = vpack.c.b16 %v3925, %v3924
        %v3938 = vpack.c.b16 %v3927, %v3926
        %v3939 = vpack.c.b16 %v3929, %v3928
        %v3940 = vpack.c.b16 %v3931, %v3930
        %v3941 = vpack.c.b16 %v3933, %v3932
        %3950 = vmatpush.bf16.xpose.msra.mxu0 %v3941
        %3951 = vmatpush.bf16.xpose.msra.mxu0 %v3940
        %3952 = vmatpush.bf16.xpose.msra.mxu0 %v3939
        %3953 = vmatpush.bf16.xpose.msra.mxu0 %v3938
        %3954 = vmatpush.bf16.xpose.msra.mxu0 %v3937
        %3955 = vmatpush.bf16.xpose.msra.mxu0 %v3936
        %3956 = vmatpush.bf16.xpose.msra.mxu0 %v3935
        %3957 = vmatpush.bf16.xpose.msra.mxu0 %v3934
        %3958 = vmatmul.bf16.gmra.mxu0 %v3898
        %v3959 = vpop.f32.mrf.mxu0
        %v3960 = vadd.f32 0.0, %v3959
        %v3961 = vpop.f32.mrf.mxu0
        %v3962 = vadd.f32 0.0, %v3961
        %3963 = vmatmul.bf16.gmra.mxu0 %v3899
        %v3964 = vpop.f32.mrf.mxu0
        %v3965 = vadd.f32 0.0, %v3964
        %v3966 = vpop.f32.mrf.mxu0
        %v3967 = vadd.f32 0.0, %v3966
        %3968 = vdwg.mxu0
        %3969 = vxpose.xlu0.b32.start [1/16] %v3723, 128
        %3970 = vxpose.xlu0.b32.cont [2/16] %v3725, 128
        %3971 = vxpose.xlu0.b32.cont [3/16] %v3728, 128
        %3972 = vxpose.xlu0.b32.cont [4/16] %v3730, 128
        %3973 = vxpose.xlu0.b32.cont [5/16] %v3802, 128
        %3974 = vxpose.xlu0.b32.cont [6/16] %v3804, 128
        %3975 = vxpose.xlu0.b32.cont [7/16] %v3807, 128
        %3976 = vxpose.xlu0.b32.cont [8/16] %v3809, 128
        %3977 = vxpose.xlu0.b32.cont [9/16] %v3881, 128
        %3978 = vxpose.xlu0.b32.cont [10/16] %v3883, 128
        %3979 = vxpose.xlu0.b32.cont [11/16] %v3886, 128
        %3980 = vxpose.xlu0.b32.cont [12/16] %v3888, 128
        %3981 = vxpose.xlu0.b32.cont [13/16] %v3960, 128
        %3982 = vxpose.xlu0.b32.cont [14/16] %v3962, 128
        %3983 = vxpose.xlu0.b32.cont [15/16] %v3965, 128
        %3984 = vxpose.xlu0.b32.end [16/16] %v3967, 128
        %v3985 = vpop.trf.xlu0
        %v3986 = vpop.trf.xlu0
        %v3987 = vpop.trf.xlu0
        %v3988 = vpop.trf.xlu0
        %v3989 = vpop.trf.xlu0
        %v3990 = vpop.trf.xlu0
        %v3991 = vpop.trf.xlu0
        %v3992 = vpop.trf.xlu0
        %v3993 = vpop.trf.xlu0
        %v3994 = vpop.trf.xlu0
        %v3995 = vpop.trf.xlu0
        %v3996 = vpop.trf.xlu0
        %v3997 = vpop.trf.xlu0
        %v3998 = vpop.trf.xlu0
        %v3999 = vpop.trf.xlu0
        %v4000 = vpop.trf.xlu0
        %v4001 = vpack.c.bf16 %v3986, %v3985
        %v4002 = vpack.c.bf16 %v3988, %v3987
        %v4003 = vpack.c.bf16 %v3990, %v3989
        %v4004 = vpack.c.bf16 %v3992, %v3991
        %v4005 = vpack.c.bf16 %v3994, %v3993
        %v4006 = vpack.c.bf16 %v3996, %v3995
        %v4007 = vpack.c.bf16 %v3998, %v3997
        %v4008 = vpack.c.bf16 %v4000, %v3999
        %v4009 = vld [vmem:[%s469] sm:$0xf]
        %v4010 = vld [vmem:[%s469 + $0x4] sm:$0xf]
        %v4011 = vld [vmem:[%s469 + $0x8] sm:$0xf]
        %v4012 = vld [vmem:[%s469 + $0xc] sm:$0xf]
        %v4013 = vld [vmem:[%s469 + $0x10] sm:$0xf]
        %v4014 = vld [vmem:[%s469 + $0x14] sm:$0xf]
        %v4015 = vld [vmem:[%s469 + $0x18] sm:$0xf]
        %v4016 = vld [vmem:[%s469 + $0x1c] sm:$0xf]
        %v4017 = vld [vmem:[%s469 + $0x20] sm:$0xf]
        %v4018 = vld [vmem:[%s469 + $0x24] sm:$0xf]
        %v4019 = vld [vmem:[%s469 + $0x28] sm:$0xf]
        %v4020 = vld [vmem:[%s469 + $0x2c] sm:$0xf]
        %v4021 = vld [vmem:[%s469 + $0x30] sm:$0xf]
        %v4022 = vld [vmem:[%s469 + $0x34] sm:$0xf]
        %v4023 = vld [vmem:[%s469 + $0x38] sm:$0xf]
        %v4024 = vld [vmem:[%s469 + $0x3c] sm:$0xf]
        %v4025 = vperm.slane %v616, 0
        %v4042 = vunpack.c.l.b16 %v4009
        %v4043 = vunpack.c.l.b16 %v4010
        %v4044 = vunpack.c.l.b16 %v4011
        %v4045 = vunpack.c.l.b16 %v4012
        %v4046 = vunpack.c.l.b16 %v4013
        %v4047 = vunpack.c.l.b16 %v4014
        %v4048 = vunpack.c.l.b16 %v4015
        %v4049 = vunpack.c.l.b16 %v4016
        %v4050 = vunpack.c.l.b16 %v4017
        %v4051 = vunpack.c.l.b16 %v4018
        %v4052 = vunpack.c.l.b16 %v4019
        %v4053 = vunpack.c.l.b16 %v4020
        %v4054 = vunpack.c.l.b16 %v4021
        %v4055 = vunpack.c.l.b16 %v4022
        %v4056 = vunpack.c.l.b16 %v4023
        %v4057 = vunpack.c.l.b16 %v4024
        %v4058 = vpack.c.b16 %v4043, %v4042
        %v4059 = vpack.c.b16 %v4045, %v4044
        %v4060 = vpack.c.b16 %v4047, %v4046
        %v4061 = vpack.c.b16 %v4049, %v4048
        %v4062 = vpack.c.b16 %v4051, %v4050
        %v4063 = vpack.c.b16 %v4053, %v4052
        %v4064 = vpack.c.b16 %v4055, %v4054
        %v4065 = vpack.c.b16 %v4057, %v4056
        %4074 = vmatpush.bf16.msra.mxu0 %v4065
        %4075 = vmatpush.bf16.msra.mxu0 %v4064
        %4076 = vmatpush.bf16.msra.mxu0 %v4063
        %4077 = vmatpush.bf16.msra.mxu0 %v4062
        %4078 = vmatpush.bf16.msra.mxu0 %v4061
        %4079 = vmatpush.bf16.msra.mxu0 %v4060
        %4080 = vmatpush.bf16.msra.mxu0 %v4059
        %4081 = vmatpush.bf16.msra.mxu0 %v4058
        %4082 = vmatmul.bf16.gmra.mxu0 %v4001
        %v4083 = vpop.f32.mrf.mxu0
        %v4084 = vadd.f32 %v4025, %v4083
        %v4085 = vpop.f32.mrf.mxu0
        %v4086 = vadd.f32 %v4025, %v4085
        %4087 = vmatmul.bf16.gmra.mxu0 %v4002
        %v4088 = vpop.f32.mrf.mxu0
        %v4089 = vadd.f32 %v4025, %v4088
        %v4090 = vpop.f32.mrf.mxu0
        %v4091 = vadd.f32 %v4025, %v4090
        %4092 = vmatmul.bf16.gmra.mxu0 %v4003
        %v4093 = vpop.f32.mrf.mxu0
        %v4094 = vadd.f32 %v4025, %v4093
        %v4095 = vpop.f32.mrf.mxu0
        %v4096 = vadd.f32 %v4025, %v4095
        %4097 = vmatmul.bf16.gmra.mxu0 %v4004
        %v4098 = vpop.f32.mrf.mxu0
        %v4099 = vadd.f32 %v4025, %v4098
        %v4100 = vpop.f32.mrf.mxu0
        %v4101 = vadd.f32 %v4025, %v4100
        %4102 = vmatmul.bf16.gmra.mxu0 %v4005
        %v4103 = vpop.f32.mrf.mxu0
        %v4104 = vadd.f32 %v4025, %v4103
        %v4105 = vpop.f32.mrf.mxu0
        %v4106 = vadd.f32 %v4025, %v4105
        %4107 = vmatmul.bf16.gmra.mxu0 %v4006
        %v4108 = vpop.f32.mrf.mxu0
        %v4109 = vadd.f32 %v4025, %v4108
        %v4110 = vpop.f32.mrf.mxu0
        %v4111 = vadd.f32 %v4025, %v4110
        %4112 = vmatmul.bf16.gmra.mxu0 %v4007
        %v4113 = vpop.f32.mrf.mxu0
        %v4114 = vadd.f32 %v4025, %v4113
        %v4115 = vpop.f32.mrf.mxu0
        %v4116 = vadd.f32 %v4025, %v4115
        %4117 = vmatmul.bf16.gmra.mxu0 %v4008
        %v4118 = vpop.f32.mrf.mxu0
        %v4119 = vadd.f32 %v4025, %v4118
        %v4120 = vpop.f32.mrf.mxu0
        %v4121 = vadd.f32 %v4025, %v4120
        %4122 = vdwg.mxu0
        %v4123 = vadd.f32 %v598, %v4084
        %v4124 = vadd.f32 %v599, %v4086
        %v4125 = vadd.f32 %v600, %v4089
        %v4126 = vadd.f32 %v601, %v4091
        %v4127 = vadd.f32 %v602, %v4094
        %v4128 = vadd.f32 %v603, %v4096
        %v4129 = vadd.f32 %v604, %v4099
        %v4130 = vadd.f32 %v605, %v4101
        %v4131 = vadd.f32 %v606, %v4104
        %v4132 = vadd.f32 %v607, %v4106
        %v4133 = vadd.f32 %v608, %v4109
        %v4134 = vadd.f32 %v609, %v4111
        %v4135 = vadd.f32 %v610, %v4114
        %v4136 = vadd.f32 %v611, %v4116
        %v4137 = vadd.f32 %v612, %v4119
        %v4138 = vadd.f32 %v613, %v4121
        %4139 = vadd.xlane.f32.xlu0 %v4123
        %v4140 = vpop.xlane.xlu0 %4139
        %4141 = vadd.xlane.f32.xlu0 %v4124
        %v4142 = vpop.xlane.xlu0 %4141
        %4143 = vadd.xlane.f32.xlu0 %v4125
        %v4144 = vpop.xlane.xlu0 %4143
        %4145 = vadd.xlane.f32.xlu0 %v4126
        %v4146 = vpop.xlane.xlu0 %4145
        %4147 = vadd.xlane.f32.xlu0 %v4127
        %v4148 = vpop.xlane.xlu0 %4147
        %4149 = vadd.xlane.f32.xlu0 %v4128
        %v4150 = vpop.xlane.xlu0 %4149
        %4151 = vadd.xlane.f32.xlu0 %v4129
        %v4152 = vpop.xlane.xlu0 %4151
        %4153 = vadd.xlane.f32.xlu0 %v4130
        %v4154 = vpop.xlane.xlu0 %4153
        %4155 = vadd.xlane.f32.xlu0 %v4131
        %v4156 = vpop.xlane.xlu0 %4155
        %4157 = vadd.xlane.f32.xlu0 %v4132
        %v4158 = vpop.xlane.xlu0 %4157
        %4159 = vadd.xlane.f32.xlu0 %v4133
        %v4160 = vpop.xlane.xlu0 %4159
        %4161 = vadd.xlane.f32.xlu0 %v4134
        %v4162 = vpop.xlane.xlu0 %4161
        %4163 = vadd.xlane.f32.xlu0 %v4135
        %v4164 = vpop.xlane.xlu0 %4163
        %4165 = vadd.xlane.f32.xlu0 %v4136
        %v4166 = vpop.xlane.xlu0 %4165
        %4167 = vadd.xlane.f32.xlu0 %v4137
        %v4168 = vpop.xlane.xlu0 %4167
        %4169 = vadd.xlane.f32.xlu0 %v4138
        %v4170 = vpop.xlane.xlu0 %4169
        %v4171 = vmul.f32 %v4140, %v658
        %v4172 = vmul.f32 %v4142, %v658
        %v4173 = vmul.f32 %v4144, %v658
        %v4174 = vmul.f32 %v4146, %v658
        %v4175 = vmul.f32 %v4148, %v658
        %v4176 = vmul.f32 %v4150, %v658
        %v4177 = vmul.f32 %v4152, %v658
        %v4178 = vmul.f32 %v4154, %v658
        %v4179 = vmul.f32 %v4156, %v658
        %v4180 = vmul.f32 %v4158, %v658
        %v4181 = vmul.f32 %v4160, %v658
        %v4182 = vmul.f32 %v4162, %v658
        %v4183 = vmul.f32 %v4164, %v658
        %v4184 = vmul.f32 %v4166, %v658
        %v4185 = vmul.f32 %v4168, %v658
        %v4186 = vmul.f32 %v4170, %v658
        %v4187 = vsub.f32 %v4123, %v4171
        %v4188 = vsub.f32 %v4124, %v4172
        %v4189 = vsub.f32 %v4125, %v4173
        %v4190 = vsub.f32 %v4126, %v4174
        %v4191 = vsub.f32 %v4127, %v4175
        %v4192 = vsub.f32 %v4128, %v4176
        %v4193 = vsub.f32 %v4129, %v4177
        %v4194 = vsub.f32 %v4130, %v4178
        %v4195 = vsub.f32 %v4131, %v4179
        %v4196 = vsub.f32 %v4132, %v4180
        %v4197 = vsub.f32 %v4133, %v4181
        %v4198 = vsub.f32 %v4134, %v4182
        %v4199 = vsub.f32 %v4135, %v4183
        %v4200 = vsub.f32 %v4136, %v4184
        %v4201 = vsub.f32 %v4137, %v4185
        %v4202 = vsub.f32 %v4138, %v4186
        %v4203 = vmul.f32 %v4187, %v4187
        %v4204 = vmul.f32 %v4188, %v4188
        %v4205 = vmul.f32 %v4189, %v4189
        %v4206 = vmul.f32 %v4190, %v4190
        %v4207 = vmul.f32 %v4191, %v4191
        %v4208 = vmul.f32 %v4192, %v4192
        %v4209 = vmul.f32 %v4193, %v4193
        %v4210 = vmul.f32 %v4194, %v4194
        %v4211 = vmul.f32 %v4195, %v4195
        %v4212 = vmul.f32 %v4196, %v4196
        %v4213 = vmul.f32 %v4197, %v4197
        %v4214 = vmul.f32 %v4198, %v4198
        %v4215 = vmul.f32 %v4199, %v4199
        %v4216 = vmul.f32 %v4200, %v4200
        %v4217 = vmul.f32 %v4201, %v4201
        %v4218 = vmul.f32 %v4202, %v4202
        %4219 = vadd.xlane.f32.xlu0 %v4203
        %v4220 = vpop.xlane.xlu0 %4219
        %4221 = vadd.xlane.f32.xlu0 %v4204
        %v4222 = vpop.xlane.xlu0 %4221
        %4223 = vadd.xlane.f32.xlu0 %v4205
        %v4224 = vpop.xlane.xlu0 %4223
        %4225 = vadd.xlane.f32.xlu0 %v4206
        %v4226 = vpop.xlane.xlu0 %4225
        %4227 = vadd.xlane.f32.xlu0 %v4207
        %v4228 = vpop.xlane.xlu0 %4227
        %4229 = vadd.xlane.f32.xlu0 %v4208
        %v4230 = vpop.xlane.xlu0 %4229
        %4231 = vadd.xlane.f32.xlu0 %v4209
        %v4232 = vpop.xlane.xlu0 %4231
        %4233 = vadd.xlane.f32.xlu0 %v4210
        %v4234 = vpop.xlane.xlu0 %4233
        %4235 = vadd.xlane.f32.xlu0 %v4211
        %v4236 = vpop.xlane.xlu0 %4235
        %4237 = vadd.xlane.f32.xlu0 %v4212
        %v4238 = vpop.xlane.xlu0 %4237
        %4239 = vadd.xlane.f32.xlu0 %v4213
        %v4240 = vpop.xlane.xlu0 %4239
        %4241 = vadd.xlane.f32.xlu0 %v4214
        %v4242 = vpop.xlane.xlu0 %4241
        %4243 = vadd.xlane.f32.xlu0 %v4215
        %v4244 = vpop.xlane.xlu0 %4243
        %4245 = vadd.xlane.f32.xlu0 %v4216
        %v4246 = vpop.xlane.xlu0 %4245
        %4247 = vadd.xlane.f32.xlu0 %v4217
        %v4248 = vpop.xlane.xlu0 %4247
        %4249 = vadd.xlane.f32.xlu0 %v4218
        %v4250 = vpop.xlane.xlu0 %4249
        %v4251 = vmul.f32 %v4220, %v658
        %v4252 = vmul.f32 %v4222, %v658
        %v4253 = vmul.f32 %v4224, %v658
        %v4254 = vmul.f32 %v4226, %v658
        %v4255 = vmul.f32 %v4228, %v658
        %v4256 = vmul.f32 %v4230, %v658
        %v4257 = vmul.f32 %v4232, %v658
        %v4258 = vmul.f32 %v4234, %v658
        %v4259 = vmul.f32 %v4236, %v658
        %v4260 = vmul.f32 %v4238, %v658
        %v4261 = vmul.f32 %v4240, %v658
        %v4262 = vmul.f32 %v4242, %v658
        %v4263 = vmul.f32 %v4244, %v658
        %v4264 = vmul.f32 %v4246, %v658
        %v4265 = vmul.f32 %v4248, %v658
        %v4266 = vmul.f32 %v4250, %v658
        %v4267 = vadd.f32 %v4251, 1e-05
        %v4268 = vadd.f32 %v4252, 1e-05
        %v4269 = vadd.f32 %v4253, 1e-05
        %v4270 = vadd.f32 %v4254, 1e-05
        %v4271 = vadd.f32 %v4255, 1e-05
        %v4272 = vadd.f32 %v4256, 1e-05
        %v4273 = vadd.f32 %v4257, 1e-05
        %v4274 = vadd.f32 %v4258, 1e-05
        %v4275 = vadd.f32 %v4259, 1e-05
        %v4276 = vadd.f32 %v4260, 1e-05
        %v4277 = vadd.f32 %v4261, 1e-05
        %v4278 = vadd.f32 %v4262, 1e-05
        %v4279 = vadd.f32 %v4263, 1e-05
        %v4280 = vadd.f32 %v4264, 1e-05
        %v4281 = vadd.f32 %v4265, 1e-05
        %v4282 = vadd.f32 %v4266, 1e-05
        %v4283 = vrsqrt.pop %v4267
        %v4284 = vmul.f32 %v4283, %v4267
        %v4285 = vmul.f32 %v4284, %v4283
        %v4286 = vmul.f32 0.5, %v4285
        %v4287 = vsub.f32 1.5, %v4286
        %v4288 = vmul.f32 %v4283, %v4287
        %vm4289 = vweird.f32 %v4267
        %vm4290 = vweird.f32 %v4283
        %vm4291 = vmor %vm4289, %vm4290
        %v4292 = vsel %vm4291, %v4283, %v4288
        %v4293 = vrsqrt.pop %v4268
        %v4294 = vmul.f32 %v4293, %v4268
        %v4295 = vmul.f32 %v4294, %v4293
        %v4296 = vmul.f32 0.5, %v4295
        %v4297 = vsub.f32 1.5, %v4296
        %v4298 = vmul.f32 %v4293, %v4297
        %vm4299 = vweird.f32 %v4268
        %vm4300 = vweird.f32 %v4293
        %vm4301 = vmor %vm4299, %vm4300
        %v4302 = vsel %vm4301, %v4293, %v4298
        %v4303 = vrsqrt.pop %v4269
        %v4304 = vmul.f32 %v4303, %v4269
        %v4305 = vmul.f32 %v4304, %v4303
        %v4306 = vmul.f32 0.5, %v4305
        %v4307 = vsub.f32 1.5, %v4306
        %v4308 = vmul.f32 %v4303, %v4307
        %vm4309 = vweird.f32 %v4269
        %vm4310 = vweird.f32 %v4303
        %vm4311 = vmor %vm4309, %vm4310
        %v4312 = vsel %vm4311, %v4303, %v4308
        %v4313 = vrsqrt.pop %v4270
        %v4314 = vmul.f32 %v4313, %v4270
        %v4315 = vmul.f32 %v4314, %v4313
        %v4316 = vmul.f32 0.5, %v4315
        %v4317 = vsub.f32 1.5, %v4316
        %v4318 = vmul.f32 %v4313, %v4317
        %vm4319 = vweird.f32 %v4270
        %vm4320 = vweird.f32 %v4313
        %vm4321 = vmor %vm4319, %vm4320
        %v4322 = vsel %vm4321, %v4313, %v4318
        %v4323 = vrsqrt.pop %v4271
        %v4324 = vmul.f32 %v4323, %v4271
        %v4325 = vmul.f32 %v4324, %v4323
        %v4326 = vmul.f32 0.5, %v4325
        %v4327 = vsub.f32 1.5, %v4326
        %v4328 = vmul.f32 %v4323, %v4327
        %vm4329 = vweird.f32 %v4271
        %vm4330 = vweird.f32 %v4323
        %vm4331 = vmor %vm4329, %vm4330
        %v4332 = vsel %vm4331, %v4323, %v4328
        %v4333 = vrsqrt.pop %v4272
        %v4334 = vmul.f32 %v4333, %v4272
        %v4335 = vmul.f32 %v4334, %v4333
        %v4336 = vmul.f32 0.5, %v4335
        %v4337 = vsub.f32 1.5, %v4336
        %v4338 = vmul.f32 %v4333, %v4337
        %vm4339 = vweird.f32 %v4272
        %vm4340 = vweird.f32 %v4333
        %vm4341 = vmor %vm4339, %vm4340
        %v4342 = vsel %vm4341, %v4333, %v4338
        %v4343 = vrsqrt.pop %v4273
        %v4344 = vmul.f32 %v4343, %v4273
        %v4345 = vmul.f32 %v4344, %v4343
        %v4346 = vmul.f32 0.5, %v4345
        %v4347 = vsub.f32 1.5, %v4346
        %v4348 = vmul.f32 %v4343, %v4347
        %vm4349 = vweird.f32 %v4273
        %vm4350 = vweird.f32 %v4343
        %vm4351 = vmor %vm4349, %vm4350
        %v4352 = vsel %vm4351, %v4343, %v4348
        %v4353 = vrsqrt.pop %v4274
        %v4354 = vmul.f32 %v4353, %v4274
        %v4355 = vmul.f32 %v4354, %v4353
        %v4356 = vmul.f32 0.5, %v4355
        %v4357 = vsub.f32 1.5, %v4356
        %v4358 = vmul.f32 %v4353, %v4357
        %vm4359 = vweird.f32 %v4274
        %vm4360 = vweird.f32 %v4353
        %vm4361 = vmor %vm4359, %vm4360
        %v4362 = vsel %vm4361, %v4353, %v4358
        %v4363 = vrsqrt.pop %v4275
        %v4364 = vmul.f32 %v4363, %v4275
        %v4365 = vmul.f32 %v4364, %v4363
        %v4366 = vmul.f32 0.5, %v4365
        %v4367 = vsub.f32 1.5, %v4366
        %v4368 = vmul.f32 %v4363, %v4367
        %vm4369 = vweird.f32 %v4275
        %vm4370 = vweird.f32 %v4363
        %vm4371 = vmor %vm4369, %vm4370
        %v4372 = vsel %vm4371, %v4363, %v4368
        %v4373 = vrsqrt.pop %v4276
        %v4374 = vmul.f32 %v4373, %v4276
        %v4375 = vmul.f32 %v4374, %v4373
        %v4376 = vmul.f32 0.5, %v4375
        %v4377 = vsub.f32 1.5, %v4376
        %v4378 = vmul.f32 %v4373, %v4377
        %vm4379 = vweird.f32 %v4276
        %vm4380 = vweird.f32 %v4373
        %vm4381 = vmor %vm4379, %vm4380
        %v4382 = vsel %vm4381, %v4373, %v4378
        %v4383 = vrsqrt.pop %v4277
        %v4384 = vmul.f32 %v4383, %v4277
        %v4385 = vmul.f32 %v4384, %v4383
        %v4386 = vmul.f32 0.5, %v4385
        %v4387 = vsub.f32 1.5, %v4386
        %v4388 = vmul.f32 %v4383, %v4387
        %vm4389 = vweird.f32 %v4277
        %vm4390 = vweird.f32 %v4383
        %vm4391 = vmor %vm4389, %vm4390
        %v4392 = vsel %vm4391, %v4383, %v4388
        %v4393 = vrsqrt.pop %v4278
        %v4394 = vmul.f32 %v4393, %v4278
        %v4395 = vmul.f32 %v4394, %v4393
        %v4396 = vmul.f32 0.5, %v4395
        %v4397 = vsub.f32 1.5, %v4396
        %v4398 = vmul.f32 %v4393, %v4397
        %vm4399 = vweird.f32 %v4278
        %vm4400 = vweird.f32 %v4393
        %vm4401 = vmor %vm4399, %vm4400
        %v4402 = vsel %vm4401, %v4393, %v4398
        %v4403 = vrsqrt.pop %v4279
        %v4404 = vmul.f32 %v4403, %v4279
        %v4405 = vmul.f32 %v4404, %v4403
        %v4406 = vmul.f32 0.5, %v4405
        %v4407 = vsub.f32 1.5, %v4406
        %v4408 = vmul.f32 %v4403, %v4407
        %vm4409 = vweird.f32 %v4279
        %vm4410 = vweird.f32 %v4403
        %vm4411 = vmor %vm4409, %vm4410
        %v4412 = vsel %vm4411, %v4403, %v4408
        %v4413 = vrsqrt.pop %v4280
        %v4414 = vmul.f32 %v4413, %v4280
        %v4415 = vmul.f32 %v4414, %v4413
        %v4416 = vmul.f32 0.5, %v4415
        %v4417 = vsub.f32 1.5, %v4416
        %v4418 = vmul.f32 %v4413, %v4417
        %vm4419 = vweird.f32 %v4280
        %vm4420 = vweird.f32 %v4413
        %vm4421 = vmor %vm4419, %vm4420
        %v4422 = vsel %vm4421, %v4413, %v4418
        %v4423 = vrsqrt.pop %v4281
        %v4424 = vmul.f32 %v4423, %v4281
        %v4425 = vmul.f32 %v4424, %v4423
        %v4426 = vmul.f32 0.5, %v4425
        %v4427 = vsub.f32 1.5, %v4426
        %v4428 = vmul.f32 %v4423, %v4427
        %vm4429 = vweird.f32 %v4281
        %vm4430 = vweird.f32 %v4423
        %vm4431 = vmor %vm4429, %vm4430
        %v4432 = vsel %vm4431, %v4423, %v4428
        %v4433 = vrsqrt.pop %v4282
        %v4434 = vmul.f32 %v4433, %v4282
        %v4435 = vmul.f32 %v4434, %v4433
        %v4436 = vmul.f32 0.5, %v4435
        %v4437 = vsub.f32 1.5, %v4436
        %v4438 = vmul.f32 %v4433, %v4437
        %vm4439 = vweird.f32 %v4282
        %vm4440 = vweird.f32 %v4433
        %vm4441 = vmor %vm4439, %vm4440
        %v4442 = vsel %vm4441, %v4433, %v4438
        %v4443 = vmul.f32 %v4187, %v4292
        %v4444 = vmul.f32 %v4188, %v4302
        %v4445 = vmul.f32 %v4189, %v4312
        %v4446 = vmul.f32 %v4190, %v4322
        %v4447 = vmul.f32 %v4191, %v4332
        %v4448 = vmul.f32 %v4192, %v4342
        %v4449 = vmul.f32 %v4193, %v4352
        %v4450 = vmul.f32 %v4194, %v4362
        %v4451 = vmul.f32 %v4195, %v4372
        %v4452 = vmul.f32 %v4196, %v4382
        %v4453 = vmul.f32 %v4197, %v4392
        %v4454 = vmul.f32 %v4198, %v4402
        %v4455 = vmul.f32 %v4199, %v4412
        %v4456 = vmul.f32 %v4200, %v4422
        %v4457 = vmul.f32 %v4201, %v4432
        %v4458 = vmul.f32 %v4202, %v4442
        %v4459 = vperm.slane %v617, 0
        %v4460 = vmul.f32 %v4443, %v4459
        %v4461 = vmul.f32 %v4444, %v4459
        %v4462 = vmul.f32 %v4445, %v4459
        %v4463 = vmul.f32 %v4446, %v4459
        %v4464 = vmul.f32 %v4447, %v4459
        %v4465 = vmul.f32 %v4448, %v4459
        %v4466 = vmul.f32 %v4449, %v4459
        %v4467 = vmul.f32 %v4450, %v4459
        %v4468 = vmul.f32 %v4451, %v4459
        %v4469 = vmul.f32 %v4452, %v4459
        %v4470 = vmul.f32 %v4453, %v4459
        %v4471 = vmul.f32 %v4454, %v4459
        %v4472 = vmul.f32 %v4455, %v4459
        %v4473 = vmul.f32 %v4456, %v4459
        %v4474 = vmul.f32 %v4457, %v4459
        %v4475 = vmul.f32 %v4458, %v4459
        %v4476 = vperm.slane %v618, 0
        %v4477 = vadd.f32 %v4460, %v4476
        %v4478 = vadd.f32 %v4461, %v4476
        %v4479 = vadd.f32 %v4462, %v4476
        %v4480 = vadd.f32 %v4463, %v4476
        %v4481 = vadd.f32 %v4464, %v4476
        %v4482 = vadd.f32 %v4465, %v4476
        %v4483 = vadd.f32 %v4466, %v4476
        %v4484 = vadd.f32 %v4467, %v4476
        %v4485 = vadd.f32 %v4468, %v4476
        %v4486 = vadd.f32 %v4469, %v4476
        %v4487 = vadd.f32 %v4470, %v4476
        %v4488 = vadd.f32 %v4471, %v4476
        %v4489 = vadd.f32 %v4472, %v4476
        %v4490 = vadd.f32 %v4473, %v4476
        %v4491 = vadd.f32 %v4474, %v4476
        %v4492 = vadd.f32 %v4475, %v4476
        %v4493 = vpack.c.bf16 %v4478, %v4477
        %v4494 = vpack.c.bf16 %v4480, %v4479
        %v4495 = vpack.c.bf16 %v4482, %v4481
        %v4496 = vpack.c.bf16 %v4484, %v4483
        %v4497 = vpack.c.bf16 %v4486, %v4485
        %v4498 = vpack.c.bf16 %v4488, %v4487
        %v4499 = vpack.c.bf16 %v4490, %v4489
        %v4500 = vpack.c.bf16 %v4492, %v4491
        %v4501 = vld [vmem:[%s479] sm:$0xff]
        %v4502 = vld [vmem:[%s479 + $0x8] sm:$0xff]
        %v4503 = vld [vmem:[%s479 + $0x10] sm:$0xff]
        %v4504 = vld [vmem:[%s479 + $0x18] sm:$0xff]
        %v4505 = vld [vmem:[%s479 + $0x20] sm:$0xff]
        %v4506 = vld [vmem:[%s479 + $0x28] sm:$0xff]
        %v4507 = vld [vmem:[%s479 + $0x30] sm:$0xff]
        %v4508 = vld [vmem:[%s479 + $0x38] sm:$0xff]
        %v4509 = vld [vmem:[%s479 + $0x40] sm:$0xff]
        %v4510 = vld [vmem:[%s479 + $0x48] sm:$0xff]
        %v4511 = vld [vmem:[%s479 + $0x50] sm:$0xff]
        %v4512 = vld [vmem:[%s479 + $0x58] sm:$0xff]
        %v4513 = vld [vmem:[%s479 + $0x60] sm:$0xff]
        %v4514 = vld [vmem:[%s479 + $0x68] sm:$0xff]
        %v4515 = vld [vmem:[%s479 + $0x70] sm:$0xff]
        %v4516 = vld [vmem:[%s479 + $0x78] sm:$0xff]
        %v4517 = vld [vmem:[%s479 + $0x80] sm:$0xff]
        %v4518 = vld [vmem:[%s479 + $0x88] sm:$0xff]
        %v4519 = vld [vmem:[%s479 + $0x90] sm:$0xff]
        %v4520 = vld [vmem:[%s479 + $0x98] sm:$0xff]
        %v4521 = vld [vmem:[%s479 + $0xa0] sm:$0xff]
        %v4522 = vld [vmem:[%s479 + $0xa8] sm:$0xff]
        %v4523 = vld [vmem:[%s479 + $0xb0] sm:$0xff]
        %v4524 = vld [vmem:[%s479 + $0xb8] sm:$0xff]
        %v4525 = vld [vmem:[%s479 + $0xc0] sm:$0xff]
        %v4526 = vld [vmem:[%s479 + $0xc8] sm:$0xff]
        %v4527 = vld [vmem:[%s479 + $0xd0] sm:$0xff]
        %v4528 = vld [vmem:[%s479 + $0xd8] sm:$0xff]
        %v4529 = vld [vmem:[%s479 + $0xe0] sm:$0xff]
        %v4530 = vld [vmem:[%s479 + $0xe8] sm:$0xff]
        %v4531 = vld [vmem:[%s479 + $0xf0] sm:$0xff]
        %v4532 = vld [vmem:[%s479 + $0xf8] sm:$0xff]
        %v4533 = vld [vmem:[%s560] sm:$0xf]
        %v4535 = vperm.slane %v4533, 0
        %v4536 = vperm.slane %v4533, 1
        %v4537 = vperm.slane %v4533, 2
        %v4538 = vperm.slane %v4533, 3
        %v4575 = vunpack.c.l.b16 %v4501
        %v4576 = vunpack.c.h.b16 %v4501
        %v4577 = vunpack.c.l.b16 %v4502
        %v4578 = vunpack.c.h.b16 %v4502
        %v4579 = vunpack.c.l.b16 %v4503
        %v4580 = vunpack.c.h.b16 %v4503
        %v4581 = vunpack.c.l.b16 %v4504
        %v4582 = vunpack.c.h.b16 %v4504
        %v4583 = vunpack.c.l.b16 %v4505
        %v4584 = vunpack.c.h.b16 %v4505
        %v4585 = vunpack.c.l.b16 %v4506
        %v4586 = vunpack.c.h.b16 %v4506
        %v4587 = vunpack.c.l.b16 %v4507
        %v4588 = vunpack.c.h.b16 %v4507
        %v4589 = vunpack.c.l.b16 %v4508
        %v4590 = vunpack.c.h.b16 %v4508
        %v4591 = vunpack.c.l.b16 %v4509
        %v4592 = vunpack.c.h.b16 %v4509
        %v4593 = vunpack.c.l.b16 %v4510
        %v4594 = vunpack.c.h.b16 %v4510
        %v4595 = vunpack.c.l.b16 %v4511
        %v4596 = vunpack.c.h.b16 %v4511
        %v4597 = vunpack.c.l.b16 %v4512
        %v4598 = vunpack.c.h.b16 %v4512
        %v4599 = vunpack.c.l.b16 %v4513
        %v4600 = vunpack.c.h.b16 %v4513
        %v4601 = vunpack.c.l.b16 %v4514
        %v4602 = vunpack.c.h.b16 %v4514
        %v4603 = vunpack.c.l.b16 %v4515
        %v4604 = vunpack.c.h.b16 %v4515
        %v4605 = vunpack.c.l.b16 %v4516
        %v4606 = vunpack.c.h.b16 %v4516
        %v4607 = vunpack.c.l.b16 %v4517
        %v4608 = vunpack.c.h.b16 %v4517
        %v4609 = vunpack.c.l.b16 %v4518
        %v4610 = vunpack.c.h.b16 %v4518
        %v4611 = vunpack.c.l.b16 %v4519
        %v4612 = vunpack.c.h.b16 %v4519
        %v4613 = vunpack.c.l.b16 %v4520
        %v4614 = vunpack.c.h.b16 %v4520
        %v4615 = vunpack.c.l.b16 %v4521
        %v4616 = vunpack.c.h.b16 %v4521
        %v4617 = vunpack.c.l.b16 %v4522
        %v4618 = vunpack.c.h.b16 %v4522
        %v4619 = vunpack.c.l.b16 %v4523
        %v4620 = vunpack.c.h.b16 %v4523
        %v4621 = vunpack.c.l.b16 %v4524
        %v4622 = vunpack.c.h.b16 %v4524
        %v4623 = vunpack.c.l.b16 %v4525
        %v4624 = vunpack.c.h.b16 %v4525
        %v4625 = vunpack.c.l.b16 %v4526
        %v4626 = vunpack.c.h.b16 %v4526
        %v4627 = vunpack.c.l.b16 %v4527
        %v4628 = vunpack.c.h.b16 %v4527
        %v4629 = vunpack.c.l.b16 %v4528
        %v4630 = vunpack.c.h.b16 %v4528
        %v4631 = vunpack.c.l.b16 %v4529
        %v4632 = vunpack.c.h.b16 %v4529
        %v4633 = vunpack.c.l.b16 %v4530
        %v4634 = vunpack.c.h.b16 %v4530
        %v4635 = vunpack.c.l.b16 %v4531
        %v4636 = vunpack.c.h.b16 %v4531
        %v4637 = vunpack.c.l.b16 %v4532
        %v4638 = vunpack.c.h.b16 %v4532
        %v4639 = vpack.c.b16 %v4579, %v4575
        %v4640 = vpack.c.b16 %v4580, %v4576
        %v4641 = vpack.c.b16 %v4581, %v4577
        %v4642 = vpack.c.b16 %v4582, %v4578
        %v4643 = vpack.c.b16 %v4587, %v4583
        %v4644 = vpack.c.b16 %v4588, %v4584
        %v4645 = vpack.c.b16 %v4589, %v4585
        %v4646 = vpack.c.b16 %v4590, %v4586
        %v4647 = vpack.c.b16 %v4595, %v4591
        %v4648 = vpack.c.b16 %v4596, %v4592
        %v4649 = vpack.c.b16 %v4597, %v4593
        %v4650 = vpack.c.b16 %v4598, %v4594
        %v4651 = vpack.c.b16 %v4603, %v4599
        %v4652 = vpack.c.b16 %v4604, %v4600
        %v4653 = vpack.c.b16 %v4605, %v4601
        %v4654 = vpack.c.b16 %v4606, %v4602
        %v4655 = vpack.c.b16 %v4611, %v4607
        %v4656 = vpack.c.b16 %v4612, %v4608
        %v4657 = vpack.c.b16 %v4613, %v4609
        %v4658 = vpack.c.b16 %v4614, %v4610
        %v4659 = vpack.c.b16 %v4619, %v4615
        %v4660 = vpack.c.b16 %v4620, %v4616
        %v4661 = vpack.c.b16 %v4621, %v4617
        %v4662 = vpack.c.b16 %v4622, %v4618
        %v4663 = vpack.c.b16 %v4627, %v4623
        %v4664 = vpack.c.b16 %v4628, %v4624
        %v4665 = vpack.c.b16 %v4629, %v4625
        %v4666 = vpack.c.b16 %v4630, %v4626
        %v4667 = vpack.c.b16 %v4635, %v4631
        %v4668 = vpack.c.b16 %v4636, %v4632
        %v4669 = vpack.c.b16 %v4637, %v4633
        %v4670 = vpack.c.b16 %v4638, %v4634
        %4703 = vmatpush.bf16.msra.mxu0 %v4667
        %4704 = vmatpush.bf16.msra.mxu0 %v4663
        %4705 = vmatpush.bf16.msra.mxu0 %v4659
        %4706 = vmatpush.bf16.msra.mxu0 %v4655
        %4707 = vmatpush.bf16.msra.mxu0 %v4651
        %4708 = vmatpush.bf16.msra.mxu0 %v4647
        %4709 = vmatpush.bf16.msra.mxu0 %v4643
        %4710 = vmatpush.bf16.msra.mxu0 %v4639
        %4711 = vmatmul.bf16.gmra.mxu0 %v4493
        %v4712 = vpop.f32.mrf.mxu0
        %v4713 = vadd.f32 %v4535, %v4712
        %v4714 = vpop.f32.mrf.mxu0
        %v4715 = vadd.f32 %v4535, %v4714
        %4716 = vmatmul.bf16.gmra.mxu0 %v4494
        %v4717 = vpop.f32.mrf.mxu0
        %v4718 = vadd.f32 %v4535, %v4717
        %v4719 = vpop.f32.mrf.mxu0
        %v4720 = vadd.f32 %v4535, %v4719
        %4721 = vmatmul.bf16.gmra.mxu0 %v4495
        %v4722 = vpop.f32.mrf.mxu0
        %v4723 = vadd.f32 %v4535, %v4722
        %v4724 = vpop.f32.mrf.mxu0
        %v4725 = vadd.f32 %v4535, %v4724
        %4726 = vmatmul.bf16.gmra.mxu0 %v4496
        %v4727 = vpop.f32.mrf.mxu0
        %v4728 = vadd.f32 %v4535, %v4727
        %v4729 = vpop.f32.mrf.mxu0
        %v4730 = vadd.f32 %v4535, %v4729
        %4731 = vmatmul.bf16.gmra.mxu0 %v4497
        %v4732 = vpop.f32.mrf.mxu0
        %v4733 = vadd.f32 %v4535, %v4732
        %v4734 = vpop.f32.mrf.mxu0
        %v4735 = vadd.f32 %v4535, %v4734
        %4736 = vmatmul.bf16.gmra.mxu0 %v4498
        %v4737 = vpop.f32.mrf.mxu0
        %v4738 = vadd.f32 %v4535, %v4737
        %v4739 = vpop.f32.mrf.mxu0
        %v4740 = vadd.f32 %v4535, %v4739
        %4741 = vmatmul.bf16.gmra.mxu0 %v4499
        %v4742 = vpop.f32.mrf.mxu0
        %v4743 = vadd.f32 %v4535, %v4742
        %v4744 = vpop.f32.mrf.mxu0
        %v4745 = vadd.f32 %v4535, %v4744
        %4746 = vmatmul.bf16.gmra.mxu0 %v4500
        %v4747 = vpop.f32.mrf.mxu0
        %v4748 = vadd.f32 %v4535, %v4747
        %v4749 = vpop.f32.mrf.mxu0
        %v4750 = vadd.f32 %v4535, %v4749
        %4751 = vdwg.mxu0
        %4752 = vmatpush.bf16.msra.mxu0 %v4668
        %4753 = vmatpush.bf16.msra.mxu0 %v4664
        %4754 = vmatpush.bf16.msra.mxu0 %v4660
        %4755 = vmatpush.bf16.msra.mxu0 %v4656
        %4756 = vmatpush.bf16.msra.mxu0 %v4652
        %4757 = vmatpush.bf16.msra.mxu0 %v4648
        %4758 = vmatpush.bf16.msra.mxu0 %v4644
        %4759 = vmatpush.bf16.msra.mxu0 %v4640
        %4760 = vmatmul.bf16.gmra.mxu0 %v4493
        %v4761 = vpop.f32.mrf.mxu0
        %v4762 = vadd.f32 %v4536, %v4761
        %v4763 = vpop.f32.mrf.mxu0
        %v4764 = vadd.f32 %v4536, %v4763
        %4765 = vmatmul.bf16.gmra.mxu0 %v4494
        %v4766 = vpop.f32.mrf.mxu0
        %v4767 = vadd.f32 %v4536, %v4766
        %v4768 = vpop.f32.mrf.mxu0
        %v4769 = vadd.f32 %v4536, %v4768
        %4770 = vmatmul.bf16.gmra.mxu0 %v4495
        %v4771 = vpop.f32.mrf.mxu0
        %v4772 = vadd.f32 %v4536, %v4771
        %v4773 = vpop.f32.mrf.mxu0
        %v4774 = vadd.f32 %v4536, %v4773
        %4775 = vmatmul.bf16.gmra.mxu0 %v4496
        %v4776 = vpop.f32.mrf.mxu0
        %v4777 = vadd.f32 %v4536, %v4776
        %v4778 = vpop.f32.mrf.mxu0
        %v4779 = vadd.f32 %v4536, %v4778
        %4780 = vmatmul.bf16.gmra.mxu0 %v4497
        %v4781 = vpop.f32.mrf.mxu0
        %v4782 = vadd.f32 %v4536, %v4781
        %v4783 = vpop.f32.mrf.mxu0
        %v4784 = vadd.f32 %v4536, %v4783
        %4785 = vmatmul.bf16.gmra.mxu0 %v4498
        %v4786 = vpop.f32.mrf.mxu0
        %v4787 = vadd.f32 %v4536, %v4786
        %v4788 = vpop.f32.mrf.mxu0
        %v4789 = vadd.f32 %v4536, %v4788
        %4790 = vmatmul.bf16.gmra.mxu0 %v4499
        %v4791 = vpop.f32.mrf.mxu0
        %v4792 = vadd.f32 %v4536, %v4791
        %v4793 = vpop.f32.mrf.mxu0
        %v4794 = vadd.f32 %v4536, %v4793
        %4795 = vmatmul.bf16.gmra.mxu0 %v4500
        %v4796 = vpop.f32.mrf.mxu0
        %v4797 = vadd.f32 %v4536, %v4796
        %v4798 = vpop.f32.mrf.mxu0
        %v4799 = vadd.f32 %v4536, %v4798
        %4800 = vdwg.mxu0
        %4801 = vmatpush.bf16.msra.mxu0 %v4669
        %4802 = vmatpush.bf16.msra.mxu0 %v4665
        %4803 = vmatpush.bf16.msra.mxu0 %v4661
        %4804 = vmatpush.bf16.msra.mxu0 %v4657
        %4805 = vmatpush.bf16.msra.mxu0 %v4653
        %4806 = vmatpush.bf16.msra.mxu0 %v4649
        %4807 = vmatpush.bf16.msra.mxu0 %v4645
        %4808 = vmatpush.bf16.msra.mxu0 %v4641
        %4809 = vmatmul.bf16.gmra.mxu0 %v4493
        %v4810 = vpop.f32.mrf.mxu0
        %v4811 = vadd.f32 %v4537, %v4810
        %v4812 = vpop.f32.mrf.mxu0
        %v4813 = vadd.f32 %v4537, %v4812
        %4814 = vmatmul.bf16.gmra.mxu0 %v4494
        %v4815 = vpop.f32.mrf.mxu0
        %v4816 = vadd.f32 %v4537, %v4815
        %v4817 = vpop.f32.mrf.mxu0
        %v4818 = vadd.f32 %v4537, %v4817
        %4819 = vmatmul.bf16.gmra.mxu0 %v4495
        %v4820 = vpop.f32.mrf.mxu0
        %v4821 = vadd.f32 %v4537, %v4820
        %v4822 = vpop.f32.mrf.mxu0
        %v4823 = vadd.f32 %v4537, %v4822
        %4824 = vmatmul.bf16.gmra.mxu0 %v4496
        %v4825 = vpop.f32.mrf.mxu0
        %v4826 = vadd.f32 %v4537, %v4825
        %v4827 = vpop.f32.mrf.mxu0
        %v4828 = vadd.f32 %v4537, %v4827
        %4829 = vmatmul.bf16.gmra.mxu0 %v4497
        %v4830 = vpop.f32.mrf.mxu0
        %v4831 = vadd.f32 %v4537, %v4830
        %v4832 = vpop.f32.mrf.mxu0
        %v4833 = vadd.f32 %v4537, %v4832
        %4834 = vmatmul.bf16.gmra.mxu0 %v4498
        %v4835 = vpop.f32.mrf.mxu0
        %v4836 = vadd.f32 %v4537, %v4835
        %v4837 = vpop.f32.mrf.mxu0
        %v4838 = vadd.f32 %v4537, %v4837
        %4839 = vmatmul.bf16.gmra.mxu0 %v4499
        %v4840 = vpop.f32.mrf.mxu0
        %v4841 = vadd.f32 %v4537, %v4840
        %v4842 = vpop.f32.mrf.mxu0
        %v4843 = vadd.f32 %v4537, %v4842
        %4844 = vmatmul.bf16.gmra.mxu0 %v4500
        %v4845 = vpop.f32.mrf.mxu0
        %v4846 = vadd.f32 %v4537, %v4845
        %v4847 = vpop.f32.mrf.mxu0
        %v4848 = vadd.f32 %v4537, %v4847
        %4849 = vdwg.mxu0
        %4850 = vmatpush.bf16.msra.mxu0 %v4670
        %4851 = vmatpush.bf16.msra.mxu0 %v4666
        %4852 = vmatpush.bf16.msra.mxu0 %v4662
        %4853 = vmatpush.bf16.msra.mxu0 %v4658
        %4854 = vmatpush.bf16.msra.mxu0 %v4654
        %4855 = vmatpush.bf16.msra.mxu0 %v4650
        %4856 = vmatpush.bf16.msra.mxu0 %v4646
        %4857 = vmatpush.bf16.msra.mxu0 %v4642
        %4858 = vmatmul.bf16.gmra.mxu0 %v4493
        %v4859 = vpop.f32.mrf.mxu0
        %v4860 = vadd.f32 %v4538, %v4859
        %v4861 = vpop.f32.mrf.mxu0
        %v4862 = vadd.f32 %v4538, %v4861
        %4863 = vmatmul.bf16.gmra.mxu0 %v4494
        %v4864 = vpop.f32.mrf.mxu0
        %v4865 = vadd.f32 %v4538, %v4864
        %v4866 = vpop.f32.mrf.mxu0
        %v4867 = vadd.f32 %v4538, %v4866
        %4868 = vmatmul.bf16.gmra.mxu0 %v4495
        %v4869 = vpop.f32.mrf.mxu0
        %v4870 = vadd.f32 %v4538, %v4869
        %v4871 = vpop.f32.mrf.mxu0
        %v4872 = vadd.f32 %v4538, %v4871
        %4873 = vmatmul.bf16.gmra.mxu0 %v4496
        %v4874 = vpop.f32.mrf.mxu0
        %v4875 = vadd.f32 %v4538, %v4874
        %v4876 = vpop.f32.mrf.mxu0
        %v4877 = vadd.f32 %v4538, %v4876
        %4878 = vmatmul.bf16.gmra.mxu0 %v4497
        %v4879 = vpop.f32.mrf.mxu0
        %v4880 = vadd.f32 %v4538, %v4879
        %v4881 = vpop.f32.mrf.mxu0
        %v4882 = vadd.f32 %v4538, %v4881
        %4883 = vmatmul.bf16.gmra.mxu0 %v4498
        %v4884 = vpop.f32.mrf.mxu0
        %v4885 = vadd.f32 %v4538, %v4884
        %v4886 = vpop.f32.mrf.mxu0
        %v4887 = vadd.f32 %v4538, %v4886
        %4888 = vmatmul.bf16.gmra.mxu0 %v4499
        %v4889 = vpop.f32.mrf.mxu0
        %v4890 = vadd.f32 %v4538, %v4889
        %v4891 = vpop.f32.mrf.mxu0
        %v4892 = vadd.f32 %v4538, %v4891
        %4893 = vmatmul.bf16.gmra.mxu0 %v4500
        %v4894 = vpop.f32.mrf.mxu0
        %v4895 = vadd.f32 %v4538, %v4894
        %v4896 = vpop.f32.mrf.mxu0
        %v4897 = vadd.f32 %v4538, %v4896
        %4898 = vdwg.mxu0
        %v4899 = vmul.f32 %v4713, 0.5
        %v4900 = vmul.f32 %v4762, 0.5
        %v4901 = vmul.f32 %v4811, 0.5
        %v4902 = vmul.f32 %v4860, 0.5
        %v4903 = vmul.f32 %v4715, 0.5
        %v4904 = vmul.f32 %v4764, 0.5
        %v4905 = vmul.f32 %v4813, 0.5
        %v4906 = vmul.f32 %v4862, 0.5
        %v4907 = vmul.f32 %v4718, 0.5
        %v4908 = vmul.f32 %v4767, 0.5
        %v4909 = vmul.f32 %v4816, 0.5
        %v4910 = vmul.f32 %v4865, 0.5
        %v4911 = vmul.f32 %v4720, 0.5
        %v4912 = vmul.f32 %v4769, 0.5
        %v4913 = vmul.f32 %v4818, 0.5
        %v4914 = vmul.f32 %v4867, 0.5
        %v4915 = vmul.f32 %v4723, 0.5
        %v4916 = vmul.f32 %v4772, 0.5
        %v4917 = vmul.f32 %v4821, 0.5
        %v4918 = vmul.f32 %v4870, 0.5
        %v4919 = vmul.f32 %v4725, 0.5
        %v4920 = vmul.f32 %v4774, 0.5
        %v4921 = vmul.f32 %v4823, 0.5
        %v4922 = vmul.f32 %v4872, 0.5
        %v4923 = vmul.f32 %v4728, 0.5
        %v4924 = vmul.f32 %v4777, 0.5
        %v4925 = vmul.f32 %v4826, 0.5
        %v4926 = vmul.f32 %v4875, 0.5
        %v4927 = vmul.f32 %v4730, 0.5
        %v4928 = vmul.f32 %v4779, 0.5
        %v4929 = vmul.f32 %v4828, 0.5
        %v4930 = vmul.f32 %v4877, 0.5
        %v4931 = vmul.f32 %v4733, 0.5
        %v4932 = vmul.f32 %v4782, 0.5
        %v4933 = vmul.f32 %v4831, 0.5
        %v4934 = vmul.f32 %v4880, 0.5
        %v4935 = vmul.f32 %v4735, 0.5
        %v4936 = vmul.f32 %v4784, 0.5
        %v4937 = vmul.f32 %v4833, 0.5
        %v4938 = vmul.f32 %v4882, 0.5
        %v4939 = vmul.f32 %v4738, 0.5
        %v4940 = vmul.f32 %v4787, 0.5
        %v4941 = vmul.f32 %v4836, 0.5
        %v4942 = vmul.f32 %v4885, 0.5
        %v4943 = vmul.f32 %v4740, 0.5
        %v4944 = vmul.f32 %v4789, 0.5
        %v4945 = vmul.f32 %v4838, 0.5
        %v4946 = vmul.f32 %v4887, 0.5
        %v4947 = vmul.f32 %v4743, 0.5
        %v4948 = vmul.f32 %v4792, 0.5
        %v4949 = vmul.f32 %v4841, 0.5
        %v4950 = vmul.f32 %v4890, 0.5
        %v4951 = vmul.f32 %v4745, 0.5
        %v4952 = vmul.f32 %v4794, 0.5
        %v4953 = vmul.f32 %v4843, 0.5
        %v4954 = vmul.f32 %v4892, 0.5
        %v4955 = vmul.f32 %v4748, 0.5
        %v4956 = vmul.f32 %v4797, 0.5
        %v4957 = vmul.f32 %v4846, 0.5
        %v4958 = vmul.f32 %v4895, 0.5
        %v4959 = vmul.f32 %v4750, 0.5
        %v4960 = vmul.f32 %v4799, 0.5
        %v4961 = vmul.f32 %v4848, 0.5
        %v4962 = vmul.f32 %v4897, 0.5
        %v4963 = vmul.f32 %v4713, 0.70710677
        %v4964 = vmul.f32 %v4762, 0.70710677
        %v4965 = vmul.f32 %v4811, 0.70710677
        %v4966 = vmul.f32 %v4860, 0.70710677
        %v4967 = vmul.f32 %v4715, 0.70710677
        %v4968 = vmul.f32 %v4764, 0.70710677
        %v4969 = vmul.f32 %v4813, 0.70710677
        %v4970 = vmul.f32 %v4862, 0.70710677
        %v4971 = vmul.f32 %v4718, 0.70710677
        %v4972 = vmul.f32 %v4767, 0.70710677
        %v4973 = vmul.f32 %v4816, 0.70710677
        %v4974 = vmul.f32 %v4865, 0.70710677
        %v4975 = vmul.f32 %v4720, 0.70710677
        %v4976 = vmul.f32 %v4769, 0.70710677
        %v4977 = vmul.f32 %v4818, 0.70710677
        %v4978 = vmul.f32 %v4867, 0.70710677
        %v4979 = vmul.f32 %v4723, 0.70710677
        %v4980 = vmul.f32 %v4772, 0.70710677
        %v4981 = vmul.f32 %v4821, 0.70710677
        %v4982 = vmul.f32 %v4870, 0.70710677
        %v4983 = vmul.f32 %v4725, 0.70710677
        %v4984 = vmul.f32 %v4774, 0.70710677
        %v4985 = vmul.f32 %v4823, 0.70710677
        %v4986 = vmul.f32 %v4872, 0.70710677
        %v4987 = vmul.f32 %v4728, 0.70710677
        %v4988 = vmul.f32 %v4777, 0.70710677
        %v4989 = vmul.f32 %v4826, 0.70710677
        %v4990 = vmul.f32 %v4875, 0.70710677
        %v4991 = vmul.f32 %v4730, 0.70710677
        %v4992 = vmul.f32 %v4779, 0.70710677
        %v4993 = vmul.f32 %v4828, 0.70710677
        %v4994 = vmul.f32 %v4877, 0.70710677
        %v4995 = vmul.f32 %v4733, 0.70710677
        %v4996 = vmul.f32 %v4782, 0.70710677
        %v4997 = vmul.f32 %v4831, 0.70710677
        %v4998 = vmul.f32 %v4880, 0.70710677
        %v4999 = vmul.f32 %v4735, 0.70710677
        %v5000 = vmul.f32 %v4784, 0.70710677
        %v5001 = vmul.f32 %v4833, 0.70710677
        %v5002 = vmul.f32 %v4882, 0.70710677
        %v5003 = vmul.f32 %v4738, 0.70710677
        %v5004 = vmul.f32 %v4787, 0.70710677
        %v5005 = vmul.f32 %v4836, 0.70710677
        %v5006 = vmul.f32 %v4885, 0.70710677
        %v5007 = vmul.f32 %v4740, 0.70710677
        %v5008 = vmul.f32 %v4789, 0.70710677
        %v5009 = vmul.f32 %v4838, 0.70710677
        %v5010 = vmul.f32 %v4887, 0.70710677
        %v5011 = vmul.f32 %v4743, 0.70710677
        %v5012 = vmul.f32 %v4792, 0.70710677
        %v5013 = vmul.f32 %v4841, 0.70710677
        %v5014 = vmul.f32 %v4890, 0.70710677
        %v5015 = vmul.f32 %v4745, 0.70710677
        %v5016 = vmul.f32 %v4794, 0.70710677
        %v5017 = vmul.f32 %v4843, 0.70710677
        %v5018 = vmul.f32 %v4892, 0.70710677
        %v5019 = vmul.f32 %v4748, 0.70710677
        %v5020 = vmul.f32 %v4797, 0.70710677
        %v5021 = vmul.f32 %v4846, 0.70710677
        %v5022 = vmul.f32 %v4895, 0.70710677
        %v5023 = vmul.f32 %v4750, 0.70710677
        %v5024 = vmul.f32 %v4799, 0.70710677
        %v5025 = vmul.f32 %v4848, 0.70710677
        %v5026 = vmul.f32 %v4897, 0.70710677
        %v5027 = vmul.f32 %v4963, %v4963
        %v5028 = vmin.f32 16.0, %v5027
        %v5029 = vmul.f32 %v5028, 2.1237322e-06
        %v5030 = vadd.f32 %v5029, 0.00028619796
        %v5031 = vmul.f32 %v5028, %v5030
        %v5032 = vadd.f32 %v5031, 0.0036580483
        %v5033 = vmul.f32 %v5028, %v5032
        %v5034 = vadd.f32 %v5033, 0.05243302
        %v5035 = vmul.f32 %v5028, %v5034
        %v5036 = vadd.f32 %v5035, 0.18741608
        %v5037 = vmul.f32 %v5028, %v5036
        %v5038 = vadd.f32 %v5037, 1.1283791
        %v5039 = vmul.f32 %v4963, %v5038
        %v5040 = vmul.f32 %v5028, 3.8918573e-05
        %v5041 = vadd.f32 %v5040, 0.001143296
        %v5042 = vmul.f32 %v5028, %v5041
        %v5043 = vadd.f32 %v5042, 0.014752088
        %v5044 = vmul.f32 %v5028, %v5043
        %v5045 = vadd.f32 %v5044, 0.112945676
        %v5046 = vmul.f32 %v5028, %v5045
        %v5047 = vadd.f32 %v5046, 0.4994258
        %v5048 = vmul.f32 %v5028, %v5047
        %v5049 = vadd.f32 %v5048, 1.0
        %v5050 = vrcp.pop %v5049
        %v5051 = vmul.f32 %v5049, %v5050
        %v5052 = vsub.f32 1.0, %v5051
        %v5053 = vmul.f32 %v5050, %v5052
        %v5054 = vadd.f32 %v5050, %v5053
        %vm5055 = vweird.f32 %v5049
        %vm5056 = vweird.f32 %v5050
        %vm5057 = vmor %vm5055, %vm5056
        %v5058 = vsel %vm5057, %v5050, %v5054
        %v5059 = vand.u32 2147483647, %v5049
        %vm5060 = vcmp.eq.f32.partialorder %v5059, 8.507059e+37
        %v5061 = vand.u32 %v5049, 2147483648
        %v5062 = vor.u32 1.1754944e-38, %v5061
        %v5063 = vsel %vm5060, %v5062, %v5058
        %v5064 = vmul.f32 %v5039, %v5063
        %v5065 = vmin.f32 %v5064, 1.0
        %v5066 = vmax.f32 %v5065, -1.0
        %v5067 = vmul.f32 %v4964, %v4964
        %v5068 = vmin.f32 16.0, %v5067
        %v5069 = vmul.f32 %v5068, 2.1237322e-06
        %v5070 = vadd.f32 %v5069, 0.00028619796
        %v5071 = vmul.f32 %v5068, %v5070
        %v5072 = vadd.f32 %v5071, 0.0036580483
        %v5073 = vmul.f32 %v5068, %v5072
        %v5074 = vadd.f32 %v5073, 0.05243302
        %v5075 = vmul.f32 %v5068, %v5074
        %v5076 = vadd.f32 %v5075, 0.18741608
        %v5077 = vmul.f32 %v5068, %v5076
        %v5078 = vadd.f32 %v5077, 1.1283791
        %v5079 = vmul.f32 %v4964, %v5078
        %v5080 = vmul.f32 %v5068, 3.8918573e-05
        %v5081 = vadd.f32 %v5080, 0.001143296
        %v5082 = vmul.f32 %v5068, %v5081
        %v5083 = vadd.f32 %v5082, 0.014752088
        %v5084 = vmul.f32 %v5068, %v5083
        %v5085 = vadd.f32 %v5084, 0.112945676
        %v5086 = vmul.f32 %v5068, %v5085
        %v5087 = vadd.f32 %v5086, 0.4994258
        %v5088 = vmul.f32 %v5068, %v5087
        %v5089 = vadd.f32 %v5088, 1.0
        %v5090 = vrcp.pop %v5089
        %v5091 = vmul.f32 %v5089, %v5090
        %v5092 = vsub.f32 1.0, %v5091
        %v5093 = vmul.f32 %v5090, %v5092
        %v5094 = vadd.f32 %v5090, %v5093
        %vm5095 = vweird.f32 %v5089
        %vm5096 = vweird.f32 %v5090
        %vm5097 = vmor %vm5095, %vm5096
        %v5098 = vsel %vm5097, %v5090, %v5094
        %v5099 = vand.u32 2147483647, %v5089
        %vm5100 = vcmp.eq.f32.partialorder %v5099, 8.507059e+37
        %v5101 = vand.u32 %v5089, 2147483648
        %v5102 = vor.u32 1.1754944e-38, %v5101
        %v5103 = vsel %vm5100, %v5102, %v5098
        %v5104 = vmul.f32 %v5079, %v5103
        %v5105 = vmin.f32 %v5104, 1.0
        %v5106 = vmax.f32 %v5105, -1.0
        %v5107 = vmul.f32 %v4965, %v4965
        %v5108 = vmin.f32 16.0, %v5107
        %v5109 = vmul.f32 %v5108, 2.1237322e-06
        %v5110 = vadd.f32 %v5109, 0.00028619796
        %v5111 = vmul.f32 %v5108, %v5110
        %v5112 = vadd.f32 %v5111, 0.0036580483
        %v5113 = vmul.f32 %v5108, %v5112
        %v5114 = vadd.f32 %v5113, 0.05243302
        %v5115 = vmul.f32 %v5108, %v5114
        %v5116 = vadd.f32 %v5115, 0.18741608
        %v5117 = vmul.f32 %v5108, %v5116
        %v5118 = vadd.f32 %v5117, 1.1283791
        %v5119 = vmul.f32 %v4965, %v5118
        %v5120 = vmul.f32 %v5108, 3.8918573e-05
        %v5121 = vadd.f32 %v5120, 0.001143296
        %v5122 = vmul.f32 %v5108, %v5121
        %v5123 = vadd.f32 %v5122, 0.014752088
        %v5124 = vmul.f32 %v5108, %v5123
        %v5125 = vadd.f32 %v5124, 0.112945676
        %v5126 = vmul.f32 %v5108, %v5125
        %v5127 = vadd.f32 %v5126, 0.4994258
        %v5128 = vmul.f32 %v5108, %v5127
        %v5129 = vadd.f32 %v5128, 1.0
        %v5130 = vrcp.pop %v5129
        %v5131 = vmul.f32 %v5129, %v5130
        %v5132 = vsub.f32 1.0, %v5131
        %v5133 = vmul.f32 %v5130, %v5132
        %v5134 = vadd.f32 %v5130, %v5133
        %vm5135 = vweird.f32 %v5129
        %vm5136 = vweird.f32 %v5130
        %vm5137 = vmor %vm5135, %vm5136
        %v5138 = vsel %vm5137, %v5130, %v5134
        %v5139 = vand.u32 2147483647, %v5129
        %vm5140 = vcmp.eq.f32.partialorder %v5139, 8.507059e+37
        %v5141 = vand.u32 %v5129, 2147483648
        %v5142 = vor.u32 1.1754944e-38, %v5141
        %v5143 = vsel %vm5140, %v5142, %v5138
        %v5144 = vmul.f32 %v5119, %v5143
        %v5145 = vmin.f32 %v5144, 1.0
        %v5146 = vmax.f32 %v5145, -1.0
        %v5147 = vmul.f32 %v4966, %v4966
        %v5148 = vmin.f32 16.0, %v5147
        %v5149 = vmul.f32 %v5148, 2.1237322e-06
        %v5150 = vadd.f32 %v5149, 0.00028619796
        %v5151 = vmul.f32 %v5148, %v5150
        %v5152 = vadd.f32 %v5151, 0.0036580483
        %v5153 = vmul.f32 %v5148, %v5152
        %v5154 = vadd.f32 %v5153, 0.05243302
        %v5155 = vmul.f32 %v5148, %v5154
        %v5156 = vadd.f32 %v5155, 0.18741608
        %v5157 = vmul.f32 %v5148, %v5156
        %v5158 = vadd.f32 %v5157, 1.1283791
        %v5159 = vmul.f32 %v4966, %v5158
        %v5160 = vmul.f32 %v5148, 3.8918573e-05
        %v5161 = vadd.f32 %v5160, 0.001143296
        %v5162 = vmul.f32 %v5148, %v5161
        %v5163 = vadd.f32 %v5162, 0.014752088
        %v5164 = vmul.f32 %v5148, %v5163
        %v5165 = vadd.f32 %v5164, 0.112945676
        %v5166 = vmul.f32 %v5148, %v5165
        %v5167 = vadd.f32 %v5166, 0.4994258
        %v5168 = vmul.f32 %v5148, %v5167
        %v5169 = vadd.f32 %v5168, 1.0
        %v5170 = vrcp.pop %v5169
        %v5171 = vmul.f32 %v5169, %v5170
        %v5172 = vsub.f32 1.0, %v5171
        %v5173 = vmul.f32 %v5170, %v5172
        %v5174 = vadd.f32 %v5170, %v5173
        %vm5175 = vweird.f32 %v5169
        %vm5176 = vweird.f32 %v5170
        %vm5177 = vmor %vm5175, %vm5176
        %v5178 = vsel %vm5177, %v5170, %v5174
        %v5179 = vand.u32 2147483647, %v5169
        %vm5180 = vcmp.eq.f32.partialorder %v5179, 8.507059e+37
        %v5181 = vand.u32 %v5169, 2147483648
        %v5182 = vor.u32 1.1754944e-38, %v5181
        %v5183 = vsel %vm5180, %v5182, %v5178
        %v5184 = vmul.f32 %v5159, %v5183
        %v5185 = vmin.f32 %v5184, 1.0
        %v5186 = vmax.f32 %v5185, -1.0
        %v5187 = vmul.f32 %v4967, %v4967
        %v5188 = vmin.f32 16.0, %v5187
        %v5189 = vmul.f32 %v5188, 2.1237322e-06
        %v5190 = vadd.f32 %v5189, 0.00028619796
        %v5191 = vmul.f32 %v5188, %v5190
        %v5192 = vadd.f32 %v5191, 0.0036580483
        %v5193 = vmul.f32 %v5188, %v5192
        %v5194 = vadd.f32 %v5193, 0.05243302
        %v5195 = vmul.f32 %v5188, %v5194
        %v5196 = vadd.f32 %v5195, 0.18741608
        %v5197 = vmul.f32 %v5188, %v5196
        %v5198 = vadd.f32 %v5197, 1.1283791
        %v5199 = vmul.f32 %v4967, %v5198
        %v5200 = vmul.f32 %v5188, 3.8918573e-05
        %v5201 = vadd.f32 %v5200, 0.001143296
        %v5202 = vmul.f32 %v5188, %v5201
        %v5203 = vadd.f32 %v5202, 0.014752088
        %v5204 = vmul.f32 %v5188, %v5203
        %v5205 = vadd.f32 %v5204, 0.112945676
        %v5206 = vmul.f32 %v5188, %v5205
        %v5207 = vadd.f32 %v5206, 0.4994258
        %v5208 = vmul.f32 %v5188, %v5207
        %v5209 = vadd.f32 %v5208, 1.0
        %v5210 = vrcp.pop %v5209
        %v5211 = vmul.f32 %v5209, %v5210
        %v5212 = vsub.f32 1.0, %v5211
        %v5213 = vmul.f32 %v5210, %v5212
        %v5214 = vadd.f32 %v5210, %v5213
        %vm5215 = vweird.f32 %v5209
        %vm5216 = vweird.f32 %v5210
        %vm5217 = vmor %vm5215, %vm5216
        %v5218 = vsel %vm5217, %v5210, %v5214
        %v5219 = vand.u32 2147483647, %v5209
        %vm5220 = vcmp.eq.f32.partialorder %v5219, 8.507059e+37
        %v5221 = vand.u32 %v5209, 2147483648
        %v5222 = vor.u32 1.1754944e-38, %v5221
        %v5223 = vsel %vm5220, %v5222, %v5218
        %v5224 = vmul.f32 %v5199, %v5223
        %v5225 = vmin.f32 %v5224, 1.0
        %v5226 = vmax.f32 %v5225, -1.0
        %v5227 = vmul.f32 %v4968, %v4968
        %v5228 = vmin.f32 16.0, %v5227
        %v5229 = vmul.f32 %v5228, 2.1237322e-06
        %v5230 = vadd.f32 %v5229, 0.00028619796
        %v5231 = vmul.f32 %v5228, %v5230
        %v5232 = vadd.f32 %v5231, 0.0036580483
        %v5233 = vmul.f32 %v5228, %v5232
        %v5234 = vadd.f32 %v5233, 0.05243302
        %v5235 = vmul.f32 %v5228, %v5234
        %v5236 = vadd.f32 %v5235, 0.18741608
        %v5237 = vmul.f32 %v5228, %v5236
        %v5238 = vadd.f32 %v5237, 1.1283791
        %v5239 = vmul.f32 %v4968, %v5238
        %v5240 = vmul.f32 %v5228, 3.8918573e-05
        %v5241 = vadd.f32 %v5240, 0.001143296
        %v5242 = vmul.f32 %v5228, %v5241
        %v5243 = vadd.f32 %v5242, 0.014752088
        %v5244 = vmul.f32 %v5228, %v5243
        %v5245 = vadd.f32 %v5244, 0.112945676
        %v5246 = vmul.f32 %v5228, %v5245
        %v5247 = vadd.f32 %v5246, 0.4994258
        %v5248 = vmul.f32 %v5228, %v5247
        %v5249 = vadd.f32 %v5248, 1.0
        %v5250 = vrcp.pop %v5249
        %v5251 = vmul.f32 %v5249, %v5250
        %v5252 = vsub.f32 1.0, %v5251
        %v5253 = vmul.f32 %v5250, %v5252
        %v5254 = vadd.f32 %v5250, %v5253
        %vm5255 = vweird.f32 %v5249
        %vm5256 = vweird.f32 %v5250
        %vm5257 = vmor %vm5255, %vm5256
        %v5258 = vsel %vm5257, %v5250, %v5254
        %v5259 = vand.u32 2147483647, %v5249
        %vm5260 = vcmp.eq.f32.partialorder %v5259, 8.507059e+37
        %v5261 = vand.u32 %v5249, 2147483648
        %v5262 = vor.u32 1.1754944e-38, %v5261
        %v5263 = vsel %vm5260, %v5262, %v5258
        %v5264 = vmul.f32 %v5239, %v5263
        %v5265 = vmin.f32 %v5264, 1.0
        %v5266 = vmax.f32 %v5265, -1.0
        %v5267 = vmul.f32 %v4969, %v4969
        %v5268 = vmin.f32 16.0, %v5267
        %v5269 = vmul.f32 %v5268, 2.1237322e-06
        %v5270 = vadd.f32 %v5269, 0.00028619796
        %v5271 = vmul.f32 %v5268, %v5270
        %v5272 = vadd.f32 %v5271, 0.0036580483
        %v5273 = vmul.f32 %v5268, %v5272
        %v5274 = vadd.f32 %v5273, 0.05243302
        %v5275 = vmul.f32 %v5268, %v5274
        %v5276 = vadd.f32 %v5275, 0.18741608
        %v5277 = vmul.f32 %v5268, %v5276
        %v5278 = vadd.f32 %v5277, 1.1283791
        %v5279 = vmul.f32 %v4969, %v5278
        %v5280 = vmul.f32 %v5268, 3.8918573e-05
        %v5281 = vadd.f32 %v5280, 0.001143296
        %v5282 = vmul.f32 %v5268, %v5281
        %v5283 = vadd.f32 %v5282, 0.014752088
        %v5284 = vmul.f32 %v5268, %v5283
        %v5285 = vadd.f32 %v5284, 0.112945676
        %v5286 = vmul.f32 %v5268, %v5285
        %v5287 = vadd.f32 %v5286, 0.4994258
        %v5288 = vmul.f32 %v5268, %v5287
        %v5289 = vadd.f32 %v5288, 1.0
        %v5290 = vrcp.pop %v5289
        %v5291 = vmul.f32 %v5289, %v5290
        %v5292 = vsub.f32 1.0, %v5291
        %v5293 = vmul.f32 %v5290, %v5292
        %v5294 = vadd.f32 %v5290, %v5293
        %vm5295 = vweird.f32 %v5289
        %vm5296 = vweird.f32 %v5290
        %vm5297 = vmor %vm5295, %vm5296
        %v5298 = vsel %vm5297, %v5290, %v5294
        %v5299 = vand.u32 2147483647, %v5289
        %vm5300 = vcmp.eq.f32.partialorder %v5299, 8.507059e+37
        %v5301 = vand.u32 %v5289, 2147483648
        %v5302 = vor.u32 1.1754944e-38, %v5301
        %v5303 = vsel %vm5300, %v5302, %v5298
        %v5304 = vmul.f32 %v5279, %v5303
        %v5305 = vmin.f32 %v5304, 1.0
        %v5306 = vmax.f32 %v5305, -1.0
        %v5307 = vmul.f32 %v4970, %v4970
        %v5308 = vmin.f32 16.0, %v5307
        %v5309 = vmul.f32 %v5308, 2.1237322e-06
        %v5310 = vadd.f32 %v5309, 0.00028619796
        %v5311 = vmul.f32 %v5308, %v5310
        %v5312 = vadd.f32 %v5311, 0.0036580483
        %v5313 = vmul.f32 %v5308, %v5312
        %v5314 = vadd.f32 %v5313, 0.05243302
        %v5315 = vmul.f32 %v5308, %v5314
        %v5316 = vadd.f32 %v5315, 0.18741608
        %v5317 = vmul.f32 %v5308, %v5316
        %v5318 = vadd.f32 %v5317, 1.1283791
        %v5319 = vmul.f32 %v4970, %v5318
        %v5320 = vmul.f32 %v5308, 3.8918573e-05
        %v5321 = vadd.f32 %v5320, 0.001143296
        %v5322 = vmul.f32 %v5308, %v5321
        %v5323 = vadd.f32 %v5322, 0.014752088
        %v5324 = vmul.f32 %v5308, %v5323
        %v5325 = vadd.f32 %v5324, 0.112945676
        %v5326 = vmul.f32 %v5308, %v5325
        %v5327 = vadd.f32 %v5326, 0.4994258
        %v5328 = vmul.f32 %v5308, %v5327
        %v5329 = vadd.f32 %v5328, 1.0
        %v5330 = vrcp.pop %v5329
        %v5331 = vmul.f32 %v5329, %v5330
        %v5332 = vsub.f32 1.0, %v5331
        %v5333 = vmul.f32 %v5330, %v5332
        %v5334 = vadd.f32 %v5330, %v5333
        %vm5335 = vweird.f32 %v5329
        %vm5336 = vweird.f32 %v5330
        %vm5337 = vmor %vm5335, %vm5336
        %v5338 = vsel %vm5337, %v5330, %v5334
        %v5339 = vand.u32 2147483647, %v5329
        %vm5340 = vcmp.eq.f32.partialorder %v5339, 8.507059e+37
        %v5341 = vand.u32 %v5329, 2147483648
        %v5342 = vor.u32 1.1754944e-38, %v5341
        %v5343 = vsel %vm5340, %v5342, %v5338
        %v5344 = vmul.f32 %v5319, %v5343
        %v5345 = vmin.f32 %v5344, 1.0
        %v5346 = vmax.f32 %v5345, -1.0
        %v5347 = vmul.f32 %v4971, %v4971
        %v5348 = vmin.f32 16.0, %v5347
        %v5349 = vmul.f32 %v5348, 2.1237322e-06
        %v5350 = vadd.f32 %v5349, 0.00028619796
        %v5351 = vmul.f32 %v5348, %v5350
        %v5352 = vadd.f32 %v5351, 0.0036580483
        %v5353 = vmul.f32 %v5348, %v5352
        %v5354 = vadd.f32 %v5353, 0.05243302
        %v5355 = vmul.f32 %v5348, %v5354
        %v5356 = vadd.f32 %v5355, 0.18741608
        %v5357 = vmul.f32 %v5348, %v5356
        %v5358 = vadd.f32 %v5357, 1.1283791
        %v5359 = vmul.f32 %v4971, %v5358
        %v5360 = vmul.f32 %v5348, 3.8918573e-05
        %v5361 = vadd.f32 %v5360, 0.001143296
        %v5362 = vmul.f32 %v5348, %v5361
        %v5363 = vadd.f32 %v5362, 0.014752088
        %v5364 = vmul.f32 %v5348, %v5363
        %v5365 = vadd.f32 %v5364, 0.112945676
        %v5366 = vmul.f32 %v5348, %v5365
        %v5367 = vadd.f32 %v5366, 0.4994258
        %v5368 = vmul.f32 %v5348, %v5367
        %v5369 = vadd.f32 %v5368, 1.0
        %v5370 = vrcp.pop %v5369
        %v5371 = vmul.f32 %v5369, %v5370
        %v5372 = vsub.f32 1.0, %v5371
        %v5373 = vmul.f32 %v5370, %v5372
        %v5374 = vadd.f32 %v5370, %v5373
        %vm5375 = vweird.f32 %v5369
        %vm5376 = vweird.f32 %v5370
        %vm5377 = vmor %vm5375, %vm5376
        %v5378 = vsel %vm5377, %v5370, %v5374
        %v5379 = vand.u32 2147483647, %v5369
        %vm5380 = vcmp.eq.f32.partialorder %v5379, 8.507059e+37
        %v5381 = vand.u32 %v5369, 2147483648
        %v5382 = vor.u32 1.1754944e-38, %v5381
        %v5383 = vsel %vm5380, %v5382, %v5378
        %v5384 = vmul.f32 %v5359, %v5383
        %v5385 = vmin.f32 %v5384, 1.0
        %v5386 = vmax.f32 %v5385, -1.0
        %v5387 = vmul.f32 %v4972, %v4972
        %v5388 = vmin.f32 16.0, %v5387
        %v5389 = vmul.f32 %v5388, 2.1237322e-06
        %v5390 = vadd.f32 %v5389, 0.00028619796
        %v5391 = vmul.f32 %v5388, %v5390
        %v5392 = vadd.f32 %v5391, 0.0036580483
        %v5393 = vmul.f32 %v5388, %v5392
        %v5394 = vadd.f32 %v5393, 0.05243302
        %v5395 = vmul.f32 %v5388, %v5394
        %v5396 = vadd.f32 %v5395, 0.18741608
        %v5397 = vmul.f32 %v5388, %v5396
        %v5398 = vadd.f32 %v5397, 1.1283791
        %v5399 = vmul.f32 %v4972, %v5398
        %v5400 = vmul.f32 %v5388, 3.8918573e-05
        %v5401 = vadd.f32 %v5400, 0.001143296
        %v5402 = vmul.f32 %v5388, %v5401
        %v5403 = vadd.f32 %v5402, 0.014752088
        %v5404 = vmul.f32 %v5388, %v5403
        %v5405 = vadd.f32 %v5404, 0.112945676
        %v5406 = vmul.f32 %v5388, %v5405
        %v5407 = vadd.f32 %v5406, 0.4994258
        %v5408 = vmul.f32 %v5388, %v5407
        %v5409 = vadd.f32 %v5408, 1.0
        %v5410 = vrcp.pop %v5409
        %v5411 = vmul.f32 %v5409, %v5410
        %v5412 = vsub.f32 1.0, %v5411
        %v5413 = vmul.f32 %v5410, %v5412
        %v5414 = vadd.f32 %v5410, %v5413
        %vm5415 = vweird.f32 %v5409
        %vm5416 = vweird.f32 %v5410
        %vm5417 = vmor %vm5415, %vm5416
        %v5418 = vsel %vm5417, %v5410, %v5414
        %v5419 = vand.u32 2147483647, %v5409
        %vm5420 = vcmp.eq.f32.partialorder %v5419, 8.507059e+37
        %v5421 = vand.u32 %v5409, 2147483648
        %v5422 = vor.u32 1.1754944e-38, %v5421
        %v5423 = vsel %vm5420, %v5422, %v5418
        %v5424 = vmul.f32 %v5399, %v5423
        %v5425 = vmin.f32 %v5424, 1.0
        %v5426 = vmax.f32 %v5425, -1.0
        %v5427 = vmul.f32 %v4973, %v4973
        %v5428 = vmin.f32 16.0, %v5427
        %v5429 = vmul.f32 %v5428, 2.1237322e-06
        %v5430 = vadd.f32 %v5429, 0.00028619796
        %v5431 = vmul.f32 %v5428, %v5430
        %v5432 = vadd.f32 %v5431, 0.0036580483
        %v5433 = vmul.f32 %v5428, %v5432
        %v5434 = vadd.f32 %v5433, 0.05243302
        %v5435 = vmul.f32 %v5428, %v5434
        %v5436 = vadd.f32 %v5435, 0.18741608
        %v5437 = vmul.f32 %v5428, %v5436
        %v5438 = vadd.f32 %v5437, 1.1283791
        %v5439 = vmul.f32 %v4973, %v5438
        %v5440 = vmul.f32 %v5428, 3.8918573e-05
        %v5441 = vadd.f32 %v5440, 0.001143296
        %v5442 = vmul.f32 %v5428, %v5441
        %v5443 = vadd.f32 %v5442, 0.014752088
        %v5444 = vmul.f32 %v5428, %v5443
        %v5445 = vadd.f32 %v5444, 0.112945676
        %v5446 = vmul.f32 %v5428, %v5445
        %v5447 = vadd.f32 %v5446, 0.4994258
        %v5448 = vmul.f32 %v5428, %v5447
        %v5449 = vadd.f32 %v5448, 1.0
        %v5450 = vrcp.pop %v5449
        %v5451 = vmul.f32 %v5449, %v5450
        %v5452 = vsub.f32 1.0, %v5451
        %v5453 = vmul.f32 %v5450, %v5452
        %v5454 = vadd.f32 %v5450, %v5453
        %vm5455 = vweird.f32 %v5449
        %vm5456 = vweird.f32 %v5450
        %vm5457 = vmor %vm5455, %vm5456
        %v5458 = vsel %vm5457, %v5450, %v5454
        %v5459 = vand.u32 2147483647, %v5449
        %vm5460 = vcmp.eq.f32.partialorder %v5459, 8.507059e+37
        %v5461 = vand.u32 %v5449, 2147483648
        %v5462 = vor.u32 1.1754944e-38, %v5461
        %v5463 = vsel %vm5460, %v5462, %v5458
        %v5464 = vmul.f32 %v5439, %v5463
        %v5465 = vmin.f32 %v5464, 1.0
        %v5466 = vmax.f32 %v5465, -1.0
        %v5467 = vmul.f32 %v4974, %v4974
        %v5468 = vmin.f32 16.0, %v5467
        %v5469 = vmul.f32 %v5468, 2.1237322e-06
        %v5470 = vadd.f32 %v5469, 0.00028619796
        %v5471 = vmul.f32 %v5468, %v5470
        %v5472 = vadd.f32 %v5471, 0.0036580483
        %v5473 = vmul.f32 %v5468, %v5472
        %v5474 = vadd.f32 %v5473, 0.05243302
        %v5475 = vmul.f32 %v5468, %v5474
        %v5476 = vadd.f32 %v5475, 0.18741608
        %v5477 = vmul.f32 %v5468, %v5476
        %v5478 = vadd.f32 %v5477, 1.1283791
        %v5479 = vmul.f32 %v4974, %v5478
        %v5480 = vmul.f32 %v5468, 3.8918573e-05
        %v5481 = vadd.f32 %v5480, 0.001143296
        %v5482 = vmul.f32 %v5468, %v5481
        %v5483 = vadd.f32 %v5482, 0.014752088
        %v5484 = vmul.f32 %v5468, %v5483
        %v5485 = vadd.f32 %v5484, 0.112945676
        %v5486 = vmul.f32 %v5468, %v5485
        %v5487 = vadd.f32 %v5486, 0.4994258
        %v5488 = vmul.f32 %v5468, %v5487
        %v5489 = vadd.f32 %v5488, 1.0
        %v5490 = vrcp.pop %v5489
        %v5491 = vmul.f32 %v5489, %v5490
        %v5492 = vsub.f32 1.0, %v5491
        %v5493 = vmul.f32 %v5490, %v5492
        %v5494 = vadd.f32 %v5490, %v5493
        %vm5495 = vweird.f32 %v5489
        %vm5496 = vweird.f32 %v5490
        %vm5497 = vmor %vm5495, %vm5496
        %v5498 = vsel %vm5497, %v5490, %v5494
        %v5499 = vand.u32 2147483647, %v5489
        %vm5500 = vcmp.eq.f32.partialorder %v5499, 8.507059e+37
        %v5501 = vand.u32 %v5489, 2147483648
        %v5502 = vor.u32 1.1754944e-38, %v5501
        %v5503 = vsel %vm5500, %v5502, %v5498
        %v5504 = vmul.f32 %v5479, %v5503
        %v5505 = vmin.f32 %v5504, 1.0
        %v5506 = vmax.f32 %v5505, -1.0
        %v5507 = vmul.f32 %v4975, %v4975
        %v5508 = vmin.f32 16.0, %v5507
        %v5509 = vmul.f32 %v5508, 2.1237322e-06
        %v5510 = vadd.f32 %v5509, 0.00028619796
        %v5511 = vmul.f32 %v5508, %v5510
        %v5512 = vadd.f32 %v5511, 0.0036580483
        %v5513 = vmul.f32 %v5508, %v5512
        %v5514 = vadd.f32 %v5513, 0.05243302
        %v5515 = vmul.f32 %v5508, %v5514
        %v5516 = vadd.f32 %v5515, 0.18741608
        %v5517 = vmul.f32 %v5508, %v5516
        %v5518 = vadd.f32 %v5517, 1.1283791
        %v5519 = vmul.f32 %v4975, %v5518
        %v5520 = vmul.f32 %v5508, 3.8918573e-05
        %v5521 = vadd.f32 %v5520, 0.001143296
        %v5522 = vmul.f32 %v5508, %v5521
        %v5523 = vadd.f32 %v5522, 0.014752088
        %v5524 = vmul.f32 %v5508, %v5523
        %v5525 = vadd.f32 %v5524, 0.112945676
        %v5526 = vmul.f32 %v5508, %v5525
        %v5527 = vadd.f32 %v5526, 0.4994258
        %v5528 = vmul.f32 %v5508, %v5527
        %v5529 = vadd.f32 %v5528, 1.0
        %v5530 = vrcp.pop %v5529
        %v5531 = vmul.f32 %v5529, %v5530
        %v5532 = vsub.f32 1.0, %v5531
        %v5533 = vmul.f32 %v5530, %v5532
        %v5534 = vadd.f32 %v5530, %v5533
        %vm5535 = vweird.f32 %v5529
        %vm5536 = vweird.f32 %v5530
        %vm5537 = vmor %vm5535, %vm5536
        %v5538 = vsel %vm5537, %v5530, %v5534
        %v5539 = vand.u32 2147483647, %v5529
        %vm5540 = vcmp.eq.f32.partialorder %v5539, 8.507059e+37
        %v5541 = vand.u32 %v5529, 2147483648
        %v5542 = vor.u32 1.1754944e-38, %v5541
        %v5543 = vsel %vm5540, %v5542, %v5538
        %v5544 = vmul.f32 %v5519, %v5543
        %v5545 = vmin.f32 %v5544, 1.0
        %v5546 = vmax.f32 %v5545, -1.0
        %v5547 = vmul.f32 %v4976, %v4976
        %v5548 = vmin.f32 16.0, %v5547
        %v5549 = vmul.f32 %v5548, 2.1237322e-06
        %v5550 = vadd.f32 %v5549, 0.00028619796
        %v5551 = vmul.f32 %v5548, %v5550
        %v5552 = vadd.f32 %v5551, 0.0036580483
        %v5553 = vmul.f32 %v5548, %v5552
        %v5554 = vadd.f32 %v5553, 0.05243302
        %v5555 = vmul.f32 %v5548, %v5554
        %v5556 = vadd.f32 %v5555, 0.18741608
        %v5557 = vmul.f32 %v5548, %v5556
        %v5558 = vadd.f32 %v5557, 1.1283791
        %v5559 = vmul.f32 %v4976, %v5558
        %v5560 = vmul.f32 %v5548, 3.8918573e-05
        %v5561 = vadd.f32 %v5560, 0.001143296
        %v5562 = vmul.f32 %v5548, %v5561
        %v5563 = vadd.f32 %v5562, 0.014752088
        %v5564 = vmul.f32 %v5548, %v5563
        %v5565 = vadd.f32 %v5564, 0.112945676
        %v5566 = vmul.f32 %v5548, %v5565
        %v5567 = vadd.f32 %v5566, 0.4994258
        %v5568 = vmul.f32 %v5548, %v5567
        %v5569 = vadd.f32 %v5568, 1.0
        %v5570 = vrcp.pop %v5569
        %v5571 = vmul.f32 %v5569, %v5570
        %v5572 = vsub.f32 1.0, %v5571
        %v5573 = vmul.f32 %v5570, %v5572
        %v5574 = vadd.f32 %v5570, %v5573
        %vm5575 = vweird.f32 %v5569
        %vm5576 = vweird.f32 %v5570
        %vm5577 = vmor %vm5575, %vm5576
        %v5578 = vsel %vm5577, %v5570, %v5574
        %v5579 = vand.u32 2147483647, %v5569
        %vm5580 = vcmp.eq.f32.partialorder %v5579, 8.507059e+37
        %v5581 = vand.u32 %v5569, 2147483648
        %v5582 = vor.u32 1.1754944e-38, %v5581
        %v5583 = vsel %vm5580, %v5582, %v5578
        %v5584 = vmul.f32 %v5559, %v5583
        %v5585 = vmin.f32 %v5584, 1.0
        %v5586 = vmax.f32 %v5585, -1.0
        %v5587 = vmul.f32 %v4977, %v4977
        %v5588 = vmin.f32 16.0, %v5587
        %v5589 = vmul.f32 %v5588, 2.1237322e-06
        %v5590 = vadd.f32 %v5589, 0.00028619796
        %v5591 = vmul.f32 %v5588, %v5590
        %v5592 = vadd.f32 %v5591, 0.0036580483
        %v5593 = vmul.f32 %v5588, %v5592
        %v5594 = vadd.f32 %v5593, 0.05243302
        %v5595 = vmul.f32 %v5588, %v5594
        %v5596 = vadd.f32 %v5595, 0.18741608
        %v5597 = vmul.f32 %v5588, %v5596
        %v5598 = vadd.f32 %v5597, 1.1283791
        %v5599 = vmul.f32 %v4977, %v5598
        %v5600 = vmul.f32 %v5588, 3.8918573e-05
        %v5601 = vadd.f32 %v5600, 0.001143296
        %v5602 = vmul.f32 %v5588, %v5601
        %v5603 = vadd.f32 %v5602, 0.014752088
        %v5604 = vmul.f32 %v5588, %v5603
        %v5605 = vadd.f32 %v5604, 0.112945676
        %v5606 = vmul.f32 %v5588, %v5605
        %v5607 = vadd.f32 %v5606, 0.4994258
        %v5608 = vmul.f32 %v5588, %v5607
        %v5609 = vadd.f32 %v5608, 1.0
        %v5610 = vrcp.pop %v5609
        %v5611 = vmul.f32 %v5609, %v5610
        %v5612 = vsub.f32 1.0, %v5611
        %v5613 = vmul.f32 %v5610, %v5612
        %v5614 = vadd.f32 %v5610, %v5613
        %vm5615 = vweird.f32 %v5609
        %vm5616 = vweird.f32 %v5610
        %vm5617 = vmor %vm5615, %vm5616
        %v5618 = vsel %vm5617, %v5610, %v5614
        %v5619 = vand.u32 2147483647, %v5609
        %vm5620 = vcmp.eq.f32.partialorder %v5619, 8.507059e+37
        %v5621 = vand.u32 %v5609, 2147483648
        %v5622 = vor.u32 1.1754944e-38, %v5621
        %v5623 = vsel %vm5620, %v5622, %v5618
        %v5624 = vmul.f32 %v5599, %v5623
        %v5625 = vmin.f32 %v5624, 1.0
        %v5626 = vmax.f32 %v5625, -1.0
        %v5627 = vmul.f32 %v4978, %v4978
        %v5628 = vmin.f32 16.0, %v5627
        %v5629 = vmul.f32 %v5628, 2.1237322e-06
        %v5630 = vadd.f32 %v5629, 0.00028619796
        %v5631 = vmul.f32 %v5628, %v5630
        %v5632 = vadd.f32 %v5631, 0.0036580483
        %v5633 = vmul.f32 %v5628, %v5632
        %v5634 = vadd.f32 %v5633, 0.05243302
        %v5635 = vmul.f32 %v5628, %v5634
        %v5636 = vadd.f32 %v5635, 0.18741608
        %v5637 = vmul.f32 %v5628, %v5636
        %v5638 = vadd.f32 %v5637, 1.1283791
        %v5639 = vmul.f32 %v4978, %v5638
        %v5640 = vmul.f32 %v5628, 3.8918573e-05
        %v5641 = vadd.f32 %v5640, 0.001143296
        %v5642 = vmul.f32 %v5628, %v5641
        %v5643 = vadd.f32 %v5642, 0.014752088
        %v5644 = vmul.f32 %v5628, %v5643
        %v5645 = vadd.f32 %v5644, 0.112945676
        %v5646 = vmul.f32 %v5628, %v5645
        %v5647 = vadd.f32 %v5646, 0.4994258
        %v5648 = vmul.f32 %v5628, %v5647
        %v5649 = vadd.f32 %v5648, 1.0
        %v5650 = vrcp.pop %v5649
        %v5651 = vmul.f32 %v5649, %v5650
        %v5652 = vsub.f32 1.0, %v5651
        %v5653 = vmul.f32 %v5650, %v5652
        %v5654 = vadd.f32 %v5650, %v5653
        %vm5655 = vweird.f32 %v5649
        %vm5656 = vweird.f32 %v5650
        %vm5657 = vmor %vm5655, %vm5656
        %v5658 = vsel %vm5657, %v5650, %v5654
        %v5659 = vand.u32 2147483647, %v5649
        %vm5660 = vcmp.eq.f32.partialorder %v5659, 8.507059e+37
        %v5661 = vand.u32 %v5649, 2147483648
        %v5662 = vor.u32 1.1754944e-38, %v5661
        %v5663 = vsel %vm5660, %v5662, %v5658
        %v5664 = vmul.f32 %v5639, %v5663
        %v5665 = vmin.f32 %v5664, 1.0
        %v5666 = vmax.f32 %v5665, -1.0
        %v5667 = vmul.f32 %v4979, %v4979
        %v5668 = vmin.f32 16.0, %v5667
        %v5669 = vmul.f32 %v5668, 2.1237322e-06
        %v5670 = vadd.f32 %v5669, 0.00028619796
        %v5671 = vmul.f32 %v5668, %v5670
        %v5672 = vadd.f32 %v5671, 0.0036580483
        %v5673 = vmul.f32 %v5668, %v5672
        %v5674 = vadd.f32 %v5673, 0.05243302
        %v5675 = vmul.f32 %v5668, %v5674
        %v5676 = vadd.f32 %v5675, 0.18741608
        %v5677 = vmul.f32 %v5668, %v5676
        %v5678 = vadd.f32 %v5677, 1.1283791
        %v5679 = vmul.f32 %v4979, %v5678
        %v5680 = vmul.f32 %v5668, 3.8918573e-05
        %v5681 = vadd.f32 %v5680, 0.001143296
        %v5682 = vmul.f32 %v5668, %v5681
        %v5683 = vadd.f32 %v5682, 0.014752088
        %v5684 = vmul.f32 %v5668, %v5683
        %v5685 = vadd.f32 %v5684, 0.112945676
        %v5686 = vmul.f32 %v5668, %v5685
        %v5687 = vadd.f32 %v5686, 0.4994258
        %v5688 = vmul.f32 %v5668, %v5687
        %v5689 = vadd.f32 %v5688, 1.0
        %v5690 = vrcp.pop %v5689
        %v5691 = vmul.f32 %v5689, %v5690
        %v5692 = vsub.f32 1.0, %v5691
        %v5693 = vmul.f32 %v5690, %v5692
        %v5694 = vadd.f32 %v5690, %v5693
        %vm5695 = vweird.f32 %v5689
        %vm5696 = vweird.f32 %v5690
        %vm5697 = vmor %vm5695, %vm5696
        %v5698 = vsel %vm5697, %v5690, %v5694
        %v5699 = vand.u32 2147483647, %v5689
        %vm5700 = vcmp.eq.f32.partialorder %v5699, 8.507059e+37
        %v5701 = vand.u32 %v5689, 2147483648
        %v5702 = vor.u32 1.1754944e-38, %v5701
        %v5703 = vsel %vm5700, %v5702, %v5698
        %v5704 = vmul.f32 %v5679, %v5703
        %v5705 = vmin.f32 %v5704, 1.0
        %v5706 = vmax.f32 %v5705, -1.0
        %v5707 = vmul.f32 %v4980, %v4980
        %v5708 = vmin.f32 16.0, %v5707
        %v5709 = vmul.f32 %v5708, 2.1237322e-06
        %v5710 = vadd.f32 %v5709, 0.00028619796
        %v5711 = vmul.f32 %v5708, %v5710
        %v5712 = vadd.f32 %v5711, 0.0036580483
        %v5713 = vmul.f32 %v5708, %v5712
        %v5714 = vadd.f32 %v5713, 0.05243302
        %v5715 = vmul.f32 %v5708, %v5714
        %v5716 = vadd.f32 %v5715, 0.18741608
        %v5717 = vmul.f32 %v5708, %v5716
        %v5718 = vadd.f32 %v5717, 1.1283791
        %v5719 = vmul.f32 %v4980, %v5718
        %v5720 = vmul.f32 %v5708, 3.8918573e-05
        %v5721 = vadd.f32 %v5720, 0.001143296
        %v5722 = vmul.f32 %v5708, %v5721
        %v5723 = vadd.f32 %v5722, 0.014752088
        %v5724 = vmul.f32 %v5708, %v5723
        %v5725 = vadd.f32 %v5724, 0.112945676
        %v5726 = vmul.f32 %v5708, %v5725
        %v5727 = vadd.f32 %v5726, 0.4994258
        %v5728 = vmul.f32 %v5708, %v5727
        %v5729 = vadd.f32 %v5728, 1.0
        %v5730 = vrcp.pop %v5729
        %v5731 = vmul.f32 %v5729, %v5730
        %v5732 = vsub.f32 1.0, %v5731
        %v5733 = vmul.f32 %v5730, %v5732
        %v5734 = vadd.f32 %v5730, %v5733
        %vm5735 = vweird.f32 %v5729
        %vm5736 = vweird.f32 %v5730
        %vm5737 = vmor %vm5735, %vm5736
        %v5738 = vsel %vm5737, %v5730, %v5734
        %v5739 = vand.u32 2147483647, %v5729
        %vm5740 = vcmp.eq.f32.partialorder %v5739, 8.507059e+37
        %v5741 = vand.u32 %v5729, 2147483648
        %v5742 = vor.u32 1.1754944e-38, %v5741
        %v5743 = vsel %vm5740, %v5742, %v5738
        %v5744 = vmul.f32 %v5719, %v5743
        %v5745 = vmin.f32 %v5744, 1.0
        %v5746 = vmax.f32 %v5745, -1.0
        %v5747 = vmul.f32 %v4981, %v4981
        %v5748 = vmin.f32 16.0, %v5747
        %v5749 = vmul.f32 %v5748, 2.1237322e-06
        %v5750 = vadd.f32 %v5749, 0.00028619796
        %v5751 = vmul.f32 %v5748, %v5750
        %v5752 = vadd.f32 %v5751, 0.0036580483
        %v5753 = vmul.f32 %v5748, %v5752
        %v5754 = vadd.f32 %v5753, 0.05243302
        %v5755 = vmul.f32 %v5748, %v5754
        %v5756 = vadd.f32 %v5755, 0.18741608
        %v5757 = vmul.f32 %v5748, %v5756
        %v5758 = vadd.f32 %v5757, 1.1283791
        %v5759 = vmul.f32 %v4981, %v5758
        %v5760 = vmul.f32 %v5748, 3.8918573e-05
        %v5761 = vadd.f32 %v5760, 0.001143296
        %v5762 = vmul.f32 %v5748, %v5761
        %v5763 = vadd.f32 %v5762, 0.014752088
        %v5764 = vmul.f32 %v5748, %v5763
        %v5765 = vadd.f32 %v5764, 0.112945676
        %v5766 = vmul.f32 %v5748, %v5765
        %v5767 = vadd.f32 %v5766, 0.4994258
        %v5768 = vmul.f32 %v5748, %v5767
        %v5769 = vadd.f32 %v5768, 1.0
        %v5770 = vrcp.pop %v5769
        %v5771 = vmul.f32 %v5769, %v5770
        %v5772 = vsub.f32 1.0, %v5771
        %v5773 = vmul.f32 %v5770, %v5772
        %v5774 = vadd.f32 %v5770, %v5773
        %vm5775 = vweird.f32 %v5769
        %vm5776 = vweird.f32 %v5770
        %vm5777 = vmor %vm5775, %vm5776
        %v5778 = vsel %vm5777, %v5770, %v5774
        %v5779 = vand.u32 2147483647, %v5769
        %vm5780 = vcmp.eq.f32.partialorder %v5779, 8.507059e+37
        %v5781 = vand.u32 %v5769, 2147483648
        %v5782 = vor.u32 1.1754944e-38, %v5781
        %v5783 = vsel %vm5780, %v5782, %v5778
        %v5784 = vmul.f32 %v5759, %v5783
        %v5785 = vmin.f32 %v5784, 1.0
        %v5786 = vmax.f32 %v5785, -1.0
        %v5787 = vmul.f32 %v4982, %v4982
        %v5788 = vmin.f32 16.0, %v5787
        %v5789 = vmul.f32 %v5788, 2.1237322e-06
        %v5790 = vadd.f32 %v5789, 0.00028619796
        %v5791 = vmul.f32 %v5788, %v5790
        %v5792 = vadd.f32 %v5791, 0.0036580483
        %v5793 = vmul.f32 %v5788, %v5792
        %v5794 = vadd.f32 %v5793, 0.05243302
        %v5795 = vmul.f32 %v5788, %v5794
        %v5796 = vadd.f32 %v5795, 0.18741608
        %v5797 = vmul.f32 %v5788, %v5796
        %v5798 = vadd.f32 %v5797, 1.1283791
        %v5799 = vmul.f32 %v4982, %v5798
        %v5800 = vmul.f32 %v5788, 3.8918573e-05
        %v5801 = vadd.f32 %v5800, 0.001143296
        %v5802 = vmul.f32 %v5788, %v5801
        %v5803 = vadd.f32 %v5802, 0.014752088
        %v5804 = vmul.f32 %v5788, %v5803
        %v5805 = vadd.f32 %v5804, 0.112945676
        %v5806 = vmul.f32 %v5788, %v5805
        %v5807 = vadd.f32 %v5806, 0.4994258
        %v5808 = vmul.f32 %v5788, %v5807
        %v5809 = vadd.f32 %v5808, 1.0
        %v5810 = vrcp.pop %v5809
        %v5811 = vmul.f32 %v5809, %v5810
        %v5812 = vsub.f32 1.0, %v5811
        %v5813 = vmul.f32 %v5810, %v5812
        %v5814 = vadd.f32 %v5810, %v5813
        %vm5815 = vweird.f32 %v5809
        %vm5816 = vweird.f32 %v5810
        %vm5817 = vmor %vm5815, %vm5816
        %v5818 = vsel %vm5817, %v5810, %v5814
        %v5819 = vand.u32 2147483647, %v5809
        %vm5820 = vcmp.eq.f32.partialorder %v5819, 8.507059e+37
        %v5821 = vand.u32 %v5809, 2147483648
        %v5822 = vor.u32 1.1754944e-38, %v5821
        %v5823 = vsel %vm5820, %v5822, %v5818
        %v5824 = vmul.f32 %v5799, %v5823
        %v5825 = vmin.f32 %v5824, 1.0
        %v5826 = vmax.f32 %v5825, -1.0
        %v5827 = vmul.f32 %v4983, %v4983
        %v5828 = vmin.f32 16.0, %v5827
        %v5829 = vmul.f32 %v5828, 2.1237322e-06
        %v5830 = vadd.f32 %v5829, 0.00028619796
        %v5831 = vmul.f32 %v5828, %v5830
        %v5832 = vadd.f32 %v5831, 0.0036580483
        %v5833 = vmul.f32 %v5828, %v5832
        %v5834 = vadd.f32 %v5833, 0.05243302
        %v5835 = vmul.f32 %v5828, %v5834
        %v5836 = vadd.f32 %v5835, 0.18741608
        %v5837 = vmul.f32 %v5828, %v5836
        %v5838 = vadd.f32 %v5837, 1.1283791
        %v5839 = vmul.f32 %v4983, %v5838
        %v5840 = vmul.f32 %v5828, 3.8918573e-05
        %v5841 = vadd.f32 %v5840, 0.001143296
        %v5842 = vmul.f32 %v5828, %v5841
        %v5843 = vadd.f32 %v5842, 0.014752088
        %v5844 = vmul.f32 %v5828, %v5843
        %v5845 = vadd.f32 %v5844, 0.112945676
        %v5846 = vmul.f32 %v5828, %v5845
        %v5847 = vadd.f32 %v5846, 0.4994258
        %v5848 = vmul.f32 %v5828, %v5847
        %v5849 = vadd.f32 %v5848, 1.0
        %v5850 = vrcp.pop %v5849
        %v5851 = vmul.f32 %v5849, %v5850
        %v5852 = vsub.f32 1.0, %v5851
        %v5853 = vmul.f32 %v5850, %v5852
        %v5854 = vadd.f32 %v5850, %v5853
        %vm5855 = vweird.f32 %v5849
        %vm5856 = vweird.f32 %v5850
        %vm5857 = vmor %vm5855, %vm5856
        %v5858 = vsel %vm5857, %v5850, %v5854
        %v5859 = vand.u32 2147483647, %v5849
        %vm5860 = vcmp.eq.f32.partialorder %v5859, 8.507059e+37
        %v5861 = vand.u32 %v5849, 2147483648
        %v5862 = vor.u32 1.1754944e-38, %v5861
        %v5863 = vsel %vm5860, %v5862, %v5858
        %v5864 = vmul.f32 %v5839, %v5863
        %v5865 = vmin.f32 %v5864, 1.0
        %v5866 = vmax.f32 %v5865, -1.0
        %v5867 = vmul.f32 %v4984, %v4984
        %v5868 = vmin.f32 16.0, %v5867
        %v5869 = vmul.f32 %v5868, 2.1237322e-06
        %v5870 = vadd.f32 %v5869, 0.00028619796
        %v5871 = vmul.f32 %v5868, %v5870
        %v5872 = vadd.f32 %v5871, 0.0036580483
        %v5873 = vmul.f32 %v5868, %v5872
        %v5874 = vadd.f32 %v5873, 0.05243302
        %v5875 = vmul.f32 %v5868, %v5874
        %v5876 = vadd.f32 %v5875, 0.18741608
        %v5877 = vmul.f32 %v5868, %v5876
        %v5878 = vadd.f32 %v5877, 1.1283791
        %v5879 = vmul.f32 %v4984, %v5878
        %v5880 = vmul.f32 %v5868, 3.8918573e-05
        %v5881 = vadd.f32 %v5880, 0.001143296
        %v5882 = vmul.f32 %v5868, %v5881
        %v5883 = vadd.f32 %v5882, 0.014752088
        %v5884 = vmul.f32 %v5868, %v5883
        %v5885 = vadd.f32 %v5884, 0.112945676
        %v5886 = vmul.f32 %v5868, %v5885
        %v5887 = vadd.f32 %v5886, 0.4994258
        %v5888 = vmul.f32 %v5868, %v5887
        %v5889 = vadd.f32 %v5888, 1.0
        %v5890 = vrcp.pop %v5889
        %v5891 = vmul.f32 %v5889, %v5890
        %v5892 = vsub.f32 1.0, %v5891
        %v5893 = vmul.f32 %v5890, %v5892
        %v5894 = vadd.f32 %v5890, %v5893
        %vm5895 = vweird.f32 %v5889
        %vm5896 = vweird.f32 %v5890
        %vm5897 = vmor %vm5895, %vm5896
        %v5898 = vsel %vm5897, %v5890, %v5894
        %v5899 = vand.u32 2147483647, %v5889
        %vm5900 = vcmp.eq.f32.partialorder %v5899, 8.507059e+37
        %v5901 = vand.u32 %v5889, 2147483648
        %v5902 = vor.u32 1.1754944e-38, %v5901
        %v5903 = vsel %vm5900, %v5902, %v5898
        %v5904 = vmul.f32 %v5879, %v5903
        %v5905 = vmin.f32 %v5904, 1.0
        %v5906 = vmax.f32 %v5905, -1.0
        %v5907 = vmul.f32 %v4985, %v4985
        %v5908 = vmin.f32 16.0, %v5907
        %v5909 = vmul.f32 %v5908, 2.1237322e-06
        %v5910 = vadd.f32 %v5909, 0.00028619796
        %v5911 = vmul.f32 %v5908, %v5910
        %v5912 = vadd.f32 %v5911, 0.0036580483
        %v5913 = vmul.f32 %v5908, %v5912
        %v5914 = vadd.f32 %v5913, 0.05243302
        %v5915 = vmul.f32 %v5908, %v5914
        %v5916 = vadd.f32 %v5915, 0.18741608
        %v5917 = vmul.f32 %v5908, %v5916
        %v5918 = vadd.f32 %v5917, 1.1283791
        %v5919 = vmul.f32 %v4985, %v5918
        %v5920 = vmul.f32 %v5908, 3.8918573e-05
        %v5921 = vadd.f32 %v5920, 0.001143296
        %v5922 = vmul.f32 %v5908, %v5921
        %v5923 = vadd.f32 %v5922, 0.014752088
        %v5924 = vmul.f32 %v5908, %v5923
        %v5925 = vadd.f32 %v5924, 0.112945676
        %v5926 = vmul.f32 %v5908, %v5925
        %v5927 = vadd.f32 %v5926, 0.4994258
        %v5928 = vmul.f32 %v5908, %v5927
        %v5929 = vadd.f32 %v5928, 1.0
        %v5930 = vrcp.pop %v5929
        %v5931 = vmul.f32 %v5929, %v5930
        %v5932 = vsub.f32 1.0, %v5931
        %v5933 = vmul.f32 %v5930, %v5932
        %v5934 = vadd.f32 %v5930, %v5933
        %vm5935 = vweird.f32 %v5929
        %vm5936 = vweird.f32 %v5930
        %vm5937 = vmor %vm5935, %vm5936
        %v5938 = vsel %vm5937, %v5930, %v5934
        %v5939 = vand.u32 2147483647, %v5929
        %vm5940 = vcmp.eq.f32.partialorder %v5939, 8.507059e+37
        %v5941 = vand.u32 %v5929, 2147483648
        %v5942 = vor.u32 1.1754944e-38, %v5941
        %v5943 = vsel %vm5940, %v5942, %v5938
        %v5944 = vmul.f32 %v5919, %v5943
        %v5945 = vmin.f32 %v5944, 1.0
        %v5946 = vmax.f32 %v5945, -1.0
        %v5947 = vmul.f32 %v4986, %v4986
        %v5948 = vmin.f32 16.0, %v5947
        %v5949 = vmul.f32 %v5948, 2.1237322e-06
        %v5950 = vadd.f32 %v5949, 0.00028619796
        %v5951 = vmul.f32 %v5948, %v5950
        %v5952 = vadd.f32 %v5951, 0.0036580483
        %v5953 = vmul.f32 %v5948, %v5952
        %v5954 = vadd.f32 %v5953, 0.05243302
        %v5955 = vmul.f32 %v5948, %v5954
        %v5956 = vadd.f32 %v5955, 0.18741608
        %v5957 = vmul.f32 %v5948, %v5956
        %v5958 = vadd.f32 %v5957, 1.1283791
        %v5959 = vmul.f32 %v4986, %v5958
        %v5960 = vmul.f32 %v5948, 3.8918573e-05
        %v5961 = vadd.f32 %v5960, 0.001143296
        %v5962 = vmul.f32 %v5948, %v5961
        %v5963 = vadd.f32 %v5962, 0.014752088
        %v5964 = vmul.f32 %v5948, %v5963
        %v5965 = vadd.f32 %v5964, 0.112945676
        %v5966 = vmul.f32 %v5948, %v5965
        %v5967 = vadd.f32 %v5966, 0.4994258
        %v5968 = vmul.f32 %v5948, %v5967
        %v5969 = vadd.f32 %v5968, 1.0
        %v5970 = vrcp.pop %v5969
        %v5971 = vmul.f32 %v5969, %v5970
        %v5972 = vsub.f32 1.0, %v5971
        %v5973 = vmul.f32 %v5970, %v5972
        %v5974 = vadd.f32 %v5970, %v5973
        %vm5975 = vweird.f32 %v5969
        %vm5976 = vweird.f32 %v5970
        %vm5977 = vmor %vm5975, %vm5976
        %v5978 = vsel %vm5977, %v5970, %v5974
        %v5979 = vand.u32 2147483647, %v5969
        %vm5980 = vcmp.eq.f32.partialorder %v5979, 8.507059e+37
        %v5981 = vand.u32 %v5969, 2147483648
        %v5982 = vor.u32 1.1754944e-38, %v5981
        %v5983 = vsel %vm5980, %v5982, %v5978
        %v5984 = vmul.f32 %v5959, %v5983
        %v5985 = vmin.f32 %v5984, 1.0
        %v5986 = vmax.f32 %v5985, -1.0
        %v5987 = vmul.f32 %v4987, %v4987
        %v5988 = vmin.f32 16.0, %v5987
        %v5989 = vmul.f32 %v5988, 2.1237322e-06
        %v5990 = vadd.f32 %v5989, 0.00028619796
        %v5991 = vmul.f32 %v5988, %v5990
        %v5992 = vadd.f32 %v5991, 0.0036580483
        %v5993 = vmul.f32 %v5988, %v5992
        %v5994 = vadd.f32 %v5993, 0.05243302
        %v5995 = vmul.f32 %v5988, %v5994
        %v5996 = vadd.f32 %v5995, 0.18741608
        %v5997 = vmul.f32 %v5988, %v5996
        %v5998 = vadd.f32 %v5997, 1.1283791
        %v5999 = vmul.f32 %v4987, %v5998
        %v6000 = vmul.f32 %v5988, 3.8918573e-05
        %v6001 = vadd.f32 %v6000, 0.001143296
        %v6002 = vmul.f32 %v5988, %v6001
        %v6003 = vadd.f32 %v6002, 0.014752088
        %v6004 = vmul.f32 %v5988, %v6003
        %v6005 = vadd.f32 %v6004, 0.112945676
        %v6006 = vmul.f32 %v5988, %v6005
        %v6007 = vadd.f32 %v6006, 0.4994258
        %v6008 = vmul.f32 %v5988, %v6007
        %v6009 = vadd.f32 %v6008, 1.0
        %v6010 = vrcp.pop %v6009
        %v6011 = vmul.f32 %v6009, %v6010
        %v6012 = vsub.f32 1.0, %v6011
        %v6013 = vmul.f32 %v6010, %v6012
        %v6014 = vadd.f32 %v6010, %v6013
        %vm6015 = vweird.f32 %v6009
        %vm6016 = vweird.f32 %v6010
        %vm6017 = vmor %vm6015, %vm6016
        %v6018 = vsel %vm6017, %v6010, %v6014
        %v6019 = vand.u32 2147483647, %v6009
        %vm6020 = vcmp.eq.f32.partialorder %v6019, 8.507059e+37
        %v6021 = vand.u32 %v6009, 2147483648
        %v6022 = vor.u32 1.1754944e-38, %v6021
        %v6023 = vsel %vm6020, %v6022, %v6018
        %v6024 = vmul.f32 %v5999, %v6023
        %v6025 = vmin.f32 %v6024, 1.0
        %v6026 = vmax.f32 %v6025, -1.0
        %v6027 = vmul.f32 %v4988, %v4988
        %v6028 = vmin.f32 16.0, %v6027
        %v6029 = vmul.f32 %v6028, 2.1237322e-06
        %v6030 = vadd.f32 %v6029, 0.00028619796
        %v6031 = vmul.f32 %v6028, %v6030
        %v6032 = vadd.f32 %v6031, 0.0036580483
        %v6033 = vmul.f32 %v6028, %v6032
        %v6034 = vadd.f32 %v6033, 0.05243302
        %v6035 = vmul.f32 %v6028, %v6034
        %v6036 = vadd.f32 %v6035, 0.18741608
        %v6037 = vmul.f32 %v6028, %v6036
        %v6038 = vadd.f32 %v6037, 1.1283791
        %v6039 = vmul.f32 %v4988, %v6038
        %v6040 = vmul.f32 %v6028, 3.8918573e-05
        %v6041 = vadd.f32 %v6040, 0.001143296
        %v6042 = vmul.f32 %v6028, %v6041
        %v6043 = vadd.f32 %v6042, 0.014752088
        %v6044 = vmul.f32 %v6028, %v6043
        %v6045 = vadd.f32 %v6044, 0.112945676
        %v6046 = vmul.f32 %v6028, %v6045
        %v6047 = vadd.f32 %v6046, 0.4994258
        %v6048 = vmul.f32 %v6028, %v6047
        %v6049 = vadd.f32 %v6048, 1.0
        %v6050 = vrcp.pop %v6049
        %v6051 = vmul.f32 %v6049, %v6050
        %v6052 = vsub.f32 1.0, %v6051
        %v6053 = vmul.f32 %v6050, %v6052
        %v6054 = vadd.f32 %v6050, %v6053
        %vm6055 = vweird.f32 %v6049
        %vm6056 = vweird.f32 %v6050
        %vm6057 = vmor %vm6055, %vm6056
        %v6058 = vsel %vm6057, %v6050, %v6054
        %v6059 = vand.u32 2147483647, %v6049
        %vm6060 = vcmp.eq.f32.partialorder %v6059, 8.507059e+37
        %v6061 = vand.u32 %v6049, 2147483648
        %v6062 = vor.u32 1.1754944e-38, %v6061
        %v6063 = vsel %vm6060, %v6062, %v6058
        %v6064 = vmul.f32 %v6039, %v6063
        %v6065 = vmin.f32 %v6064, 1.0
        %v6066 = vmax.f32 %v6065, -1.0
        %v6067 = vmul.f32 %v4989, %v4989
        %v6068 = vmin.f32 16.0, %v6067
        %v6069 = vmul.f32 %v6068, 2.1237322e-06
        %v6070 = vadd.f32 %v6069, 0.00028619796
        %v6071 = vmul.f32 %v6068, %v6070
        %v6072 = vadd.f32 %v6071, 0.0036580483
        %v6073 = vmul.f32 %v6068, %v6072
        %v6074 = vadd.f32 %v6073, 0.05243302
        %v6075 = vmul.f32 %v6068, %v6074
        %v6076 = vadd.f32 %v6075, 0.18741608
        %v6077 = vmul.f32 %v6068, %v6076
        %v6078 = vadd.f32 %v6077, 1.1283791
        %v6079 = vmul.f32 %v4989, %v6078
        %v6080 = vmul.f32 %v6068, 3.8918573e-05
        %v6081 = vadd.f32 %v6080, 0.001143296
        %v6082 = vmul.f32 %v6068, %v6081
        %v6083 = vadd.f32 %v6082, 0.014752088
        %v6084 = vmul.f32 %v6068, %v6083
        %v6085 = vadd.f32 %v6084, 0.112945676
        %v6086 = vmul.f32 %v6068, %v6085
        %v6087 = vadd.f32 %v6086, 0.4994258
        %v6088 = vmul.f32 %v6068, %v6087
        %v6089 = vadd.f32 %v6088, 1.0
        %v6090 = vrcp.pop %v6089
        %v6091 = vmul.f32 %v6089, %v6090
        %v6092 = vsub.f32 1.0, %v6091
        %v6093 = vmul.f32 %v6090, %v6092
        %v6094 = vadd.f32 %v6090, %v6093
        %vm6095 = vweird.f32 %v6089
        %vm6096 = vweird.f32 %v6090
        %vm6097 = vmor %vm6095, %vm6096
        %v6098 = vsel %vm6097, %v6090, %v6094
        %v6099 = vand.u32 2147483647, %v6089
        %vm6100 = vcmp.eq.f32.partialorder %v6099, 8.507059e+37
        %v6101 = vand.u32 %v6089, 2147483648
        %v6102 = vor.u32 1.1754944e-38, %v6101
        %v6103 = vsel %vm6100, %v6102, %v6098
        %v6104 = vmul.f32 %v6079, %v6103
        %v6105 = vmin.f32 %v6104, 1.0
        %v6106 = vmax.f32 %v6105, -1.0
        %v6107 = vmul.f32 %v4990, %v4990
        %v6108 = vmin.f32 16.0, %v6107
        %v6109 = vmul.f32 %v6108, 2.1237322e-06
        %v6110 = vadd.f32 %v6109, 0.00028619796
        %v6111 = vmul.f32 %v6108, %v6110
        %v6112 = vadd.f32 %v6111, 0.0036580483
        %v6113 = vmul.f32 %v6108, %v6112
        %v6114 = vadd.f32 %v6113, 0.05243302
        %v6115 = vmul.f32 %v6108, %v6114
        %v6116 = vadd.f32 %v6115, 0.18741608
        %v6117 = vmul.f32 %v6108, %v6116
        %v6118 = vadd.f32 %v6117, 1.1283791
        %v6119 = vmul.f32 %v4990, %v6118
        %v6120 = vmul.f32 %v6108, 3.8918573e-05
        %v6121 = vadd.f32 %v6120, 0.001143296
        %v6122 = vmul.f32 %v6108, %v6121
        %v6123 = vadd.f32 %v6122, 0.014752088
        %v6124 = vmul.f32 %v6108, %v6123
        %v6125 = vadd.f32 %v6124, 0.112945676
        %v6126 = vmul.f32 %v6108, %v6125
        %v6127 = vadd.f32 %v6126, 0.4994258
        %v6128 = vmul.f32 %v6108, %v6127
        %v6129 = vadd.f32 %v6128, 1.0
        %v6130 = vrcp.pop %v6129
        %v6131 = vmul.f32 %v6129, %v6130
        %v6132 = vsub.f32 1.0, %v6131
        %v6133 = vmul.f32 %v6130, %v6132
        %v6134 = vadd.f32 %v6130, %v6133
        %vm6135 = vweird.f32 %v6129
        %vm6136 = vweird.f32 %v6130
        %vm6137 = vmor %vm6135, %vm6136
        %v6138 = vsel %vm6137, %v6130, %v6134
        %v6139 = vand.u32 2147483647, %v6129
        %vm6140 = vcmp.eq.f32.partialorder %v6139, 8.507059e+37
        %v6141 = vand.u32 %v6129, 2147483648
        %v6142 = vor.u32 1.1754944e-38, %v6141
        %v6143 = vsel %vm6140, %v6142, %v6138
        %v6144 = vmul.f32 %v6119, %v6143
        %v6145 = vmin.f32 %v6144, 1.0
        %v6146 = vmax.f32 %v6145, -1.0
        %v6147 = vmul.f32 %v4991, %v4991
        %v6148 = vmin.f32 16.0, %v6147
        %v6149 = vmul.f32 %v6148, 2.1237322e-06
        %v6150 = vadd.f32 %v6149, 0.00028619796
        %v6151 = vmul.f32 %v6148, %v6150
        %v6152 = vadd.f32 %v6151, 0.0036580483
        %v6153 = vmul.f32 %v6148, %v6152
        %v6154 = vadd.f32 %v6153, 0.05243302
        %v6155 = vmul.f32 %v6148, %v6154
        %v6156 = vadd.f32 %v6155, 0.18741608
        %v6157 = vmul.f32 %v6148, %v6156
        %v6158 = vadd.f32 %v6157, 1.1283791
        %v6159 = vmul.f32 %v4991, %v6158
        %v6160 = vmul.f32 %v6148, 3.8918573e-05
        %v6161 = vadd.f32 %v6160, 0.001143296
        %v6162 = vmul.f32 %v6148, %v6161
        %v6163 = vadd.f32 %v6162, 0.014752088
        %v6164 = vmul.f32 %v6148, %v6163
        %v6165 = vadd.f32 %v6164, 0.112945676
        %v6166 = vmul.f32 %v6148, %v6165
        %v6167 = vadd.f32 %v6166, 0.4994258
        %v6168 = vmul.f32 %v6148, %v6167
        %v6169 = vadd.f32 %v6168, 1.0
        %v6170 = vrcp.pop %v6169
        %v6171 = vmul.f32 %v6169, %v6170
        %v6172 = vsub.f32 1.0, %v6171
        %v6173 = vmul.f32 %v6170, %v6172
        %v6174 = vadd.f32 %v6170, %v6173
        %vm6175 = vweird.f32 %v6169
        %vm6176 = vweird.f32 %v6170
        %vm6177 = vmor %vm6175, %vm6176
        %v6178 = vsel %vm6177, %v6170, %v6174
        %v6179 = vand.u32 2147483647, %v6169
        %vm6180 = vcmp.eq.f32.partialorder %v6179, 8.507059e+37
        %v6181 = vand.u32 %v6169, 2147483648
        %v6182 = vor.u32 1.1754944e-38, %v6181
        %v6183 = vsel %vm6180, %v6182, %v6178
        %v6184 = vmul.f32 %v6159, %v6183
        %v6185 = vmin.f32 %v6184, 1.0
        %v6186 = vmax.f32 %v6185, -1.0
        %v6187 = vmul.f32 %v4992, %v4992
        %v6188 = vmin.f32 16.0, %v6187
        %v6189 = vmul.f32 %v6188, 2.1237322e-06
        %v6190 = vadd.f32 %v6189, 0.00028619796
        %v6191 = vmul.f32 %v6188, %v6190
        %v6192 = vadd.f32 %v6191, 0.0036580483
        %v6193 = vmul.f32 %v6188, %v6192
        %v6194 = vadd.f32 %v6193, 0.05243302
        %v6195 = vmul.f32 %v6188, %v6194
        %v6196 = vadd.f32 %v6195, 0.18741608
        %v6197 = vmul.f32 %v6188, %v6196
        %v6198 = vadd.f32 %v6197, 1.1283791
        %v6199 = vmul.f32 %v4992, %v6198
        %v6200 = vmul.f32 %v6188, 3.8918573e-05
        %v6201 = vadd.f32 %v6200, 0.001143296
        %v6202 = vmul.f32 %v6188, %v6201
        %v6203 = vadd.f32 %v6202, 0.014752088
        %v6204 = vmul.f32 %v6188, %v6203
        %v6205 = vadd.f32 %v6204, 0.112945676
        %v6206 = vmul.f32 %v6188, %v6205
        %v6207 = vadd.f32 %v6206, 0.4994258
        %v6208 = vmul.f32 %v6188, %v6207
        %v6209 = vadd.f32 %v6208, 1.0
        %v6210 = vrcp.pop %v6209
        %v6211 = vmul.f32 %v6209, %v6210
        %v6212 = vsub.f32 1.0, %v6211
        %v6213 = vmul.f32 %v6210, %v6212
        %v6214 = vadd.f32 %v6210, %v6213
        %vm6215 = vweird.f32 %v6209
        %vm6216 = vweird.f32 %v6210
        %vm6217 = vmor %vm6215, %vm6216
        %v6218 = vsel %vm6217, %v6210, %v6214
        %v6219 = vand.u32 2147483647, %v6209
        %vm6220 = vcmp.eq.f32.partialorder %v6219, 8.507059e+37
        %v6221 = vand.u32 %v6209, 2147483648
        %v6222 = vor.u32 1.1754944e-38, %v6221
        %v6223 = vsel %vm6220, %v6222, %v6218
        %v6224 = vmul.f32 %v6199, %v6223
        %v6225 = vmin.f32 %v6224, 1.0
        %v6226 = vmax.f32 %v6225, -1.0
        %v6227 = vmul.f32 %v4993, %v4993
        %v6228 = vmin.f32 16.0, %v6227
        %v6229 = vmul.f32 %v6228, 2.1237322e-06
        %v6230 = vadd.f32 %v6229, 0.00028619796
        %v6231 = vmul.f32 %v6228, %v6230
        %v6232 = vadd.f32 %v6231, 0.0036580483
        %v6233 = vmul.f32 %v6228, %v6232
        %v6234 = vadd.f32 %v6233, 0.05243302
        %v6235 = vmul.f32 %v6228, %v6234
        %v6236 = vadd.f32 %v6235, 0.18741608
        %v6237 = vmul.f32 %v6228, %v6236
        %v6238 = vadd.f32 %v6237, 1.1283791
        %v6239 = vmul.f32 %v4993, %v6238
        %v6240 = vmul.f32 %v6228, 3.8918573e-05
        %v6241 = vadd.f32 %v6240, 0.001143296
        %v6242 = vmul.f32 %v6228, %v6241
        %v6243 = vadd.f32 %v6242, 0.014752088
        %v6244 = vmul.f32 %v6228, %v6243
        %v6245 = vadd.f32 %v6244, 0.112945676
        %v6246 = vmul.f32 %v6228, %v6245
        %v6247 = vadd.f32 %v6246, 0.4994258
        %v6248 = vmul.f32 %v6228, %v6247
        %v6249 = vadd.f32 %v6248, 1.0
        %v6250 = vrcp.pop %v6249
        %v6251 = vmul.f32 %v6249, %v6250
        %v6252 = vsub.f32 1.0, %v6251
        %v6253 = vmul.f32 %v6250, %v6252
        %v6254 = vadd.f32 %v6250, %v6253
        %vm6255 = vweird.f32 %v6249
        %vm6256 = vweird.f32 %v6250
        %vm6257 = vmor %vm6255, %vm6256
        %v6258 = vsel %vm6257, %v6250, %v6254
        %v6259 = vand.u32 2147483647, %v6249
        %vm6260 = vcmp.eq.f32.partialorder %v6259, 8.507059e+37
        %v6261 = vand.u32 %v6249, 2147483648
        %v6262 = vor.u32 1.1754944e-38, %v6261
        %v6263 = vsel %vm6260, %v6262, %v6258
        %v6264 = vmul.f32 %v6239, %v6263
        %v6265 = vmin.f32 %v6264, 1.0
        %v6266 = vmax.f32 %v6265, -1.0
        %v6267 = vmul.f32 %v4994, %v4994
        %v6268 = vmin.f32 16.0, %v6267
        %v6269 = vmul.f32 %v6268, 2.1237322e-06
        %v6270 = vadd.f32 %v6269, 0.00028619796
        %v6271 = vmul.f32 %v6268, %v6270
        %v6272 = vadd.f32 %v6271, 0.0036580483
        %v6273 = vmul.f32 %v6268, %v6272
        %v6274 = vadd.f32 %v6273, 0.05243302
        %v6275 = vmul.f32 %v6268, %v6274
        %v6276 = vadd.f32 %v6275, 0.18741608
        %v6277 = vmul.f32 %v6268, %v6276
        %v6278 = vadd.f32 %v6277, 1.1283791
        %v6279 = vmul.f32 %v4994, %v6278
        %v6280 = vmul.f32 %v6268, 3.8918573e-05
        %v6281 = vadd.f32 %v6280, 0.001143296
        %v6282 = vmul.f32 %v6268, %v6281
        %v6283 = vadd.f32 %v6282, 0.014752088
        %v6284 = vmul.f32 %v6268, %v6283
        %v6285 = vadd.f32 %v6284, 0.112945676
        %v6286 = vmul.f32 %v6268, %v6285
        %v6287 = vadd.f32 %v6286, 0.4994258
        %v6288 = vmul.f32 %v6268, %v6287
        %v6289 = vadd.f32 %v6288, 1.0
        %v6290 = vrcp.pop %v6289
        %v6291 = vmul.f32 %v6289, %v6290
        %v6292 = vsub.f32 1.0, %v6291
        %v6293 = vmul.f32 %v6290, %v6292
        %v6294 = vadd.f32 %v6290, %v6293
        %vm6295 = vweird.f32 %v6289
        %vm6296 = vweird.f32 %v6290
        %vm6297 = vmor %vm6295, %vm6296
        %v6298 = vsel %vm6297, %v6290, %v6294
        %v6299 = vand.u32 2147483647, %v6289
        %vm6300 = vcmp.eq.f32.partialorder %v6299, 8.507059e+37
        %v6301 = vand.u32 %v6289, 2147483648
        %v6302 = vor.u32 1.1754944e-38, %v6301
        %v6303 = vsel %vm6300, %v6302, %v6298
        %v6304 = vmul.f32 %v6279, %v6303
        %v6305 = vmin.f32 %v6304, 1.0
        %v6306 = vmax.f32 %v6305, -1.0
        %v6307 = vmul.f32 %v4995, %v4995
        %v6308 = vmin.f32 16.0, %v6307
        %v6309 = vmul.f32 %v6308, 2.1237322e-06
        %v6310 = vadd.f32 %v6309, 0.00028619796
        %v6311 = vmul.f32 %v6308, %v6310
        %v6312 = vadd.f32 %v6311, 0.0036580483
        %v6313 = vmul.f32 %v6308, %v6312
        %v6314 = vadd.f32 %v6313, 0.05243302
        %v6315 = vmul.f32 %v6308, %v6314
        %v6316 = vadd.f32 %v6315, 0.18741608
        %v6317 = vmul.f32 %v6308, %v6316
        %v6318 = vadd.f32 %v6317, 1.1283791
        %v6319 = vmul.f32 %v4995, %v6318
        %v6320 = vmul.f32 %v6308, 3.8918573e-05
        %v6321 = vadd.f32 %v6320, 0.001143296
        %v6322 = vmul.f32 %v6308, %v6321
        %v6323 = vadd.f32 %v6322, 0.014752088
        %v6324 = vmul.f32 %v6308, %v6323
        %v6325 = vadd.f32 %v6324, 0.112945676
        %v6326 = vmul.f32 %v6308, %v6325
        %v6327 = vadd.f32 %v6326, 0.4994258
        %v6328 = vmul.f32 %v6308, %v6327
        %v6329 = vadd.f32 %v6328, 1.0
        %v6330 = vrcp.pop %v6329
        %v6331 = vmul.f32 %v6329, %v6330
        %v6332 = vsub.f32 1.0, %v6331
        %v6333 = vmul.f32 %v6330, %v6332
        %v6334 = vadd.f32 %v6330, %v6333
        %vm6335 = vweird.f32 %v6329
        %vm6336 = vweird.f32 %v6330
        %vm6337 = vmor %vm6335, %vm6336
        %v6338 = vsel %vm6337, %v6330, %v6334
        %v6339 = vand.u32 2147483647, %v6329
        %vm6340 = vcmp.eq.f32.partialorder %v6339, 8.507059e+37
        %v6341 = vand.u32 %v6329, 2147483648
        %v6342 = vor.u32 1.1754944e-38, %v6341
        %v6343 = vsel %vm6340, %v6342, %v6338
        %v6344 = vmul.f32 %v6319, %v6343
        %v6345 = vmin.f32 %v6344, 1.0
        %v6346 = vmax.f32 %v6345, -1.0
        %v6347 = vmul.f32 %v4996, %v4996
        %v6348 = vmin.f32 16.0, %v6347
        %v6349 = vmul.f32 %v6348, 2.1237322e-06
        %v6350 = vadd.f32 %v6349, 0.00028619796
        %v6351 = vmul.f32 %v6348, %v6350
        %v6352 = vadd.f32 %v6351, 0.0036580483
        %v6353 = vmul.f32 %v6348, %v6352
        %v6354 = vadd.f32 %v6353, 0.05243302
        %v6355 = vmul.f32 %v6348, %v6354
        %v6356 = vadd.f32 %v6355, 0.18741608
        %v6357 = vmul.f32 %v6348, %v6356
        %v6358 = vadd.f32 %v6357, 1.1283791
        %v6359 = vmul.f32 %v4996, %v6358
        %v6360 = vmul.f32 %v6348, 3.8918573e-05
        %v6361 = vadd.f32 %v6360, 0.001143296
        %v6362 = vmul.f32 %v6348, %v6361
        %v6363 = vadd.f32 %v6362, 0.014752088
        %v6364 = vmul.f32 %v6348, %v6363
        %v6365 = vadd.f32 %v6364, 0.112945676
        %v6366 = vmul.f32 %v6348, %v6365
        %v6367 = vadd.f32 %v6366, 0.4994258
        %v6368 = vmul.f32 %v6348, %v6367
        %v6369 = vadd.f32 %v6368, 1.0
        %v6370 = vrcp.pop %v6369
        %v6371 = vmul.f32 %v6369, %v6370
        %v6372 = vsub.f32 1.0, %v6371
        %v6373 = vmul.f32 %v6370, %v6372
        %v6374 = vadd.f32 %v6370, %v6373
        %vm6375 = vweird.f32 %v6369
        %vm6376 = vweird.f32 %v6370
        %vm6377 = vmor %vm6375, %vm6376
        %v6378 = vsel %vm6377, %v6370, %v6374
        %v6379 = vand.u32 2147483647, %v6369
        %vm6380 = vcmp.eq.f32.partialorder %v6379, 8.507059e+37
        %v6381 = vand.u32 %v6369, 2147483648
        %v6382 = vor.u32 1.1754944e-38, %v6381
        %v6383 = vsel %vm6380, %v6382, %v6378
        %v6384 = vmul.f32 %v6359, %v6383
        %v6385 = vmin.f32 %v6384, 1.0
        %v6386 = vmax.f32 %v6385, -1.0
        %v6387 = vmul.f32 %v4997, %v4997
        %v6388 = vmin.f32 16.0, %v6387
        %v6389 = vmul.f32 %v6388, 2.1237322e-06
        %v6390 = vadd.f32 %v6389, 0.00028619796
        %v6391 = vmul.f32 %v6388, %v6390
        %v6392 = vadd.f32 %v6391, 0.0036580483
        %v6393 = vmul.f32 %v6388, %v6392
        %v6394 = vadd.f32 %v6393, 0.05243302
        %v6395 = vmul.f32 %v6388, %v6394
        %v6396 = vadd.f32 %v6395, 0.18741608
        %v6397 = vmul.f32 %v6388, %v6396
        %v6398 = vadd.f32 %v6397, 1.1283791
        %v6399 = vmul.f32 %v4997, %v6398
        %v6400 = vmul.f32 %v6388, 3.8918573e-05
        %v6401 = vadd.f32 %v6400, 0.001143296
        %v6402 = vmul.f32 %v6388, %v6401
        %v6403 = vadd.f32 %v6402, 0.014752088
        %v6404 = vmul.f32 %v6388, %v6403
        %v6405 = vadd.f32 %v6404, 0.112945676
        %v6406 = vmul.f32 %v6388, %v6405
        %v6407 = vadd.f32 %v6406, 0.4994258
        %v6408 = vmul.f32 %v6388, %v6407
        %v6409 = vadd.f32 %v6408, 1.0
        %v6410 = vrcp.pop %v6409
        %v6411 = vmul.f32 %v6409, %v6410
        %v6412 = vsub.f32 1.0, %v6411
        %v6413 = vmul.f32 %v6410, %v6412
        %v6414 = vadd.f32 %v6410, %v6413
        %vm6415 = vweird.f32 %v6409
        %vm6416 = vweird.f32 %v6410
        %vm6417 = vmor %vm6415, %vm6416
        %v6418 = vsel %vm6417, %v6410, %v6414
        %v6419 = vand.u32 2147483647, %v6409
        %vm6420 = vcmp.eq.f32.partialorder %v6419, 8.507059e+37
        %v6421 = vand.u32 %v6409, 2147483648
        %v6422 = vor.u32 1.1754944e-38, %v6421
        %v6423 = vsel %vm6420, %v6422, %v6418
        %v6424 = vmul.f32 %v6399, %v6423
        %v6425 = vmin.f32 %v6424, 1.0
        %v6426 = vmax.f32 %v6425, -1.0
        %v6427 = vmul.f32 %v4998, %v4998
        %v6428 = vmin.f32 16.0, %v6427
        %v6429 = vmul.f32 %v6428, 2.1237322e-06
        %v6430 = vadd.f32 %v6429, 0.00028619796
        %v6431 = vmul.f32 %v6428, %v6430
        %v6432 = vadd.f32 %v6431, 0.0036580483
        %v6433 = vmul.f32 %v6428, %v6432
        %v6434 = vadd.f32 %v6433, 0.05243302
        %v6435 = vmul.f32 %v6428, %v6434
        %v6436 = vadd.f32 %v6435, 0.18741608
        %v6437 = vmul.f32 %v6428, %v6436
        %v6438 = vadd.f32 %v6437, 1.1283791
        %v6439 = vmul.f32 %v4998, %v6438
        %v6440 = vmul.f32 %v6428, 3.8918573e-05
        %v6441 = vadd.f32 %v6440, 0.001143296
        %v6442 = vmul.f32 %v6428, %v6441
        %v6443 = vadd.f32 %v6442, 0.014752088
        %v6444 = vmul.f32 %v6428, %v6443
        %v6445 = vadd.f32 %v6444, 0.112945676
        %v6446 = vmul.f32 %v6428, %v6445
        %v6447 = vadd.f32 %v6446, 0.4994258
        %v6448 = vmul.f32 %v6428, %v6447
        %v6449 = vadd.f32 %v6448, 1.0
        %v6450 = vrcp.pop %v6449
        %v6451 = vmul.f32 %v6449, %v6450
        %v6452 = vsub.f32 1.0, %v6451
        %v6453 = vmul.f32 %v6450, %v6452
        %v6454 = vadd.f32 %v6450, %v6453
        %vm6455 = vweird.f32 %v6449
        %vm6456 = vweird.f32 %v6450
        %vm6457 = vmor %vm6455, %vm6456
        %v6458 = vsel %vm6457, %v6450, %v6454
        %v6459 = vand.u32 2147483647, %v6449
        %vm6460 = vcmp.eq.f32.partialorder %v6459, 8.507059e+37
        %v6461 = vand.u32 %v6449, 2147483648
        %v6462 = vor.u32 1.1754944e-38, %v6461
        %v6463 = vsel %vm6460, %v6462, %v6458
        %v6464 = vmul.f32 %v6439, %v6463
        %v6465 = vmin.f32 %v6464, 1.0
        %v6466 = vmax.f32 %v6465, -1.0
        %v6467 = vmul.f32 %v4999, %v4999
        %v6468 = vmin.f32 16.0, %v6467
        %v6469 = vmul.f32 %v6468, 2.1237322e-06
        %v6470 = vadd.f32 %v6469, 0.00028619796
        %v6471 = vmul.f32 %v6468, %v6470
        %v6472 = vadd.f32 %v6471, 0.0036580483
        %v6473 = vmul.f32 %v6468, %v6472
        %v6474 = vadd.f32 %v6473, 0.05243302
        %v6475 = vmul.f32 %v6468, %v6474
        %v6476 = vadd.f32 %v6475, 0.18741608
        %v6477 = vmul.f32 %v6468, %v6476
        %v6478 = vadd.f32 %v6477, 1.1283791
        %v6479 = vmul.f32 %v4999, %v6478
        %v6480 = vmul.f32 %v6468, 3.8918573e-05
        %v6481 = vadd.f32 %v6480, 0.001143296
        %v6482 = vmul.f32 %v6468, %v6481
        %v6483 = vadd.f32 %v6482, 0.014752088
        %v6484 = vmul.f32 %v6468, %v6483
        %v6485 = vadd.f32 %v6484, 0.112945676
        %v6486 = vmul.f32 %v6468, %v6485
        %v6487 = vadd.f32 %v6486, 0.4994258
        %v6488 = vmul.f32 %v6468, %v6487
        %v6489 = vadd.f32 %v6488, 1.0
        %v6490 = vrcp.pop %v6489
        %v6491 = vmul.f32 %v6489, %v6490
        %v6492 = vsub.f32 1.0, %v6491
        %v6493 = vmul.f32 %v6490, %v6492
        %v6494 = vadd.f32 %v6490, %v6493
        %vm6495 = vweird.f32 %v6489
        %vm6496 = vweird.f32 %v6490
        %vm6497 = vmor %vm6495, %vm6496
        %v6498 = vsel %vm6497, %v6490, %v6494
        %v6499 = vand.u32 2147483647, %v6489
        %vm6500 = vcmp.eq.f32.partialorder %v6499, 8.507059e+37
        %v6501 = vand.u32 %v6489, 2147483648
        %v6502 = vor.u32 1.1754944e-38, %v6501
        %v6503 = vsel %vm6500, %v6502, %v6498
        %v6504 = vmul.f32 %v6479, %v6503
        %v6505 = vmin.f32 %v6504, 1.0
        %v6506 = vmax.f32 %v6505, -1.0
        %v6507 = vmul.f32 %v5000, %v5000
        %v6508 = vmin.f32 16.0, %v6507
        %v6509 = vmul.f32 %v6508, 2.1237322e-06
        %v6510 = vadd.f32 %v6509, 0.00028619796
        %v6511 = vmul.f32 %v6508, %v6510
        %v6512 = vadd.f32 %v6511, 0.0036580483
        %v6513 = vmul.f32 %v6508, %v6512
        %v6514 = vadd.f32 %v6513, 0.05243302
        %v6515 = vmul.f32 %v6508, %v6514
        %v6516 = vadd.f32 %v6515, 0.18741608
        %v6517 = vmul.f32 %v6508, %v6516
        %v6518 = vadd.f32 %v6517, 1.1283791
        %v6519 = vmul.f32 %v5000, %v6518
        %v6520 = vmul.f32 %v6508, 3.8918573e-05
        %v6521 = vadd.f32 %v6520, 0.001143296
        %v6522 = vmul.f32 %v6508, %v6521
        %v6523 = vadd.f32 %v6522, 0.014752088
        %v6524 = vmul.f32 %v6508, %v6523
        %v6525 = vadd.f32 %v6524, 0.112945676
        %v6526 = vmul.f32 %v6508, %v6525
        %v6527 = vadd.f32 %v6526, 0.4994258
        %v6528 = vmul.f32 %v6508, %v6527
        %v6529 = vadd.f32 %v6528, 1.0
        %v6530 = vrcp.pop %v6529
        %v6531 = vmul.f32 %v6529, %v6530
        %v6532 = vsub.f32 1.0, %v6531
        %v6533 = vmul.f32 %v6530, %v6532
        %v6534 = vadd.f32 %v6530, %v6533
        %vm6535 = vweird.f32 %v6529
        %vm6536 = vweird.f32 %v6530
        %vm6537 = vmor %vm6535, %vm6536
        %v6538 = vsel %vm6537, %v6530, %v6534
        %v6539 = vand.u32 2147483647, %v6529
        %vm6540 = vcmp.eq.f32.partialorder %v6539, 8.507059e+37
        %v6541 = vand.u32 %v6529, 2147483648
        %v6542 = vor.u32 1.1754944e-38, %v6541
        %v6543 = vsel %vm6540, %v6542, %v6538
        %v6544 = vmul.f32 %v6519, %v6543
        %v6545 = vmin.f32 %v6544, 1.0
        %v6546 = vmax.f32 %v6545, -1.0
        %v6547 = vmul.f32 %v5001, %v5001
        %v6548 = vmin.f32 16.0, %v6547
        %v6549 = vmul.f32 %v6548, 2.1237322e-06
        %v6550 = vadd.f32 %v6549, 0.00028619796
        %v6551 = vmul.f32 %v6548, %v6550
        %v6552 = vadd.f32 %v6551, 0.0036580483
        %v6553 = vmul.f32 %v6548, %v6552
        %v6554 = vadd.f32 %v6553, 0.05243302
        %v6555 = vmul.f32 %v6548, %v6554
        %v6556 = vadd.f32 %v6555, 0.18741608
        %v6557 = vmul.f32 %v6548, %v6556
        %v6558 = vadd.f32 %v6557, 1.1283791
        %v6559 = vmul.f32 %v5001, %v6558
        %v6560 = vmul.f32 %v6548, 3.8918573e-05
        %v6561 = vadd.f32 %v6560, 0.001143296
        %v6562 = vmul.f32 %v6548, %v6561
        %v6563 = vadd.f32 %v6562, 0.014752088
        %v6564 = vmul.f32 %v6548, %v6563
        %v6565 = vadd.f32 %v6564, 0.112945676
        %v6566 = vmul.f32 %v6548, %v6565
        %v6567 = vadd.f32 %v6566, 0.4994258
        %v6568 = vmul.f32 %v6548, %v6567
        %v6569 = vadd.f32 %v6568, 1.0
        %v6570 = vrcp.pop %v6569
        %v6571 = vmul.f32 %v6569, %v6570
        %v6572 = vsub.f32 1.0, %v6571
        %v6573 = vmul.f32 %v6570, %v6572
        %v6574 = vadd.f32 %v6570, %v6573
        %vm6575 = vweird.f32 %v6569
        %vm6576 = vweird.f32 %v6570
        %vm6577 = vmor %vm6575, %vm6576
        %v6578 = vsel %vm6577, %v6570, %v6574
        %v6579 = vand.u32 2147483647, %v6569
        %vm6580 = vcmp.eq.f32.partialorder %v6579, 8.507059e+37
        %v6581 = vand.u32 %v6569, 2147483648
        %v6582 = vor.u32 1.1754944e-38, %v6581
        %v6583 = vsel %vm6580, %v6582, %v6578
        %v6584 = vmul.f32 %v6559, %v6583
        %v6585 = vmin.f32 %v6584, 1.0
        %v6586 = vmax.f32 %v6585, -1.0
        %v6587 = vmul.f32 %v5002, %v5002
        %v6588 = vmin.f32 16.0, %v6587
        %v6589 = vmul.f32 %v6588, 2.1237322e-06
        %v6590 = vadd.f32 %v6589, 0.00028619796
        %v6591 = vmul.f32 %v6588, %v6590
        %v6592 = vadd.f32 %v6591, 0.0036580483
        %v6593 = vmul.f32 %v6588, %v6592
        %v6594 = vadd.f32 %v6593, 0.05243302
        %v6595 = vmul.f32 %v6588, %v6594
        %v6596 = vadd.f32 %v6595, 0.18741608
        %v6597 = vmul.f32 %v6588, %v6596
        %v6598 = vadd.f32 %v6597, 1.1283791
        %v6599 = vmul.f32 %v5002, %v6598
        %v6600 = vmul.f32 %v6588, 3.8918573e-05
        %v6601 = vadd.f32 %v6600, 0.001143296
        %v6602 = vmul.f32 %v6588, %v6601
        %v6603 = vadd.f32 %v6602, 0.014752088
        %v6604 = vmul.f32 %v6588, %v6603
        %v6605 = vadd.f32 %v6604, 0.112945676
        %v6606 = vmul.f32 %v6588, %v6605
        %v6607 = vadd.f32 %v6606, 0.4994258
        %v6608 = vmul.f32 %v6588, %v6607
        %v6609 = vadd.f32 %v6608, 1.0
        %v6610 = vrcp.pop %v6609
        %v6611 = vmul.f32 %v6609, %v6610
        %v6612 = vsub.f32 1.0, %v6611
        %v6613 = vmul.f32 %v6610, %v6612
        %v6614 = vadd.f32 %v6610, %v6613
        %vm6615 = vweird.f32 %v6609
        %vm6616 = vweird.f32 %v6610
        %vm6617 = vmor %vm6615, %vm6616
        %v6618 = vsel %vm6617, %v6610, %v6614
        %v6619 = vand.u32 2147483647, %v6609
        %vm6620 = vcmp.eq.f32.partialorder %v6619, 8.507059e+37
        %v6621 = vand.u32 %v6609, 2147483648
        %v6622 = vor.u32 1.1754944e-38, %v6621
        %v6623 = vsel %vm6620, %v6622, %v6618
        %v6624 = vmul.f32 %v6599, %v6623
        %v6625 = vmin.f32 %v6624, 1.0
        %v6626 = vmax.f32 %v6625, -1.0
        %v6627 = vmul.f32 %v5003, %v5003
        %v6628 = vmin.f32 16.0, %v6627
        %v6629 = vmul.f32 %v6628, 2.1237322e-06
        %v6630 = vadd.f32 %v6629, 0.00028619796
        %v6631 = vmul.f32 %v6628, %v6630
        %v6632 = vadd.f32 %v6631, 0.0036580483
        %v6633 = vmul.f32 %v6628, %v6632
        %v6634 = vadd.f32 %v6633, 0.05243302
        %v6635 = vmul.f32 %v6628, %v6634
        %v6636 = vadd.f32 %v6635, 0.18741608
        %v6637 = vmul.f32 %v6628, %v6636
        %v6638 = vadd.f32 %v6637, 1.1283791
        %v6639 = vmul.f32 %v5003, %v6638
        %v6640 = vmul.f32 %v6628, 3.8918573e-05
        %v6641 = vadd.f32 %v6640, 0.001143296
        %v6642 = vmul.f32 %v6628, %v6641
        %v6643 = vadd.f32 %v6642, 0.014752088
        %v6644 = vmul.f32 %v6628, %v6643
        %v6645 = vadd.f32 %v6644, 0.112945676
        %v6646 = vmul.f32 %v6628, %v6645
        %v6647 = vadd.f32 %v6646, 0.4994258
        %v6648 = vmul.f32 %v6628, %v6647
        %v6649 = vadd.f32 %v6648, 1.0
        %v6650 = vrcp.pop %v6649
        %v6651 = vmul.f32 %v6649, %v6650
        %v6652 = vsub.f32 1.0, %v6651
        %v6653 = vmul.f32 %v6650, %v6652
        %v6654 = vadd.f32 %v6650, %v6653
        %vm6655 = vweird.f32 %v6649
        %vm6656 = vweird.f32 %v6650
        %vm6657 = vmor %vm6655, %vm6656
        %v6658 = vsel %vm6657, %v6650, %v6654
        %v6659 = vand.u32 2147483647, %v6649
        %vm6660 = vcmp.eq.f32.partialorder %v6659, 8.507059e+37
        %v6661 = vand.u32 %v6649, 2147483648
        %v6662 = vor.u32 1.1754944e-38, %v6661
        %v6663 = vsel %vm6660, %v6662, %v6658
        %v6664 = vmul.f32 %v6639, %v6663
        %v6665 = vmin.f32 %v6664, 1.0
        %v6666 = vmax.f32 %v6665, -1.0
        %v6667 = vmul.f32 %v5004, %v5004
        %v6668 = vmin.f32 16.0, %v6667
        %v6669 = vmul.f32 %v6668, 2.1237322e-06
        %v6670 = vadd.f32 %v6669, 0.00028619796
        %v6671 = vmul.f32 %v6668, %v6670
        %v6672 = vadd.f32 %v6671, 0.0036580483
        %v6673 = vmul.f32 %v6668, %v6672
        %v6674 = vadd.f32 %v6673, 0.05243302
        %v6675 = vmul.f32 %v6668, %v6674
        %v6676 = vadd.f32 %v6675, 0.18741608
        %v6677 = vmul.f32 %v6668, %v6676
        %v6678 = vadd.f32 %v6677, 1.1283791
        %v6679 = vmul.f32 %v5004, %v6678
        %v6680 = vmul.f32 %v6668, 3.8918573e-05
        %v6681 = vadd.f32 %v6680, 0.001143296
        %v6682 = vmul.f32 %v6668, %v6681
        %v6683 = vadd.f32 %v6682, 0.014752088
        %v6684 = vmul.f32 %v6668, %v6683
        %v6685 = vadd.f32 %v6684, 0.112945676
        %v6686 = vmul.f32 %v6668, %v6685
        %v6687 = vadd.f32 %v6686, 0.4994258
        %v6688 = vmul.f32 %v6668, %v6687
        %v6689 = vadd.f32 %v6688, 1.0
        %v6690 = vrcp.pop %v6689
        %v6691 = vmul.f32 %v6689, %v6690
        %v6692 = vsub.f32 1.0, %v6691
        %v6693 = vmul.f32 %v6690, %v6692
        %v6694 = vadd.f32 %v6690, %v6693
        %vm6695 = vweird.f32 %v6689
        %vm6696 = vweird.f32 %v6690
        %vm6697 = vmor %vm6695, %vm6696
        %v6698 = vsel %vm6697, %v6690, %v6694
        %v6699 = vand.u32 2147483647, %v6689
        %vm6700 = vcmp.eq.f32.partialorder %v6699, 8.507059e+37
        %v6701 = vand.u32 %v6689, 2147483648
        %v6702 = vor.u32 1.1754944e-38, %v6701
        %v6703 = vsel %vm6700, %v6702, %v6698
        %v6704 = vmul.f32 %v6679, %v6703
        %v6705 = vmin.f32 %v6704, 1.0
        %v6706 = vmax.f32 %v6705, -1.0
        %v6707 = vmul.f32 %v5005, %v5005
        %v6708 = vmin.f32 16.0, %v6707
        %v6709 = vmul.f32 %v6708, 2.1237322e-06
        %v6710 = vadd.f32 %v6709, 0.00028619796
        %v6711 = vmul.f32 %v6708, %v6710
        %v6712 = vadd.f32 %v6711, 0.0036580483
        %v6713 = vmul.f32 %v6708, %v6712
        %v6714 = vadd.f32 %v6713, 0.05243302
        %v6715 = vmul.f32 %v6708, %v6714
        %v6716 = vadd.f32 %v6715, 0.18741608
        %v6717 = vmul.f32 %v6708, %v6716
        %v6718 = vadd.f32 %v6717, 1.1283791
        %v6719 = vmul.f32 %v5005, %v6718
        %v6720 = vmul.f32 %v6708, 3.8918573e-05
        %v6721 = vadd.f32 %v6720, 0.001143296
        %v6722 = vmul.f32 %v6708, %v6721
        %v6723 = vadd.f32 %v6722, 0.014752088
        %v6724 = vmul.f32 %v6708, %v6723
        %v6725 = vadd.f32 %v6724, 0.112945676
        %v6726 = vmul.f32 %v6708, %v6725
        %v6727 = vadd.f32 %v6726, 0.4994258
        %v6728 = vmul.f32 %v6708, %v6727
        %v6729 = vadd.f32 %v6728, 1.0
        %v6730 = vrcp.pop %v6729
        %v6731 = vmul.f32 %v6729, %v6730
        %v6732 = vsub.f32 1.0, %v6731
        %v6733 = vmul.f32 %v6730, %v6732
        %v6734 = vadd.f32 %v6730, %v6733
        %vm6735 = vweird.f32 %v6729
        %vm6736 = vweird.f32 %v6730
        %vm6737 = vmor %vm6735, %vm6736
        %v6738 = vsel %vm6737, %v6730, %v6734
        %v6739 = vand.u32 2147483647, %v6729
        %vm6740 = vcmp.eq.f32.partialorder %v6739, 8.507059e+37
        %v6741 = vand.u32 %v6729, 2147483648
        %v6742 = vor.u32 1.1754944e-38, %v6741
        %v6743 = vsel %vm6740, %v6742, %v6738
        %v6744 = vmul.f32 %v6719, %v6743
        %v6745 = vmin.f32 %v6744, 1.0
        %v6746 = vmax.f32 %v6745, -1.0
        %v6747 = vmul.f32 %v5006, %v5006
        %v6748 = vmin.f32 16.0, %v6747
        %v6749 = vmul.f32 %v6748, 2.1237322e-06
        %v6750 = vadd.f32 %v6749, 0.00028619796
        %v6751 = vmul.f32 %v6748, %v6750
        %v6752 = vadd.f32 %v6751, 0.0036580483
        %v6753 = vmul.f32 %v6748, %v6752
        %v6754 = vadd.f32 %v6753, 0.05243302
        %v6755 = vmul.f32 %v6748, %v6754
        %v6756 = vadd.f32 %v6755, 0.18741608
        %v6757 = vmul.f32 %v6748, %v6756
        %v6758 = vadd.f32 %v6757, 1.1283791
        %v6759 = vmul.f32 %v5006, %v6758
        %v6760 = vmul.f32 %v6748, 3.8918573e-05
        %v6761 = vadd.f32 %v6760, 0.001143296
        %v6762 = vmul.f32 %v6748, %v6761
        %v6763 = vadd.f32 %v6762, 0.014752088
        %v6764 = vmul.f32 %v6748, %v6763
        %v6765 = vadd.f32 %v6764, 0.112945676
        %v6766 = vmul.f32 %v6748, %v6765
        %v6767 = vadd.f32 %v6766, 0.4994258
        %v6768 = vmul.f32 %v6748, %v6767
        %v6769 = vadd.f32 %v6768, 1.0
        %v6770 = vrcp.pop %v6769
        %v6771 = vmul.f32 %v6769, %v6770
        %v6772 = vsub.f32 1.0, %v6771
        %v6773 = vmul.f32 %v6770, %v6772
        %v6774 = vadd.f32 %v6770, %v6773
        %vm6775 = vweird.f32 %v6769
        %vm6776 = vweird.f32 %v6770
        %vm6777 = vmor %vm6775, %vm6776
        %v6778 = vsel %vm6777, %v6770, %v6774
        %v6779 = vand.u32 2147483647, %v6769
        %vm6780 = vcmp.eq.f32.partialorder %v6779, 8.507059e+37
        %v6781 = vand.u32 %v6769, 2147483648
        %v6782 = vor.u32 1.1754944e-38, %v6781
        %v6783 = vsel %vm6780, %v6782, %v6778
        %v6784 = vmul.f32 %v6759, %v6783
        %v6785 = vmin.f32 %v6784, 1.0
        %v6786 = vmax.f32 %v6785, -1.0
        %v6787 = vmul.f32 %v5007, %v5007
        %v6788 = vmin.f32 16.0, %v6787
        %v6789 = vmul.f32 %v6788, 2.1237322e-06
        %v6790 = vadd.f32 %v6789, 0.00028619796
        %v6791 = vmul.f32 %v6788, %v6790
        %v6792 = vadd.f32 %v6791, 0.0036580483
        %v6793 = vmul.f32 %v6788, %v6792
        %v6794 = vadd.f32 %v6793, 0.05243302
        %v6795 = vmul.f32 %v6788, %v6794
        %v6796 = vadd.f32 %v6795, 0.18741608
        %v6797 = vmul.f32 %v6788, %v6796
        %v6798 = vadd.f32 %v6797, 1.1283791
        %v6799 = vmul.f32 %v5007, %v6798
        %v6800 = vmul.f32 %v6788, 3.8918573e-05
        %v6801 = vadd.f32 %v6800, 0.001143296
        %v6802 = vmul.f32 %v6788, %v6801
        %v6803 = vadd.f32 %v6802, 0.014752088
        %v6804 = vmul.f32 %v6788, %v6803
        %v6805 = vadd.f32 %v6804, 0.112945676
        %v6806 = vmul.f32 %v6788, %v6805
        %v6807 = vadd.f32 %v6806, 0.4994258
        %v6808 = vmul.f32 %v6788, %v6807
        %v6809 = vadd.f32 %v6808, 1.0
        %v6810 = vrcp.pop %v6809
        %v6811 = vmul.f32 %v6809, %v6810
        %v6812 = vsub.f32 1.0, %v6811
        %v6813 = vmul.f32 %v6810, %v6812
        %v6814 = vadd.f32 %v6810, %v6813
        %vm6815 = vweird.f32 %v6809
        %vm6816 = vweird.f32 %v6810
        %vm6817 = vmor %vm6815, %vm6816
        %v6818 = vsel %vm6817, %v6810, %v6814
        %v6819 = vand.u32 2147483647, %v6809
        %vm6820 = vcmp.eq.f32.partialorder %v6819, 8.507059e+37
        %v6821 = vand.u32 %v6809, 2147483648
        %v6822 = vor.u32 1.1754944e-38, %v6821
        %v6823 = vsel %vm6820, %v6822, %v6818
        %v6824 = vmul.f32 %v6799, %v6823
        %v6825 = vmin.f32 %v6824, 1.0
        %v6826 = vmax.f32 %v6825, -1.0
        %v6827 = vmul.f32 %v5008, %v5008
        %v6828 = vmin.f32 16.0, %v6827
        %v6829 = vmul.f32 %v6828, 2.1237322e-06
        %v6830 = vadd.f32 %v6829, 0.00028619796
        %v6831 = vmul.f32 %v6828, %v6830
        %v6832 = vadd.f32 %v6831, 0.0036580483
        %v6833 = vmul.f32 %v6828, %v6832
        %v6834 = vadd.f32 %v6833, 0.05243302
        %v6835 = vmul.f32 %v6828, %v6834
        %v6836 = vadd.f32 %v6835, 0.18741608
        %v6837 = vmul.f32 %v6828, %v6836
        %v6838 = vadd.f32 %v6837, 1.1283791
        %v6839 = vmul.f32 %v5008, %v6838
        %v6840 = vmul.f32 %v6828, 3.8918573e-05
        %v6841 = vadd.f32 %v6840, 0.001143296
        %v6842 = vmul.f32 %v6828, %v6841
        %v6843 = vadd.f32 %v6842, 0.014752088
        %v6844 = vmul.f32 %v6828, %v6843
        %v6845 = vadd.f32 %v6844, 0.112945676
        %v6846 = vmul.f32 %v6828, %v6845
        %v6847 = vadd.f32 %v6846, 0.4994258
        %v6848 = vmul.f32 %v6828, %v6847
        %v6849 = vadd.f32 %v6848, 1.0
        %v6850 = vrcp.pop %v6849
        %v6851 = vmul.f32 %v6849, %v6850
        %v6852 = vsub.f32 1.0, %v6851
        %v6853 = vmul.f32 %v6850, %v6852
        %v6854 = vadd.f32 %v6850, %v6853
        %vm6855 = vweird.f32 %v6849
        %vm6856 = vweird.f32 %v6850
        %vm6857 = vmor %vm6855, %vm6856
        %v6858 = vsel %vm6857, %v6850, %v6854
        %v6859 = vand.u32 2147483647, %v6849
        %vm6860 = vcmp.eq.f32.partialorder %v6859, 8.507059e+37
        %v6861 = vand.u32 %v6849, 2147483648
        %v6862 = vor.u32 1.1754944e-38, %v6861
        %v6863 = vsel %vm6860, %v6862, %v6858
        %v6864 = vmul.f32 %v6839, %v6863
        %v6865 = vmin.f32 %v6864, 1.0
        %v6866 = vmax.f32 %v6865, -1.0
        %v6867 = vmul.f32 %v5009, %v5009
        %v6868 = vmin.f32 16.0, %v6867
        %v6869 = vmul.f32 %v6868, 2.1237322e-06
        %v6870 = vadd.f32 %v6869, 0.00028619796
        %v6871 = vmul.f32 %v6868, %v6870
        %v6872 = vadd.f32 %v6871, 0.0036580483
        %v6873 = vmul.f32 %v6868, %v6872
        %v6874 = vadd.f32 %v6873, 0.05243302
        %v6875 = vmul.f32 %v6868, %v6874
        %v6876 = vadd.f32 %v6875, 0.18741608
        %v6877 = vmul.f32 %v6868, %v6876
        %v6878 = vadd.f32 %v6877, 1.1283791
        %v6879 = vmul.f32 %v5009, %v6878
        %v6880 = vmul.f32 %v6868, 3.8918573e-05
        %v6881 = vadd.f32 %v6880, 0.001143296
        %v6882 = vmul.f32 %v6868, %v6881
        %v6883 = vadd.f32 %v6882, 0.014752088
        %v6884 = vmul.f32 %v6868, %v6883
        %v6885 = vadd.f32 %v6884, 0.112945676
        %v6886 = vmul.f32 %v6868, %v6885
        %v6887 = vadd.f32 %v6886, 0.4994258
        %v6888 = vmul.f32 %v6868, %v6887
        %v6889 = vadd.f32 %v6888, 1.0
        %v6890 = vrcp.pop %v6889
        %v6891 = vmul.f32 %v6889, %v6890
        %v6892 = vsub.f32 1.0, %v6891
        %v6893 = vmul.f32 %v6890, %v6892
        %v6894 = vadd.f32 %v6890, %v6893
        %vm6895 = vweird.f32 %v6889
        %vm6896 = vweird.f32 %v6890
        %vm6897 = vmor %vm6895, %vm6896
        %v6898 = vsel %vm6897, %v6890, %v6894
        %v6899 = vand.u32 2147483647, %v6889
        %vm6900 = vcmp.eq.f32.partialorder %v6899, 8.507059e+37
        %v6901 = vand.u32 %v6889, 2147483648
        %v6902 = vor.u32 1.1754944e-38, %v6901
        %v6903 = vsel %vm6900, %v6902, %v6898
        %v6904 = vmul.f32 %v6879, %v6903
        %v6905 = vmin.f32 %v6904, 1.0
        %v6906 = vmax.f32 %v6905, -1.0
        %v6907 = vmul.f32 %v5010, %v5010
        %v6908 = vmin.f32 16.0, %v6907
        %v6909 = vmul.f32 %v6908, 2.1237322e-06
        %v6910 = vadd.f32 %v6909, 0.00028619796
        %v6911 = vmul.f32 %v6908, %v6910
        %v6912 = vadd.f32 %v6911, 0.0036580483
        %v6913 = vmul.f32 %v6908, %v6912
        %v6914 = vadd.f32 %v6913, 0.05243302
        %v6915 = vmul.f32 %v6908, %v6914
        %v6916 = vadd.f32 %v6915, 0.18741608
        %v6917 = vmul.f32 %v6908, %v6916
        %v6918 = vadd.f32 %v6917, 1.1283791
        %v6919 = vmul.f32 %v5010, %v6918
        %v6920 = vmul.f32 %v6908, 3.8918573e-05
        %v6921 = vadd.f32 %v6920, 0.001143296
        %v6922 = vmul.f32 %v6908, %v6921
        %v6923 = vadd.f32 %v6922, 0.014752088
        %v6924 = vmul.f32 %v6908, %v6923
        %v6925 = vadd.f32 %v6924, 0.112945676
        %v6926 = vmul.f32 %v6908, %v6925
        %v6927 = vadd.f32 %v6926, 0.4994258
        %v6928 = vmul.f32 %v6908, %v6927
        %v6929 = vadd.f32 %v6928, 1.0
        %v6930 = vrcp.pop %v6929
        %v6931 = vmul.f32 %v6929, %v6930
        %v6932 = vsub.f32 1.0, %v6931
        %v6933 = vmul.f32 %v6930, %v6932
        %v6934 = vadd.f32 %v6930, %v6933
        %vm6935 = vweird.f32 %v6929
        %vm6936 = vweird.f32 %v6930
        %vm6937 = vmor %vm6935, %vm6936
        %v6938 = vsel %vm6937, %v6930, %v6934
        %v6939 = vand.u32 2147483647, %v6929
        %vm6940 = vcmp.eq.f32.partialorder %v6939, 8.507059e+37
        %v6941 = vand.u32 %v6929, 2147483648
        %v6942 = vor.u32 1.1754944e-38, %v6941
        %v6943 = vsel %vm6940, %v6942, %v6938
        %v6944 = vmul.f32 %v6919, %v6943
        %v6945 = vmin.f32 %v6944, 1.0
        %v6946 = vmax.f32 %v6945, -1.0
        %v6947 = vmul.f32 %v5011, %v5011
        %v6948 = vmin.f32 16.0, %v6947
        %v6949 = vmul.f32 %v6948, 2.1237322e-06
        %v6950 = vadd.f32 %v6949, 0.00028619796
        %v6951 = vmul.f32 %v6948, %v6950
        %v6952 = vadd.f32 %v6951, 0.0036580483
        %v6953 = vmul.f32 %v6948, %v6952
        %v6954 = vadd.f32 %v6953, 0.05243302
        %v6955 = vmul.f32 %v6948, %v6954
        %v6956 = vadd.f32 %v6955, 0.18741608
        %v6957 = vmul.f32 %v6948, %v6956
        %v6958 = vadd.f32 %v6957, 1.1283791
        %v6959 = vmul.f32 %v5011, %v6958
        %v6960 = vmul.f32 %v6948, 3.8918573e-05
        %v6961 = vadd.f32 %v6960, 0.001143296
        %v6962 = vmul.f32 %v6948, %v6961
        %v6963 = vadd.f32 %v6962, 0.014752088
        %v6964 = vmul.f32 %v6948, %v6963
        %v6965 = vadd.f32 %v6964, 0.112945676
        %v6966 = vmul.f32 %v6948, %v6965
        %v6967 = vadd.f32 %v6966, 0.4994258
        %v6968 = vmul.f32 %v6948, %v6967
        %v6969 = vadd.f32 %v6968, 1.0
        %v6970 = vrcp.pop %v6969
        %v6971 = vmul.f32 %v6969, %v6970
        %v6972 = vsub.f32 1.0, %v6971
        %v6973 = vmul.f32 %v6970, %v6972
        %v6974 = vadd.f32 %v6970, %v6973
        %vm6975 = vweird.f32 %v6969
        %vm6976 = vweird.f32 %v6970
        %vm6977 = vmor %vm6975, %vm6976
        %v6978 = vsel %vm6977, %v6970, %v6974
        %v6979 = vand.u32 2147483647, %v6969
        %vm6980 = vcmp.eq.f32.partialorder %v6979, 8.507059e+37
        %v6981 = vand.u32 %v6969, 2147483648
        %v6982 = vor.u32 1.1754944e-38, %v6981
        %v6983 = vsel %vm6980, %v6982, %v6978
        %v6984 = vmul.f32 %v6959, %v6983
        %v6985 = vmin.f32 %v6984, 1.0
        %v6986 = vmax.f32 %v6985, -1.0
        %v6987 = vmul.f32 %v5012, %v5012
        %v6988 = vmin.f32 16.0, %v6987
        %v6989 = vmul.f32 %v6988, 2.1237322e-06
        %v6990 = vadd.f32 %v6989, 0.00028619796
        %v6991 = vmul.f32 %v6988, %v6990
        %v6992 = vadd.f32 %v6991, 0.0036580483
        %v6993 = vmul.f32 %v6988, %v6992
        %v6994 = vadd.f32 %v6993, 0.05243302
        %v6995 = vmul.f32 %v6988, %v6994
        %v6996 = vadd.f32 %v6995, 0.18741608
        %v6997 = vmul.f32 %v6988, %v6996
        %v6998 = vadd.f32 %v6997, 1.1283791
        %v6999 = vmul.f32 %v5012, %v6998
        %v7000 = vmul.f32 %v6988, 3.8918573e-05
        %v7001 = vadd.f32 %v7000, 0.001143296
        %v7002 = vmul.f32 %v6988, %v7001
        %v7003 = vadd.f32 %v7002, 0.014752088
        %v7004 = vmul.f32 %v6988, %v7003
        %v7005 = vadd.f32 %v7004, 0.112945676
        %v7006 = vmul.f32 %v6988, %v7005
        %v7007 = vadd.f32 %v7006, 0.4994258
        %v7008 = vmul.f32 %v6988, %v7007
        %v7009 = vadd.f32 %v7008, 1.0
        %v7010 = vrcp.pop %v7009
        %v7011 = vmul.f32 %v7009, %v7010
        %v7012 = vsub.f32 1.0, %v7011
        %v7013 = vmul.f32 %v7010, %v7012
        %v7014 = vadd.f32 %v7010, %v7013
        %vm7015 = vweird.f32 %v7009
        %vm7016 = vweird.f32 %v7010
        %vm7017 = vmor %vm7015, %vm7016
        %v7018 = vsel %vm7017, %v7010, %v7014
        %v7019 = vand.u32 2147483647, %v7009
        %vm7020 = vcmp.eq.f32.partialorder %v7019, 8.507059e+37
        %v7021 = vand.u32 %v7009, 2147483648
        %v7022 = vor.u32 1.1754944e-38, %v7021
        %v7023 = vsel %vm7020, %v7022, %v7018
        %v7024 = vmul.f32 %v6999, %v7023
        %v7025 = vmin.f32 %v7024, 1.0
        %v7026 = vmax.f32 %v7025, -1.0
        %v7027 = vmul.f32 %v5013, %v5013
        %v7028 = vmin.f32 16.0, %v7027
        %v7029 = vmul.f32 %v7028, 2.1237322e-06
        %v7030 = vadd.f32 %v7029, 0.00028619796
        %v7031 = vmul.f32 %v7028, %v7030
        %v7032 = vadd.f32 %v7031, 0.0036580483
        %v7033 = vmul.f32 %v7028, %v7032
        %v7034 = vadd.f32 %v7033, 0.05243302
        %v7035 = vmul.f32 %v7028, %v7034
        %v7036 = vadd.f32 %v7035, 0.18741608
        %v7037 = vmul.f32 %v7028, %v7036
        %v7038 = vadd.f32 %v7037, 1.1283791
        %v7039 = vmul.f32 %v5013, %v7038
        %v7040 = vmul.f32 %v7028, 3.8918573e-05
        %v7041 = vadd.f32 %v7040, 0.001143296
        %v7042 = vmul.f32 %v7028, %v7041
        %v7043 = vadd.f32 %v7042, 0.014752088
        %v7044 = vmul.f32 %v7028, %v7043
        %v7045 = vadd.f32 %v7044, 0.112945676
        %v7046 = vmul.f32 %v7028, %v7045
        %v7047 = vadd.f32 %v7046, 0.4994258
        %v7048 = vmul.f32 %v7028, %v7047
        %v7049 = vadd.f32 %v7048, 1.0
        %v7050 = vrcp.pop %v7049
        %v7051 = vmul.f32 %v7049, %v7050
        %v7052 = vsub.f32 1.0, %v7051
        %v7053 = vmul.f32 %v7050, %v7052
        %v7054 = vadd.f32 %v7050, %v7053
        %vm7055 = vweird.f32 %v7049
        %vm7056 = vweird.f32 %v7050
        %vm7057 = vmor %vm7055, %vm7056
        %v7058 = vsel %vm7057, %v7050, %v7054
        %v7059 = vand.u32 2147483647, %v7049
        %vm7060 = vcmp.eq.f32.partialorder %v7059, 8.507059e+37
        %v7061 = vand.u32 %v7049, 2147483648
        %v7062 = vor.u32 1.1754944e-38, %v7061
        %v7063 = vsel %vm7060, %v7062, %v7058
        %v7064 = vmul.f32 %v7039, %v7063
        %v7065 = vmin.f32 %v7064, 1.0
        %v7066 = vmax.f32 %v7065, -1.0
        %v7067 = vmul.f32 %v5014, %v5014
        %v7068 = vmin.f32 16.0, %v7067
        %v7069 = vmul.f32 %v7068, 2.1237322e-06
        %v7070 = vadd.f32 %v7069, 0.00028619796
        %v7071 = vmul.f32 %v7068, %v7070
        %v7072 = vadd.f32 %v7071, 0.0036580483
        %v7073 = vmul.f32 %v7068, %v7072
        %v7074 = vadd.f32 %v7073, 0.05243302
        %v7075 = vmul.f32 %v7068, %v7074
        %v7076 = vadd.f32 %v7075, 0.18741608
        %v7077 = vmul.f32 %v7068, %v7076
        %v7078 = vadd.f32 %v7077, 1.1283791
        %v7079 = vmul.f32 %v5014, %v7078
        %v7080 = vmul.f32 %v7068, 3.8918573e-05
        %v7081 = vadd.f32 %v7080, 0.001143296
        %v7082 = vmul.f32 %v7068, %v7081
        %v7083 = vadd.f32 %v7082, 0.014752088
        %v7084 = vmul.f32 %v7068, %v7083
        %v7085 = vadd.f32 %v7084, 0.112945676
        %v7086 = vmul.f32 %v7068, %v7085
        %v7087 = vadd.f32 %v7086, 0.4994258
        %v7088 = vmul.f32 %v7068, %v7087
        %v7089 = vadd.f32 %v7088, 1.0
        %v7090 = vrcp.pop %v7089
        %v7091 = vmul.f32 %v7089, %v7090
        %v7092 = vsub.f32 1.0, %v7091
        %v7093 = vmul.f32 %v7090, %v7092
        %v7094 = vadd.f32 %v7090, %v7093
        %vm7095 = vweird.f32 %v7089
        %vm7096 = vweird.f32 %v7090
        %vm7097 = vmor %vm7095, %vm7096
        %v7098 = vsel %vm7097, %v7090, %v7094
        %v7099 = vand.u32 2147483647, %v7089
        %vm7100 = vcmp.eq.f32.partialorder %v7099, 8.507059e+37
        %v7101 = vand.u32 %v7089, 2147483648
        %v7102 = vor.u32 1.1754944e-38, %v7101
        %v7103 = vsel %vm7100, %v7102, %v7098
        %v7104 = vmul.f32 %v7079, %v7103
        %v7105 = vmin.f32 %v7104, 1.0
        %v7106 = vmax.f32 %v7105, -1.0
        %v7107 = vmul.f32 %v5015, %v5015
        %v7108 = vmin.f32 16.0, %v7107
        %v7109 = vmul.f32 %v7108, 2.1237322e-06
        %v7110 = vadd.f32 %v7109, 0.00028619796
        %v7111 = vmul.f32 %v7108, %v7110
        %v7112 = vadd.f32 %v7111, 0.0036580483
        %v7113 = vmul.f32 %v7108, %v7112
        %v7114 = vadd.f32 %v7113, 0.05243302
        %v7115 = vmul.f32 %v7108, %v7114
        %v7116 = vadd.f32 %v7115, 0.18741608
        %v7117 = vmul.f32 %v7108, %v7116
        %v7118 = vadd.f32 %v7117, 1.1283791
        %v7119 = vmul.f32 %v5015, %v7118
        %v7120 = vmul.f32 %v7108, 3.8918573e-05
        %v7121 = vadd.f32 %v7120, 0.001143296
        %v7122 = vmul.f32 %v7108, %v7121
        %v7123 = vadd.f32 %v7122, 0.014752088
        %v7124 = vmul.f32 %v7108, %v7123
        %v7125 = vadd.f32 %v7124, 0.112945676
        %v7126 = vmul.f32 %v7108, %v7125
        %v7127 = vadd.f32 %v7126, 0.4994258
        %v7128 = vmul.f32 %v7108, %v7127
        %v7129 = vadd.f32 %v7128, 1.0
        %v7130 = vrcp.pop %v7129
        %v7131 = vmul.f32 %v7129, %v7130
        %v7132 = vsub.f32 1.0, %v7131
        %v7133 = vmul.f32 %v7130, %v7132
        %v7134 = vadd.f32 %v7130, %v7133
        %vm7135 = vweird.f32 %v7129
        %vm7136 = vweird.f32 %v7130
        %vm7137 = vmor %vm7135, %vm7136
        %v7138 = vsel %vm7137, %v7130, %v7134
        %v7139 = vand.u32 2147483647, %v7129
        %vm7140 = vcmp.eq.f32.partialorder %v7139, 8.507059e+37
        %v7141 = vand.u32 %v7129, 2147483648
        %v7142 = vor.u32 1.1754944e-38, %v7141
        %v7143 = vsel %vm7140, %v7142, %v7138
        %v7144 = vmul.f32 %v7119, %v7143
        %v7145 = vmin.f32 %v7144, 1.0
        %v7146 = vmax.f32 %v7145, -1.0
        %v7147 = vmul.f32 %v5016, %v5016
        %v7148 = vmin.f32 16.0, %v7147
        %v7149 = vmul.f32 %v7148, 2.1237322e-06
        %v7150 = vadd.f32 %v7149, 0.00028619796
        %v7151 = vmul.f32 %v7148, %v7150
        %v7152 = vadd.f32 %v7151, 0.0036580483
        %v7153 = vmul.f32 %v7148, %v7152
        %v7154 = vadd.f32 %v7153, 0.05243302
        %v7155 = vmul.f32 %v7148, %v7154
        %v7156 = vadd.f32 %v7155, 0.18741608
        %v7157 = vmul.f32 %v7148, %v7156
        %v7158 = vadd.f32 %v7157, 1.1283791
        %v7159 = vmul.f32 %v5016, %v7158
        %v7160 = vmul.f32 %v7148, 3.8918573e-05
        %v7161 = vadd.f32 %v7160, 0.001143296
        %v7162 = vmul.f32 %v7148, %v7161
        %v7163 = vadd.f32 %v7162, 0.014752088
        %v7164 = vmul.f32 %v7148, %v7163
        %v7165 = vadd.f32 %v7164, 0.112945676
        %v7166 = vmul.f32 %v7148, %v7165
        %v7167 = vadd.f32 %v7166, 0.4994258
        %v7168 = vmul.f32 %v7148, %v7167
        %v7169 = vadd.f32 %v7168, 1.0
        %v7170 = vrcp.pop %v7169
        %v7171 = vmul.f32 %v7169, %v7170
        %v7172 = vsub.f32 1.0, %v7171
        %v7173 = vmul.f32 %v7170, %v7172
        %v7174 = vadd.f32 %v7170, %v7173
        %vm7175 = vweird.f32 %v7169
        %vm7176 = vweird.f32 %v7170
        %vm7177 = vmor %vm7175, %vm7176
        %v7178 = vsel %vm7177, %v7170, %v7174
        %v7179 = vand.u32 2147483647, %v7169
        %vm7180 = vcmp.eq.f32.partialorder %v7179, 8.507059e+37
        %v7181 = vand.u32 %v7169, 2147483648
        %v7182 = vor.u32 1.1754944e-38, %v7181
        %v7183 = vsel %vm7180, %v7182, %v7178
        %v7184 = vmul.f32 %v7159, %v7183
        %v7185 = vmin.f32 %v7184, 1.0
        %v7186 = vmax.f32 %v7185, -1.0
        %v7187 = vmul.f32 %v5017, %v5017
        %v7188 = vmin.f32 16.0, %v7187
        %v7189 = vmul.f32 %v7188, 2.1237322e-06
        %v7190 = vadd.f32 %v7189, 0.00028619796
        %v7191 = vmul.f32 %v7188, %v7190
        %v7192 = vadd.f32 %v7191, 0.0036580483
        %v7193 = vmul.f32 %v7188, %v7192
        %v7194 = vadd.f32 %v7193, 0.05243302
        %v7195 = vmul.f32 %v7188, %v7194
        %v7196 = vadd.f32 %v7195, 0.18741608
        %v7197 = vmul.f32 %v7188, %v7196
        %v7198 = vadd.f32 %v7197, 1.1283791
        %v7199 = vmul.f32 %v5017, %v7198
        %v7200 = vmul.f32 %v7188, 3.8918573e-05
        %v7201 = vadd.f32 %v7200, 0.001143296
        %v7202 = vmul.f32 %v7188, %v7201
        %v7203 = vadd.f32 %v7202, 0.014752088
        %v7204 = vmul.f32 %v7188, %v7203
        %v7205 = vadd.f32 %v7204, 0.112945676
        %v7206 = vmul.f32 %v7188, %v7205
        %v7207 = vadd.f32 %v7206, 0.4994258
        %v7208 = vmul.f32 %v7188, %v7207
        %v7209 = vadd.f32 %v7208, 1.0
        %v7210 = vrcp.pop %v7209
        %v7211 = vmul.f32 %v7209, %v7210
        %v7212 = vsub.f32 1.0, %v7211
        %v7213 = vmul.f32 %v7210, %v7212
        %v7214 = vadd.f32 %v7210, %v7213
        %vm7215 = vweird.f32 %v7209
        %vm7216 = vweird.f32 %v7210
        %vm7217 = vmor %vm7215, %vm7216
        %v7218 = vsel %vm7217, %v7210, %v7214
        %v7219 = vand.u32 2147483647, %v7209
        %vm7220 = vcmp.eq.f32.partialorder %v7219, 8.507059e+37
        %v7221 = vand.u32 %v7209, 2147483648
        %v7222 = vor.u32 1.1754944e-38, %v7221
        %v7223 = vsel %vm7220, %v7222, %v7218
        %v7224 = vmul.f32 %v7199, %v7223
        %v7225 = vmin.f32 %v7224, 1.0
        %v7226 = vmax.f32 %v7225, -1.0
        %v7227 = vmul.f32 %v5018, %v5018
        %v7228 = vmin.f32 16.0, %v7227
        %v7229 = vmul.f32 %v7228, 2.1237322e-06
        %v7230 = vadd.f32 %v7229, 0.00028619796
        %v7231 = vmul.f32 %v7228, %v7230
        %v7232 = vadd.f32 %v7231, 0.0036580483
        %v7233 = vmul.f32 %v7228, %v7232
        %v7234 = vadd.f32 %v7233, 0.05243302
        %v7235 = vmul.f32 %v7228, %v7234
        %v7236 = vadd.f32 %v7235, 0.18741608
        %v7237 = vmul.f32 %v7228, %v7236
        %v7238 = vadd.f32 %v7237, 1.1283791
        %v7239 = vmul.f32 %v5018, %v7238
        %v7240 = vmul.f32 %v7228, 3.8918573e-05
        %v7241 = vadd.f32 %v7240, 0.001143296
        %v7242 = vmul.f32 %v7228, %v7241
        %v7243 = vadd.f32 %v7242, 0.014752088
        %v7244 = vmul.f32 %v7228, %v7243
        %v7245 = vadd.f32 %v7244, 0.112945676
        %v7246 = vmul.f32 %v7228, %v7245
        %v7247 = vadd.f32 %v7246, 0.4994258
        %v7248 = vmul.f32 %v7228, %v7247
        %v7249 = vadd.f32 %v7248, 1.0
        %v7250 = vrcp.pop %v7249
        %v7251 = vmul.f32 %v7249, %v7250
        %v7252 = vsub.f32 1.0, %v7251
        %v7253 = vmul.f32 %v7250, %v7252
        %v7254 = vadd.f32 %v7250, %v7253
        %vm7255 = vweird.f32 %v7249
        %vm7256 = vweird.f32 %v7250
        %vm7257 = vmor %vm7255, %vm7256
        %v7258 = vsel %vm7257, %v7250, %v7254
        %v7259 = vand.u32 2147483647, %v7249
        %vm7260 = vcmp.eq.f32.partialorder %v7259, 8.507059e+37
        %v7261 = vand.u32 %v7249, 2147483648
        %v7262 = vor.u32 1.1754944e-38, %v7261
        %v7263 = vsel %vm7260, %v7262, %v7258
        %v7264 = vmul.f32 %v7239, %v7263
        %v7265 = vmin.f32 %v7264, 1.0
        %v7266 = vmax.f32 %v7265, -1.0
        %v7267 = vmul.f32 %v5019, %v5019
        %v7268 = vmin.f32 16.0, %v7267
        %v7269 = vmul.f32 %v7268, 2.1237322e-06
        %v7270 = vadd.f32 %v7269, 0.00028619796
        %v7271 = vmul.f32 %v7268, %v7270
        %v7272 = vadd.f32 %v7271, 0.0036580483
        %v7273 = vmul.f32 %v7268, %v7272
        %v7274 = vadd.f32 %v7273, 0.05243302
        %v7275 = vmul.f32 %v7268, %v7274
        %v7276 = vadd.f32 %v7275, 0.18741608
        %v7277 = vmul.f32 %v7268, %v7276
        %v7278 = vadd.f32 %v7277, 1.1283791
        %v7279 = vmul.f32 %v5019, %v7278
        %v7280 = vmul.f32 %v7268, 3.8918573e-05
        %v7281 = vadd.f32 %v7280, 0.001143296
        %v7282 = vmul.f32 %v7268, %v7281
        %v7283 = vadd.f32 %v7282, 0.014752088
        %v7284 = vmul.f32 %v7268, %v7283
        %v7285 = vadd.f32 %v7284, 0.112945676
        %v7286 = vmul.f32 %v7268, %v7285
        %v7287 = vadd.f32 %v7286, 0.4994258
        %v7288 = vmul.f32 %v7268, %v7287
        %v7289 = vadd.f32 %v7288, 1.0
        %v7290 = vrcp.pop %v7289
        %v7291 = vmul.f32 %v7289, %v7290
        %v7292 = vsub.f32 1.0, %v7291
        %v7293 = vmul.f32 %v7290, %v7292
        %v7294 = vadd.f32 %v7290, %v7293
        %vm7295 = vweird.f32 %v7289
        %vm7296 = vweird.f32 %v7290
        %vm7297 = vmor %vm7295, %vm7296
        %v7298 = vsel %vm7297, %v7290, %v7294
        %v7299 = vand.u32 2147483647, %v7289
        %vm7300 = vcmp.eq.f32.partialorder %v7299, 8.507059e+37
        %v7301 = vand.u32 %v7289, 2147483648
        %v7302 = vor.u32 1.1754944e-38, %v7301
        %v7303 = vsel %vm7300, %v7302, %v7298
        %v7304 = vmul.f32 %v7279, %v7303
        %v7305 = vmin.f32 %v7304, 1.0
        %v7306 = vmax.f32 %v7305, -1.0
        %v7307 = vmul.f32 %v5020, %v5020
        %v7308 = vmin.f32 16.0, %v7307
        %v7309 = vmul.f32 %v7308, 2.1237322e-06
        %v7310 = vadd.f32 %v7309, 0.00028619796
        %v7311 = vmul.f32 %v7308, %v7310
        %v7312 = vadd.f32 %v7311, 0.0036580483
        %v7313 = vmul.f32 %v7308, %v7312
        %v7314 = vadd.f32 %v7313, 0.05243302
        %v7315 = vmul.f32 %v7308, %v7314
        %v7316 = vadd.f32 %v7315, 0.18741608
        %v7317 = vmul.f32 %v7308, %v7316
        %v7318 = vadd.f32 %v7317, 1.1283791
        %v7319 = vmul.f32 %v5020, %v7318
        %v7320 = vmul.f32 %v7308, 3.8918573e-05
        %v7321 = vadd.f32 %v7320, 0.001143296
        %v7322 = vmul.f32 %v7308, %v7321
        %v7323 = vadd.f32 %v7322, 0.014752088
        %v7324 = vmul.f32 %v7308, %v7323
        %v7325 = vadd.f32 %v7324, 0.112945676
        %v7326 = vmul.f32 %v7308, %v7325
        %v7327 = vadd.f32 %v7326, 0.4994258
        %v7328 = vmul.f32 %v7308, %v7327
        %v7329 = vadd.f32 %v7328, 1.0
        %v7330 = vrcp.pop %v7329
        %v7331 = vmul.f32 %v7329, %v7330
        %v7332 = vsub.f32 1.0, %v7331
        %v7333 = vmul.f32 %v7330, %v7332
        %v7334 = vadd.f32 %v7330, %v7333
        %vm7335 = vweird.f32 %v7329
        %vm7336 = vweird.f32 %v7330
        %vm7337 = vmor %vm7335, %vm7336
        %v7338 = vsel %vm7337, %v7330, %v7334
        %v7339 = vand.u32 2147483647, %v7329
        %vm7340 = vcmp.eq.f32.partialorder %v7339, 8.507059e+37
        %v7341 = vand.u32 %v7329, 2147483648
        %v7342 = vor.u32 1.1754944e-38, %v7341
        %v7343 = vsel %vm7340, %v7342, %v7338
        %v7344 = vmul.f32 %v7319, %v7343
        %v7345 = vmin.f32 %v7344, 1.0
        %v7346 = vmax.f32 %v7345, -1.0
        %v7347 = vmul.f32 %v5021, %v5021
        %v7348 = vmin.f32 16.0, %v7347
        %v7349 = vmul.f32 %v7348, 2.1237322e-06
        %v7350 = vadd.f32 %v7349, 0.00028619796
        %v7351 = vmul.f32 %v7348, %v7350
        %v7352 = vadd.f32 %v7351, 0.0036580483
        %v7353 = vmul.f32 %v7348, %v7352
        %v7354 = vadd.f32 %v7353, 0.05243302
        %v7355 = vmul.f32 %v7348, %v7354
        %v7356 = vadd.f32 %v7355, 0.18741608
        %v7357 = vmul.f32 %v7348, %v7356
        %v7358 = vadd.f32 %v7357, 1.1283791
        %v7359 = vmul.f32 %v5021, %v7358
        %v7360 = vmul.f32 %v7348, 3.8918573e-05
        %v7361 = vadd.f32 %v7360, 0.001143296
        %v7362 = vmul.f32 %v7348, %v7361
        %v7363 = vadd.f32 %v7362, 0.014752088
        %v7364 = vmul.f32 %v7348, %v7363
        %v7365 = vadd.f32 %v7364, 0.112945676
        %v7366 = vmul.f32 %v7348, %v7365
        %v7367 = vadd.f32 %v7366, 0.4994258
        %v7368 = vmul.f32 %v7348, %v7367
        %v7369 = vadd.f32 %v7368, 1.0
        %v7370 = vrcp.pop %v7369
        %v7371 = vmul.f32 %v7369, %v7370
        %v7372 = vsub.f32 1.0, %v7371
        %v7373 = vmul.f32 %v7370, %v7372
        %v7374 = vadd.f32 %v7370, %v7373
        %vm7375 = vweird.f32 %v7369
        %vm7376 = vweird.f32 %v7370
        %vm7377 = vmor %vm7375, %vm7376
        %v7378 = vsel %vm7377, %v7370, %v7374
        %v7379 = vand.u32 2147483647, %v7369
        %vm7380 = vcmp.eq.f32.partialorder %v7379, 8.507059e+37
        %v7381 = vand.u32 %v7369, 2147483648
        %v7382 = vor.u32 1.1754944e-38, %v7381
        %v7383 = vsel %vm7380, %v7382, %v7378
        %v7384 = vmul.f32 %v7359, %v7383
        %v7385 = vmin.f32 %v7384, 1.0
        %v7386 = vmax.f32 %v7385, -1.0
        %v7387 = vmul.f32 %v5022, %v5022
        %v7388 = vmin.f32 16.0, %v7387
        %v7389 = vmul.f32 %v7388, 2.1237322e-06
        %v7390 = vadd.f32 %v7389, 0.00028619796
        %v7391 = vmul.f32 %v7388, %v7390
        %v7392 = vadd.f32 %v7391, 0.0036580483
        %v7393 = vmul.f32 %v7388, %v7392
        %v7394 = vadd.f32 %v7393, 0.05243302
        %v7395 = vmul.f32 %v7388, %v7394
        %v7396 = vadd.f32 %v7395, 0.18741608
        %v7397 = vmul.f32 %v7388, %v7396
        %v7398 = vadd.f32 %v7397, 1.1283791
        %v7399 = vmul.f32 %v5022, %v7398
        %v7400 = vmul.f32 %v7388, 3.8918573e-05
        %v7401 = vadd.f32 %v7400, 0.001143296
        %v7402 = vmul.f32 %v7388, %v7401
        %v7403 = vadd.f32 %v7402, 0.014752088
        %v7404 = vmul.f32 %v7388, %v7403
        %v7405 = vadd.f32 %v7404, 0.112945676
        %v7406 = vmul.f32 %v7388, %v7405
        %v7407 = vadd.f32 %v7406, 0.4994258
        %v7408 = vmul.f32 %v7388, %v7407
        %v7409 = vadd.f32 %v7408, 1.0
        %v7410 = vrcp.pop %v7409
        %v7411 = vmul.f32 %v7409, %v7410
        %v7412 = vsub.f32 1.0, %v7411
        %v7413 = vmul.f32 %v7410, %v7412
        %v7414 = vadd.f32 %v7410, %v7413
        %vm7415 = vweird.f32 %v7409
        %vm7416 = vweird.f32 %v7410
        %vm7417 = vmor %vm7415, %vm7416
        %v7418 = vsel %vm7417, %v7410, %v7414
        %v7419 = vand.u32 2147483647, %v7409
        %vm7420 = vcmp.eq.f32.partialorder %v7419, 8.507059e+37
        %v7421 = vand.u32 %v7409, 2147483648
        %v7422 = vor.u32 1.1754944e-38, %v7421
        %v7423 = vsel %vm7420, %v7422, %v7418
        %v7424 = vmul.f32 %v7399, %v7423
        %v7425 = vmin.f32 %v7424, 1.0
        %v7426 = vmax.f32 %v7425, -1.0
        %v7427 = vmul.f32 %v5023, %v5023
        %v7428 = vmin.f32 16.0, %v7427
        %v7429 = vmul.f32 %v7428, 2.1237322e-06
        %v7430 = vadd.f32 %v7429, 0.00028619796
        %v7431 = vmul.f32 %v7428, %v7430
        %v7432 = vadd.f32 %v7431, 0.0036580483
        %v7433 = vmul.f32 %v7428, %v7432
        %v7434 = vadd.f32 %v7433, 0.05243302
        %v7435 = vmul.f32 %v7428, %v7434
        %v7436 = vadd.f32 %v7435, 0.18741608
        %v7437 = vmul.f32 %v7428, %v7436
        %v7438 = vadd.f32 %v7437, 1.1283791
        %v7439 = vmul.f32 %v5023, %v7438
        %v7440 = vmul.f32 %v7428, 3.8918573e-05
        %v7441 = vadd.f32 %v7440, 0.001143296
        %v7442 = vmul.f32 %v7428, %v7441
        %v7443 = vadd.f32 %v7442, 0.014752088
        %v7444 = vmul.f32 %v7428, %v7443
        %v7445 = vadd.f32 %v7444, 0.112945676
        %v7446 = vmul.f32 %v7428, %v7445
        %v7447 = vadd.f32 %v7446, 0.4994258
        %v7448 = vmul.f32 %v7428, %v7447
        %v7449 = vadd.f32 %v7448, 1.0
        %v7450 = vrcp.pop %v7449
        %v7451 = vmul.f32 %v7449, %v7450
        %v7452 = vsub.f32 1.0, %v7451
        %v7453 = vmul.f32 %v7450, %v7452
        %v7454 = vadd.f32 %v7450, %v7453
        %vm7455 = vweird.f32 %v7449
        %vm7456 = vweird.f32 %v7450
        %vm7457 = vmor %vm7455, %vm7456
        %v7458 = vsel %vm7457, %v7450, %v7454
        %v7459 = vand.u32 2147483647, %v7449
        %vm7460 = vcmp.eq.f32.partialorder %v7459, 8.507059e+37
        %v7461 = vand.u32 %v7449, 2147483648
        %v7462 = vor.u32 1.1754944e-38, %v7461
        %v7463 = vsel %vm7460, %v7462, %v7458
        %v7464 = vmul.f32 %v7439, %v7463
        %v7465 = vmin.f32 %v7464, 1.0
        %v7466 = vmax.f32 %v7465, -1.0
        %v7467 = vmul.f32 %v5024, %v5024
        %v7468 = vmin.f32 16.0, %v7467
        %v7469 = vmul.f32 %v7468, 2.1237322e-06
        %v7470 = vadd.f32 %v7469, 0.00028619796
        %v7471 = vmul.f32 %v7468, %v7470
        %v7472 = vadd.f32 %v7471, 0.0036580483
        %v7473 = vmul.f32 %v7468, %v7472
        %v7474 = vadd.f32 %v7473, 0.05243302
        %v7475 = vmul.f32 %v7468, %v7474
        %v7476 = vadd.f32 %v7475, 0.18741608
        %v7477 = vmul.f32 %v7468, %v7476
        %v7478 = vadd.f32 %v7477, 1.1283791
        %v7479 = vmul.f32 %v5024, %v7478
        %v7480 = vmul.f32 %v7468, 3.8918573e-05
        %v7481 = vadd.f32 %v7480, 0.001143296
        %v7482 = vmul.f32 %v7468, %v7481
        %v7483 = vadd.f32 %v7482, 0.014752088
        %v7484 = vmul.f32 %v7468, %v7483
        %v7485 = vadd.f32 %v7484, 0.112945676
        %v7486 = vmul.f32 %v7468, %v7485
        %v7487 = vadd.f32 %v7486, 0.4994258
        %v7488 = vmul.f32 %v7468, %v7487
        %v7489 = vadd.f32 %v7488, 1.0
        %v7490 = vrcp.pop %v7489
        %v7491 = vmul.f32 %v7489, %v7490
        %v7492 = vsub.f32 1.0, %v7491
        %v7493 = vmul.f32 %v7490, %v7492
        %v7494 = vadd.f32 %v7490, %v7493
        %vm7495 = vweird.f32 %v7489
        %vm7496 = vweird.f32 %v7490
        %vm7497 = vmor %vm7495, %vm7496
        %v7498 = vsel %vm7497, %v7490, %v7494
        %v7499 = vand.u32 2147483647, %v7489
        %vm7500 = vcmp.eq.f32.partialorder %v7499, 8.507059e+37
        %v7501 = vand.u32 %v7489, 2147483648
        %v7502 = vor.u32 1.1754944e-38, %v7501
        %v7503 = vsel %vm7500, %v7502, %v7498
        %v7504 = vmul.f32 %v7479, %v7503
        %v7505 = vmin.f32 %v7504, 1.0
        %v7506 = vmax.f32 %v7505, -1.0
        %v7507 = vmul.f32 %v5025, %v5025
        %v7508 = vmin.f32 16.0, %v7507
        %v7509 = vmul.f32 %v7508, 2.1237322e-06
        %v7510 = vadd.f32 %v7509, 0.00028619796
        %v7511 = vmul.f32 %v7508, %v7510
        %v7512 = vadd.f32 %v7511, 0.0036580483
        %v7513 = vmul.f32 %v7508, %v7512
        %v7514 = vadd.f32 %v7513, 0.05243302
        %v7515 = vmul.f32 %v7508, %v7514
        %v7516 = vadd.f32 %v7515, 0.18741608
        %v7517 = vmul.f32 %v7508, %v7516
        %v7518 = vadd.f32 %v7517, 1.1283791
        %v7519 = vmul.f32 %v5025, %v7518
        %v7520 = vmul.f32 %v7508, 3.8918573e-05
        %v7521 = vadd.f32 %v7520, 0.001143296
        %v7522 = vmul.f32 %v7508, %v7521
        %v7523 = vadd.f32 %v7522, 0.014752088
        %v7524 = vmul.f32 %v7508, %v7523
        %v7525 = vadd.f32 %v7524, 0.112945676
        %v7526 = vmul.f32 %v7508, %v7525
        %v7527 = vadd.f32 %v7526, 0.4994258
        %v7528 = vmul.f32 %v7508, %v7527
        %v7529 = vadd.f32 %v7528, 1.0
        %v7530 = vrcp.pop %v7529
        %v7531 = vmul.f32 %v7529, %v7530
        %v7532 = vsub.f32 1.0, %v7531
        %v7533 = vmul.f32 %v7530, %v7532
        %v7534 = vadd.f32 %v7530, %v7533
        %vm7535 = vweird.f32 %v7529
        %vm7536 = vweird.f32 %v7530
        %vm7537 = vmor %vm7535, %vm7536
        %v7538 = vsel %vm7537, %v7530, %v7534
        %v7539 = vand.u32 2147483647, %v7529
        %vm7540 = vcmp.eq.f32.partialorder %v7539, 8.507059e+37
        %v7541 = vand.u32 %v7529, 2147483648
        %v7542 = vor.u32 1.1754944e-38, %v7541
        %v7543 = vsel %vm7540, %v7542, %v7538
        %v7544 = vmul.f32 %v7519, %v7543
        %v7545 = vmin.f32 %v7544, 1.0
        %v7546 = vmax.f32 %v7545, -1.0
        %v7547 = vmul.f32 %v5026, %v5026
        %v7548 = vmin.f32 16.0, %v7547
        %v7549 = vmul.f32 %v7548, 2.1237322e-06
        %v7550 = vadd.f32 %v7549, 0.00028619796
        %v7551 = vmul.f32 %v7548, %v7550
        %v7552 = vadd.f32 %v7551, 0.0036580483
        %v7553 = vmul.f32 %v7548, %v7552
        %v7554 = vadd.f32 %v7553, 0.05243302
        %v7555 = vmul.f32 %v7548, %v7554
        %v7556 = vadd.f32 %v7555, 0.18741608
        %v7557 = vmul.f32 %v7548, %v7556
        %v7558 = vadd.f32 %v7557, 1.1283791
        %v7559 = vmul.f32 %v5026, %v7558
        %v7560 = vmul.f32 %v7548, 3.8918573e-05
        %v7561 = vadd.f32 %v7560, 0.001143296
        %v7562 = vmul.f32 %v7548, %v7561
        %v7563 = vadd.f32 %v7562, 0.014752088
        %v7564 = vmul.f32 %v7548, %v7563
        %v7565 = vadd.f32 %v7564, 0.112945676
        %v7566 = vmul.f32 %v7548, %v7565
        %v7567 = vadd.f32 %v7566, 0.4994258
        %v7568 = vmul.f32 %v7548, %v7567
        %v7569 = vadd.f32 %v7568, 1.0
        %v7570 = vrcp.pop %v7569
        %v7571 = vmul.f32 %v7569, %v7570
        %v7572 = vsub.f32 1.0, %v7571
        %v7573 = vmul.f32 %v7570, %v7572
        %v7574 = vadd.f32 %v7570, %v7573
        %vm7575 = vweird.f32 %v7569
        %vm7576 = vweird.f32 %v7570
        %vm7577 = vmor %vm7575, %vm7576
        %v7578 = vsel %vm7577, %v7570, %v7574
        %v7579 = vand.u32 2147483647, %v7569
        %vm7580 = vcmp.eq.f32.partialorder %v7579, 8.507059e+37
        %v7581 = vand.u32 %v7569, 2147483648
        %v7582 = vor.u32 1.1754944e-38, %v7581
        %v7583 = vsel %vm7580, %v7582, %v7578
        %v7584 = vmul.f32 %v7559, %v7583
        %v7585 = vmin.f32 %v7584, 1.0
        %v7586 = vmax.f32 %v7585, -1.0
        %v7587 = vadd.f32 %v5066, 1.0
        %v7588 = vadd.f32 %v5106, 1.0
        %v7589 = vadd.f32 %v5146, 1.0
        %v7590 = vadd.f32 %v5186, 1.0
        %v7591 = vadd.f32 %v5226, 1.0
        %v7592 = vadd.f32 %v5266, 1.0
        %v7593 = vadd.f32 %v5306, 1.0
        %v7594 = vadd.f32 %v5346, 1.0
        %v7595 = vadd.f32 %v5386, 1.0
        %v7596 = vadd.f32 %v5426, 1.0
        %v7597 = vadd.f32 %v5466, 1.0
        %v7598 = vadd.f32 %v5506, 1.0
        %v7599 = vadd.f32 %v5546, 1.0
        %v7600 = vadd.f32 %v5586, 1.0
        %v7601 = vadd.f32 %v5626, 1.0
        %v7602 = vadd.f32 %v5666, 1.0
        %v7603 = vadd.f32 %v5706, 1.0
        %v7604 = vadd.f32 %v5746, 1.0
        %v7605 = vadd.f32 %v5786, 1.0
        %v7606 = vadd.f32 %v5826, 1.0
        %v7607 = vadd.f32 %v5866, 1.0
        %v7608 = vadd.f32 %v5906, 1.0
        %v7609 = vadd.f32 %v5946, 1.0
        %v7610 = vadd.f32 %v5986, 1.0
        %v7611 = vadd.f32 %v6026, 1.0
        %v7612 = vadd.f32 %v6066, 1.0
        %v7613 = vadd.f32 %v6106, 1.0
        %v7614 = vadd.f32 %v6146, 1.0
        %v7615 = vadd.f32 %v6186, 1.0
        %v7616 = vadd.f32 %v6226, 1.0
        %v7617 = vadd.f32 %v6266, 1.0
        %v7618 = vadd.f32 %v6306, 1.0
        %v7619 = vadd.f32 %v6346, 1.0
        %v7620 = vadd.f32 %v6386, 1.0
        %v7621 = vadd.f32 %v6426, 1.0
        %v7622 = vadd.f32 %v6466, 1.0
        %v7623 = vadd.f32 %v6506, 1.0
        %v7624 = vadd.f32 %v6546, 1.0
        %v7625 = vadd.f32 %v6586, 1.0
        %v7626 = vadd.f32 %v6626, 1.0
        %v7627 = vadd.f32 %v6666, 1.0
        %v7628 = vadd.f32 %v6706, 1.0
        %v7629 = vadd.f32 %v6746, 1.0
        %v7630 = vadd.f32 %v6786, 1.0
        %v7631 = vadd.f32 %v6826, 1.0
        %v7632 = vadd.f32 %v6866, 1.0
        %v7633 = vadd.f32 %v6906, 1.0
        %v7634 = vadd.f32 %v6946, 1.0
        %v7635 = vadd.f32 %v6986, 1.0
        %v7636 = vadd.f32 %v7026, 1.0
        %v7637 = vadd.f32 %v7066, 1.0
        %v7638 = vadd.f32 %v7106, 1.0
        %v7639 = vadd.f32 %v7146, 1.0
        %v7640 = vadd.f32 %v7186, 1.0
        %v7641 = vadd.f32 %v7226, 1.0
        %v7642 = vadd.f32 %v7266, 1.0
        %v7643 = vadd.f32 %v7306, 1.0
        %v7644 = vadd.f32 %v7346, 1.0
        %v7645 = vadd.f32 %v7386, 1.0
        %v7646 = vadd.f32 %v7426, 1.0
        %v7647 = vadd.f32 %v7466, 1.0
        %v7648 = vadd.f32 %v7506, 1.0
        %v7649 = vadd.f32 %v7546, 1.0
        %v7650 = vadd.f32 %v7586, 1.0
        %v7651 = vmul.f32 %v4899, %v7587
        %v7652 = vmul.f32 %v4900, %v7588
        %v7653 = vmul.f32 %v4901, %v7589
        %v7654 = vmul.f32 %v4902, %v7590
        %v7655 = vmul.f32 %v4903, %v7591
        %v7656 = vmul.f32 %v4904, %v7592
        %v7657 = vmul.f32 %v4905, %v7593
        %v7658 = vmul.f32 %v4906, %v7594
        %v7659 = vmul.f32 %v4907, %v7595
        %v7660 = vmul.f32 %v4908, %v7596
        %v7661 = vmul.f32 %v4909, %v7597
        %v7662 = vmul.f32 %v4910, %v7598
        %v7663 = vmul.f32 %v4911, %v7599
        %v7664 = vmul.f32 %v4912, %v7600
        %v7665 = vmul.f32 %v4913, %v7601
        %v7666 = vmul.f32 %v4914, %v7602
        %v7667 = vmul.f32 %v4915, %v7603
        %v7668 = vmul.f32 %v4916, %v7604
        %v7669 = vmul.f32 %v4917, %v7605
        %v7670 = vmul.f32 %v4918, %v7606
        %v7671 = vmul.f32 %v4919, %v7607
        %v7672 = vmul.f32 %v4920, %v7608
        %v7673 = vmul.f32 %v4921, %v7609
        %v7674 = vmul.f32 %v4922, %v7610
        %v7675 = vmul.f32 %v4923, %v7611
        %v7676 = vmul.f32 %v4924, %v7612
        %v7677 = vmul.f32 %v4925, %v7613
        %v7678 = vmul.f32 %v4926, %v7614
        %v7679 = vmul.f32 %v4927, %v7615
        %v7680 = vmul.f32 %v4928, %v7616
        %v7681 = vmul.f32 %v4929, %v7617
        %v7682 = vmul.f32 %v4930, %v7618
        %v7683 = vmul.f32 %v4931, %v7619
        %v7684 = vmul.f32 %v4932, %v7620
        %v7685 = vmul.f32 %v4933, %v7621
        %v7686 = vmul.f32 %v4934, %v7622
        %v7687 = vmul.f32 %v4935, %v7623
        %v7688 = vmul.f32 %v4936, %v7624
        %v7689 = vmul.f32 %v4937, %v7625
        %v7690 = vmul.f32 %v4938, %v7626
        %v7691 = vmul.f32 %v4939, %v7627
        %v7692 = vmul.f32 %v4940, %v7628
        %v7693 = vmul.f32 %v4941, %v7629
        %v7694 = vmul.f32 %v4942, %v7630
        %v7695 = vmul.f32 %v4943, %v7631
        %v7696 = vmul.f32 %v4944, %v7632
        %v7697 = vmul.f32 %v4945, %v7633
        %v7698 = vmul.f32 %v4946, %v7634
        %v7699 = vmul.f32 %v4947, %v7635
        %v7700 = vmul.f32 %v4948, %v7636
        %v7701 = vmul.f32 %v4949, %v7637
        %v7702 = vmul.f32 %v4950, %v7638
        %v7703 = vmul.f32 %v4951, %v7639
        %v7704 = vmul.f32 %v4952, %v7640
        %v7705 = vmul.f32 %v4953, %v7641
        %v7706 = vmul.f32 %v4954, %v7642
        %v7707 = vmul.f32 %v4955, %v7643
        %v7708 = vmul.f32 %v4956, %v7644
        %v7709 = vmul.f32 %v4957, %v7645
        %v7710 = vmul.f32 %v4958, %v7646
        %v7711 = vmul.f32 %v4959, %v7647
        %v7712 = vmul.f32 %v4960, %v7648
        %v7713 = vmul.f32 %v4961, %v7649
        %v7714 = vmul.f32 %v4962, %v7650
        %v7715 = vpack.c.bf16 %v7655, %v7651
        %v7716 = vpack.c.bf16 %v7656, %v7652
        %v7717 = vpack.c.bf16 %v7657, %v7653
        %v7718 = vpack.c.bf16 %v7658, %v7654
        %v7719 = vpack.c.bf16 %v7663, %v7659
        %v7720 = vpack.c.bf16 %v7664, %v7660
        %v7721 = vpack.c.bf16 %v7665, %v7661
        %v7722 = vpack.c.bf16 %v7666, %v7662
        %v7723 = vpack.c.bf16 %v7671, %v7667
        %v7724 = vpack.c.bf16 %v7672, %v7668
        %v7725 = vpack.c.bf16 %v7673, %v7669
        %v7726 = vpack.c.bf16 %v7674, %v7670
        %v7727 = vpack.c.bf16 %v7679, %v7675
        %v7728 = vpack.c.bf16 %v7680, %v7676
        %v7729 = vpack.c.bf16 %v7681, %v7677
        %v7730 = vpack.c.bf16 %v7682, %v7678
        %v7731 = vpack.c.bf16 %v7687, %v7683
        %v7732 = vpack.c.bf16 %v7688, %v7684
        %v7733 = vpack.c.bf16 %v7689, %v7685
        %v7734 = vpack.c.bf16 %v7690, %v7686
        %v7735 = vpack.c.bf16 %v7695, %v7691
        %v7736 = vpack.c.bf16 %v7696, %v7692
        %v7737 = vpack.c.bf16 %v7697, %v7693
        %v7738 = vpack.c.bf16 %v7698, %v7694
        %v7739 = vpack.c.bf16 %v7703, %v7699
        %v7740 = vpack.c.bf16 %v7704, %v7700
        %v7741 = vpack.c.bf16 %v7705, %v7701
        %v7742 = vpack.c.bf16 %v7706, %v7702
        %v7743 = vpack.c.bf16 %v7711, %v7707
        %v7744 = vpack.c.bf16 %v7712, %v7708
        %v7745 = vpack.c.bf16 %v7713, %v7709
        %v7746 = vpack.c.bf16 %v7714, %v7710
        %v7747 = vld [vmem:[%s489] sm:$0xf]
        %v7748 = vld [vmem:[%s489 + $0x4] sm:$0xf]
        %v7749 = vld [vmem:[%s489 + $0x8] sm:$0xf]
        %v7750 = vld [vmem:[%s489 + $0xc] sm:$0xf]
        %v7751 = vld [vmem:[%s489 + $0x10] sm:$0xf]
        %v7752 = vld [vmem:[%s489 + $0x14] sm:$0xf]
        %v7753 = vld [vmem:[%s489 + $0x18] sm:$0xf]
        %v7754 = vld [vmem:[%s489 + $0x1c] sm:$0xf]
        %v7755 = vld [vmem:[%s489 + $0x20] sm:$0xf]
        %v7756 = vld [vmem:[%s489 + $0x24] sm:$0xf]
        %v7757 = vld [vmem:[%s489 + $0x28] sm:$0xf]
        %v7758 = vld [vmem:[%s489 + $0x2c] sm:$0xf]
        %v7759 = vld [vmem:[%s489 + $0x30] sm:$0xf]
        %v7760 = vld [vmem:[%s489 + $0x34] sm:$0xf]
        %v7761 = vld [vmem:[%s489 + $0x38] sm:$0xf]
        %v7762 = vld [vmem:[%s489 + $0x3c] sm:$0xf]
        %v7763 = vld [vmem:[%s489 + $0x40] sm:$0xf]
        %v7764 = vld [vmem:[%s489 + $0x44] sm:$0xf]
        %v7765 = vld [vmem:[%s489 + $0x48] sm:$0xf]
        %v7766 = vld [vmem:[%s489 + $0x4c] sm:$0xf]
        %v7767 = vld [vmem:[%s489 + $0x50] sm:$0xf]
        %v7768 = vld [vmem:[%s489 + $0x54] sm:$0xf]
        %v7769 = vld [vmem:[%s489 + $0x58] sm:$0xf]
        %v7770 = vld [vmem:[%s489 + $0x5c] sm:$0xf]
        %v7771 = vld [vmem:[%s489 + $0x60] sm:$0xf]
        %v7772 = vld [vmem:[%s489 + $0x64] sm:$0xf]
        %v7773 = vld [vmem:[%s489 + $0x68] sm:$0xf]
        %v7774 = vld [vmem:[%s489 + $0x6c] sm:$0xf]
        %v7775 = vld [vmem:[%s489 + $0x70] sm:$0xf]
        %v7776 = vld [vmem:[%s489 + $0x74] sm:$0xf]
        %v7777 = vld [vmem:[%s489 + $0x78] sm:$0xf]
        %v7778 = vld [vmem:[%s489 + $0x7c] sm:$0xf]
        %v7779 = vld [vmem:[%s489 + $0x80] sm:$0xf]
        %v7780 = vld [vmem:[%s489 + $0x84] sm:$0xf]
        %v7781 = vld [vmem:[%s489 + $0x88] sm:$0xf]
        %v7782 = vld [vmem:[%s489 + $0x8c] sm:$0xf]
        %v7783 = vld [vmem:[%s489 + $0x90] sm:$0xf]
        %v7784 = vld [vmem:[%s489 + $0x94] sm:$0xf]
        %v7785 = vld [vmem:[%s489 + $0x98] sm:$0xf]
        %v7786 = vld [vmem:[%s489 + $0x9c] sm:$0xf]
        %v7787 = vld [vmem:[%s489 + $0xa0] sm:$0xf]
        %v7788 = vld [vmem:[%s489 + $0xa4] sm:$0xf]
        %v7789 = vld [vmem:[%s489 + $0xa8] sm:$0xf]
        %v7790 = vld [vmem:[%s489 + $0xac] sm:$0xf]
        %v7791 = vld [vmem:[%s489 + $0xb0] sm:$0xf]
        %v7792 = vld [vmem:[%s489 + $0xb4] sm:$0xf]
        %v7793 = vld [vmem:[%s489 + $0xb8] sm:$0xf]
        %v7794 = vld [vmem:[%s489 + $0xbc] sm:$0xf]
        %v7795 = vld [vmem:[%s489 + $0xc0] sm:$0xf]
        %v7796 = vld [vmem:[%s489 + $0xc4] sm:$0xf]
        %v7797 = vld [vmem:[%s489 + $0xc8] sm:$0xf]
        %v7798 = vld [vmem:[%s489 + $0xcc] sm:$0xf]
        %v7799 = vld [vmem:[%s489 + $0xd0] sm:$0xf]
        %v7800 = vld [vmem:[%s489 + $0xd4] sm:$0xf]
        %v7801 = vld [vmem:[%s489 + $0xd8] sm:$0xf]
        %v7802 = vld [vmem:[%s489 + $0xdc] sm:$0xf]
        %v7803 = vld [vmem:[%s489 + $0xe0] sm:$0xf]
        %v7804 = vld [vmem:[%s489 + $0xe4] sm:$0xf]
        %v7805 = vld [vmem:[%s489 + $0xe8] sm:$0xf]
        %v7806 = vld [vmem:[%s489 + $0xec] sm:$0xf]
        %v7807 = vld [vmem:[%s489 + $0xf0] sm:$0xf]
        %v7808 = vld [vmem:[%s489 + $0xf4] sm:$0xf]
        %v7809 = vld [vmem:[%s489 + $0xf8] sm:$0xf]
        %v7810 = vld [vmem:[%s489 + $0xfc] sm:$0xf]
        %v7811 = vperm.slane %v619, 0
        %v7876 = vunpack.c.l.b16 %v7747
        %v7877 = vunpack.c.l.b16 %v7748
        %v7878 = vunpack.c.l.b16 %v7749
        %v7879 = vunpack.c.l.b16 %v7750
        %v7880 = vunpack.c.l.b16 %v7751
        %v7881 = vunpack.c.l.b16 %v7752
        %v7882 = vunpack.c.l.b16 %v7753
        %v7883 = vunpack.c.l.b16 %v7754
        %v7884 = vunpack.c.l.b16 %v7755
        %v7885 = vunpack.c.l.b16 %v7756
        %v7886 = vunpack.c.l.b16 %v7757
        %v7887 = vunpack.c.l.b16 %v7758
        %v7888 = vunpack.c.l.b16 %v7759
        %v7889 = vunpack.c.l.b16 %v7760
        %v7890 = vunpack.c.l.b16 %v7761
        %v7891 = vunpack.c.l.b16 %v7762
        %v7892 = vunpack.c.l.b16 %v7763
        %v7893 = vunpack.c.l.b16 %v7764
        %v7894 = vunpack.c.l.b16 %v7765
        %v7895 = vunpack.c.l.b16 %v7766
        %v7896 = vunpack.c.l.b16 %v7767
        %v7897 = vunpack.c.l.b16 %v7768
        %v7898 = vunpack.c.l.b16 %v7769
        %v7899 = vunpack.c.l.b16 %v7770
        %v7900 = vunpack.c.l.b16 %v7771
        %v7901 = vunpack.c.l.b16 %v7772
        %v7902 = vunpack.c.l.b16 %v7773
        %v7903 = vunpack.c.l.b16 %v7774
        %v7904 = vunpack.c.l.b16 %v7775
        %v7905 = vunpack.c.l.b16 %v7776
        %v7906 = vunpack.c.l.b16 %v7777
        %v7907 = vunpack.c.l.b16 %v7778
        %v7908 = vunpack.c.l.b16 %v7779
        %v7909 = vunpack.c.l.b16 %v7780
        %v7910 = vunpack.c.l.b16 %v7781
        %v7911 = vunpack.c.l.b16 %v7782
        %v7912 = vunpack.c.l.b16 %v7783
        %v7913 = vunpack.c.l.b16 %v7784
        %v7914 = vunpack.c.l.b16 %v7785
        %v7915 = vunpack.c.l.b16 %v7786
        %v7916 = vunpack.c.l.b16 %v7787
        %v7917 = vunpack.c.l.b16 %v7788
        %v7918 = vunpack.c.l.b16 %v7789
        %v7919 = vunpack.c.l.b16 %v7790
        %v7920 = vunpack.c.l.b16 %v7791
        %v7921 = vunpack.c.l.b16 %v7792
        %v7922 = vunpack.c.l.b16 %v7793
        %v7923 = vunpack.c.l.b16 %v7794
        %v7924 = vunpack.c.l.b16 %v7795
        %v7925 = vunpack.c.l.b16 %v7796
        %v7926 = vunpack.c.l.b16 %v7797
        %v7927 = vunpack.c.l.b16 %v7798
        %v7928 = vunpack.c.l.b16 %v7799
        %v7929 = vunpack.c.l.b16 %v7800
        %v7930 = vunpack.c.l.b16 %v7801
        %v7931 = vunpack.c.l.b16 %v7802
        %v7932 = vunpack.c.l.b16 %v7803
        %v7933 = vunpack.c.l.b16 %v7804
        %v7934 = vunpack.c.l.b16 %v7805
        %v7935 = vunpack.c.l.b16 %v7806
        %v7936 = vunpack.c.l.b16 %v7807
        %v7937 = vunpack.c.l.b16 %v7808
        %v7938 = vunpack.c.l.b16 %v7809
        %v7939 = vunpack.c.l.b16 %v7810
        %v7940 = vpack.c.b16 %v7877, %v7876
        %v7941 = vpack.c.b16 %v7879, %v7878
        %v7942 = vpack.c.b16 %v7881, %v7880
        %v7943 = vpack.c.b16 %v7883, %v7882
        %v7944 = vpack.c.b16 %v7885, %v7884
        %v7945 = vpack.c.b16 %v7887, %v7886
        %v7946 = vpack.c.b16 %v7889, %v7888
        %v7947 = vpack.c.b16 %v7891, %v7890
        %v7948 = vpack.c.b16 %v7893, %v7892
        %v7949 = vpack.c.b16 %v7895, %v7894
        %v7950 = vpack.c.b16 %v7897, %v7896
        %v7951 = vpack.c.b16 %v7899, %v7898
        %v7952 = vpack.c.b16 %v7901, %v7900
        %v7953 = vpack.c.b16 %v7903, %v7902
        %v7954 = vpack.c.b16 %v7905, %v7904
        %v7955 = vpack.c.b16 %v7907, %v7906
        %v7956 = vpack.c.b16 %v7909, %v7908
        %v7957 = vpack.c.b16 %v7911, %v7910
        %v7958 = vpack.c.b16 %v7913, %v7912
        %v7959 = vpack.c.b16 %v7915, %v7914
        %v7960 = vpack.c.b16 %v7917, %v7916
        %v7961 = vpack.c.b16 %v7919, %v7918
        %v7962 = vpack.c.b16 %v7921, %v7920
        %v7963 = vpack.c.b16 %v7923, %v7922
        %v7964 = vpack.c.b16 %v7925, %v7924
        %v7965 = vpack.c.b16 %v7927, %v7926
        %v7966 = vpack.c.b16 %v7929, %v7928
        %v7967 = vpack.c.b16 %v7931, %v7930
        %v7968 = vpack.c.b16 %v7933, %v7932
        %v7969 = vpack.c.b16 %v7935, %v7934
        %v7970 = vpack.c.b16 %v7937, %v7936
        %v7971 = vpack.c.b16 %v7939, %v7938
        %8004 = vmatpush.bf16.msra.mxu0 %v7947
        %8005 = vmatpush.bf16.msra.mxu0 %v7946
        %8006 = vmatpush.bf16.msra.mxu0 %v7945
        %8007 = vmatpush.bf16.msra.mxu0 %v7944
        %8008 = vmatpush.bf16.msra.mxu0 %v7943
        %8009 = vmatpush.bf16.msra.mxu0 %v7942
        %8010 = vmatpush.bf16.msra.mxu0 %v7941
        %8011 = vmatpush.bf16.msra.mxu0 %v7940
        %8012 = vmatmul.bf16.gmra.mxu0 %v7715
        %v8013 = vpop.f32.mrf.mxu0
        %v8014 = vadd.f32 %v7811, %v8013
        %v8015 = vpop.f32.mrf.mxu0
        %v8016 = vadd.f32 %v7811, %v8015
        %8017 = vmatmul.bf16.gmra.mxu0 %v7719
        %v8018 = vpop.f32.mrf.mxu0
        %v8019 = vadd.f32 %v7811, %v8018
        %v8020 = vpop.f32.mrf.mxu0
        %v8021 = vadd.f32 %v7811, %v8020
        %8022 = vmatmul.bf16.gmra.mxu0 %v7723
        %v8023 = vpop.f32.mrf.mxu0
        %v8024 = vadd.f32 %v7811, %v8023
        %v8025 = vpop.f32.mrf.mxu0
        %v8026 = vadd.f32 %v7811, %v8025
        %8027 = vmatmul.bf16.gmra.mxu0 %v7727
        %v8028 = vpop.f32.mrf.mxu0
        %v8029 = vadd.f32 %v7811, %v8028
        %v8030 = vpop.f32.mrf.mxu0
        %v8031 = vadd.f32 %v7811, %v8030
        %8032 = vmatmul.bf16.gmra.mxu0 %v7731
        %v8033 = vpop.f32.mrf.mxu0
        %v8034 = vadd.f32 %v7811, %v8033
        %v8035 = vpop.f32.mrf.mxu0
        %v8036 = vadd.f32 %v7811, %v8035
        %8037 = vmatmul.bf16.gmra.mxu0 %v7735
        %v8038 = vpop.f32.mrf.mxu0
        %v8039 = vadd.f32 %v7811, %v8038
        %v8040 = vpop.f32.mrf.mxu0
        %v8041 = vadd.f32 %v7811, %v8040
        %8042 = vmatmul.bf16.gmra.mxu0 %v7739
        %v8043 = vpop.f32.mrf.mxu0
        %v8044 = vadd.f32 %v7811, %v8043
        %v8045 = vpop.f32.mrf.mxu0
        %v8046 = vadd.f32 %v7811, %v8045
        %8047 = vmatmul.bf16.gmra.mxu0 %v7743
        %v8048 = vpop.f32.mrf.mxu0
        %v8049 = vadd.f32 %v7811, %v8048
        %v8050 = vpop.f32.mrf.mxu0
        %v8051 = vadd.f32 %v7811, %v8050
        %8052 = vdwg.mxu0
        %8053 = vmatpush.bf16.msra.mxu0 %v7955
        %8054 = vmatpush.bf16.msra.mxu0 %v7954
        %8055 = vmatpush.bf16.msra.mxu0 %v7953
        %8056 = vmatpush.bf16.msra.mxu0 %v7952
        %8057 = vmatpush.bf16.msra.mxu0 %v7951
        %8058 = vmatpush.bf16.msra.mxu0 %v7950
        %8059 = vmatpush.bf16.msra.mxu0 %v7949
        %8060 = vmatpush.bf16.msra.mxu0 %v7948
        %8061 = vmatmul.bf16.gmra.mxu0 %v7716
        %v8062 = vpop.f32.mrf.mxu0
        %v8063 = vadd.f32 %v8014, %v8062
        %v8064 = vpop.f32.mrf.mxu0
        %v8065 = vadd.f32 %v8016, %v8064
        %8066 = vmatmul.bf16.gmra.mxu0 %v7720
        %v8067 = vpop.f32.mrf.mxu0
        %v8068 = vadd.f32 %v8019, %v8067
        %v8069 = vpop.f32.mrf.mxu0
        %v8070 = vadd.f32 %v8021, %v8069
        %8071 = vmatmul.bf16.gmra.mxu0 %v7724
        %v8072 = vpop.f32.mrf.mxu0
        %v8073 = vadd.f32 %v8024, %v8072
        %v8074 = vpop.f32.mrf.mxu0
        %v8075 = vadd.f32 %v8026, %v8074
        %8076 = vmatmul.bf16.gmra.mxu0 %v7728
        %v8077 = vpop.f32.mrf.mxu0
        %v8078 = vadd.f32 %v8029, %v8077
        %v8079 = vpop.f32.mrf.mxu0
        %v8080 = vadd.f32 %v8031, %v8079
        %8081 = vmatmul.bf16.gmra.mxu0 %v7732
        %v8082 = vpop.f32.mrf.mxu0
        %v8083 = vadd.f32 %v8034, %v8082
        %v8084 = vpop.f32.mrf.mxu0
        %v8085 = vadd.f32 %v8036, %v8084
        %8086 = vmatmul.bf16.gmra.mxu0 %v7736
        %v8087 = vpop.f32.mrf.mxu0
        %v8088 = vadd.f32 %v8039, %v8087
        %v8089 = vpop.f32.mrf.mxu0
        %v8090 = vadd.f32 %v8041, %v8089
        %8091 = vmatmul.bf16.gmra.mxu0 %v7740
        %v8092 = vpop.f32.mrf.mxu0
        %v8093 = vadd.f32 %v8044, %v8092
        %v8094 = vpop.f32.mrf.mxu0
        %v8095 = vadd.f32 %v8046, %v8094
        %8096 = vmatmul.bf16.gmra.mxu0 %v7744
        %v8097 = vpop.f32.mrf.mxu0
        %v8098 = vadd.f32 %v8049, %v8097
        %v8099 = vpop.f32.mrf.mxu0
        %v8100 = vadd.f32 %v8051, %v8099
        %8101 = vdwg.mxu0
        %8102 = vmatpush.bf16.msra.mxu0 %v7963
        %8103 = vmatpush.bf16.msra.mxu0 %v7962
        %8104 = vmatpush.bf16.msra.mxu0 %v7961
        %8105 = vmatpush.bf16.msra.mxu0 %v7960
        %8106 = vmatpush.bf16.msra.mxu0 %v7959
        %8107 = vmatpush.bf16.msra.mxu0 %v7958
        %8108 = vmatpush.bf16.msra.mxu0 %v7957
        %8109 = vmatpush.bf16.msra.mxu0 %v7956
        %8110 = vmatmul.bf16.gmra.mxu0 %v7717
        %v8111 = vpop.f32.mrf.mxu0
        %v8112 = vadd.f32 %v8063, %v8111
        %v8113 = vpop.f32.mrf.mxu0
        %v8114 = vadd.f32 %v8065, %v8113
        %8115 = vmatmul.bf16.gmra.mxu0 %v7721
        %v8116 = vpop.f32.mrf.mxu0
        %v8117 = vadd.f32 %v8068, %v8116
        %v8118 = vpop.f32.mrf.mxu0
        %v8119 = vadd.f32 %v8070, %v8118
        %8120 = vmatmul.bf16.gmra.mxu0 %v7725
        %v8121 = vpop.f32.mrf.mxu0
        %v8122 = vadd.f32 %v8073, %v8121
        %v8123 = vpop.f32.mrf.mxu0
        %v8124 = vadd.f32 %v8075, %v8123
        %8125 = vmatmul.bf16.gmra.mxu0 %v7729
        %v8126 = vpop.f32.mrf.mxu0
        %v8127 = vadd.f32 %v8078, %v8126
        %v8128 = vpop.f32.mrf.mxu0
        %v8129 = vadd.f32 %v8080, %v8128
        %8130 = vmatmul.bf16.gmra.mxu0 %v7733
        %v8131 = vpop.f32.mrf.mxu0
        %v8132 = vadd.f32 %v8083, %v8131
        %v8133 = vpop.f32.mrf.mxu0
        %v8134 = vadd.f32 %v8085, %v8133
        %8135 = vmatmul.bf16.gmra.mxu0 %v7737
        %v8136 = vpop.f32.mrf.mxu0
        %v8137 = vadd.f32 %v8088, %v8136
        %v8138 = vpop.f32.mrf.mxu0
        %v8139 = vadd.f32 %v8090, %v8138
        %8140 = vmatmul.bf16.gmra.mxu0 %v7741
        %v8141 = vpop.f32.mrf.mxu0
        %v8142 = vadd.f32 %v8093, %v8141
        %v8143 = vpop.f32.mrf.mxu0
        %v8144 = vadd.f32 %v8095, %v8143
        %8145 = vmatmul.bf16.gmra.mxu0 %v7745
        %v8146 = vpop.f32.mrf.mxu0
        %v8147 = vadd.f32 %v8098, %v8146
        %v8148 = vpop.f32.mrf.mxu0
        %v8149 = vadd.f32 %v8100, %v8148
        %8150 = vdwg.mxu0
        %8151 = vmatpush.bf16.msra.mxu0 %v7971
        %8152 = vmatpush.bf16.msra.mxu0 %v7970
        %8153 = vmatpush.bf16.msra.mxu0 %v7969
        %8154 = vmatpush.bf16.msra.mxu0 %v7968
        %8155 = vmatpush.bf16.msra.mxu0 %v7967
        %8156 = vmatpush.bf16.msra.mxu0 %v7966
        %8157 = vmatpush.bf16.msra.mxu0 %v7965
        %8158 = vmatpush.bf16.msra.mxu0 %v7964
        %8159 = vmatmul.bf16.gmra.mxu0 %v7718
        %v8160 = vpop.f32.mrf.mxu0
        %v8161 = vadd.f32 %v8112, %v8160
        %v8162 = vpop.f32.mrf.mxu0
        %v8163 = vadd.f32 %v8114, %v8162
        %8164 = vmatmul.bf16.gmra.mxu0 %v7722
        %v8165 = vpop.f32.mrf.mxu0
        %v8166 = vadd.f32 %v8117, %v8165
        %v8167 = vpop.f32.mrf.mxu0
        %v8168 = vadd.f32 %v8119, %v8167
        %8169 = vmatmul.bf16.gmra.mxu0 %v7726
        %v8170 = vpop.f32.mrf.mxu0
        %v8171 = vadd.f32 %v8122, %v8170
        %v8172 = vpop.f32.mrf.mxu0
        %v8173 = vadd.f32 %v8124, %v8172
        %8174 = vmatmul.bf16.gmra.mxu0 %v7730
        %v8175 = vpop.f32.mrf.mxu0
        %v8176 = vadd.f32 %v8127, %v8175
        %v8177 = vpop.f32.mrf.mxu0
        %v8178 = vadd.f32 %v8129, %v8177
        %8179 = vmatmul.bf16.gmra.mxu0 %v7734
        %v8180 = vpop.f32.mrf.mxu0
        %v8181 = vadd.f32 %v8132, %v8180
        %v8182 = vpop.f32.mrf.mxu0
        %v8183 = vadd.f32 %v8134, %v8182
        %8184 = vmatmul.bf16.gmra.mxu0 %v7738
        %v8185 = vpop.f32.mrf.mxu0
        %v8186 = vadd.f32 %v8137, %v8185
        %v8187 = vpop.f32.mrf.mxu0
        %v8188 = vadd.f32 %v8139, %v8187
        %8189 = vmatmul.bf16.gmra.mxu0 %v7742
        %v8190 = vpop.f32.mrf.mxu0
        %v8191 = vadd.f32 %v8142, %v8190
        %v8192 = vpop.f32.mrf.mxu0
        %v8193 = vadd.f32 %v8144, %v8192
        %8194 = vmatmul.bf16.gmra.mxu0 %v7746
        %v8195 = vpop.f32.mrf.mxu0
        %v8196 = vadd.f32 %v8147, %v8195
        %v8197 = vpop.f32.mrf.mxu0
        %v8198 = vadd.f32 %v8149, %v8197
        %8199 = vdwg.mxu0
        %v8200 = vadd.f32 %v4123, %v8161
        %v8201 = vadd.f32 %v4124, %v8163
        %v8202 = vadd.f32 %v4125, %v8166
        %v8203 = vadd.f32 %v4126, %v8168
        %v8204 = vadd.f32 %v4127, %v8171
        %v8205 = vadd.f32 %v4128, %v8173
        %v8206 = vadd.f32 %v4129, %v8176
        %v8207 = vadd.f32 %v4130, %v8178
        %v8208 = vadd.f32 %v4131, %v8181
        %v8209 = vadd.f32 %v4132, %v8183
        %v8210 = vadd.f32 %v4133, %v8186
        %v8211 = vadd.f32 %v4134, %v8188
        %v8212 = vadd.f32 %v4135, %v8191
        %v8213 = vadd.f32 %v4136, %v8193
        %v8214 = vadd.f32 %v4137, %v8196
        %v8215 = vadd.f32 %v4138, %v8198
        %p8216 = scmp.lt.s32.totalorder %s37, 1
        // Predicated region
        $region81: #{tpu_custom_call.1} parent=55 // pred_check
          %p8217 = pneg %p8216
        $region82: #{tpu_custom_call.1} parent=55 // pred_check_branch
          %8219 = sbr.rel (%p8217) target = $region84
        $region83: #{tpu_custom_call.1} parent=55 // pred_region
          %8220 = vst [vmem:[%s552] sm:$0xff] %v8200
          %8221 = vst [vmem:[%s552 + $0x8] sm:$0xff] %v8201
          %8222 = vst [vmem:[%s552 + $0x10] sm:$0xff] %v8202
          %8223 = vst [vmem:[%s552 + $0x18] sm:$0xff] %v8203
          %8224 = vst [vmem:[%s552 + $0x20] sm:$0xff] %v8204
          %8225 = vst [vmem:[%s552 + $0x28] sm:$0xff] %v8205
          %8226 = vst [vmem:[%s552 + $0x30] sm:$0xff] %v8206
          %8227 = vst [vmem:[%s552 + $0x38] sm:$0xff] %v8207
          %8228 = vst [vmem:[%s552 + $0x40] sm:$0xff] %v8208
          %8229 = vst [vmem:[%s552 + $0x48] sm:$0xff] %v8209
          %8230 = vst [vmem:[%s552 + $0x50] sm:$0xff] %v8210
          %8231 = vst [vmem:[%s552 + $0x58] sm:$0xff] %v8211
          %8232 = vst [vmem:[%s552 + $0x60] sm:$0xff] %v8212
          %8233 = vst [vmem:[%s552 + $0x68] sm:$0xff] %v8213
          %8234 = vst [vmem:[%s552 + $0x70] sm:$0xff] %v8214
          %8235 = vst [vmem:[%s552 + $0x78] sm:$0xff] %v8215
        $region84: #{tpu_custom_call.1} parent=55 // pred_fallthru
          _
        %p8236 = scmp.eq.s32.totalorder %s37, 1
        // Predicated region
        $region85: #{tpu_custom_call.1} parent=55 // pred_check
          %p8237 = pneg %p8236
        $region86: #{tpu_custom_call.1} parent=55 // pred_check_branch
          %8239 = sbr.rel (%p8237) target = $region88
        $region87: #{tpu_custom_call.1} parent=55 // pred_region
          %v8240 = vld [vmem:[%s7] sm:$0x1]
          %v8241 = vld [vmem:[%s8] sm:$0x1]
          %8242 = vadd.xlane.f32.xlu0 %v8200
          %v8243 = vpop.xlane.xlu0 %8242
          %8244 = vadd.xlane.f32.xlu0 %v8201
          %v8245 = vpop.xlane.xlu0 %8244
          %8246 = vadd.xlane.f32.xlu0 %v8202
          %v8247 = vpop.xlane.xlu0 %8246
          %8248 = vadd.xlane.f32.xlu0 %v8203
          %v8249 = vpop.xlane.xlu0 %8248
          %8250 = vadd.xlane.f32.xlu0 %v8204
          %v8251 = vpop.xlane.xlu0 %8250
          %8252 = vadd.xlane.f32.xlu0 %v8205
          %v8253 = vpop.xlane.xlu0 %8252
          %8254 = vadd.xlane.f32.xlu0 %v8206
          %v8255 = vpop.xlane.xlu0 %8254
          %8256 = vadd.xlane.f32.xlu0 %v8207
          %v8257 = vpop.xlane.xlu0 %8256
          %8258 = vadd.xlane.f32.xlu0 %v8208
          %v8259 = vpop.xlane.xlu0 %8258
          %8260 = vadd.xlane.f32.xlu0 %v8209
          %v8261 = vpop.xlane.xlu0 %8260
          %8262 = vadd.xlane.f32.xlu0 %v8210
          %v8263 = vpop.xlane.xlu0 %8262
          %8264 = vadd.xlane.f32.xlu0 %v8211
          %v8265 = vpop.xlane.xlu0 %8264
          %8266 = vadd.xlane.f32.xlu0 %v8212
          %v8267 = vpop.xlane.xlu0 %8266
          %8268 = vadd.xlane.f32.xlu0 %v8213
          %v8269 = vpop.xlane.xlu0 %8268
          %8270 = vadd.xlane.f32.xlu0 %v8214
          %v8271 = vpop.xlane.xlu0 %8270
          %8272 = vadd.xlane.f32.xlu0 %v8215
          %v8273 = vpop.xlane.xlu0 %8272
          %v8274 = vmul.f32 %v8243, %v658
          %v8275 = vmul.f32 %v8245, %v658
          %v8276 = vmul.f32 %v8247, %v658
          %v8277 = vmul.f32 %v8249, %v658
          %v8278 = vmul.f32 %v8251, %v658
          %v8279 = vmul.f32 %v8253, %v658
          %v8280 = vmul.f32 %v8255, %v658
          %v8281 = vmul.f32 %v8257, %v658
          %v8282 = vmul.f32 %v8259, %v658
          %v8283 = vmul.f32 %v8261, %v658
          %v8284 = vmul.f32 %v8263, %v658
          %v8285 = vmul.f32 %v8265, %v658
          %v8286 = vmul.f32 %v8267, %v658
          %v8287 = vmul.f32 %v8269, %v658
          %v8288 = vmul.f32 %v8271, %v658
          %v8289 = vmul.f32 %v8273, %v658
          %v8290 = vsub.f32 %v8200, %v8274
          %v8291 = vsub.f32 %v8201, %v8275
          %v8292 = vsub.f32 %v8202, %v8276
          %v8293 = vsub.f32 %v8203, %v8277
          %v8294 = vsub.f32 %v8204, %v8278
          %v8295 = vsub.f32 %v8205, %v8279
          %v8296 = vsub.f32 %v8206, %v8280
          %v8297 = vsub.f32 %v8207, %v8281
          %v8298 = vsub.f32 %v8208, %v8282
          %v8299 = vsub.f32 %v8209, %v8283
          %v8300 = vsub.f32 %v8210, %v8284
          %v8301 = vsub.f32 %v8211, %v8285
          %v8302 = vsub.f32 %v8212, %v8286
          %v8303 = vsub.f32 %v8213, %v8287
          %v8304 = vsub.f32 %v8214, %v8288
          %v8305 = vsub.f32 %v8215, %v8289
          %v8306 = vmul.f32 %v8290, %v8290
          %v8307 = vmul.f32 %v8291, %v8291
          %v8308 = vmul.f32 %v8292, %v8292
          %v8309 = vmul.f32 %v8293, %v8293
          %v8310 = vmul.f32 %v8294, %v8294
          %v8311 = vmul.f32 %v8295, %v8295
          %v8312 = vmul.f32 %v8296, %v8296
          %v8313 = vmul.f32 %v8297, %v8297
          %v8314 = vmul.f32 %v8298, %v8298
          %v8315 = vmul.f32 %v8299, %v8299
          %v8316 = vmul.f32 %v8300, %v8300
          %v8317 = vmul.f32 %v8301, %v8301
          %v8318 = vmul.f32 %v8302, %v8302
          %v8319 = vmul.f32 %v8303, %v8303
          %v8320 = vmul.f32 %v8304, %v8304
          %v8321 = vmul.f32 %v8305, %v8305
          %8322 = vadd.xlane.f32.xlu0 %v8306
          %v8323 = vpop.xlane.xlu0 %8322
          %8324 = vadd.xlane.f32.xlu0 %v8307
          %v8325 = vpop.xlane.xlu0 %8324
          %8326 = vadd.xlane.f32.xlu0 %v8308
          %v8327 = vpop.xlane.xlu0 %8326
          %8328 = vadd.xlane.f32.xlu0 %v8309
          %v8329 = vpop.xlane.xlu0 %8328
          %8330 = vadd.xlane.f32.xlu0 %v8310
          %v8331 = vpop.xlane.xlu0 %8330
          %8332 = vadd.xlane.f32.xlu0 %v8311
          %v8333 = vpop.xlane.xlu0 %8332
          %8334 = vadd.xlane.f32.xlu0 %v8312
          %v8335 = vpop.xlane.xlu0 %8334
          %8336 = vadd.xlane.f32.xlu0 %v8313
          %v8337 = vpop.xlane.xlu0 %8336
          %8338 = vadd.xlane.f32.xlu0 %v8314
          %v8339 = vpop.xlane.xlu0 %8338
          %8340 = vadd.xlane.f32.xlu0 %v8315
          %v8341 = vpop.xlane.xlu0 %8340
          %8342 = vadd.xlane.f32.xlu0 %v8316
          %v8343 = vpop.xlane.xlu0 %8342
          %8344 = vadd.xlane.f32.xlu0 %v8317
          %v8345 = vpop.xlane.xlu0 %8344
          %8346 = vadd.xlane.f32.xlu0 %v8318
          %v8347 = vpop.xlane.xlu0 %8346
          %8348 = vadd.xlane.f32.xlu0 %v8319
          %v8349 = vpop.xlane.xlu0 %8348
          %8350 = vadd.xlane.f32.xlu0 %v8320
          %v8351 = vpop.xlane.xlu0 %8350
          %8352 = vadd.xlane.f32.xlu0 %v8321
          %v8353 = vpop.xlane.xlu0 %8352
          %v8354 = vmul.f32 %v8323, %v658
          %v8355 = vmul.f32 %v8325, %v658
          %v8356 = vmul.f32 %v8327, %v658
          %v8357 = vmul.f32 %v8329, %v658
          %v8358 = vmul.f32 %v8331, %v658
          %v8359 = vmul.f32 %v8333, %v658
          %v8360 = vmul.f32 %v8335, %v658
          %v8361 = vmul.f32 %v8337, %v658
          %v8362 = vmul.f32 %v8339, %v658
          %v8363 = vmul.f32 %v8341, %v658
          %v8364 = vmul.f32 %v8343, %v658
          %v8365 = vmul.f32 %v8345, %v658
          %v8366 = vmul.f32 %v8347, %v658
          %v8367 = vmul.f32 %v8349, %v658
          %v8368 = vmul.f32 %v8351, %v658
          %v8369 = vmul.f32 %v8353, %v658
          %v8370 = vadd.f32 %v8354, 1e-05
          %v8371 = vadd.f32 %v8355, 1e-05
          %v8372 = vadd.f32 %v8356, 1e-05
          %v8373 = vadd.f32 %v8357, 1e-05
          %v8374 = vadd.f32 %v8358, 1e-05
          %v8375 = vadd.f32 %v8359, 1e-05
          %v8376 = vadd.f32 %v8360, 1e-05
          %v8377 = vadd.f32 %v8361, 1e-05
          %v8378 = vadd.f32 %v8362, 1e-05
          %v8379 = vadd.f32 %v8363, 1e-05
          %v8380 = vadd.f32 %v8364, 1e-05
          %v8381 = vadd.f32 %v8365, 1e-05
          %v8382 = vadd.f32 %v8366, 1e-05
          %v8383 = vadd.f32 %v8367, 1e-05
          %v8384 = vadd.f32 %v8368, 1e-05
          %v8385 = vadd.f32 %v8369, 1e-05
          %v8386 = vrsqrt.pop %v8370
          %v8387 = vmul.f32 %v8386, %v8370
          %v8388 = vmul.f32 %v8387, %v8386
          %v8389 = vmul.f32 0.5, %v8388
          %v8390 = vsub.f32 1.5, %v8389
          %v8391 = vmul.f32 %v8386, %v8390
          %vm8392 = vweird.f32 %v8370
          %vm8393 = vweird.f32 %v8386
          %vm8394 = vmor %vm8392, %vm8393
          %v8395 = vsel %vm8394, %v8386, %v8391
          %v8396 = vrsqrt.pop %v8371
          %v8397 = vmul.f32 %v8396, %v8371
          %v8398 = vmul.f32 %v8397, %v8396
          %v8399 = vmul.f32 0.5, %v8398
          %v8400 = vsub.f32 1.5, %v8399
          %v8401 = vmul.f32 %v8396, %v8400
          %vm8402 = vweird.f32 %v8371
          %vm8403 = vweird.f32 %v8396
          %vm8404 = vmor %vm8402, %vm8403
          %v8405 = vsel %vm8404, %v8396, %v8401
          %v8406 = vrsqrt.pop %v8372
          %v8407 = vmul.f32 %v8406, %v8372
          %v8408 = vmul.f32 %v8407, %v8406
          %v8409 = vmul.f32 0.5, %v8408
          %v8410 = vsub.f32 1.5, %v8409
          %v8411 = vmul.f32 %v8406, %v8410
          %vm8412 = vweird.f32 %v8372
          %vm8413 = vweird.f32 %v8406
          %vm8414 = vmor %vm8412, %vm8413
          %v8415 = vsel %vm8414, %v8406, %v8411
          %v8416 = vrsqrt.pop %v8373
          %v8417 = vmul.f32 %v8416, %v8373
          %v8418 = vmul.f32 %v8417, %v8416
          %v8419 = vmul.f32 0.5, %v8418
          %v8420 = vsub.f32 1.5, %v8419
          %v8421 = vmul.f32 %v8416, %v8420
          %vm8422 = vweird.f32 %v8373
          %vm8423 = vweird.f32 %v8416
          %vm8424 = vmor %vm8422, %vm8423
          %v8425 = vsel %vm8424, %v8416, %v8421
          %v8426 = vrsqrt.pop %v8374
          %v8427 = vmul.f32 %v8426, %v8374
          %v8428 = vmul.f32 %v8427, %v8426
          %v8429 = vmul.f32 0.5, %v8428
          %v8430 = vsub.f32 1.5, %v8429
          %v8431 = vmul.f32 %v8426, %v8430
          %vm8432 = vweird.f32 %v8374
          %vm8433 = vweird.f32 %v8426
          %vm8434 = vmor %vm8432, %vm8433
          %v8435 = vsel %vm8434, %v8426, %v8431
          %v8436 = vrsqrt.pop %v8375
          %v8437 = vmul.f32 %v8436, %v8375
          %v8438 = vmul.f32 %v8437, %v8436
          %v8439 = vmul.f32 0.5, %v8438
          %v8440 = vsub.f32 1.5, %v8439
          %v8441 = vmul.f32 %v8436, %v8440
          %vm8442 = vweird.f32 %v8375
          %vm8443 = vweird.f32 %v8436
          %vm8444 = vmor %vm8442, %vm8443
          %v8445 = vsel %vm8444, %v8436, %v8441
          %v8446 = vrsqrt.pop %v8376
          %v8447 = vmul.f32 %v8446, %v8376
          %v8448 = vmul.f32 %v8447, %v8446
          %v8449 = vmul.f32 0.5, %v8448
          %v8450 = vsub.f32 1.5, %v8449
          %v8451 = vmul.f32 %v8446, %v8450
          %vm8452 = vweird.f32 %v8376
          %vm8453 = vweird.f32 %v8446
          %vm8454 = vmor %vm8452, %vm8453
          %v8455 = vsel %vm8454, %v8446, %v8451
          %v8456 = vrsqrt.pop %v8377
          %v8457 = vmul.f32 %v8456, %v8377
          %v8458 = vmul.f32 %v8457, %v8456
          %v8459 = vmul.f32 0.5, %v8458
          %v8460 = vsub.f32 1.5, %v8459
          %v8461 = vmul.f32 %v8456, %v8460
          %vm8462 = vweird.f32 %v8377
          %vm8463 = vweird.f32 %v8456
          %vm8464 = vmor %vm8462, %vm8463
          %v8465 = vsel %vm8464, %v8456, %v8461
          %v8466 = vrsqrt.pop %v8378
          %v8467 = vmul.f32 %v8466, %v8378
          %v8468 = vmul.f32 %v8467, %v8466
          %v8469 = vmul.f32 0.5, %v8468
          %v8470 = vsub.f32 1.5, %v8469
          %v8471 = vmul.f32 %v8466, %v8470
          %vm8472 = vweird.f32 %v8378
          %vm8473 = vweird.f32 %v8466
          %vm8474 = vmor %vm8472, %vm8473
          %v8475 = vsel %vm8474, %v8466, %v8471
          %v8476 = vrsqrt.pop %v8379
          %v8477 = vmul.f32 %v8476, %v8379
          %v8478 = vmul.f32 %v8477, %v8476
          %v8479 = vmul.f32 0.5, %v8478
          %v8480 = vsub.f32 1.5, %v8479
          %v8481 = vmul.f32 %v8476, %v8480
          %vm8482 = vweird.f32 %v8379
          %vm8483 = vweird.f32 %v8476
          %vm8484 = vmor %vm8482, %vm8483
          %v8485 = vsel %vm8484, %v8476, %v8481
          %v8486 = vrsqrt.pop %v8380
          %v8487 = vmul.f32 %v8486, %v8380
          %v8488 = vmul.f32 %v8487, %v8486
          %v8489 = vmul.f32 0.5, %v8488
          %v8490 = vsub.f32 1.5, %v8489
          %v8491 = vmul.f32 %v8486, %v8490
          %vm8492 = vweird.f32 %v8380
          %vm8493 = vweird.f32 %v8486
          %vm8494 = vmor %vm8492, %vm8493
          %v8495 = vsel %vm8494, %v8486, %v8491
          %v8496 = vrsqrt.pop %v8381
          %v8497 = vmul.f32 %v8496, %v8381
          %v8498 = vmul.f32 %v8497, %v8496
          %v8499 = vmul.f32 0.5, %v8498
          %v8500 = vsub.f32 1.5, %v8499
          %v8501 = vmul.f32 %v8496, %v8500
          %vm8502 = vweird.f32 %v8381
          %vm8503 = vweird.f32 %v8496
          %vm8504 = vmor %vm8502, %vm8503
          %v8505 = vsel %vm8504, %v8496, %v8501
          %v8506 = vrsqrt.pop %v8382
          %v8507 = vmul.f32 %v8506, %v8382
          %v8508 = vmul.f32 %v8507, %v8506
          %v8509 = vmul.f32 0.5, %v8508
          %v8510 = vsub.f32 1.5, %v8509
          %v8511 = vmul.f32 %v8506, %v8510
          %vm8512 = vweird.f32 %v8382
          %vm8513 = vweird.f32 %v8506
          %vm8514 = vmor %vm8512, %vm8513
          %v8515 = vsel %vm8514, %v8506, %v8511
          %v8516 = vrsqrt.pop %v8383
          %v8517 = vmul.f32 %v8516, %v8383
          %v8518 = vmul.f32 %v8517, %v8516
          %v8519 = vmul.f32 0.5, %v8518
          %v8520 = vsub.f32 1.5, %v8519
          %v8521 = vmul.f32 %v8516, %v8520
          %vm8522 = vweird.f32 %v8383
          %vm8523 = vweird.f32 %v8516
          %vm8524 = vmor %vm8522, %vm8523
          %v8525 = vsel %vm8524, %v8516, %v8521
          %v8526 = vrsqrt.pop %v8384
          %v8527 = vmul.f32 %v8526, %v8384
          %v8528 = vmul.f32 %v8527, %v8526
          %v8529 = vmul.f32 0.5, %v8528
          %v8530 = vsub.f32 1.5, %v8529
          %v8531 = vmul.f32 %v8526, %v8530
          %vm8532 = vweird.f32 %v8384
          %vm8533 = vweird.f32 %v8526
          %vm8534 = vmor %vm8532, %vm8533
          %v8535 = vsel %vm8534, %v8526, %v8531
          %v8536 = vrsqrt.pop %v8385
          %v8537 = vmul.f32 %v8536, %v8385
          %v8538 = vmul.f32 %v8537, %v8536
          %v8539 = vmul.f32 0.5, %v8538
          %v8540 = vsub.f32 1.5, %v8539
          %v8541 = vmul.f32 %v8536, %v8540
          %vm8542 = vweird.f32 %v8385
          %vm8543 = vweird.f32 %v8536
          %vm8544 = vmor %vm8542, %vm8543
          %v8545 = vsel %vm8544, %v8536, %v8541
          %v8546 = vmul.f32 %v8290, %v8395
          %v8547 = vmul.f32 %v8291, %v8405
          %v8548 = vmul.f32 %v8292, %v8415
          %v8549 = vmul.f32 %v8293, %v8425
          %v8550 = vmul.f32 %v8294, %v8435
          %v8551 = vmul.f32 %v8295, %v8445
          %v8552 = vmul.f32 %v8296, %v8455
          %v8553 = vmul.f32 %v8297, %v8465
          %v8554 = vmul.f32 %v8298, %v8475
          %v8555 = vmul.f32 %v8299, %v8485
          %v8556 = vmul.f32 %v8300, %v8495
          %v8557 = vmul.f32 %v8301, %v8505
          %v8558 = vmul.f32 %v8302, %v8515
          %v8559 = vmul.f32 %v8303, %v8525
          %v8560 = vmul.f32 %v8304, %v8535
          %v8561 = vmul.f32 %v8305, %v8545
          %v8563 = vperm.slane %v8240, 0
          %v8565 = vmul.f32 %v8546, %v8563
          %v8566 = vmul.f32 %v8547, %v8563
          %v8567 = vmul.f32 %v8548, %v8563
          %v8568 = vmul.f32 %v8549, %v8563
          %v8569 = vmul.f32 %v8550, %v8563
          %v8570 = vmul.f32 %v8551, %v8563
          %v8571 = vmul.f32 %v8552, %v8563
          %v8572 = vmul.f32 %v8553, %v8563
          %v8573 = vmul.f32 %v8554, %v8563
          %v8574 = vmul.f32 %v8555, %v8563
          %v8575 = vmul.f32 %v8556, %v8563
          %v8576 = vmul.f32 %v8557, %v8563
          %v8577 = vmul.f32 %v8558, %v8563
          %v8578 = vmul.f32 %v8559, %v8563
          %v8579 = vmul.f32 %v8560, %v8563
          %v8580 = vmul.f32 %v8561, %v8563
          %v8582 = vperm.slane %v8241, 0
          %v8584 = vadd.f32 %v8565, %v8582
          %v8585 = vadd.f32 %v8566, %v8582
          %v8586 = vadd.f32 %v8567, %v8582
          %v8587 = vadd.f32 %v8568, %v8582
          %v8588 = vadd.f32 %v8569, %v8582
          %v8589 = vadd.f32 %v8570, %v8582
          %v8590 = vadd.f32 %v8571, %v8582
          %v8591 = vadd.f32 %v8572, %v8582
          %v8592 = vadd.f32 %v8573, %v8582
          %v8593 = vadd.f32 %v8574, %v8582
          %v8594 = vadd.f32 %v8575, %v8582
          %v8595 = vadd.f32 %v8576, %v8582
          %v8596 = vadd.f32 %v8577, %v8582
          %v8597 = vadd.f32 %v8578, %v8582
          %v8598 = vadd.f32 %v8579, %v8582
          %v8599 = vadd.f32 %v8580, %v8582
          %8600 = vst [vmem:[%s552] sm:$0xff] %v8584
          %8601 = vst [vmem:[%s552 + $0x8] sm:$0xff] %v8585
          %8602 = vst [vmem:[%s552 + $0x10] sm:$0xff] %v8586
          %8603 = vst [vmem:[%s552 + $0x18] sm:$0xff] %v8587
          %8604 = vst [vmem:[%s552 + $0x20] sm:$0xff] %v8588
          %8605 = vst [vmem:[%s552 + $0x28] sm:$0xff] %v8589
          %8606 = vst [vmem:[%s552 + $0x30] sm:$0xff] %v8590
          %8607 = vst [vmem:[%s552 + $0x38] sm:$0xff] %v8591
          %8608 = vst [vmem:[%s552 + $0x40] sm:$0xff] %v8592
          %8609 = vst [vmem:[%s552 + $0x48] sm:$0xff] %v8593
          %8610 = vst [vmem:[%s552 + $0x50] sm:$0xff] %v8594
          %8611 = vst [vmem:[%s552 + $0x58] sm:$0xff] %v8595
          %8612 = vst [vmem:[%s552 + $0x60] sm:$0xff] %v8596
          %8613 = vst [vmem:[%s552 + $0x68] sm:$0xff] %v8597
          %8614 = vst [vmem:[%s552 + $0x70] sm:$0xff] %v8598
          %8615 = vst [vmem:[%s552 + $0x78] sm:$0xff] %v8599
        $region88: #{tpu_custom_call.1} parent=55 // pred_fallthru
          _
        %s8616 = sand.u32 %s276, 1
        %s8617 = scalar_lea.sflag [#allocation4], %s8616
        %s8618 = sand.u32 %s276, 1
        %s8619 = smul.addr %s8618, 128
        %s8620 = scalar_lea.vmem [#allocation11], %s8619
        // Predicated region
        $region89: #{tpu_custom_call.1} parent=55 // pred_check
          %p8621 = pneg %p286
        $region90: #{tpu_custom_call.1} parent=55 // pred_check_branch
          %8623 = sbr.rel (%p8621) target = $region92
        $region91: #{tpu_custom_call.1} parent=55 // pred_region
          %8625 = vsyncadd %s8617, 0
          %s8626 = smul.addr %s36, 16
          %s8627 = smul.addr %s8626, 8
          %s8628 = scalar_lea.hbm %s9, %s8627
          %s8629 = sshll.u32 %s8620, 4
          %s8630 = int_to_ptr.vmem [resolvable:$true] %s8629
          %s8631 = sshll.u32 %s8628, 4
          %s8632 = int_to_ptr.hbm [resolvable:$true] %s8631
          %8637 = dma.vmem_to_hbm [thread:$0]  %s8630, 2048, %s8632, %s8617, 128, 128, 8
        $region92: #{tpu_custom_call.1} parent=55 // pred_fallthru
          _
      $region56: #{tpu_custom_call.1} parent=5 // pred_fallthru
        _
      %p8638 = scmp.le.s32.totalorder 2, %s27
      // Predicated region
      $region93: #{tpu_custom_call.1} parent=5 // pred_check
        %p8639 = pneg %p8638
      $region94: #{tpu_custom_call.1} parent=5 // pred_check_branch
        %8641 = sbr.rel (%p8639) target = $region96
      $region95: #{tpu_custom_call.1} parent=5 // pred_region
        %s8642 = ssub.s32 %s27, 2
        // Predicated region
        $region97: #{tpu_custom_call.1} parent=95 // pred_check
          %p8643 = pneg %p292
        $region98: #{tpu_custom_call.1} parent=95 // pred_check_branch
          %8645 = sbr.rel (%p8643) target = $region100
        $region99: #{tpu_custom_call.1} parent=95 // pred_region
          %s8646 = sand.u32 %s277, 1
          %s8647 = scalar_lea.sflag [#allocation4], %s8646
          %s8648 = sand.u32 %s277, 1
          %s8649 = smul.addr %s8648, 128
          %s8650 = scalar_lea.vmem [#allocation11], %s8649
          %8652 = dma.done %s8647, 2048
        $region100: #{tpu_custom_call.1} parent=95 // pred_fallthru
          _
      $region96: #{tpu_custom_call.1} parent=5 // pred_fallthru
        _
    $region6: #{tpu_custom_call.1} parent=1 // loop_footer
      %s31 = sadd.s32 1, %s27
    $region7: #{tpu_custom_call.1} parent=1 // loop_footer_branch
      %26 = sbr.rel target = $region3
    $region8: #{tpu_custom_call.1} parent=1 // loop_exit
      _
    %8653 = vsyncpa [#allocation3], 1
    %s8654 = scalar_lea.sflag [#allocation3], 1
    %8655 = vsyncpa %s8654, 1
    %8656 = vsyncpa [#allocation6], 1
    %s8657 = scalar_lea.sflag [#allocation6], 1
    %8658 = vsyncpa %s8657, 1
    %8659 = vsyncpa [#allocation9], 1
    %s8660 = scalar_lea.sflag [#allocation9], 1
    %8661 = vsyncpa %s8660, 1
    %8662 = vsyncpa [#allocation4], 1
    %s8663 = scalar_lea.sflag [#allocation4], 1
    %8664 = vsyncpa %s8663, 1

</llo_original>
